<compile_context>
chip_gen: v7x
topology: tpu7x:2x2x1
jax: 0.10.0
libtpu: 0.0.40
codegen_flags: <defaults>
</compile_context>

<pallas_src>
import functools

import jax
import jax.numpy as jnp
import numpy as np
from jax import lax
from jax.experimental import pallas as pl
from jax.experimental.pallas import tpu as pltpu

C_IN = 3     # conv1 in / conv2 out channels
C_MID = 12   # conv1 out / conv2 in channels
K1 = 3       # conv1 kernel size
PAD1 = 2     # conv1 padding (conv2's padding=1 is handled by the canvas algebra)

# 3x3 tap offsets of the centered conv, row-major.
TAPS = tuple((di, dj) for di in (-1, 0, 1) for dj in (-1, 0, 1))


def _fused_conv_kernel(xp_ref, w1_ref, b1_ref, w2_ref, b2_ref, o_ref,
                       xm, v2m, cols, mid, *, wp, marg):
    """One batch tile.

    xp_ref : (3, BP)   zero-padded x1, canvas-flattened, batch packed along lanes
    w1_ref : (12, 27)  conv1 weight, columns ordered (ki, kj, ci)
    b1_ref : (12, 1)   conv1 bias
    w2_ref : (3, 12)   conv2 weight
    b2_ref : (3, 1)    conv2 bias
    o_ref  : (3, BP)   relu(v4 * x1) embedded in the same canvas layout
    xm,v2m : (3, BP + 2*marg)  margin canvases (shift reads stay in bounds)
    cols   : (27, BP)  im2col buffer (reused by both 3x3 stages)
    mid    : (12, BP)  12-channel intermediate (v1, then v3)
    """
    bp = xp_ref.shape[-1]

    def zero_margins(buf):
        # Only the two tiny margin strips — never the whole buffer.
        buf[:, :marg] = jnp.zeros((C_IN, marg), jnp.float32)
        buf[:, marg + bp:2 * marg + bp] = jnp.zeros((C_IN, marg), jnp.float32)

    def im2col(src):
        # cols[3*t + ci, n] = src[ci, marg + n + di*wp + dj]  for tap t = (di, dj).
        # Static lane-shifted slices of a lane-dense buffer; one (3, BP) store per tap.
        for t, (di, dj) in enumerate(TAPS):
            s = marg + di * wp + dj
            cols[3 * t:3 * t + 3, :] = src[:, s:s + bp]

    zero_margins(xm)
    zero_margins(v2m)
    xm[:, marg:marg + bp] = xp_ref[...]

    # ---- v1 = conv1(x1): im2col + one MXU matmul (12,27)@(27,BP) ------------
    im2col(xm)
    mid[...] = (jnp.dot(w1_ref[...], cols[...], preferred_element_type=jnp.float32)
                + b1_ref[...])

    # ---- v2 = conv2(v1): 1x1 conv == (3,12)@(12,BP) on the MXU ---------------
    v2m[:, marg:marg + bp] = (
        jnp.dot(w2_ref[...], mid[...], preferred_element_type=jnp.float32)
        + b2_ref[...])

    # ---- v3 = conv1(v2) -------------------------------------------------------
    im2col(v2m)
    mid[...] = (jnp.dot(w1_ref[...], cols[...], preferred_element_type=jnp.float32)
                + b1_ref[...])

    # ---- v4 = conv2(v3); v5 = v4 * x1 (x1 is canvas-embedded, zero ring); relu
    v4 = (jnp.dot(w2_ref[...], mid[...], preferred_element_type=jnp.float32)
          + b2_ref[...])
    o_ref[...] = jnp.maximum(v4 * xp_ref[...], 0.0)


def model_forward(x1, params, *, batch_tile=2):
    w1, b1, w2, b2 = params
    n, c, h, w = x1.shape
    assert c == C_IN

    bt = batch_tile if (n % batch_tile == 0) else 1
    hp, wp = h + 2 * PAD1, w + 2 * PAD1          # padded canvas (36x36 for 32x32)
    pc = hp * wp                                 # flat canvas length per image
    slot = ((pc + 127) // 128) * 128             # per-image lane slot, 128-aligned
    bp = bt * slot                               # lanes per grid step
    marg = 128                                   # shift margin (>= wp + 1)
    assert marg >= wp + 1

    # --- pack: (n,3,h,w) -> pad by 2 -> flatten spatial -> pad to `slot`
    #     -> channel-major with batch folded into the lane dim: (3, n*slot)
    xpad = jnp.pad(x1.astype(jnp.float32),
                   ((0, 0), (0, 0), (PAD1, PAD1), (PAD1, PAD1)))
    xflat = xpad.reshape(n, C_IN, pc)
    xflat = jnp.pad(xflat, ((0, 0), (0, 0), (0, slot - pc)))
    xpk = jnp.transpose(xflat, (1, 0, 2)).reshape(C_IN, n * slot)

    # --- weights as small VMEM matrices for the MXU
    # w1mat columns ordered (ki, kj, ci) to match the im2col row order.
    w1mat = jnp.transpose(w1.astype(jnp.float32), (0, 2, 3, 1)).reshape(C_MID, C_IN * K1 * K1)
    w2mat = w2.astype(jnp.float32).reshape(C_IN, C_MID)
    b1c = b1.astype(jnp.float32).reshape(C_MID, 1)
    b2c = b2.astype(jnp.float32).reshape(C_IN, 1)

    kernel = functools.partial(_fused_conv_kernel, wp=wp, marg=marg)

    flops = 2 * n * slot * 2 * (C_MID * C_IN * K1 * K1 + C_IN * C_MID)
    bytes_accessed = 4 * (2 * xpk.size + xpk.size  # in + out + reread for multiply
                          + w1mat.size + w2mat.size + b1c.size + b2c.size)

    out_pk = pl.pallas_call(
        kernel,
        out_shape=jax.ShapeDtypeStruct((C_IN, n * slot), jnp.float32),
        grid=(n // bt,),
        in_specs=[
            pl.BlockSpec((C_IN, bp), lambda i: (0, i)),                   # packed x1
            pl.BlockSpec((C_MID, C_IN * K1 * K1), lambda i: (0, 0)),      # w1 (12,27)
            pl.BlockSpec((C_MID, 1), lambda i: (0, 0)),                   # b1
            pl.BlockSpec((C_IN, C_MID), lambda i: (0, 0)),                # w2 (3,12)
            pl.BlockSpec((C_IN, 1), lambda i: (0, 0)),                    # b2
        ],
        out_specs=pl.BlockSpec((C_IN, bp), lambda i: (0, i)),
        scratch_shapes=[
            pltpu.VMEM((C_IN, bp + 2 * marg), jnp.float32),               # xm
            pltpu.VMEM((C_IN, bp + 2 * marg), jnp.float32),               # v2m
            pltpu.VMEM((C_IN * K1 * K1, bp), jnp.float32),                # cols
            pltpu.VMEM((C_MID, bp), jnp.float32),                         # mid (v1/v3)
        ],
        compiler_params=pltpu.CompilerParams(
            dimension_semantics=("parallel",)),
        cost_estimate=pl.CostEstimate(
            flops=flops, transcendentals=0, bytes_accessed=bytes_accessed),
    )(xpk, w1mat, b1c, w2mat, b2c)

    # --- unpack: (3, n*slot) -> (n, 3, hp, wp) -> centre crop back to (n, 3, h, w)
    out = out_pk.reshape(C_IN, n, slot)[:, :, :pc].reshape(C_IN, n, hp, wp)
    out = jnp.transpose(out, (1, 0, 2, 3))[:, :, PAD1:PAD1 + h, PAD1:PAD1 + w]
    return out


# ---------------------------------------------------------------------------
# Pure-JAX reference (for correctness check).
# ---------------------------------------------------------------------------
def _conv_ref(x, w, b, pad):
    out = lax.conv_general_dilated(
        x, w, window_strides=(1, 1), padding=[(pad, pad), (pad, pad)],
        dimension_numbers=("NCHW", "OIHW", "NCHW"),
        precision=lax.Precision.HIGHEST)
    return out + b[None, :, None, None]


def model_ref(x1, params):
    w1, b1, w2, b2 = params
    v1 = _conv_ref(x1, w1, b1, 2)
    v2 = _conv_ref(v1, w2, b2, 1)
    v3 = _conv_ref(v2, w1, b1, 2)
    v4 = _conv_ref(v3, w2, b2, 1)
    h, w = x1.shape[2], x1.shape[3]
    v4c = v4[:, :, 4:4 + h, 4:4 + w]
    return jnp.maximum(v4c * x1, 0.0)


if __name__ == "__main__":
    key = jax.random.PRNGKey(0)
    k1, k2, k3, k4, kx = jax.random.split(key, 5)

    # Deterministic synthetic parameters (shapes from the module's __init__,
    # with conv2 in_channels fixed to 12).
    w1 = jax.random.normal(k1, (12, 3, 3, 3), jnp.float32) * 0.1   # conv1 weight
    b1 = jax.random.normal(k2, (12,), jnp.float32) * 0.1           # conv1 bias
    w2 = jax.random.normal(k3, (3, 12, 1, 1), jnp.float32) * 0.1   # conv2 weight
    b2 = jax.random.normal(k4, (3,), jnp.float32) * 0.1            # conv2 bias
    params = (w1, b1, w2, b2)

    # batch=4 so grid=(2,) with batch_tile=2 (both v7x TensorCores get a step).
    x1 = jax.random.normal(kx, (4, 3, 32, 32), jnp.float32)

    fwd = jax.jit(model_forward, static_argnames=("batch_tile",))
    out = jax.block_until_ready(fwd(x1, params, batch_tile=2))
    ref = jax.block_until_ready(model_ref(x1, params))

    # Tolerance leaves headroom for the MXU f32-matmul pass decomposition vs the
    # VALU-exact reference; observed error is far smaller.
    np.testing.assert_allclose(np.asarray(out), np.asarray(ref),
                               rtol=1e-3, atol=1e-3)

    print("KERNEL_OK")
</pallas_src>

<mosaic_0001>
module attributes {stable_mosaic.version = 11 : i64} {
  func.func @_fused_conv_kernel(%arg0: i32, %arg1: memref<3x2816xf32, #tpu.memory_space<vmem>>, %arg2: memref<12x27xf32, #tpu.memory_space<vmem>>, %arg3: memref<12x1xf32, #tpu.memory_space<vmem>>, %arg4: memref<3x12xf32, #tpu.memory_space<vmem>>, %arg5: memref<3x1xf32, #tpu.memory_space<vmem>>, %arg6: memref<3x2816xf32, #tpu.memory_space<vmem>>, %arg7: memref<3x3072xf32, #tpu.memory_space<vmem>>, %arg8: memref<3x3072xf32, #tpu.memory_space<vmem>>, %arg9: memref<27x2816xf32, #tpu.memory_space<vmem>>, %arg10: memref<12x2816xf32, #tpu.memory_space<vmem>>) attributes {dimension_semantics = [#tpu.dimension_semantics<parallel>], iteration_bounds = array<i64: 2>, scalar_prefetch = 0 : i64, scratch_operands = 4 : i64, tpu.core_type = #tpu.core_type<tc>, window_params = [{transform_indices = @transform_0, window_bounds = array<i64: 3, 2816>}, {pipeline_mode = #tpu.pipeline_mode<synchronous>, transform_indices = @transform_1, window_bounds = array<i64: 12, 27>}, {pipeline_mode = #tpu.pipeline_mode<synchronous>, transform_indices = @transform_2, window_bounds = array<i64: 12, 1>}, {pipeline_mode = #tpu.pipeline_mode<synchronous>, transform_indices = @transform_3, window_bounds = array<i64: 3, 12>}, {pipeline_mode = #tpu.pipeline_mode<synchronous>, transform_indices = @transform_4, window_bounds = array<i64: 3, 1>}, {transform_indices = @transform_5, window_bounds = array<i64: 3, 2816>}]} {
    %cst = arith.constant 0.000000e+00 : f32
    %0 = vector.broadcast %cst : f32 to vector<3x128xf32>
    %c0 = arith.constant 0 : index
    %c0_0 = arith.constant 0 : index
    %1 = vector.load %arg7[%c0, %c0_0] : memref<3x3072xf32, #tpu.memory_space<vmem>>, vector<3x128xf32>
    tpu.vector_store %arg7[%c0, %c0_0], %0 {strides = array<i32>} : memref<3x3072xf32, #tpu.memory_space<vmem>>, vector<3x128xf32>,
    %cst_1 = arith.constant 0.000000e+00 : f32
    %2 = vector.broadcast %cst_1 : f32 to vector<3x128xf32>
    %c0_2 = arith.constant 0 : index
    %c2944 = arith.constant 2944 : index
    %3 = vector.load %arg7[%c0_2, %c2944] : memref<3x3072xf32, #tpu.memory_space<vmem>>, vector<3x128xf32>
    tpu.vector_store %arg7[%c0_2, %c2944], %2 {strides = array<i32>} : memref<3x3072xf32, #tpu.memory_space<vmem>>, vector<3x128xf32>,
    %cst_3 = arith.constant 0.000000e+00 : f32
    %4 = vector.broadcast %cst_3 : f32 to vector<3x128xf32>
    %c0_4 = arith.constant 0 : index
    %c0_5 = arith.constant 0 : index
    %5 = vector.load %arg8[%c0_4, %c0_5] : memref<3x3072xf32, #tpu.memory_space<vmem>>, vector<3x128xf32>
    tpu.vector_store %arg8[%c0_4, %c0_5], %4 {strides = array<i32>} : memref<3x3072xf32, #tpu.memory_space<vmem>>, vector<3x128xf32>,
    %cst_6 = arith.constant 0.000000e+00 : f32
    %6 = vector.broadcast %cst_6 : f32 to vector<3x128xf32>
    %c0_7 = arith.constant 0 : index
    %c2944_8 = arith.constant 2944 : index
    %7 = vector.load %arg8[%c0_7, %c2944_8] : memref<3x3072xf32, #tpu.memory_space<vmem>>, vector<3x128xf32>
    tpu.vector_store %arg8[%c0_7, %c2944_8], %6 {strides = array<i32>} : memref<3x3072xf32, #tpu.memory_space<vmem>>, vector<3x128xf32>,
    %c0_9 = arith.constant 0 : index
    %c0_10 = arith.constant 0 : index
    %8 = vector.load %arg1[%c0_9, %c0_10] : memref<3x2816xf32, #tpu.memory_space<vmem>>, vector<3x2816xf32>
    %c0_11 = arith.constant 0 : index
    %c128 = arith.constant 128 : index
    %9 = vector.load %arg7[%c0_11, %c128] : memref<3x3072xf32, #tpu.memory_space<vmem>>, vector<3x2816xf32>
    tpu.vector_store %arg7[%c0_11, %c128], %8 {strides = array<i32>} : memref<3x3072xf32, #tpu.memory_space<vmem>>, vector<3x2816xf32>,
    %c0_12 = arith.constant 0 : index
    %c91 = arith.constant 91 : index
    %10 = vector.load %arg7[%c0_12, %c91] : memref<3x3072xf32, #tpu.memory_space<vmem>>, vector<3x2816xf32>
    %c0_13 = arith.constant 0 : index
    %c0_14 = arith.constant 0 : index
    %11 = vector.load %arg9[%c0_13, %c0_14] : memref<27x2816xf32, #tpu.memory_space<vmem>>, vector<3x2816xf32>
    tpu.vector_store %arg9[%c0_13, %c0_14], %10 {strides = array<i32>} : memref<27x2816xf32, #tpu.memory_space<vmem>>, vector<3x2816xf32>,
    %c0_15 = arith.constant 0 : index
    %c92 = arith.constant 92 : index
    %12 = vector.load %arg7[%c0_15, %c92] : memref<3x3072xf32, #tpu.memory_space<vmem>>, vector<3x2816xf32>
    %c3 = arith.constant 3 : index
    %c0_16 = arith.constant 0 : index
    %13 = vector.load %arg9[%c3, %c0_16] : memref<27x2816xf32, #tpu.memory_space<vmem>>, vector<3x2816xf32>
    tpu.vector_store %arg9[%c3, %c0_16], %12 {strides = array<i32>} : memref<27x2816xf32, #tpu.memory_space<vmem>>, vector<3x2816xf32>,
    %c0_17 = arith.constant 0 : index
    %c93 = arith.constant 93 : index
    %14 = vector.load %arg7[%c0_17, %c93] : memref<3x3072xf32, #tpu.memory_space<vmem>>, vector<3x2816xf32>
    %c6 = arith.constant 6 : index
    %c0_18 = arith.constant 0 : index
    %15 = vector.load %arg9[%c6, %c0_18] : memref<27x2816xf32, #tpu.memory_space<vmem>>, vector<3x2816xf32>
    tpu.vector_store %arg9[%c6, %c0_18], %14 {strides = array<i32>} : memref<27x2816xf32, #tpu.memory_space<vmem>>, vector<3x2816xf32>,
    %c0_19 = arith.constant 0 : index
    %c127 = arith.constant 127 : index
    %16 = vector.load %arg7[%c0_19, %c127] : memref<3x3072xf32, #tpu.memory_space<vmem>>, vector<3x2816xf32>
    %c9 = arith.constant 9 : index
    %c0_20 = arith.constant 0 : index
    %17 = vector.load %arg9[%c9, %c0_20] : memref<27x2816xf32, #tpu.memory_space<vmem>>, vector<3x2816xf32>
    tpu.vector_store %arg9[%c9, %c0_20], %16 {strides = array<i32>} : memref<27x2816xf32, #tpu.memory_space<vmem>>, vector<3x2816xf32>,
    %c0_21 = arith.constant 0 : index
    %c128_22 = arith.constant 128 : index
    %18 = vector.load %arg7[%c0_21, %c128_22] : memref<3x3072xf32, #tpu.memory_space<vmem>>, vector<3x2816xf32>
    %c12 = arith.constant 12 : index
    %c0_23 = arith.constant 0 : index
    %19 = vector.load %arg9[%c12, %c0_23] : memref<27x2816xf32, #tpu.memory_space<vmem>>, vector<3x2816xf32>
    tpu.vector_store %arg9[%c12, %c0_23], %18 {strides = array<i32>} : memref<27x2816xf32, #tpu.memory_space<vmem>>, vector<3x2816xf32>,
    %c0_24 = arith.constant 0 : index
    %c129 = arith.constant 129 : index
    %20 = vector.load %arg7[%c0_24, %c129] : memref<3x3072xf32, #tpu.memory_space<vmem>>, vector<3x2816xf32>
    %c15 = arith.constant 15 : index
    %c0_25 = arith.constant 0 : index
    %21 = vector.load %arg9[%c15, %c0_25] : memref<27x2816xf32, #tpu.memory_space<vmem>>, vector<3x2816xf32>
    tpu.vector_store %arg9[%c15, %c0_25], %20 {strides = array<i32>} : memref<27x2816xf32, #tpu.memory_space<vmem>>, vector<3x2816xf32>,
    %c0_26 = arith.constant 0 : index
    %c163 = arith.constant 163 : index
    %22 = vector.load %arg7[%c0_26, %c163] : memref<3x3072xf32, #tpu.memory_space<vmem>>, vector<3x2816xf32>
    %c18 = arith.constant 18 : index
    %c0_27 = arith.constant 0 : index
    %23 = vector.load %arg9[%c18, %c0_27] : memref<27x2816xf32, #tpu.memory_space<vmem>>, vector<3x2816xf32>
    tpu.vector_store %arg9[%c18, %c0_27], %22 {strides = array<i32>} : memref<27x2816xf32, #tpu.memory_space<vmem>>, vector<3x2816xf32>,
    %c0_28 = arith.constant 0 : index
    %c164 = arith.constant 164 : index
    %24 = vector.load %arg7[%c0_28, %c164] : memref<3x3072xf32, #tpu.memory_space<vmem>>, vector<3x2816xf32>
    %c21 = arith.constant 21 : index
    %c0_29 = arith.constant 0 : index
    %25 = vector.load %arg9[%c21, %c0_29] : memref<27x2816xf32, #tpu.memory_space<vmem>>, vector<3x2816xf32>
    tpu.vector_store %arg9[%c21, %c0_29], %24 {strides = array<i32>} : memref<27x2816xf32, #tpu.memory_space<vmem>>, vector<3x2816xf32>,
    %c0_30 = arith.constant 0 : index
    %c165 = arith.constant 165 : index
    %26 = vector.load %arg7[%c0_30, %c165] : memref<3x3072xf32, #tpu.memory_space<vmem>>, vector<3x2816xf32>
    %c24 = arith.constant 24 : index
    %c0_31 = arith.constant 0 : index
    %27 = vector.load %arg9[%c24, %c0_31] : memref<27x2816xf32, #tpu.memory_space<vmem>>, vector<3x2816xf32>
    tpu.vector_store %arg9[%c24, %c0_31], %26 {strides = array<i32>} : memref<27x2816xf32, #tpu.memory_space<vmem>>, vector<3x2816xf32>,
    %c0_32 = arith.constant 0 : index
    %c0_33 = arith.constant 0 : index
    %28 = vector.load %arg2[%c0_32, %c0_33] : memref<12x27xf32, #tpu.memory_space<vmem>>, vector<12x27xf32>
    %c0_34 = arith.constant 0 : index
    %c0_35 = arith.constant 0 : index
    %29 = vector.load %arg9[%c0_34, %c0_35] : memref<27x2816xf32, #tpu.memory_space<vmem>>, vector<27x2816xf32>
    %cst_36 = arith.constant dense<0.000000e+00> : vector<12x2816xf32>
    %30 = tpu.matmul %28, %29, %cst_36 {dimension_numbers = #tpu.dot_dimension_numbers<[1], [0], [0], [1], [0, 0, 1, 1], [], []>} : vector<12x27xf32>, vector<27x2816xf32>, vector<12x2816xf32> -> vector<12x2816xf32>
    %c0_37 = arith.constant 0 : index
    %c0_38 = arith.constant 0 : index
    %31 = vector.load %arg3[%c0_37, %c0_38] : memref<12x1xf32, #tpu.memory_space<vmem>>, vector<12x1xf32>
    %32 = vector.broadcast %31 : vector<12x1xf32> to vector<12x2816xf32>
    %33 = arith.addf %30, %32 : vector<12x2816xf32>
    %c0_39 = arith.constant 0 : index
    %c0_40 = arith.constant 0 : index
    %34 = vector.load %arg10[%c0_39, %c0_40] : memref<12x2816xf32, #tpu.memory_space<vmem>>, vector<12x2816xf32>
    tpu.vector_store %arg10[%c0_39, %c0_40], %33 {strides = array<i32>} : memref<12x2816xf32, #tpu.memory_space<vmem>>, vector<12x2816xf32>,
    %c0_41 = arith.constant 0 : index
    %c0_42 = arith.constant 0 : index
    %35 = vector.load %arg4[%c0_41, %c0_42] : memref<3x12xf32, #tpu.memory_space<vmem>>, vector<3x12xf32>
    %c0_43 = arith.constant 0 : index
    %c0_44 = arith.constant 0 : index
    %36 = vector.load %arg10[%c0_43, %c0_44] : memref<12x2816xf32, #tpu.memory_space<vmem>>, vector<12x2816xf32>
    %cst_45 = arith.constant dense<0.000000e+00> : vector<3x2816xf32>
    %37 = tpu.matmul %35, %36, %cst_45 {dimension_numbers = #tpu.dot_dimension_numbers<[1], [0], [0], [1], [0, 0, 1, 1], [], []>} : vector<3x12xf32>, vector<12x2816xf32>, vector<3x2816xf32> -> vector<3x2816xf32>
    %c0_46 = arith.constant 0 : index
    %c0_47 = arith.constant 0 : index
    %38 = vector.load %arg5[%c0_46, %c0_47] : memref<3x1xf32, #tpu.memory_space<vmem>>, vector<3x1xf32>
    %39 = vector.broadcast %38 : vector<3x1xf32> to vector<3x2816xf32>
    %40 = arith.addf %37, %39 : vector<3x2816xf32>
    %c0_48 = arith.constant 0 : index
    %c128_49 = arith.constant 128 : index
    %41 = vector.load %arg8[%c0_48, %c128_49] : memref<3x3072xf32, #tpu.memory_space<vmem>>, vector<3x2816xf32>
    tpu.vector_store %arg8[%c0_48, %c128_49], %40 {strides = array<i32>} : memref<3x3072xf32, #tpu.memory_space<vmem>>, vector<3x2816xf32>,
    %c0_50 = arith.constant 0 : index
    %c91_51 = arith.constant 91 : index
    %42 = vector.load %arg8[%c0_50, %c91_51] : memref<3x3072xf32, #tpu.memory_space<vmem>>, vector<3x2816xf32>
    %c0_52 = arith.constant 0 : index
    %c0_53 = arith.constant 0 : index
    %43 = vector.load %arg9[%c0_52, %c0_53] : memref<27x2816xf32, #tpu.memory_space<vmem>>, vector<3x2816xf32>
    tpu.vector_store %arg9[%c0_52, %c0_53], %42 {strides = array<i32>} : memref<27x2816xf32, #tpu.memory_space<vmem>>, vector<3x2816xf32>,
    %c0_54 = arith.constant 0 : index
    %c92_55 = arith.constant 92 : index
    %44 = vector.load %arg8[%c0_54, %c92_55] : memref<3x3072xf32, #tpu.memory_space<vmem>>, vector<3x2816xf32>
    %c3_56 = arith.constant 3 : index
    %c0_57 = arith.constant 0 : index
    %45 = vector.load %arg9[%c3_56, %c0_57] : memref<27x2816xf32, #tpu.memory_space<vmem>>, vector<3x2816xf32>
    tpu.vector_store %arg9[%c3_56, %c0_57], %44 {strides = array<i32>} : memref<27x2816xf32, #tpu.memory_space<vmem>>, vector<3x2816xf32>,
    %c0_58 = arith.constant 0 : index
    %c93_59 = arith.constant 93 : index
    %46 = vector.load %arg8[%c0_58, %c93_59] : memref<3x3072xf32, #tpu.memory_space<vmem>>, vector<3x2816xf32>
    %c6_60 = arith.constant 6 : index
    %c0_61 = arith.constant 0 : index
    %47 = vector.load %arg9[%c6_60, %c0_61] : memref<27x2816xf32, #tpu.memory_space<vmem>>, vector<3x2816xf32>
    tpu.vector_store %arg9[%c6_60, %c0_61], %46 {strides = array<i32>} : memref<27x2816xf32, #tpu.memory_space<vmem>>, vector<3x2816xf32>,
    %c0_62 = arith.constant 0 : index
    %c127_63 = arith.constant 127 : index
    %48 = vector.load %arg8[%c0_62, %c127_63] : memref<3x3072xf32, #tpu.memory_space<vmem>>, vector<3x2816xf32>
    %c9_64 = arith.constant 9 : index
    %c0_65 = arith.constant 0 : index
    %49 = vector.load %arg9[%c9_64, %c0_65] : memref<27x2816xf32, #tpu.memory_space<vmem>>, vector<3x2816xf32>
    tpu.vector_store %arg9[%c9_64, %c0_65], %48 {strides = array<i32>} : memref<27x2816xf32, #tpu.memory_space<vmem>>, vector<3x2816xf32>,
    %c0_66 = arith.constant 0 : index
    %c128_67 = arith.constant 128 : index
    %50 = vector.load %arg8[%c0_66, %c128_67] : memref<3x3072xf32, #tpu.memory_space<vmem>>, vector<3x2816xf32>
    %c12_68 = arith.constant 12 : index
    %c0_69 = arith.constant 0 : index
    %51 = vector.load %arg9[%c12_68, %c0_69] : memref<27x2816xf32, #tpu.memory_space<vmem>>, vector<3x2816xf32>
    tpu.vector_store %arg9[%c12_68, %c0_69], %50 {strides = array<i32>} : memref<27x2816xf32, #tpu.memory_space<vmem>>, vector<3x2816xf32>,
    %c0_70 = arith.constant 0 : index
    %c129_71 = arith.constant 129 : index
    %52 = vector.load %arg8[%c0_70, %c129_71] : memref<3x3072xf32, #tpu.memory_space<vmem>>, vector<3x2816xf32>
    %c15_72 = arith.constant 15 : index
    %c0_73 = arith.constant 0 : index
    %53 = vector.load %arg9[%c15_72, %c0_73] : memref<27x2816xf32, #tpu.memory_space<vmem>>, vector<3x2816xf32>
    tpu.vector_store %arg9[%c15_72, %c0_73], %52 {strides = array<i32>} : memref<27x2816xf32, #tpu.memory_space<vmem>>, vector<3x2816xf32>,
    %c0_74 = arith.constant 0 : index
    %c163_75 = arith.constant 163 : index
    %54 = vector.load %arg8[%c0_74, %c163_75] : memref<3x3072xf32, #tpu.memory_space<vmem>>, vector<3x2816xf32>
    %c18_76 = arith.constant 18 : index
    %c0_77 = arith.constant 0 : index
    %55 = vector.load %arg9[%c18_76, %c0_77] : memref<27x2816xf32, #tpu.memory_space<vmem>>, vector<3x2816xf32>
    tpu.vector_store %arg9[%c18_76, %c0_77], %54 {strides = array<i32>} : memref<27x2816xf32, #tpu.memory_space<vmem>>, vector<3x2816xf32>,
    %c0_78 = arith.constant 0 : index
    %c164_79 = arith.constant 164 : index
    %56 = vector.load %arg8[%c0_78, %c164_79] : memref<3x3072xf32, #tpu.memory_space<vmem>>, vector<3x2816xf32>
    %c21_80 = arith.constant 21 : index
    %c0_81 = arith.constant 0 : index
    %57 = vector.load %arg9[%c21_80, %c0_81] : memref<27x2816xf32, #tpu.memory_space<vmem>>, vector<3x2816xf32>
    tpu.vector_store %arg9[%c21_80, %c0_81], %56 {strides = array<i32>} : memref<27x2816xf32, #tpu.memory_space<vmem>>, vector<3x2816xf32>,
    %c0_82 = arith.constant 0 : index
    %c165_83 = arith.constant 165 : index
    %58 = vector.load %arg8[%c0_82, %c165_83] : memref<3x3072xf32, #tpu.memory_space<vmem>>, vector<3x2816xf32>
    %c24_84 = arith.constant 24 : index
    %c0_85 = arith.constant 0 : index
    %59 = vector.load %arg9[%c24_84, %c0_85] : memref<27x2816xf32, #tpu.memory_space<vmem>>, vector<3x2816xf32>
    tpu.vector_store %arg9[%c24_84, %c0_85], %58 {strides = array<i32>} : memref<27x2816xf32, #tpu.memory_space<vmem>>, vector<3x2816xf32>,
    %c0_86 = arith.constant 0 : index
    %c0_87 = arith.constant 0 : index
    %60 = vector.load %arg2[%c0_86, %c0_87] : memref<12x27xf32, #tpu.memory_space<vmem>>, vector<12x27xf32>
    %c0_88 = arith.constant 0 : index
    %c0_89 = arith.constant 0 : index
    %61 = vector.load %arg9[%c0_88, %c0_89] : memref<27x2816xf32, #tpu.memory_space<vmem>>, vector<27x2816xf32>
    %cst_90 = arith.constant dense<0.000000e+00> : vector<12x2816xf32>
    %62 = tpu.matmul %60, %61, %cst_90 {dimension_numbers = #tpu.dot_dimension_numbers<[1], [0], [0], [1], [0, 0, 1, 1], [], []>} : vector<12x27xf32>, vector<27x2816xf32>, vector<12x2816xf32> -> vector<12x2816xf32>
    %c0_91 = arith.constant 0 : index
    %c0_92 = arith.constant 0 : index
    %63 = vector.load %arg3[%c0_91, %c0_92] : memref<12x1xf32, #tpu.memory_space<vmem>>, vector<12x1xf32>
    %64 = vector.broadcast %63 : vector<12x1xf32> to vector<12x2816xf32>
    %65 = arith.addf %62, %64 : vector<12x2816xf32>
    %c0_93 = arith.constant 0 : index
    %c0_94 = arith.constant 0 : index
    %66 = vector.load %arg10[%c0_93, %c0_94] : memref<12x2816xf32, #tpu.memory_space<vmem>>, vector<12x2816xf32>
    tpu.vector_store %arg10[%c0_93, %c0_94], %65 {strides = array<i32>} : memref<12x2816xf32, #tpu.memory_space<vmem>>, vector<12x2816xf32>,
    %c0_95 = arith.constant 0 : index
    %c0_96 = arith.constant 0 : index
    %67 = vector.load %arg4[%c0_95, %c0_96] : memref<3x12xf32, #tpu.memory_space<vmem>>, vector<3x12xf32>
    %c0_97 = arith.constant 0 : index
    %c0_98 = arith.constant 0 : index
    %68 = vector.load %arg10[%c0_97, %c0_98] : memref<12x2816xf32, #tpu.memory_space<vmem>>, vector<12x2816xf32>
    %cst_99 = arith.constant dense<0.000000e+00> : vector<3x2816xf32>
    %69 = tpu.matmul %67, %68, %cst_99 {dimension_numbers = #tpu.dot_dimension_numbers<[1], [0], [0], [1], [0, 0, 1, 1], [], []>} : vector<3x12xf32>, vector<12x2816xf32>, vector<3x2816xf32> -> vector<3x2816xf32>
    %c0_100 = arith.constant 0 : index
    %c0_101 = arith.constant 0 : index
    %70 = vector.load %arg5[%c0_100, %c0_101] : memref<3x1xf32, #tpu.memory_space<vmem>>, vector<3x1xf32>
    %71 = vector.broadcast %70 : vector<3x1xf32> to vector<3x2816xf32>
    %72 = arith.addf %69, %71 : vector<3x2816xf32>
    %c0_102 = arith.constant 0 : index
    %c0_103 = arith.constant 0 : index
    %73 = vector.load %arg1[%c0_102, %c0_103] : memref<3x2816xf32, #tpu.memory_space<vmem>>, vector<3x2816xf32>
    %74 = arith.mulf %72, %73 : vector<3x2816xf32>
    %cst_104 = arith.constant 0.000000e+00 : f32
    %75 = vector.broadcast %cst_104 : f32 to vector<3x2816xf32>
    %76 = arith.maximumf %74, %75 : vector<3x2816xf32>
    %c0_105 = arith.constant 0 : index
    %c0_106 = arith.constant 0 : index
    %77 = vector.load %arg6[%c0_105, %c0_106] : memref<3x2816xf32, #tpu.memory_space<vmem>>, vector<3x2816xf32>
    tpu.vector_store %arg6[%c0_105, %c0_106], %76 {strides = array<i32>} : memref<3x2816xf32, #tpu.memory_space<vmem>>, vector<3x2816xf32>,
    return
  }
  func.func @transform_0(%arg0: i32) -> (i32, i32) {
    %c0_i32 = arith.constant 0 : i32
    %c0_i32_0 = arith.constant 0 : i32
    return %c0_i32, %arg0 : i32, i32
  }
  func.func @transform_1(%arg0: i32) -> (i32, i32) {
    %c0_i32 = arith.constant 0 : i32
    %c0_i32_0 = arith.constant 0 : i32
    %c0_i32_1 = arith.constant 0 : i32
    return %c0_i32, %c0_i32_0 : i32, i32
  }
  func.func @transform_2(%arg0: i32) -> (i32, i32) {
    %c0_i32 = arith.constant 0 : i32
    %c0_i32_0 = arith.constant 0 : i32
    %c0_i32_1 = arith.constant 0 : i32
    return %c0_i32, %c0_i32_0 : i32, i32
  }
  func.func @transform_3(%arg0: i32) -> (i32, i32) {
    %c0_i32 = arith.constant 0 : i32
    %c0_i32_0 = arith.constant 0 : i32
    %c0_i32_1 = arith.constant 0 : i32
    return %c0_i32, %c0_i32_0 : i32, i32
  }
  func.func @transform_4(%arg0: i32) -> (i32, i32) {
    %c0_i32 = arith.constant 0 : i32
    %c0_i32_0 = arith.constant 0 : i32
    %c0_i32_1 = arith.constant 0 : i32
    return %c0_i32, %c0_i32_0 : i32, i32
  }
  func.func @transform_5(%arg0: i32) -> (i32, i32) {
    %c0_i32 = arith.constant 0 : i32
    %c0_i32_0 = arith.constant 0 : i32
    return %c0_i32, %arg0 : i32, i32
  }
}

</mosaic_0001>

<llo_original>
// kernel: model_forward.1
$region0: #{model_forward.1}
  #allocation0 [shape = 'u32[]', space=smem, size = 0x4, offset = 0x4, fixed_abs, tag = 'smem constant byte address 0x4 - core index']
  #allocation1 [shape = 'u32[144,128]{1,0:T(1,128)}', space=vmem, size = 0x12000, scoped, tag = 'internal scratch']
  #allocation2 [shape = 'f32[3,3072]{1,0:T(4,128)}', space=vmem, size = 0xc000, scoped, tag = 'scratch operand']
  #allocation3 [shape = 'f32[3,3072]{1,0:T(4,128)}', space=vmem, size = 0xc000, scoped, tag = 'scratch operand']
  #allocation4 [shape = 'f32[27,2816]{1,0:T(8,128)}', space=vmem, size = 0x58000, scoped, tag = 'scratch operand']
  #allocation5 [shape = 'f32[12,2816]{1,0:T(8,128)}', space=vmem, size = 0x2c000, scoped, tag = 'scratch operand']
  %s0 = inlined_call_operand.vmem [shape: f32[3,5632], index: 0, kind: input, shape index: {}]
  %s1 = inlined_call_operand.vmem [shape: f32[12,27], index: 1, kind: input, shape index: {}]
  %s2 = inlined_call_operand.vmem [shape: f32[12,1], index: 2, kind: input, shape index: {}]
  %s3 = inlined_call_operand.vmem [shape: f32[3,12], index: 3, kind: input, shape index: {}]
  %s4 = inlined_call_operand.vmem [shape: f32[3,1], index: 4, kind: input, shape index: {}]
  %s5 = inlined_call_operand.vmem [shape: f32[3,5632], index: 5, kind: output, shape index: {}]
  %s6 = sld [smem:[#allocation0]]
  $region53: #{model_forward.1} parent=0
    _
  %s8 = ssub.s32 1, %s6
  %s9 = scalar_select 0, %s8, %s6
  loop: start=0, step=1, limit=4
  $region2: #{model_forward.1} parent=0 // loop_pre_header
    _
  $region3: #{model_forward.1} parent=0 // loop_header
    %s11 = sphi 0, %s15
    %p12 = scmp.ge.s32.totalorder %s11, 4
    %s21 = sphi 0, %s23
    %s24 = sphi 0, %s21
    %s25 = sphi 0, %s24
    %s41 = sphi 0, %s25
    %s45 = sphi 0, %s45
    %s47 = sphi 0, %s45
    %s48 = sphi 0, %s47
    %s62 = sphi 0, %s48
    %s66 = sphi 0, %s66
    %s68 = sphi 0, %s66
    %s69 = sphi 0, %s68
    %s83 = sphi 0, %s69
    %s87 = sphi 0, %s87
    %s89 = sphi 0, %s87
    %s90 = sphi 0, %s89
    %s104 = sphi 0, %s90
    %s108 = sphi 0, %s108
    %s110 = sphi 0, %s108
    %s111 = sphi 0, %s110
    %s125 = sphi 0, %s111
    %s131 = sphi 0, %s133
    %s134 = sphi 0, %s131
    %s135 = sphi 0, %s134
    %s151 = sphi 0, %s135
  $region4: #{model_forward.1} parent=0 // loop_header_branch
    %14 = sbr.rel (%p12) target = $region8
  $region5: #{model_forward.1} parent=0 // loop_body
    %s16 = ssub.s32 %s11, 1
    %s17 = ssub.s32 %s11, 2
    %s18 = sadd.s32 %s11, 1
    %s19 = ssub.s32 %s11, %s18
    %p20 = scmp.eq.s32.totalorder %s19, 0
    %s22 = sadd.s32 %s21, 1
    %s23 = scalar_select %p20, %s21, %s22
    %p26 = pneg %p20
    %p27 = scmp.eq.s32.totalorder %s11, 1
    %p28 = por %p26, %p27
    %p29 = scmp.ne.s32.totalorder %s21, %s24
    %p30 = scmp.eq.s32.totalorder %s11, 0
    %p31 = por %p29, %p30
    %p32 = scmp.ne.s32.totalorder %s21, %s24
    %p33 = scmp.eq.s32.totalorder %s16, 1
    %p34 = por %p32, %p33
    %p35 = scmp.ne.s32.totalorder %s24, %s25
    %p36 = scmp.eq.s32.totalorder %s16, 0
    %p37 = por %p35, %p36
    %p38 = scmp.ne.s32.totalorder %s24, %s25
    %p39 = scmp.eq.s32.totalorder %s17, 1
    %p40 = por %p38, %p39
    %p42 = scmp.ne.s32.totalorder %s25, %s41
    %p43 = scmp.eq.s32.totalorder %s17, 0
    %p44 = por %p42, %p43
    %s46 = sadd.s32 %s45, 1
    %p49 = scmp.eq.s32.totalorder %s11, 1
    %p50 = scmp.ne.s32.totalorder %s45, %s47
    %p51 = scmp.eq.s32.totalorder %s11, 0
    %p52 = por %p50, %p51
    %p53 = scmp.ne.s32.totalorder %s45, %s47
    %p54 = scmp.eq.s32.totalorder %s16, 1
    %p55 = por %p53, %p54
    %p56 = scmp.ne.s32.totalorder %s47, %s48
    %p57 = scmp.eq.s32.totalorder %s16, 0
    %p58 = por %p56, %p57
    %p59 = scmp.ne.s32.totalorder %s47, %s48
    %p60 = scmp.eq.s32.totalorder %s17, 1
    %p61 = por %p59, %p60
    %p63 = scmp.ne.s32.totalorder %s48, %s62
    %p64 = scmp.eq.s32.totalorder %s17, 0
    %p65 = por %p63, %p64
    %s67 = sadd.s32 %s66, 1
    %p70 = scmp.eq.s32.totalorder %s11, 1
    %p71 = scmp.ne.s32.totalorder %s66, %s68
    %p72 = scmp.eq.s32.totalorder %s11, 0
    %p73 = por %p71, %p72
    %p74 = scmp.ne.s32.totalorder %s66, %s68
    %p75 = scmp.eq.s32.totalorder %s16, 1
    %p76 = por %p74, %p75
    %p77 = scmp.ne.s32.totalorder %s68, %s69
    %p78 = scmp.eq.s32.totalorder %s16, 0
    %p79 = por %p77, %p78
    %p80 = scmp.ne.s32.totalorder %s68, %s69
    %p81 = scmp.eq.s32.totalorder %s17, 1
    %p82 = por %p80, %p81
    %p84 = scmp.ne.s32.totalorder %s69, %s83
    %p85 = scmp.eq.s32.totalorder %s17, 0
    %p86 = por %p84, %p85
    %s88 = sadd.s32 %s87, 1
    %p91 = scmp.eq.s32.totalorder %s11, 1
    %p92 = scmp.ne.s32.totalorder %s87, %s89
    %p93 = scmp.eq.s32.totalorder %s11, 0
    %p94 = por %p92, %p93
    %p95 = scmp.ne.s32.totalorder %s87, %s89
    %p96 = scmp.eq.s32.totalorder %s16, 1
    %p97 = por %p95, %p96
    %p98 = scmp.ne.s32.totalorder %s89, %s90
    %p99 = scmp.eq.s32.totalorder %s16, 0
    %p100 = por %p98, %p99
    %p101 = scmp.ne.s32.totalorder %s89, %s90
    %p102 = scmp.eq.s32.totalorder %s17, 1
    %p103 = por %p101, %p102
    %p105 = scmp.ne.s32.totalorder %s90, %s104
    %p106 = scmp.eq.s32.totalorder %s17, 0
    %p107 = por %p105, %p106
    %s109 = sadd.s32 %s108, 1
    %p112 = scmp.eq.s32.totalorder %s11, 1
    %p113 = scmp.ne.s32.totalorder %s108, %s110
    %p114 = scmp.eq.s32.totalorder %s11, 0
    %p115 = por %p113, %p114
    %p116 = scmp.ne.s32.totalorder %s108, %s110
    %p117 = scmp.eq.s32.totalorder %s16, 1
    %p118 = por %p116, %p117
    %p119 = scmp.ne.s32.totalorder %s110, %s111
    %p120 = scmp.eq.s32.totalorder %s16, 0
    %p121 = por %p119, %p120
    %p122 = scmp.ne.s32.totalorder %s110, %s111
    %p123 = scmp.eq.s32.totalorder %s17, 1
    %p124 = por %p122, %p123
    %p126 = scmp.ne.s32.totalorder %s111, %s125
    %p127 = scmp.eq.s32.totalorder %s17, 0
    %p128 = por %p126, %p127
    %s129 = ssub.s32 %s11, %s18
    %p130 = scmp.eq.s32.totalorder %s129, 0
    %s132 = sadd.s32 %s131, 1
    %s133 = scalar_select %p130, %s131, %s132
    %p136 = pneg %p130
    %p137 = scmp.eq.s32.totalorder %s11, 1
    %p138 = por %p136, %p137
    %p139 = scmp.ne.s32.totalorder %s131, %s134
    %p140 = scmp.eq.s32.totalorder %s11, 0
    %p141 = por %p139, %p140
    %p142 = scmp.ne.s32.totalorder %s131, %s134
    %p143 = scmp.eq.s32.totalorder %s16, 1
    %p144 = por %p142, %p143
    %p145 = scmp.ne.s32.totalorder %s134, %s135
    %p146 = scmp.eq.s32.totalorder %s16, 0
    %p147 = por %p145, %p146
    %p148 = scmp.ne.s32.totalorder %s134, %s135
    %p149 = scmp.eq.s32.totalorder %s17, 1
    %p150 = por %p148, %p149
    %p152 = scmp.ne.s32.totalorder %s135, %s151
    %p153 = scmp.eq.s32.totalorder %s17, 0
    %p154 = por %p152, %p153
    %p155 = scmp.le.s32.totalorder 1, %s11
    %p156 = scmp.lt.s32.totalorder %s11, 3
    %p157 = pnand %p155, %p156
    %p158 = pneg %p157
    // Predicated region
    $region9: #{model_forward.1} parent=5 // pred_check
      _
    $region10: #{model_forward.1} parent=5 // pred_check_branch
      %160 = sbr.rel (%p157) target = $region12
    $region11: #{model_forward.1} parent=5 // pred_region
      %s161 = ssub.s32 %s11, 1
      // Predicated region
      $region13: #{model_forward.1} parent=11 // pred_check
        %p162 = pneg %p58
      $region14: #{model_forward.1} parent=11 // pred_check_branch
        %164 = sbr.rel (%p162) target = $region16
      $region15: #{model_forward.1} parent=11 // pred_region
        _
      $region16: #{model_forward.1} parent=11 // pred_fallthru
        _
      // Predicated region
      $region17: #{model_forward.1} parent=11 // pred_check
        %p165 = pneg %p79
      $region18: #{model_forward.1} parent=11 // pred_check_branch
        %167 = sbr.rel (%p165) target = $region20
      $region19: #{model_forward.1} parent=11 // pred_region
        _
      $region20: #{model_forward.1} parent=11 // pred_fallthru
        _
      // Predicated region
      $region21: #{model_forward.1} parent=11 // pred_check
        %p168 = pneg %p100
      $region22: #{model_forward.1} parent=11 // pred_check_branch
        %170 = sbr.rel (%p168) target = $region24
      $region23: #{model_forward.1} parent=11 // pred_region
        _
      $region24: #{model_forward.1} parent=11 // pred_fallthru
        _
      // Predicated region
      $region25: #{model_forward.1} parent=11 // pred_check
        %p171 = pneg %p121
      $region26: #{model_forward.1} parent=11 // pred_check_branch
        %173 = sbr.rel (%p171) target = $region28
      $region27: #{model_forward.1} parent=11 // pred_region
        _
      $region28: #{model_forward.1} parent=11 // pred_fallthru
        _
    $region12: #{model_forward.1} parent=5 // pred_fallthru
      _
    %p174 = scmp.lt.s32.totalorder %s11, 2
    // Predicated region
    $region29: #{model_forward.1} parent=5 // pred_check
      %p175 = pneg %p174
    $region30: #{model_forward.1} parent=5 // pred_check_branch
      %177 = sbr.rel (%p175) target = $region32
    $region31: #{model_forward.1} parent=5 // pred_region
      // Predicated region
      $region33: #{model_forward.1} parent=31 // pred_check
        %p178 = pneg %p31
      $region34: #{model_forward.1} parent=31 // pred_check_branch
        %180 = sbr.rel (%p178) target = $region36
      $region35: #{model_forward.1} parent=31 // pred_region
        %s181 = smul.u32 22, %s11
        %p182 = scmp.lt.s32.totalorder %s181, 43
        %s183 = scalar_select %p182, %s181, 43
        %s184 = smul.addr %s183, 4
        %s185 = scalar_lea.vmem %s0, %s184
        %s186 = smul.u32 22, %s11
      $region36: #{model_forward.1} parent=31 // pred_fallthru
        _
    $region32: #{model_forward.1} parent=5 // pred_fallthru
      _
    %p187 = scmp.le.s32.totalorder 1, %s11
    %p188 = scmp.lt.s32.totalorder %s11, 3
    %p189 = pnand %p187, %p188
    %p190 = pneg %p189
    // Predicated region
    $region37: #{model_forward.1} parent=5 // pred_check
      _
    $region38: #{model_forward.1} parent=5 // pred_check_branch
      %192 = sbr.rel (%p189) target = $region40
    $region39: #{model_forward.1} parent=5 // pred_region
      %s193 = ssub.s32 %s11, 1
      %s194 = smul.u32 22, %s16
      %p195 = scmp.lt.s32.totalorder %s194, 43
      %s196 = scalar_select %p195, %s194, 43
      %s197 = smul.addr %s196, 4
      %s198 = scalar_lea.vmem %s0, %s197
      %p199 = pneg %p37
      %p200 = pneg %p34
      %p201 = pneg %p58
      %p202 = pneg %p55
      %p203 = pneg %p79
      %p204 = pneg %p76
      %p205 = pneg %p100
      %p206 = pneg %p97
      %p207 = pneg %p121
      %p208 = pneg %p118
      %p209 = pneg %p147
      %p210 = pneg %p144
      %s211 = smul.u32 22, %s16
      %p212 = scmp.lt.s32.totalorder %s211, 43
      %s213 = scalar_select %p212, %s211, 43
      %s214 = smul.addr %s213, 4
      %s215 = scalar_lea.vmem %s5, %s214
      %s216 = smul.u32 22, %s16
      %p217 = scmp.lt.s32.totalorder %s216, 43
      %s218 = scalar_select %p217, %s216, 43
      %s219 = smul.addr %s218, 4
      %s220 = scalar_lea.vmem %s0, %s219
      %s221 = smul.u32 22, %s16
      %s222 = smul.u32 22, %s16
      %p223 = scmp.lt.s32.totalorder %s222, 43
      %s224 = scalar_select %p223, %s222, 43
      %s225 = smul.addr %s224, 4
      %s226 = scalar_lea.vmem %s5, %s225
      %s227 = smul.u32 22, %s16
      %228 = vst [vmem:[#allocation2] sm:$0x7] 0.0
      %229 = vst [vmem:[#allocation2 + $0x5c] sm:$0x7] 0.0
      %230 = vst [vmem:[#allocation3] sm:$0x7] 0.0
      %231 = vst [vmem:[#allocation3 + $0x5c] sm:$0x7] 0.0
      %v232 = vld [vmem:[%s220] sm:$0x77]
      %v233 = vld [vmem:[%s220 + $0x8] sm:$0x77]
      %v234 = vld [vmem:[%s220 + $0x10] sm:$0x77]
      %v235 = vld [vmem:[%s220 + $0x18] sm:$0x77]
      %v236 = vld [vmem:[%s220 + $0x20] sm:$0x77]
      %v237 = vld [vmem:[%s220 + $0x28] sm:$0x77]
      %v238 = vld [vmem:[%s220 + $0x30] sm:$0x77]
      %v239 = vld [vmem:[%s220 + $0x38] sm:$0x77]
      %v240 = vld [vmem:[%s220 + $0x40] sm:$0x77]
      %v241 = vld [vmem:[%s220 + $0x48] sm:$0x77]
      %v242 = vld [vmem:[%s220 + $0x50] sm:$0x77]
      %243 = vst [vmem:[#allocation2 + $0x4] sm:$0x77] %v232
      %244 = vst [vmem:[#allocation2 + $0xc] sm:$0x77] %v233
      %245 = vst [vmem:[#allocation2 + $0x14] sm:$0x77] %v234
      %246 = vst [vmem:[#allocation2 + $0x1c] sm:$0x77] %v235
      %247 = vst [vmem:[#allocation2 + $0x24] sm:$0x77] %v236
      %248 = vst [vmem:[#allocation2 + $0x2c] sm:$0x77] %v237
      %249 = vst [vmem:[#allocation2 + $0x34] sm:$0x77] %v238
      %250 = vst [vmem:[#allocation2 + $0x3c] sm:$0x77] %v239
      %251 = vst [vmem:[#allocation2 + $0x44] sm:$0x77] %v240
      %252 = vst [vmem:[#allocation2 + $0x4c] sm:$0x77] %v241
      %253 = vst [vmem:[#allocation2 + $0x54] sm:$0x77] %v242
      %v254 = vld [vmem:[#allocation2] sm:$0x77]
      %v255 = vld [vmem:[#allocation2 + $0x8] sm:$0x77]
      %v256 = vld [vmem:[#allocation2 + $0x10] sm:$0x77]
      %v257 = vld [vmem:[#allocation2 + $0x18] sm:$0x77]
      %v258 = vld [vmem:[#allocation2 + $0x20] sm:$0x77]
      %v259 = vld [vmem:[#allocation2 + $0x28] sm:$0x77]
      %v260 = vld [vmem:[#allocation2 + $0x30] sm:$0x77]
      %v261 = vld [vmem:[#allocation2 + $0x38] sm:$0x77]
      %v262 = vld [vmem:[#allocation2 + $0x40] sm:$0x77]
      %v263 = vld [vmem:[#allocation2 + $0x48] sm:$0x77]
      %v264 = vld [vmem:[#allocation2 + $0x50] sm:$0x77]
      %v265 = vld [vmem:[#allocation2 + $0x58] sm:$0x7]
      %v278 = vcombine.high %v254, %v254
      %v279 = vcombine.high %v255, %v255
      %v280 = vcombine.high %v256, %v256
      %v281 = vcombine.high %v257, %v257
      %v282 = vcombine.high %v258, %v258
      %v283 = vcombine.high %v259, %v259
      %v284 = vcombine.high %v260, %v260
      %v285 = vcombine.high %v261, %v261
      %v286 = vcombine.high %v262, %v262
      %v287 = vcombine.high %v263, %v263
      %v288 = vcombine.high %v264, %v264
      %289 = vrot.lane.b32.xlu0 %v254, 37
      %v290 = vpop.permute.xlu0 %289
      %291 = vrot.lane.b32.xlu0 %v278, 37
      %v292 = vpop.permute.xlu0 %291
      %293 = vrot.lane.b32.xlu0 %v255, 37
      %v294 = vpop.permute.xlu0 %293
      %295 = vrot.lane.b32.xlu0 %v279, 37
      %v296 = vpop.permute.xlu0 %295
      %297 = vrot.lane.b32.xlu0 %v256, 37
      %v298 = vpop.permute.xlu0 %297
      %299 = vrot.lane.b32.xlu0 %v280, 37
      %v300 = vpop.permute.xlu0 %299
      %301 = vrot.lane.b32.xlu0 %v257, 37
      %v302 = vpop.permute.xlu0 %301
      %303 = vrot.lane.b32.xlu0 %v281, 37
      %v304 = vpop.permute.xlu0 %303
      %305 = vrot.lane.b32.xlu0 %v258, 37
      %v306 = vpop.permute.xlu0 %305
      %307 = vrot.lane.b32.xlu0 %v282, 37
      %v308 = vpop.permute.xlu0 %307
      %309 = vrot.lane.b32.xlu0 %v259, 37
      %v310 = vpop.permute.xlu0 %309
      %311 = vrot.lane.b32.xlu0 %v283, 37
      %v312 = vpop.permute.xlu0 %311
      %313 = vrot.lane.b32.xlu0 %v260, 37
      %v314 = vpop.permute.xlu0 %313
      %315 = vrot.lane.b32.xlu0 %v284, 37
      %v316 = vpop.permute.xlu0 %315
      %317 = vrot.lane.b32.xlu0 %v261, 37
      %v318 = vpop.permute.xlu0 %317
      %319 = vrot.lane.b32.xlu0 %v285, 37
      %v320 = vpop.permute.xlu0 %319
      %321 = vrot.lane.b32.xlu0 %v262, 37
      %v322 = vpop.permute.xlu0 %321
      %323 = vrot.lane.b32.xlu0 %v286, 37
      %v324 = vpop.permute.xlu0 %323
      %325 = vrot.lane.b32.xlu0 %v263, 37
      %v326 = vpop.permute.xlu0 %325
      %327 = vrot.lane.b32.xlu0 %v287, 37
      %v328 = vpop.permute.xlu0 %327
      %329 = vrot.lane.b32.xlu0 %v264, 37
      %v330 = vpop.permute.xlu0 %329
      %331 = vrot.lane.b32.xlu0 %v288, 37
      %v332 = vpop.permute.xlu0 %331
      %333 = vrot.lane.b32.xlu0 %v265, 37
      %v334 = vpop.permute.xlu0 %333
      %vm335 = vcmask 302080
      %v336 = vsel %vm335, %v290, %v292
      %v337 = vsel %vm335, %v292, %v294
      %v338 = vsel %vm335, %v294, %v296
      %v339 = vsel %vm335, %v296, %v298
      %v340 = vsel %vm335, %v298, %v300
      %v341 = vsel %vm335, %v300, %v302
      %v342 = vsel %vm335, %v302, %v304
      %v343 = vsel %vm335, %v304, %v306
      %v344 = vsel %vm335, %v306, %v308
      %v345 = vsel %vm335, %v308, %v310
      %v346 = vsel %vm335, %v310, %v312
      %v347 = vsel %vm335, %v312, %v314
      %v348 = vsel %vm335, %v314, %v316
      %v349 = vsel %vm335, %v316, %v318
      %v350 = vsel %vm335, %v318, %v320
      %v351 = vsel %vm335, %v320, %v322
      %v352 = vsel %vm335, %v322, %v324
      %v353 = vsel %vm335, %v324, %v326
      %v354 = vsel %vm335, %v326, %v328
      %v355 = vsel %vm335, %v328, %v330
      %v356 = vsel %vm335, %v330, %v332
      %v357 = vsel %vm335, %v332, %v334
      %380 = vst [vmem:[#allocation4] sm:$0x7] %v336
      %381 = vst [vmem:[#allocation4 + $0x8] sm:$0x7] %v337
      %382 = vst [vmem:[#allocation4 + $0x10] sm:$0x7] %v338
      %383 = vst [vmem:[#allocation4 + $0x18] sm:$0x7] %v339
      %384 = vst [vmem:[#allocation4 + $0x20] sm:$0x7] %v340
      %385 = vst [vmem:[#allocation4 + $0x28] sm:$0x7] %v341
      %386 = vst [vmem:[#allocation4 + $0x30] sm:$0x7] %v342
      %387 = vst [vmem:[#allocation4 + $0x38] sm:$0x7] %v343
      %388 = vst [vmem:[#allocation4 + $0x40] sm:$0x7] %v344
      %389 = vst [vmem:[#allocation4 + $0x48] sm:$0x7] %v345
      %390 = vst [vmem:[#allocation4 + $0x50] sm:$0x7] %v346
      %391 = vst [vmem:[#allocation4 + $0x58] sm:$0x7] %v347
      %392 = vst [vmem:[#allocation4 + $0x60] sm:$0x7] %v348
      %393 = vst [vmem:[#allocation4 + $0x68] sm:$0x7] %v349
      %394 = vst [vmem:[#allocation4 + $0x70] sm:$0x7] %v350
      %395 = vst [vmem:[#allocation4 + $0x78] sm:$0x7] %v351
      %396 = vst [vmem:[#allocation4 + $0x80] sm:$0x7] %v352
      %397 = vst [vmem:[#allocation4 + $0x88] sm:$0x7] %v353
      %398 = vst [vmem:[#allocation4 + $0x90] sm:$0x7] %v354
      %399 = vst [vmem:[#allocation4 + $0x98] sm:$0x7] %v355
      %400 = vst [vmem:[#allocation4 + $0xa0] sm:$0x7] %v356
      %401 = vst [vmem:[#allocation4 + $0xa8] sm:$0x7] %v357
      %v402 = vld [vmem:[#allocation2] sm:$0x77]
      %v403 = vld [vmem:[#allocation2 + $0x8] sm:$0x77]
      %v404 = vld [vmem:[#allocation2 + $0x10] sm:$0x77]
      %v405 = vld [vmem:[#allocation2 + $0x18] sm:$0x77]
      %v406 = vld [vmem:[#allocation2 + $0x20] sm:$0x77]
      %v407 = vld [vmem:[#allocation2 + $0x28] sm:$0x77]
      %v408 = vld [vmem:[#allocation2 + $0x30] sm:$0x77]
      %v409 = vld [vmem:[#allocation2 + $0x38] sm:$0x77]
      %v410 = vld [vmem:[#allocation2 + $0x40] sm:$0x77]
      %v411 = vld [vmem:[#allocation2 + $0x48] sm:$0x77]
      %v412 = vld [vmem:[#allocation2 + $0x50] sm:$0x77]
      %v413 = vld [vmem:[#allocation2 + $0x58] sm:$0x7]
      %v426 = vcombine.high %v402, %v402
      %v427 = vcombine.high %v403, %v403
      %v428 = vcombine.high %v404, %v404
      %v429 = vcombine.high %v405, %v405
      %v430 = vcombine.high %v406, %v406
      %v431 = vcombine.high %v407, %v407
      %v432 = vcombine.high %v408, %v408
      %v433 = vcombine.high %v409, %v409
      %v434 = vcombine.high %v410, %v410
      %v435 = vcombine.high %v411, %v411
      %v436 = vcombine.high %v412, %v412
      %v437 = vrot.slane %v402, 5
      %v438 = vrot.slane %v426, 5
      %v439 = vrot.slane %v403, 5
      %v440 = vrot.slane %v427, 5
      %v441 = vrot.slane %v404, 5
      %v442 = vrot.slane %v428, 5
      %v443 = vrot.slane %v405, 5
      %v444 = vrot.slane %v429, 5
      %v445 = vrot.slane %v406, 5
      %v446 = vrot.slane %v430, 5
      %v447 = vrot.slane %v407, 5
      %v448 = vrot.slane %v431, 5
      %v449 = vrot.slane %v408, 5
      %v450 = vrot.slane %v432, 5
      %v451 = vrot.slane %v409, 5
      %v452 = vrot.slane %v433, 5
      %v453 = vrot.slane %v410, 5
      %v454 = vrot.slane %v434, 5
      %v455 = vrot.slane %v411, 5
      %v456 = vrot.slane %v435, 5
      %v457 = vrot.slane %v412, 5
      %v458 = vrot.slane %v436, 5
      %v459 = vrot.slane %v413, 5
      %460 = vrot.lane.b32.xlu0 %v437, 36
      %v461 = vpop.permute.xlu0 %460
      %462 = vrot.lane.b32.xlu0 %v438, 36
      %v463 = vpop.permute.xlu0 %462
      %464 = vrot.lane.b32.xlu0 %v439, 36
      %v465 = vpop.permute.xlu0 %464
      %466 = vrot.lane.b32.xlu0 %v440, 36
      %v467 = vpop.permute.xlu0 %466
      %468 = vrot.lane.b32.xlu0 %v441, 36
      %v469 = vpop.permute.xlu0 %468
      %470 = vrot.lane.b32.xlu0 %v442, 36
      %v471 = vpop.permute.xlu0 %470
      %472 = vrot.lane.b32.xlu0 %v443, 36
      %v473 = vpop.permute.xlu0 %472
      %474 = vrot.lane.b32.xlu0 %v444, 36
      %v475 = vpop.permute.xlu0 %474
      %476 = vrot.lane.b32.xlu0 %v445, 36
      %v477 = vpop.permute.xlu0 %476
      %478 = vrot.lane.b32.xlu0 %v446, 36
      %v479 = vpop.permute.xlu0 %478
      %480 = vrot.lane.b32.xlu0 %v447, 36
      %v481 = vpop.permute.xlu0 %480
      %482 = vrot.lane.b32.xlu0 %v448, 36
      %v483 = vpop.permute.xlu0 %482
      %484 = vrot.lane.b32.xlu0 %v449, 36
      %v485 = vpop.permute.xlu0 %484
      %486 = vrot.lane.b32.xlu0 %v450, 36
      %v487 = vpop.permute.xlu0 %486
      %488 = vrot.lane.b32.xlu0 %v451, 36
      %v489 = vpop.permute.xlu0 %488
      %490 = vrot.lane.b32.xlu0 %v452, 36
      %v491 = vpop.permute.xlu0 %490
      %492 = vrot.lane.b32.xlu0 %v453, 36
      %v493 = vpop.permute.xlu0 %492
      %494 = vrot.lane.b32.xlu0 %v454, 36
      %v495 = vpop.permute.xlu0 %494
      %496 = vrot.lane.b32.xlu0 %v455, 36
      %v497 = vpop.permute.xlu0 %496
      %498 = vrot.lane.b32.xlu0 %v456, 36
      %v499 = vpop.permute.xlu0 %498
      %500 = vrot.lane.b32.xlu0 %v457, 36
      %v501 = vpop.permute.xlu0 %500
      %502 = vrot.lane.b32.xlu0 %v458, 36
      %v503 = vpop.permute.xlu0 %502
      %504 = vrot.lane.b32.xlu0 %v459, 36
      %v505 = vpop.permute.xlu0 %504
      %vm506 = vcmask 293888
      %v507 = vsel %vm506, %v461, %v463
      %v508 = vsel %vm506, %v463, %v465
      %v509 = vsel %vm506, %v465, %v467
      %v510 = vsel %vm506, %v467, %v469
      %v511 = vsel %vm506, %v469, %v471
      %v512 = vsel %vm506, %v471, %v473
      %v513 = vsel %vm506, %v473, %v475
      %v514 = vsel %vm506, %v475, %v477
      %v515 = vsel %vm506, %v477, %v479
      %v516 = vsel %vm506, %v479, %v481
      %v517 = vsel %vm506, %v481, %v483
      %v518 = vsel %vm506, %v483, %v485
      %v519 = vsel %vm506, %v485, %v487
      %v520 = vsel %vm506, %v487, %v489
      %v521 = vsel %vm506, %v489, %v491
      %v522 = vsel %vm506, %v491, %v493
      %v523 = vsel %vm506, %v493, %v495
      %v524 = vsel %vm506, %v495, %v497
      %v525 = vsel %vm506, %v497, %v499
      %v526 = vsel %vm506, %v499, %v501
      %v527 = vsel %vm506, %v501, %v503
      %v528 = vsel %vm506, %v503, %v505
      %551 = vst [vmem:[#allocation4] sm:$0x38] %v507
      %552 = vst [vmem:[#allocation4 + $0x8] sm:$0x38] %v508
      %553 = vst [vmem:[#allocation4 + $0x10] sm:$0x38] %v509
      %554 = vst [vmem:[#allocation4 + $0x18] sm:$0x38] %v510
      %555 = vst [vmem:[#allocation4 + $0x20] sm:$0x38] %v511
      %556 = vst [vmem:[#allocation4 + $0x28] sm:$0x38] %v512
      %557 = vst [vmem:[#allocation4 + $0x30] sm:$0x38] %v513
      %558 = vst [vmem:[#allocation4 + $0x38] sm:$0x38] %v514
      %559 = vst [vmem:[#allocation4 + $0x40] sm:$0x38] %v515
      %560 = vst [vmem:[#allocation4 + $0x48] sm:$0x38] %v516
      %561 = vst [vmem:[#allocation4 + $0x50] sm:$0x38] %v517
      %562 = vst [vmem:[#allocation4 + $0x58] sm:$0x38] %v518
      %563 = vst [vmem:[#allocation4 + $0x60] sm:$0x38] %v519
      %564 = vst [vmem:[#allocation4 + $0x68] sm:$0x38] %v520
      %565 = vst [vmem:[#allocation4 + $0x70] sm:$0x38] %v521
      %566 = vst [vmem:[#allocation4 + $0x78] sm:$0x38] %v522
      %567 = vst [vmem:[#allocation4 + $0x80] sm:$0x38] %v523
      %568 = vst [vmem:[#allocation4 + $0x88] sm:$0x38] %v524
      %569 = vst [vmem:[#allocation4 + $0x90] sm:$0x38] %v525
      %570 = vst [vmem:[#allocation4 + $0x98] sm:$0x38] %v526
      %571 = vst [vmem:[#allocation4 + $0xa0] sm:$0x38] %v527
      %572 = vst [vmem:[#allocation4 + $0xa8] sm:$0x38] %v528
      %v573 = vld [vmem:[#allocation2] sm:$0x77]
      %v574 = vld [vmem:[#allocation2 + $0x8] sm:$0x77]
      %v575 = vld [vmem:[#allocation2 + $0x10] sm:$0x77]
      %v576 = vld [vmem:[#allocation2 + $0x18] sm:$0x77]
      %v577 = vld [vmem:[#allocation2 + $0x20] sm:$0x77]
      %v578 = vld [vmem:[#allocation2 + $0x28] sm:$0x77]
      %v579 = vld [vmem:[#allocation2 + $0x30] sm:$0x77]
      %v580 = vld [vmem:[#allocation2 + $0x38] sm:$0x77]
      %v581 = vld [vmem:[#allocation2 + $0x40] sm:$0x77]
      %v582 = vld [vmem:[#allocation2 + $0x48] sm:$0x77]
      %v583 = vld [vmem:[#allocation2 + $0x50] sm:$0x77]
      %v584 = vld [vmem:[#allocation2 + $0x58] sm:$0x7]
      %v597 = vcombine.high %v573, %v573
      %v598 = vcombine.high %v574, %v574
      %v599 = vcombine.high %v575, %v575
      %v600 = vcombine.high %v576, %v576
      %v601 = vcombine.high %v577, %v577
      %v602 = vcombine.high %v578, %v578
      %v603 = vcombine.high %v579, %v579
      %v604 = vcombine.high %v580, %v580
      %v605 = vcombine.high %v581, %v581
      %v606 = vcombine.high %v582, %v582
      %v607 = vcombine.high %v583, %v583
      %v608 = vrot.slane %v573, 2
      %v609 = vrot.slane %v597, 2
      %v610 = vrot.slane %v574, 2
      %v611 = vrot.slane %v598, 2
      %v612 = vrot.slane %v575, 2
      %v613 = vrot.slane %v599, 2
      %v614 = vrot.slane %v576, 2
      %v615 = vrot.slane %v600, 2
      %v616 = vrot.slane %v577, 2
      %v617 = vrot.slane %v601, 2
      %v618 = vrot.slane %v578, 2
      %v619 = vrot.slane %v602, 2
      %v620 = vrot.slane %v579, 2
      %v621 = vrot.slane %v603, 2
      %v622 = vrot.slane %v580, 2
      %v623 = vrot.slane %v604, 2
      %v624 = vrot.slane %v581, 2
      %v625 = vrot.slane %v605, 2
      %v626 = vrot.slane %v582, 2
      %v627 = vrot.slane %v606, 2
      %v628 = vrot.slane %v583, 2
      %v629 = vrot.slane %v607, 2
      %v630 = vrot.slane %v584, 2
      %631 = vrot.lane.b32.xlu0 %v608, 35
      %v632 = vpop.permute.xlu0 %631
      %633 = vrot.lane.b32.xlu0 %v609, 35
      %v634 = vpop.permute.xlu0 %633
      %635 = vrot.lane.b32.xlu0 %v610, 35
      %v636 = vpop.permute.xlu0 %635
      %637 = vrot.lane.b32.xlu0 %v611, 35
      %v638 = vpop.permute.xlu0 %637
      %639 = vrot.lane.b32.xlu0 %v612, 35
      %v640 = vpop.permute.xlu0 %639
      %641 = vrot.lane.b32.xlu0 %v613, 35
      %v642 = vpop.permute.xlu0 %641
      %643 = vrot.lane.b32.xlu0 %v614, 35
      %v644 = vpop.permute.xlu0 %643
      %645 = vrot.lane.b32.xlu0 %v615, 35
      %v646 = vpop.permute.xlu0 %645
      %647 = vrot.lane.b32.xlu0 %v616, 35
      %v648 = vpop.permute.xlu0 %647
      %649 = vrot.lane.b32.xlu0 %v617, 35
      %v650 = vpop.permute.xlu0 %649
      %651 = vrot.lane.b32.xlu0 %v618, 35
      %v652 = vpop.permute.xlu0 %651
      %653 = vrot.lane.b32.xlu0 %v619, 35
      %v654 = vpop.permute.xlu0 %653
      %655 = vrot.lane.b32.xlu0 %v620, 35
      %v656 = vpop.permute.xlu0 %655
      %657 = vrot.lane.b32.xlu0 %v621, 35
      %v658 = vpop.permute.xlu0 %657
      %659 = vrot.lane.b32.xlu0 %v622, 35
      %v660 = vpop.permute.xlu0 %659
      %661 = vrot.lane.b32.xlu0 %v623, 35
      %v662 = vpop.permute.xlu0 %661
      %663 = vrot.lane.b32.xlu0 %v624, 35
      %v664 = vpop.permute.xlu0 %663
      %665 = vrot.lane.b32.xlu0 %v625, 35
      %v666 = vpop.permute.xlu0 %665
      %667 = vrot.lane.b32.xlu0 %v626, 35
      %v668 = vpop.permute.xlu0 %667
      %669 = vrot.lane.b32.xlu0 %v627, 35
      %v670 = vpop.permute.xlu0 %669
      %671 = vrot.lane.b32.xlu0 %v628, 35
      %v672 = vpop.permute.xlu0 %671
      %673 = vrot.lane.b32.xlu0 %v629, 35
      %v674 = vpop.permute.xlu0 %673
      %675 = vrot.lane.b32.xlu0 %v630, 35
      %v676 = vpop.permute.xlu0 %675
      %vm677 = vcmask 285696
      %v678 = vsel %vm677, %v632, %v634
      %v679 = vsel %vm677, %v634, %v636
      %v680 = vsel %vm677, %v636, %v638
      %v681 = vsel %vm677, %v638, %v640
      %v682 = vsel %vm677, %v640, %v642
      %v683 = vsel %vm677, %v642, %v644
      %v684 = vsel %vm677, %v644, %v646
      %v685 = vsel %vm677, %v646, %v648
      %v686 = vsel %vm677, %v648, %v650
      %v687 = vsel %vm677, %v650, %v652
      %v688 = vsel %vm677, %v652, %v654
      %v689 = vsel %vm677, %v654, %v656
      %v690 = vsel %vm677, %v656, %v658
      %v691 = vsel %vm677, %v658, %v660
      %v692 = vsel %vm677, %v660, %v662
      %v693 = vsel %vm677, %v662, %v664
      %v694 = vsel %vm677, %v664, %v666
      %v695 = vsel %vm677, %v666, %v668
      %v696 = vsel %vm677, %v668, %v670
      %v697 = vsel %vm677, %v670, %v672
      %v698 = vsel %vm677, %v672, %v674
      %v699 = vsel %vm677, %v674, %v676
      %722 = vst [vmem:[#allocation4] sm:$0xc0] %v678
      %723 = vst [vmem:[#allocation4 + $0x8] sm:$0xc0] %v679
      %724 = vst [vmem:[#allocation4 + $0x10] sm:$0xc0] %v680
      %725 = vst [vmem:[#allocation4 + $0x18] sm:$0xc0] %v681
      %726 = vst [vmem:[#allocation4 + $0x20] sm:$0xc0] %v682
      %727 = vst [vmem:[#allocation4 + $0x28] sm:$0xc0] %v683
      %728 = vst [vmem:[#allocation4 + $0x30] sm:$0xc0] %v684
      %729 = vst [vmem:[#allocation4 + $0x38] sm:$0xc0] %v685
      %730 = vst [vmem:[#allocation4 + $0x40] sm:$0xc0] %v686
      %731 = vst [vmem:[#allocation4 + $0x48] sm:$0xc0] %v687
      %732 = vst [vmem:[#allocation4 + $0x50] sm:$0xc0] %v688
      %733 = vst [vmem:[#allocation4 + $0x58] sm:$0xc0] %v689
      %734 = vst [vmem:[#allocation4 + $0x60] sm:$0xc0] %v690
      %735 = vst [vmem:[#allocation4 + $0x68] sm:$0xc0] %v691
      %736 = vst [vmem:[#allocation4 + $0x70] sm:$0xc0] %v692
      %737 = vst [vmem:[#allocation4 + $0x78] sm:$0xc0] %v693
      %738 = vst [vmem:[#allocation4 + $0x80] sm:$0xc0] %v694
      %739 = vst [vmem:[#allocation4 + $0x88] sm:$0xc0] %v695
      %740 = vst [vmem:[#allocation4 + $0x90] sm:$0xc0] %v696
      %741 = vst [vmem:[#allocation4 + $0x98] sm:$0xc0] %v697
      %742 = vst [vmem:[#allocation4 + $0xa0] sm:$0xc0] %v698
      %743 = vst [vmem:[#allocation4 + $0xa8] sm:$0xc0] %v699
      %744 = vst [vmem:[#allocation4 + $0xb0] sm:$0x1] %v678
      %745 = vst [vmem:[#allocation4 + $0xb8] sm:$0x1] %v679
      %746 = vst [vmem:[#allocation4 + $0xc0] sm:$0x1] %v680
      %747 = vst [vmem:[#allocation4 + $0xc8] sm:$0x1] %v681
      %748 = vst [vmem:[#allocation4 + $0xd0] sm:$0x1] %v682
      %749 = vst [vmem:[#allocation4 + $0xd8] sm:$0x1] %v683
      %750 = vst [vmem:[#allocation4 + $0xe0] sm:$0x1] %v684
      %751 = vst [vmem:[#allocation4 + $0xe8] sm:$0x1] %v685
      %752 = vst [vmem:[#allocation4 + $0xf0] sm:$0x1] %v686
      %753 = vst [vmem:[#allocation4 + $0xf8] sm:$0x1] %v687
      %754 = vst [vmem:[#allocation4 + $0x100] sm:$0x1] %v688
      %755 = vst [vmem:[#allocation4 + $0x108] sm:$0x1] %v689
      %756 = vst [vmem:[#allocation4 + $0x110] sm:$0x1] %v690
      %757 = vst [vmem:[#allocation4 + $0x118] sm:$0x1] %v691
      %758 = vst [vmem:[#allocation4 + $0x120] sm:$0x1] %v692
      %759 = vst [vmem:[#allocation4 + $0x128] sm:$0x1] %v693
      %760 = vst [vmem:[#allocation4 + $0x130] sm:$0x1] %v694
      %761 = vst [vmem:[#allocation4 + $0x138] sm:$0x1] %v695
      %762 = vst [vmem:[#allocation4 + $0x140] sm:$0x1] %v696
      %763 = vst [vmem:[#allocation4 + $0x148] sm:$0x1] %v697
      %764 = vst [vmem:[#allocation4 + $0x150] sm:$0x1] %v698
      %765 = vst [vmem:[#allocation4 + $0x158] sm:$0x1] %v699
      %v766 = vld [vmem:[#allocation2] sm:$0x77]
      %v767 = vld [vmem:[#allocation2 + $0x8] sm:$0x77]
      %v768 = vld [vmem:[#allocation2 + $0x10] sm:$0x77]
      %v769 = vld [vmem:[#allocation2 + $0x18] sm:$0x77]
      %v770 = vld [vmem:[#allocation2 + $0x20] sm:$0x77]
      %v771 = vld [vmem:[#allocation2 + $0x28] sm:$0x77]
      %v772 = vld [vmem:[#allocation2 + $0x30] sm:$0x77]
      %v773 = vld [vmem:[#allocation2 + $0x38] sm:$0x77]
      %v774 = vld [vmem:[#allocation2 + $0x40] sm:$0x77]
      %v775 = vld [vmem:[#allocation2 + $0x48] sm:$0x77]
      %v776 = vld [vmem:[#allocation2 + $0x50] sm:$0x77]
      %v777 = vld [vmem:[#allocation2 + $0x58] sm:$0x7]
      %v790 = vcombine.high %v766, %v766
      %v791 = vcombine.high %v767, %v767
      %v792 = vcombine.high %v768, %v768
      %v793 = vcombine.high %v769, %v769
      %v794 = vcombine.high %v770, %v770
      %v795 = vcombine.high %v771, %v771
      %v796 = vcombine.high %v772, %v772
      %v797 = vcombine.high %v773, %v773
      %v798 = vcombine.high %v774, %v774
      %v799 = vcombine.high %v775, %v775
      %v800 = vcombine.high %v776, %v776
      %v801 = vrot.slane %v766, 7
      %v802 = vrot.slane %v790, 7
      %v803 = vrot.slane %v767, 7
      %v804 = vrot.slane %v791, 7
      %v805 = vrot.slane %v768, 7
      %v806 = vrot.slane %v792, 7
      %v807 = vrot.slane %v769, 7
      %v808 = vrot.slane %v793, 7
      %v809 = vrot.slane %v770, 7
      %v810 = vrot.slane %v794, 7
      %v811 = vrot.slane %v771, 7
      %v812 = vrot.slane %v795, 7
      %v813 = vrot.slane %v772, 7
      %v814 = vrot.slane %v796, 7
      %v815 = vrot.slane %v773, 7
      %v816 = vrot.slane %v797, 7
      %v817 = vrot.slane %v774, 7
      %v818 = vrot.slane %v798, 7
      %v819 = vrot.slane %v775, 7
      %v820 = vrot.slane %v799, 7
      %v821 = vrot.slane %v776, 7
      %v822 = vrot.slane %v800, 7
      %v823 = vrot.slane %v777, 7
      %824 = vrot.lane.b32.xlu0 %v801, 1
      %v825 = vpop.permute.xlu0 %824
      %826 = vrot.lane.b32.xlu0 %v802, 1
      %v827 = vpop.permute.xlu0 %826
      %828 = vrot.lane.b32.xlu0 %v803, 1
      %v829 = vpop.permute.xlu0 %828
      %830 = vrot.lane.b32.xlu0 %v804, 1
      %v831 = vpop.permute.xlu0 %830
      %832 = vrot.lane.b32.xlu0 %v805, 1
      %v833 = vpop.permute.xlu0 %832
      %834 = vrot.lane.b32.xlu0 %v806, 1
      %v835 = vpop.permute.xlu0 %834
      %836 = vrot.lane.b32.xlu0 %v807, 1
      %v837 = vpop.permute.xlu0 %836
      %838 = vrot.lane.b32.xlu0 %v808, 1
      %v839 = vpop.permute.xlu0 %838
      %840 = vrot.lane.b32.xlu0 %v809, 1
      %v841 = vpop.permute.xlu0 %840
      %842 = vrot.lane.b32.xlu0 %v810, 1
      %v843 = vpop.permute.xlu0 %842
      %844 = vrot.lane.b32.xlu0 %v811, 1
      %v845 = vpop.permute.xlu0 %844
      %846 = vrot.lane.b32.xlu0 %v812, 1
      %v847 = vpop.permute.xlu0 %846
      %848 = vrot.lane.b32.xlu0 %v813, 1
      %v849 = vpop.permute.xlu0 %848
      %850 = vrot.lane.b32.xlu0 %v814, 1
      %v851 = vpop.permute.xlu0 %850
      %852 = vrot.lane.b32.xlu0 %v815, 1
      %v853 = vpop.permute.xlu0 %852
      %854 = vrot.lane.b32.xlu0 %v816, 1
      %v855 = vpop.permute.xlu0 %854
      %856 = vrot.lane.b32.xlu0 %v817, 1
      %v857 = vpop.permute.xlu0 %856
      %858 = vrot.lane.b32.xlu0 %v818, 1
      %v859 = vpop.permute.xlu0 %858
      %860 = vrot.lane.b32.xlu0 %v819, 1
      %v861 = vpop.permute.xlu0 %860
      %862 = vrot.lane.b32.xlu0 %v820, 1
      %v863 = vpop.permute.xlu0 %862
      %864 = vrot.lane.b32.xlu0 %v821, 1
      %v865 = vpop.permute.xlu0 %864
      %866 = vrot.lane.b32.xlu0 %v822, 1
      %v867 = vpop.permute.xlu0 %866
      %868 = vrot.lane.b32.xlu0 %v823, 1
      %v869 = vpop.permute.xlu0 %868
      %vm870 = vcmask 7168
      %v871 = vsel %vm870, %v825, %v827
      %v872 = vsel %vm870, %v827, %v829
      %v873 = vsel %vm870, %v829, %v831
      %v874 = vsel %vm870, %v831, %v833
      %v875 = vsel %vm870, %v833, %v835
      %v876 = vsel %vm870, %v835, %v837
      %v877 = vsel %vm870, %v837, %v839
      %v878 = vsel %vm870, %v839, %v841
      %v879 = vsel %vm870, %v841, %v843
      %v880 = vsel %vm870, %v843, %v845
      %v881 = vsel %vm870, %v845, %v847
      %v882 = vsel %vm870, %v847, %v849
      %v883 = vsel %vm870, %v849, %v851
      %v884 = vsel %vm870, %v851, %v853
      %v885 = vsel %vm870, %v853, %v855
      %v886 = vsel %vm870, %v855, %v857
      %v887 = vsel %vm870, %v857, %v859
      %v888 = vsel %vm870, %v859, %v861
      %v889 = vsel %vm870, %v861, %v863
      %v890 = vsel %vm870, %v863, %v865
      %v891 = vsel %vm870, %v865, %v867
      %v892 = vsel %vm870, %v867, %v869
      %915 = vst [vmem:[#allocation4 + $0xb0] sm:$0xe] %v871
      %916 = vst [vmem:[#allocation4 + $0xb8] sm:$0xe] %v872
      %917 = vst [vmem:[#allocation4 + $0xc0] sm:$0xe] %v873
      %918 = vst [vmem:[#allocation4 + $0xc8] sm:$0xe] %v874
      %919 = vst [vmem:[#allocation4 + $0xd0] sm:$0xe] %v875
      %920 = vst [vmem:[#allocation4 + $0xd8] sm:$0xe] %v876
      %921 = vst [vmem:[#allocation4 + $0xe0] sm:$0xe] %v877
      %922 = vst [vmem:[#allocation4 + $0xe8] sm:$0xe] %v878
      %923 = vst [vmem:[#allocation4 + $0xf0] sm:$0xe] %v879
      %924 = vst [vmem:[#allocation4 + $0xf8] sm:$0xe] %v880
      %925 = vst [vmem:[#allocation4 + $0x100] sm:$0xe] %v881
      %926 = vst [vmem:[#allocation4 + $0x108] sm:$0xe] %v882
      %927 = vst [vmem:[#allocation4 + $0x110] sm:$0xe] %v883
      %928 = vst [vmem:[#allocation4 + $0x118] sm:$0xe] %v884
      %929 = vst [vmem:[#allocation4 + $0x120] sm:$0xe] %v885
      %930 = vst [vmem:[#allocation4 + $0x128] sm:$0xe] %v886
      %931 = vst [vmem:[#allocation4 + $0x130] sm:$0xe] %v887
      %932 = vst [vmem:[#allocation4 + $0x138] sm:$0xe] %v888
      %933 = vst [vmem:[#allocation4 + $0x140] sm:$0xe] %v889
      %934 = vst [vmem:[#allocation4 + $0x148] sm:$0xe] %v890
      %935 = vst [vmem:[#allocation4 + $0x150] sm:$0xe] %v891
      %936 = vst [vmem:[#allocation4 + $0x158] sm:$0xe] %v892
      %v937 = vld [vmem:[#allocation2 + $0x4] sm:$0x77]
      %v938 = vld [vmem:[#allocation2 + $0xc] sm:$0x77]
      %v939 = vld [vmem:[#allocation2 + $0x14] sm:$0x77]
      %v940 = vld [vmem:[#allocation2 + $0x1c] sm:$0x77]
      %v941 = vld [vmem:[#allocation2 + $0x24] sm:$0x77]
      %v942 = vld [vmem:[#allocation2 + $0x2c] sm:$0x77]
      %v943 = vld [vmem:[#allocation2 + $0x34] sm:$0x77]
      %v944 = vld [vmem:[#allocation2 + $0x3c] sm:$0x77]
      %v945 = vld [vmem:[#allocation2 + $0x44] sm:$0x77]
      %v946 = vld [vmem:[#allocation2 + $0x4c] sm:$0x77]
      %v947 = vld [vmem:[#allocation2 + $0x54] sm:$0x77]
      %v959 = vcombine.low %v937, %v937
      %v960 = vcombine.low %v938, %v938
      %v961 = vcombine.low %v939, %v939
      %v962 = vcombine.low %v940, %v940
      %v963 = vcombine.low %v941, %v941
      %v964 = vcombine.low %v942, %v942
      %v965 = vcombine.low %v943, %v943
      %v966 = vcombine.low %v944, %v944
      %v967 = vcombine.low %v945, %v945
      %v968 = vcombine.low %v946, %v946
      %v969 = vcombine.low %v947, %v947
      %981 = vst [vmem:[#allocation4 + $0xb0] sm:$0x70] %v959
      %982 = vst [vmem:[#allocation4 + $0xb8] sm:$0x70] %v937
      %983 = vst [vmem:[#allocation4 + $0xc0] sm:$0x70] %v960
      %984 = vst [vmem:[#allocation4 + $0xc8] sm:$0x70] %v938
      %985 = vst [vmem:[#allocation4 + $0xd0] sm:$0x70] %v961
      %986 = vst [vmem:[#allocation4 + $0xd8] sm:$0x70] %v939
      %987 = vst [vmem:[#allocation4 + $0xe0] sm:$0x70] %v962
      %988 = vst [vmem:[#allocation4 + $0xe8] sm:$0x70] %v940
      %989 = vst [vmem:[#allocation4 + $0xf0] sm:$0x70] %v963
      %990 = vst [vmem:[#allocation4 + $0xf8] sm:$0x70] %v941
      %991 = vst [vmem:[#allocation4 + $0x100] sm:$0x70] %v964
      %992 = vst [vmem:[#allocation4 + $0x108] sm:$0x70] %v942
      %993 = vst [vmem:[#allocation4 + $0x110] sm:$0x70] %v965
      %994 = vst [vmem:[#allocation4 + $0x118] sm:$0x70] %v943
      %995 = vst [vmem:[#allocation4 + $0x120] sm:$0x70] %v966
      %996 = vst [vmem:[#allocation4 + $0x128] sm:$0x70] %v944
      %997 = vst [vmem:[#allocation4 + $0x130] sm:$0x70] %v967
      %998 = vst [vmem:[#allocation4 + $0x138] sm:$0x70] %v945
      %999 = vst [vmem:[#allocation4 + $0x140] sm:$0x70] %v968
      %1000 = vst [vmem:[#allocation4 + $0x148] sm:$0x70] %v946
      %1001 = vst [vmem:[#allocation4 + $0x150] sm:$0x70] %v969
      %1002 = vst [vmem:[#allocation4 + $0x158] sm:$0x70] %v947
      %v1003 = vld [vmem:[#allocation2 + $0x4] sm:$0x77]
      %v1004 = vld [vmem:[#allocation2 + $0xc] sm:$0x77]
      %v1005 = vld [vmem:[#allocation2 + $0x14] sm:$0x77]
      %v1006 = vld [vmem:[#allocation2 + $0x1c] sm:$0x77]
      %v1007 = vld [vmem:[#allocation2 + $0x24] sm:$0x77]
      %v1008 = vld [vmem:[#allocation2 + $0x2c] sm:$0x77]
      %v1009 = vld [vmem:[#allocation2 + $0x34] sm:$0x77]
      %v1010 = vld [vmem:[#allocation2 + $0x3c] sm:$0x77]
      %v1011 = vld [vmem:[#allocation2 + $0x44] sm:$0x77]
      %v1012 = vld [vmem:[#allocation2 + $0x4c] sm:$0x77]
      %v1013 = vld [vmem:[#allocation2 + $0x54] sm:$0x77]
      %v1014 = vld [vmem:[#allocation2 + $0x5c] sm:$0x7]
      %v1027 = vcombine.high %v1003, %v1003
      %v1028 = vcombine.high %v1004, %v1004
      %v1029 = vcombine.high %v1005, %v1005
      %v1030 = vcombine.high %v1006, %v1006
      %v1031 = vcombine.high %v1007, %v1007
      %v1032 = vcombine.high %v1008, %v1008
      %v1033 = vcombine.high %v1009, %v1009
      %v1034 = vcombine.high %v1010, %v1010
      %v1035 = vcombine.high %v1011, %v1011
      %v1036 = vcombine.high %v1012, %v1012
      %v1037 = vcombine.high %v1013, %v1013
      %v1038 = vrot.slane %v1003, 1
      %v1039 = vrot.slane %v1027, 1
      %v1040 = vrot.slane %v1004, 1
      %v1041 = vrot.slane %v1028, 1
      %v1042 = vrot.slane %v1005, 1
      %v1043 = vrot.slane %v1029, 1
      %v1044 = vrot.slane %v1006, 1
      %v1045 = vrot.slane %v1030, 1
      %v1046 = vrot.slane %v1007, 1
      %v1047 = vrot.slane %v1031, 1
      %v1048 = vrot.slane %v1008, 1
      %v1049 = vrot.slane %v1032, 1
      %v1050 = vrot.slane %v1009, 1
      %v1051 = vrot.slane %v1033, 1
      %v1052 = vrot.slane %v1010, 1
      %v1053 = vrot.slane %v1034, 1
      %v1054 = vrot.slane %v1011, 1
      %v1055 = vrot.slane %v1035, 1
      %v1056 = vrot.slane %v1012, 1
      %v1057 = vrot.slane %v1036, 1
      %v1058 = vrot.slane %v1013, 1
      %v1059 = vrot.slane %v1037, 1
      %v1060 = vrot.slane %v1014, 1
      %1061 = vrot.lane.b32.xlu0 %v1038, 127
      %v1062 = vpop.permute.xlu0 %1061
      %1063 = vrot.lane.b32.xlu0 %v1039, 127
      %v1064 = vpop.permute.xlu0 %1063
      %1065 = vrot.lane.b32.xlu0 %v1040, 127
      %v1066 = vpop.permute.xlu0 %1065
      %1067 = vrot.lane.b32.xlu0 %v1041, 127
      %v1068 = vpop.permute.xlu0 %1067
      %1069 = vrot.lane.b32.xlu0 %v1042, 127
      %v1070 = vpop.permute.xlu0 %1069
      %1071 = vrot.lane.b32.xlu0 %v1043, 127
      %v1072 = vpop.permute.xlu0 %1071
      %1073 = vrot.lane.b32.xlu0 %v1044, 127
      %v1074 = vpop.permute.xlu0 %1073
      %1075 = vrot.lane.b32.xlu0 %v1045, 127
      %v1076 = vpop.permute.xlu0 %1075
      %1077 = vrot.lane.b32.xlu0 %v1046, 127
      %v1078 = vpop.permute.xlu0 %1077
      %1079 = vrot.lane.b32.xlu0 %v1047, 127
      %v1080 = vpop.permute.xlu0 %1079
      %1081 = vrot.lane.b32.xlu0 %v1048, 127
      %v1082 = vpop.permute.xlu0 %1081
      %1083 = vrot.lane.b32.xlu0 %v1049, 127
      %v1084 = vpop.permute.xlu0 %1083
      %1085 = vrot.lane.b32.xlu0 %v1050, 127
      %v1086 = vpop.permute.xlu0 %1085
      %1087 = vrot.lane.b32.xlu0 %v1051, 127
      %v1088 = vpop.permute.xlu0 %1087
      %1089 = vrot.lane.b32.xlu0 %v1052, 127
      %v1090 = vpop.permute.xlu0 %1089
      %1091 = vrot.lane.b32.xlu0 %v1053, 127
      %v1092 = vpop.permute.xlu0 %1091
      %1093 = vrot.lane.b32.xlu0 %v1054, 127
      %v1094 = vpop.permute.xlu0 %1093
      %1095 = vrot.lane.b32.xlu0 %v1055, 127
      %v1096 = vpop.permute.xlu0 %1095
      %1097 = vrot.lane.b32.xlu0 %v1056, 127
      %v1098 = vpop.permute.xlu0 %1097
      %1099 = vrot.lane.b32.xlu0 %v1057, 127
      %v1100 = vpop.permute.xlu0 %1099
      %1101 = vrot.lane.b32.xlu0 %v1058, 127
      %v1102 = vpop.permute.xlu0 %1101
      %1103 = vrot.lane.b32.xlu0 %v1059, 127
      %v1104 = vpop.permute.xlu0 %1103
      %1105 = vrot.lane.b32.xlu0 %v1060, 127
      %v1106 = vpop.permute.xlu0 %1105
      %vm1107 = vcmask 1039360
      %v1108 = vsel %vm1107, %v1062, %v1064
      %v1109 = vsel %vm1107, %v1064, %v1066
      %v1110 = vsel %vm1107, %v1066, %v1068
      %v1111 = vsel %vm1107, %v1068, %v1070
      %v1112 = vsel %vm1107, %v1070, %v1072
      %v1113 = vsel %vm1107, %v1072, %v1074
      %v1114 = vsel %vm1107, %v1074, %v1076
      %v1115 = vsel %vm1107, %v1076, %v1078
      %v1116 = vsel %vm1107, %v1078, %v1080
      %v1117 = vsel %vm1107, %v1080, %v1082
      %v1118 = vsel %vm1107, %v1082, %v1084
      %v1119 = vsel %vm1107, %v1084, %v1086
      %v1120 = vsel %vm1107, %v1086, %v1088
      %v1121 = vsel %vm1107, %v1088, %v1090
      %v1122 = vsel %vm1107, %v1090, %v1092
      %v1123 = vsel %vm1107, %v1092, %v1094
      %v1124 = vsel %vm1107, %v1094, %v1096
      %v1125 = vsel %vm1107, %v1096, %v1098
      %v1126 = vsel %vm1107, %v1098, %v1100
      %v1127 = vsel %vm1107, %v1100, %v1102
      %v1128 = vsel %vm1107, %v1102, %v1104
      %v1129 = vsel %vm1107, %v1104, %v1106
      %1152 = vst [vmem:[#allocation4 + $0xb0] sm:$0x80] %v1108
      %1153 = vst [vmem:[#allocation4 + $0xb8] sm:$0x80] %v1109
      %1154 = vst [vmem:[#allocation4 + $0xc0] sm:$0x80] %v1110
      %1155 = vst [vmem:[#allocation4 + $0xc8] sm:$0x80] %v1111
      %1156 = vst [vmem:[#allocation4 + $0xd0] sm:$0x80] %v1112
      %1157 = vst [vmem:[#allocation4 + $0xd8] sm:$0x80] %v1113
      %1158 = vst [vmem:[#allocation4 + $0xe0] sm:$0x80] %v1114
      %1159 = vst [vmem:[#allocation4 + $0xe8] sm:$0x80] %v1115
      %1160 = vst [vmem:[#allocation4 + $0xf0] sm:$0x80] %v1116
      %1161 = vst [vmem:[#allocation4 + $0xf8] sm:$0x80] %v1117
      %1162 = vst [vmem:[#allocation4 + $0x100] sm:$0x80] %v1118
      %1163 = vst [vmem:[#allocation4 + $0x108] sm:$0x80] %v1119
      %1164 = vst [vmem:[#allocation4 + $0x110] sm:$0x80] %v1120
      %1165 = vst [vmem:[#allocation4 + $0x118] sm:$0x80] %v1121
      %1166 = vst [vmem:[#allocation4 + $0x120] sm:$0x80] %v1122
      %1167 = vst [vmem:[#allocation4 + $0x128] sm:$0x80] %v1123
      %1168 = vst [vmem:[#allocation4 + $0x130] sm:$0x80] %v1124
      %1169 = vst [vmem:[#allocation4 + $0x138] sm:$0x80] %v1125
      %1170 = vst [vmem:[#allocation4 + $0x140] sm:$0x80] %v1126
      %1171 = vst [vmem:[#allocation4 + $0x148] sm:$0x80] %v1127
      %1172 = vst [vmem:[#allocation4 + $0x150] sm:$0x80] %v1128
      %1173 = vst [vmem:[#allocation4 + $0x158] sm:$0x80] %v1129
      %1174 = vst [vmem:[#allocation4 + $0x160] sm:$0x3] %v1108
      %1175 = vst [vmem:[#allocation4 + $0x168] sm:$0x3] %v1109
      %1176 = vst [vmem:[#allocation4 + $0x170] sm:$0x3] %v1110
      %1177 = vst [vmem:[#allocation4 + $0x178] sm:$0x3] %v1111
      %1178 = vst [vmem:[#allocation4 + $0x180] sm:$0x3] %v1112
      %1179 = vst [vmem:[#allocation4 + $0x188] sm:$0x3] %v1113
      %1180 = vst [vmem:[#allocation4 + $0x190] sm:$0x3] %v1114
      %1181 = vst [vmem:[#allocation4 + $0x198] sm:$0x3] %v1115
      %1182 = vst [vmem:[#allocation4 + $0x1a0] sm:$0x3] %v1116
      %1183 = vst [vmem:[#allocation4 + $0x1a8] sm:$0x3] %v1117
      %1184 = vst [vmem:[#allocation4 + $0x1b0] sm:$0x3] %v1118
      %1185 = vst [vmem:[#allocation4 + $0x1b8] sm:$0x3] %v1119
      %1186 = vst [vmem:[#allocation4 + $0x1c0] sm:$0x3] %v1120
      %1187 = vst [vmem:[#allocation4 + $0x1c8] sm:$0x3] %v1121
      %1188 = vst [vmem:[#allocation4 + $0x1d0] sm:$0x3] %v1122
      %1189 = vst [vmem:[#allocation4 + $0x1d8] sm:$0x3] %v1123
      %1190 = vst [vmem:[#allocation4 + $0x1e0] sm:$0x3] %v1124
      %1191 = vst [vmem:[#allocation4 + $0x1e8] sm:$0x3] %v1125
      %1192 = vst [vmem:[#allocation4 + $0x1f0] sm:$0x3] %v1126
      %1193 = vst [vmem:[#allocation4 + $0x1f8] sm:$0x3] %v1127
      %1194 = vst [vmem:[#allocation4 + $0x200] sm:$0x3] %v1128
      %1195 = vst [vmem:[#allocation4 + $0x208] sm:$0x3] %v1129
      %v1196 = vld [vmem:[#allocation2 + $0x4] sm:$0x77]
      %v1197 = vld [vmem:[#allocation2 + $0xc] sm:$0x77]
      %v1198 = vld [vmem:[#allocation2 + $0x14] sm:$0x77]
      %v1199 = vld [vmem:[#allocation2 + $0x1c] sm:$0x77]
      %v1200 = vld [vmem:[#allocation2 + $0x24] sm:$0x77]
      %v1201 = vld [vmem:[#allocation2 + $0x2c] sm:$0x77]
      %v1202 = vld [vmem:[#allocation2 + $0x34] sm:$0x77]
      %v1203 = vld [vmem:[#allocation2 + $0x3c] sm:$0x77]
      %v1204 = vld [vmem:[#allocation2 + $0x44] sm:$0x77]
      %v1205 = vld [vmem:[#allocation2 + $0x4c] sm:$0x77]
      %v1206 = vld [vmem:[#allocation2 + $0x54] sm:$0x77]
      %v1207 = vld [vmem:[#allocation2 + $0x5c] sm:$0x7]
      %v1220 = vcombine.high %v1196, %v1196
      %v1221 = vcombine.high %v1197, %v1197
      %v1222 = vcombine.high %v1198, %v1198
      %v1223 = vcombine.high %v1199, %v1199
      %v1224 = vcombine.high %v1200, %v1200
      %v1225 = vcombine.high %v1201, %v1201
      %v1226 = vcombine.high %v1202, %v1202
      %v1227 = vcombine.high %v1203, %v1203
      %v1228 = vcombine.high %v1204, %v1204
      %v1229 = vcombine.high %v1205, %v1205
      %v1230 = vcombine.high %v1206, %v1206
      %v1231 = vrot.slane %v1196, 6
      %v1232 = vrot.slane %v1220, 6
      %v1233 = vrot.slane %v1197, 6
      %v1234 = vrot.slane %v1221, 6
      %v1235 = vrot.slane %v1198, 6
      %v1236 = vrot.slane %v1222, 6
      %v1237 = vrot.slane %v1199, 6
      %v1238 = vrot.slane %v1223, 6
      %v1239 = vrot.slane %v1200, 6
      %v1240 = vrot.slane %v1224, 6
      %v1241 = vrot.slane %v1201, 6
      %v1242 = vrot.slane %v1225, 6
      %v1243 = vrot.slane %v1202, 6
      %v1244 = vrot.slane %v1226, 6
      %v1245 = vrot.slane %v1203, 6
      %v1246 = vrot.slane %v1227, 6
      %v1247 = vrot.slane %v1204, 6
      %v1248 = vrot.slane %v1228, 6
      %v1249 = vrot.slane %v1205, 6
      %v1250 = vrot.slane %v1229, 6
      %v1251 = vrot.slane %v1206, 6
      %v1252 = vrot.slane %v1230, 6
      %v1253 = vrot.slane %v1207, 6
      %1254 = vrot.lane.b32.xlu0 %v1231, 93
      %v1255 = vpop.permute.xlu0 %1254
      %1256 = vrot.lane.b32.xlu0 %v1232, 93
      %v1257 = vpop.permute.xlu0 %1256
      %1258 = vrot.lane.b32.xlu0 %v1233, 93
      %v1259 = vpop.permute.xlu0 %1258
      %1260 = vrot.lane.b32.xlu0 %v1234, 93
      %v1261 = vpop.permute.xlu0 %1260
      %1262 = vrot.lane.b32.xlu0 %v1235, 93
      %v1263 = vpop.permute.xlu0 %1262
      %1264 = vrot.lane.b32.xlu0 %v1236, 93
      %v1265 = vpop.permute.xlu0 %1264
      %1266 = vrot.lane.b32.xlu0 %v1237, 93
      %v1267 = vpop.permute.xlu0 %1266
      %1268 = vrot.lane.b32.xlu0 %v1238, 93
      %v1269 = vpop.permute.xlu0 %1268
      %1270 = vrot.lane.b32.xlu0 %v1239, 93
      %v1271 = vpop.permute.xlu0 %1270
      %1272 = vrot.lane.b32.xlu0 %v1240, 93
      %v1273 = vpop.permute.xlu0 %1272
      %1274 = vrot.lane.b32.xlu0 %v1241, 93
      %v1275 = vpop.permute.xlu0 %1274
      %1276 = vrot.lane.b32.xlu0 %v1242, 93
      %v1277 = vpop.permute.xlu0 %1276
      %1278 = vrot.lane.b32.xlu0 %v1243, 93
      %v1279 = vpop.permute.xlu0 %1278
      %1280 = vrot.lane.b32.xlu0 %v1244, 93
      %v1281 = vpop.permute.xlu0 %1280
      %1282 = vrot.lane.b32.xlu0 %v1245, 93
      %v1283 = vpop.permute.xlu0 %1282
      %1284 = vrot.lane.b32.xlu0 %v1246, 93
      %v1285 = vpop.permute.xlu0 %1284
      %1286 = vrot.lane.b32.xlu0 %v1247, 93
      %v1287 = vpop.permute.xlu0 %1286
      %1288 = vrot.lane.b32.xlu0 %v1248, 93
      %v1289 = vpop.permute.xlu0 %1288
      %1290 = vrot.lane.b32.xlu0 %v1249, 93
      %v1291 = vpop.permute.xlu0 %1290
      %1292 = vrot.lane.b32.xlu0 %v1250, 93
      %v1293 = vpop.permute.xlu0 %1292
      %1294 = vrot.lane.b32.xlu0 %v1251, 93
      %v1295 = vpop.permute.xlu0 %1294
      %1296 = vrot.lane.b32.xlu0 %v1252, 93
      %v1297 = vpop.permute.xlu0 %1296
      %1298 = vrot.lane.b32.xlu0 %v1253, 93
      %v1299 = vpop.permute.xlu0 %1298
      %vm1300 = vcmask 760832
      %v1301 = vsel %vm1300, %v1255, %v1257
      %v1302 = vsel %vm1300, %v1257, %v1259
      %v1303 = vsel %vm1300, %v1259, %v1261
      %v1304 = vsel %vm1300, %v1261, %v1263
      %v1305 = vsel %vm1300, %v1263, %v1265
      %v1306 = vsel %vm1300, %v1265, %v1267
      %v1307 = vsel %vm1300, %v1267, %v1269
      %v1308 = vsel %vm1300, %v1269, %v1271
      %v1309 = vsel %vm1300, %v1271, %v1273
      %v1310 = vsel %vm1300, %v1273, %v1275
      %v1311 = vsel %vm1300, %v1275, %v1277
      %v1312 = vsel %vm1300, %v1277, %v1279
      %v1313 = vsel %vm1300, %v1279, %v1281
      %v1314 = vsel %vm1300, %v1281, %v1283
      %v1315 = vsel %vm1300, %v1283, %v1285
      %v1316 = vsel %vm1300, %v1285, %v1287
      %v1317 = vsel %vm1300, %v1287, %v1289
      %v1318 = vsel %vm1300, %v1289, %v1291
      %v1319 = vsel %vm1300, %v1291, %v1293
      %v1320 = vsel %vm1300, %v1293, %v1295
      %v1321 = vsel %vm1300, %v1295, %v1297
      %v1322 = vsel %vm1300, %v1297, %v1299
      %1345 = vst [vmem:[#allocation4 + $0x160] sm:$0x1c] %v1301
      %1346 = vst [vmem:[#allocation4 + $0x168] sm:$0x1c] %v1302
      %1347 = vst [vmem:[#allocation4 + $0x170] sm:$0x1c] %v1303
      %1348 = vst [vmem:[#allocation4 + $0x178] sm:$0x1c] %v1304
      %1349 = vst [vmem:[#allocation4 + $0x180] sm:$0x1c] %v1305
      %1350 = vst [vmem:[#allocation4 + $0x188] sm:$0x1c] %v1306
      %1351 = vst [vmem:[#allocation4 + $0x190] sm:$0x1c] %v1307
      %1352 = vst [vmem:[#allocation4 + $0x198] sm:$0x1c] %v1308
      %1353 = vst [vmem:[#allocation4 + $0x1a0] sm:$0x1c] %v1309
      %1354 = vst [vmem:[#allocation4 + $0x1a8] sm:$0x1c] %v1310
      %1355 = vst [vmem:[#allocation4 + $0x1b0] sm:$0x1c] %v1311
      %1356 = vst [vmem:[#allocation4 + $0x1b8] sm:$0x1c] %v1312
      %1357 = vst [vmem:[#allocation4 + $0x1c0] sm:$0x1c] %v1313
      %1358 = vst [vmem:[#allocation4 + $0x1c8] sm:$0x1c] %v1314
      %1359 = vst [vmem:[#allocation4 + $0x1d0] sm:$0x1c] %v1315
      %1360 = vst [vmem:[#allocation4 + $0x1d8] sm:$0x1c] %v1316
      %1361 = vst [vmem:[#allocation4 + $0x1e0] sm:$0x1c] %v1317
      %1362 = vst [vmem:[#allocation4 + $0x1e8] sm:$0x1c] %v1318
      %1363 = vst [vmem:[#allocation4 + $0x1f0] sm:$0x1c] %v1319
      %1364 = vst [vmem:[#allocation4 + $0x1f8] sm:$0x1c] %v1320
      %1365 = vst [vmem:[#allocation4 + $0x200] sm:$0x1c] %v1321
      %1366 = vst [vmem:[#allocation4 + $0x208] sm:$0x1c] %v1322
      %v1367 = vld [vmem:[#allocation2 + $0x4] sm:$0x77]
      %v1368 = vld [vmem:[#allocation2 + $0xc] sm:$0x77]
      %v1369 = vld [vmem:[#allocation2 + $0x14] sm:$0x77]
      %v1370 = vld [vmem:[#allocation2 + $0x1c] sm:$0x77]
      %v1371 = vld [vmem:[#allocation2 + $0x24] sm:$0x77]
      %v1372 = vld [vmem:[#allocation2 + $0x2c] sm:$0x77]
      %v1373 = vld [vmem:[#allocation2 + $0x34] sm:$0x77]
      %v1374 = vld [vmem:[#allocation2 + $0x3c] sm:$0x77]
      %v1375 = vld [vmem:[#allocation2 + $0x44] sm:$0x77]
      %v1376 = vld [vmem:[#allocation2 + $0x4c] sm:$0x77]
      %v1377 = vld [vmem:[#allocation2 + $0x54] sm:$0x77]
      %v1378 = vld [vmem:[#allocation2 + $0x5c] sm:$0x7]
      %v1391 = vcombine.high %v1367, %v1367
      %v1392 = vcombine.high %v1368, %v1368
      %v1393 = vcombine.high %v1369, %v1369
      %v1394 = vcombine.high %v1370, %v1370
      %v1395 = vcombine.high %v1371, %v1371
      %v1396 = vcombine.high %v1372, %v1372
      %v1397 = vcombine.high %v1373, %v1373
      %v1398 = vcombine.high %v1374, %v1374
      %v1399 = vcombine.high %v1375, %v1375
      %v1400 = vcombine.high %v1376, %v1376
      %v1401 = vcombine.high %v1377, %v1377
      %v1402 = vrot.slane %v1367, 3
      %v1403 = vrot.slane %v1391, 3
      %v1404 = vrot.slane %v1368, 3
      %v1405 = vrot.slane %v1392, 3
      %v1406 = vrot.slane %v1369, 3
      %v1407 = vrot.slane %v1393, 3
      %v1408 = vrot.slane %v1370, 3
      %v1409 = vrot.slane %v1394, 3
      %v1410 = vrot.slane %v1371, 3
      %v1411 = vrot.slane %v1395, 3
      %v1412 = vrot.slane %v1372, 3
      %v1413 = vrot.slane %v1396, 3
      %v1414 = vrot.slane %v1373, 3
      %v1415 = vrot.slane %v1397, 3
      %v1416 = vrot.slane %v1374, 3
      %v1417 = vrot.slane %v1398, 3
      %v1418 = vrot.slane %v1375, 3
      %v1419 = vrot.slane %v1399, 3
      %v1420 = vrot.slane %v1376, 3
      %v1421 = vrot.slane %v1400, 3
      %v1422 = vrot.slane %v1377, 3
      %v1423 = vrot.slane %v1401, 3
      %v1424 = vrot.slane %v1378, 3
      %1425 = vrot.lane.b32.xlu0 %v1402, 92
      %v1426 = vpop.permute.xlu0 %1425
      %1427 = vrot.lane.b32.xlu0 %v1403, 92
      %v1428 = vpop.permute.xlu0 %1427
      %1429 = vrot.lane.b32.xlu0 %v1404, 92
      %v1430 = vpop.permute.xlu0 %1429
      %1431 = vrot.lane.b32.xlu0 %v1405, 92
      %v1432 = vpop.permute.xlu0 %1431
      %1433 = vrot.lane.b32.xlu0 %v1406, 92
      %v1434 = vpop.permute.xlu0 %1433
      %1435 = vrot.lane.b32.xlu0 %v1407, 92
      %v1436 = vpop.permute.xlu0 %1435
      %1437 = vrot.lane.b32.xlu0 %v1408, 92
      %v1438 = vpop.permute.xlu0 %1437
      %1439 = vrot.lane.b32.xlu0 %v1409, 92
      %v1440 = vpop.permute.xlu0 %1439
      %1441 = vrot.lane.b32.xlu0 %v1410, 92
      %v1442 = vpop.permute.xlu0 %1441
      %1443 = vrot.lane.b32.xlu0 %v1411, 92
      %v1444 = vpop.permute.xlu0 %1443
      %1445 = vrot.lane.b32.xlu0 %v1412, 92
      %v1446 = vpop.permute.xlu0 %1445
      %1447 = vrot.lane.b32.xlu0 %v1413, 92
      %v1448 = vpop.permute.xlu0 %1447
      %1449 = vrot.lane.b32.xlu0 %v1414, 92
      %v1450 = vpop.permute.xlu0 %1449
      %1451 = vrot.lane.b32.xlu0 %v1415, 92
      %v1452 = vpop.permute.xlu0 %1451
      %1453 = vrot.lane.b32.xlu0 %v1416, 92
      %v1454 = vpop.permute.xlu0 %1453
      %1455 = vrot.lane.b32.xlu0 %v1417, 92
      %v1456 = vpop.permute.xlu0 %1455
      %1457 = vrot.lane.b32.xlu0 %v1418, 92
      %v1458 = vpop.permute.xlu0 %1457
      %1459 = vrot.lane.b32.xlu0 %v1419, 92
      %v1460 = vpop.permute.xlu0 %1459
      %1461 = vrot.lane.b32.xlu0 %v1420, 92
      %v1462 = vpop.permute.xlu0 %1461
      %1463 = vrot.lane.b32.xlu0 %v1421, 92
      %v1464 = vpop.permute.xlu0 %1463
      %1465 = vrot.lane.b32.xlu0 %v1422, 92
      %v1466 = vpop.permute.xlu0 %1465
      %1467 = vrot.lane.b32.xlu0 %v1423, 92
      %v1468 = vpop.permute.xlu0 %1467
      %1469 = vrot.lane.b32.xlu0 %v1424, 92
      %v1470 = vpop.permute.xlu0 %1469
      %vm1471 = vcmask 752640
      %v1472 = vsel %vm1471, %v1426, %v1428
      %v1473 = vsel %vm1471, %v1428, %v1430
      %v1474 = vsel %vm1471, %v1430, %v1432
      %v1475 = vsel %vm1471, %v1432, %v1434
      %v1476 = vsel %vm1471, %v1434, %v1436
      %v1477 = vsel %vm1471, %v1436, %v1438
      %v1478 = vsel %vm1471, %v1438, %v1440
      %v1479 = vsel %vm1471, %v1440, %v1442
      %v1480 = vsel %vm1471, %v1442, %v1444
      %v1481 = vsel %vm1471, %v1444, %v1446
      %v1482 = vsel %vm1471, %v1446, %v1448
      %v1483 = vsel %vm1471, %v1448, %v1450
      %v1484 = vsel %vm1471, %v1450, %v1452
      %v1485 = vsel %vm1471, %v1452, %v1454
      %v1486 = vsel %vm1471, %v1454, %v1456
      %v1487 = vsel %vm1471, %v1456, %v1458
      %v1488 = vsel %vm1471, %v1458, %v1460
      %v1489 = vsel %vm1471, %v1460, %v1462
      %v1490 = vsel %vm1471, %v1462, %v1464
      %v1491 = vsel %vm1471, %v1464, %v1466
      %v1492 = vsel %vm1471, %v1466, %v1468
      %v1493 = vsel %vm1471, %v1468, %v1470
      %1516 = vst [vmem:[#allocation4 + $0x160] sm:$0xe0] %v1472
      %1517 = vst [vmem:[#allocation4 + $0x168] sm:$0xe0] %v1473
      %1518 = vst [vmem:[#allocation4 + $0x170] sm:$0xe0] %v1474
      %1519 = vst [vmem:[#allocation4 + $0x178] sm:$0xe0] %v1475
      %1520 = vst [vmem:[#allocation4 + $0x180] sm:$0xe0] %v1476
      %1521 = vst [vmem:[#allocation4 + $0x188] sm:$0xe0] %v1477
      %1522 = vst [vmem:[#allocation4 + $0x190] sm:$0xe0] %v1478
      %1523 = vst [vmem:[#allocation4 + $0x198] sm:$0xe0] %v1479
      %1524 = vst [vmem:[#allocation4 + $0x1a0] sm:$0xe0] %v1480
      %1525 = vst [vmem:[#allocation4 + $0x1a8] sm:$0xe0] %v1481
      %1526 = vst [vmem:[#allocation4 + $0x1b0] sm:$0xe0] %v1482
      %1527 = vst [vmem:[#allocation4 + $0x1b8] sm:$0xe0] %v1483
      %1528 = vst [vmem:[#allocation4 + $0x1c0] sm:$0xe0] %v1484
      %1529 = vst [vmem:[#allocation4 + $0x1c8] sm:$0xe0] %v1485
      %1530 = vst [vmem:[#allocation4 + $0x1d0] sm:$0xe0] %v1486
      %1531 = vst [vmem:[#allocation4 + $0x1d8] sm:$0xe0] %v1487
      %1532 = vst [vmem:[#allocation4 + $0x1e0] sm:$0xe0] %v1488
      %1533 = vst [vmem:[#allocation4 + $0x1e8] sm:$0xe0] %v1489
      %1534 = vst [vmem:[#allocation4 + $0x1f0] sm:$0xe0] %v1490
      %1535 = vst [vmem:[#allocation4 + $0x1f8] sm:$0xe0] %v1491
      %1536 = vst [vmem:[#allocation4 + $0x200] sm:$0xe0] %v1492
      %1537 = vst [vmem:[#allocation4 + $0x208] sm:$0xe0] %v1493
      %v1538 = vld [vmem:[#allocation2 + $0x4] sm:$0x77]
      %v1539 = vld [vmem:[#allocation2 + $0xc] sm:$0x77]
      %v1540 = vld [vmem:[#allocation2 + $0x14] sm:$0x77]
      %v1541 = vld [vmem:[#allocation2 + $0x1c] sm:$0x77]
      %v1542 = vld [vmem:[#allocation2 + $0x24] sm:$0x77]
      %v1543 = vld [vmem:[#allocation2 + $0x2c] sm:$0x77]
      %v1544 = vld [vmem:[#allocation2 + $0x34] sm:$0x77]
      %v1545 = vld [vmem:[#allocation2 + $0x3c] sm:$0x77]
      %v1546 = vld [vmem:[#allocation2 + $0x44] sm:$0x77]
      %v1547 = vld [vmem:[#allocation2 + $0x4c] sm:$0x77]
      %v1548 = vld [vmem:[#allocation2 + $0x54] sm:$0x77]
      %v1549 = vld [vmem:[#allocation2 + $0x5c] sm:$0x7]
      %v1562 = vcombine.high %v1538, %v1538
      %v1563 = vcombine.high %v1539, %v1539
      %v1564 = vcombine.high %v1540, %v1540
      %v1565 = vcombine.high %v1541, %v1541
      %v1566 = vcombine.high %v1542, %v1542
      %v1567 = vcombine.high %v1543, %v1543
      %v1568 = vcombine.high %v1544, %v1544
      %v1569 = vcombine.high %v1545, %v1545
      %v1570 = vcombine.high %v1546, %v1546
      %v1571 = vcombine.high %v1547, %v1547
      %v1572 = vcombine.high %v1548, %v1548
      %1573 = vrot.lane.b32.xlu0 %v1538, 91
      %v1574 = vpop.permute.xlu0 %1573
      %1575 = vrot.lane.b32.xlu0 %v1562, 91
      %v1576 = vpop.permute.xlu0 %1575
      %1577 = vrot.lane.b32.xlu0 %v1539, 91
      %v1578 = vpop.permute.xlu0 %1577
      %1579 = vrot.lane.b32.xlu0 %v1563, 91
      %v1580 = vpop.permute.xlu0 %1579
      %1581 = vrot.lane.b32.xlu0 %v1540, 91
      %v1582 = vpop.permute.xlu0 %1581
      %1583 = vrot.lane.b32.xlu0 %v1564, 91
      %v1584 = vpop.permute.xlu0 %1583
      %1585 = vrot.lane.b32.xlu0 %v1541, 91
      %v1586 = vpop.permute.xlu0 %1585
      %1587 = vrot.lane.b32.xlu0 %v1565, 91
      %v1588 = vpop.permute.xlu0 %1587
      %1589 = vrot.lane.b32.xlu0 %v1542, 91
      %v1590 = vpop.permute.xlu0 %1589
      %1591 = vrot.lane.b32.xlu0 %v1566, 91
      %v1592 = vpop.permute.xlu0 %1591
      %1593 = vrot.lane.b32.xlu0 %v1543, 91
      %v1594 = vpop.permute.xlu0 %1593
      %1595 = vrot.lane.b32.xlu0 %v1567, 91
      %v1596 = vpop.permute.xlu0 %1595
      %1597 = vrot.lane.b32.xlu0 %v1544, 91
      %v1598 = vpop.permute.xlu0 %1597
      %1599 = vrot.lane.b32.xlu0 %v1568, 91
      %v1600 = vpop.permute.xlu0 %1599
      %1601 = vrot.lane.b32.xlu0 %v1545, 91
      %v1602 = vpop.permute.xlu0 %1601
      %1603 = vrot.lane.b32.xlu0 %v1569, 91
      %v1604 = vpop.permute.xlu0 %1603
      %1605 = vrot.lane.b32.xlu0 %v1546, 91
      %v1606 = vpop.permute.xlu0 %1605
      %1607 = vrot.lane.b32.xlu0 %v1570, 91
      %v1608 = vpop.permute.xlu0 %1607
      %1609 = vrot.lane.b32.xlu0 %v1547, 91
      %v1610 = vpop.permute.xlu0 %1609
      %1611 = vrot.lane.b32.xlu0 %v1571, 91
      %v1612 = vpop.permute.xlu0 %1611
      %1613 = vrot.lane.b32.xlu0 %v1548, 91
      %v1614 = vpop.permute.xlu0 %1613
      %1615 = vrot.lane.b32.xlu0 %v1572, 91
      %v1616 = vpop.permute.xlu0 %1615
      %1617 = vrot.lane.b32.xlu0 %v1549, 91
      %v1618 = vpop.permute.xlu0 %1617
      %vm1619 = vcmask 744448
      %v1620 = vsel %vm1619, %v1574, %v1576
      %v1621 = vsel %vm1619, %v1576, %v1578
      %v1622 = vsel %vm1619, %v1578, %v1580
      %v1623 = vsel %vm1619, %v1580, %v1582
      %v1624 = vsel %vm1619, %v1582, %v1584
      %v1625 = vsel %vm1619, %v1584, %v1586
      %v1626 = vsel %vm1619, %v1586, %v1588
      %v1627 = vsel %vm1619, %v1588, %v1590
      %v1628 = vsel %vm1619, %v1590, %v1592
      %v1629 = vsel %vm1619, %v1592, %v1594
      %v1630 = vsel %vm1619, %v1594, %v1596
      %v1631 = vsel %vm1619, %v1596, %v1598
      %v1632 = vsel %vm1619, %v1598, %v1600
      %v1633 = vsel %vm1619, %v1600, %v1602
      %v1634 = vsel %vm1619, %v1602, %v1604
      %v1635 = vsel %vm1619, %v1604, %v1606
      %v1636 = vsel %vm1619, %v1606, %v1608
      %v1637 = vsel %vm1619, %v1608, %v1610
      %v1638 = vsel %vm1619, %v1610, %v1612
      %v1639 = vsel %vm1619, %v1612, %v1614
      %v1640 = vsel %vm1619, %v1614, %v1616
      %v1641 = vsel %vm1619, %v1616, %v1618
      %1664 = vst [vmem:[#allocation4 + $0x210] sm:$0x7] %v1620
      %1665 = vst [vmem:[#allocation4 + $0x218] sm:$0x7] %v1621
      %1666 = vst [vmem:[#allocation4 + $0x220] sm:$0x7] %v1622
      %1667 = vst [vmem:[#allocation4 + $0x228] sm:$0x7] %v1623
      %1668 = vst [vmem:[#allocation4 + $0x230] sm:$0x7] %v1624
      %1669 = vst [vmem:[#allocation4 + $0x238] sm:$0x7] %v1625
      %1670 = vst [vmem:[#allocation4 + $0x240] sm:$0x7] %v1626
      %1671 = vst [vmem:[#allocation4 + $0x248] sm:$0x7] %v1627
      %1672 = vst [vmem:[#allocation4 + $0x250] sm:$0x7] %v1628
      %1673 = vst [vmem:[#allocation4 + $0x258] sm:$0x7] %v1629
      %1674 = vst [vmem:[#allocation4 + $0x260] sm:$0x7] %v1630
      %1675 = vst [vmem:[#allocation4 + $0x268] sm:$0x7] %v1631
      %1676 = vst [vmem:[#allocation4 + $0x270] sm:$0x7] %v1632
      %1677 = vst [vmem:[#allocation4 + $0x278] sm:$0x7] %v1633
      %1678 = vst [vmem:[#allocation4 + $0x280] sm:$0x7] %v1634
      %1679 = vst [vmem:[#allocation4 + $0x288] sm:$0x7] %v1635
      %1680 = vst [vmem:[#allocation4 + $0x290] sm:$0x7] %v1636
      %1681 = vst [vmem:[#allocation4 + $0x298] sm:$0x7] %v1637
      %1682 = vst [vmem:[#allocation4 + $0x2a0] sm:$0x7] %v1638
      %1683 = vst [vmem:[#allocation4 + $0x2a8] sm:$0x7] %v1639
      %1684 = vst [vmem:[#allocation4 + $0x2b0] sm:$0x7] %v1640
      %1685 = vst [vmem:[#allocation4 + $0x2b8] sm:$0x7] %v1641
      %v1686 = vld [vmem:[%s1] sm:$0xff]
      %v1687 = vld [vmem:[%s1 + $0x8] sm:$0xf]
      %v1688 = vld [vmem:[#allocation4] sm:$0xff]
      %v1689 = vld [vmem:[#allocation4 + $0x8] sm:$0xff]
      %v1690 = vld [vmem:[#allocation4 + $0x10] sm:$0xff]
      %v1691 = vld [vmem:[#allocation4 + $0x18] sm:$0xff]
      %v1692 = vld [vmem:[#allocation4 + $0x20] sm:$0xff]
      %v1693 = vld [vmem:[#allocation4 + $0x28] sm:$0xff]
      %v1694 = vld [vmem:[#allocation4 + $0x30] sm:$0xff]
      %v1695 = vld [vmem:[#allocation4 + $0x38] sm:$0xff]
      %v1696 = vld [vmem:[#allocation4 + $0x40] sm:$0xff]
      %v1697 = vld [vmem:[#allocation4 + $0x48] sm:$0xff]
      %v1698 = vld [vmem:[#allocation4 + $0x50] sm:$0xff]
      %v1699 = vld [vmem:[#allocation4 + $0x58] sm:$0xff]
      %v1700 = vld [vmem:[#allocation4 + $0x60] sm:$0xff]
      %v1701 = vld [vmem:[#allocation4 + $0x68] sm:$0xff]
      %v1702 = vld [vmem:[#allocation4 + $0x70] sm:$0xff]
      %v1703 = vld [vmem:[#allocation4 + $0x78] sm:$0xff]
      %v1704 = vld [vmem:[#allocation4 + $0x80] sm:$0xff]
      %v1705 = vld [vmem:[#allocation4 + $0x88] sm:$0xff]
      %v1706 = vld [vmem:[#allocation4 + $0x90] sm:$0xff]
      %v1707 = vld [vmem:[#allocation4 + $0x98] sm:$0xff]
      %v1708 = vld [vmem:[#allocation4 + $0xa0] sm:$0xff]
      %v1709 = vld [vmem:[#allocation4 + $0xa8] sm:$0xff]
      %v1710 = vld [vmem:[#allocation4 + $0xb0] sm:$0xff]
      %v1711 = vld [vmem:[#allocation4 + $0xb8] sm:$0xff]
      %v1712 = vld [vmem:[#allocation4 + $0xc0] sm:$0xff]
      %v1713 = vld [vmem:[#allocation4 + $0xc8] sm:$0xff]
      %v1714 = vld [vmem:[#allocation4 + $0xd0] sm:$0xff]
      %v1715 = vld [vmem:[#allocation4 + $0xd8] sm:$0xff]
      %v1716 = vld [vmem:[#allocation4 + $0xe0] sm:$0xff]
      %v1717 = vld [vmem:[#allocation4 + $0xe8] sm:$0xff]
      %v1718 = vld [vmem:[#allocation4 + $0xf0] sm:$0xff]
      %v1719 = vld [vmem:[#allocation4 + $0xf8] sm:$0xff]
      %v1720 = vld [vmem:[#allocation4 + $0x100] sm:$0xff]
      %v1721 = vld [vmem:[#allocation4 + $0x108] sm:$0xff]
      %v1722 = vld [vmem:[#allocation4 + $0x110] sm:$0xff]
      %v1723 = vld [vmem:[#allocation4 + $0x118] sm:$0xff]
      %v1724 = vld [vmem:[#allocation4 + $0x120] sm:$0xff]
      %v1725 = vld [vmem:[#allocation4 + $0x128] sm:$0xff]
      %v1726 = vld [vmem:[#allocation4 + $0x130] sm:$0xff]
      %v1727 = vld [vmem:[#allocation4 + $0x138] sm:$0xff]
      %v1728 = vld [vmem:[#allocation4 + $0x140] sm:$0xff]
      %v1729 = vld [vmem:[#allocation4 + $0x148] sm:$0xff]
      %v1730 = vld [vmem:[#allocation4 + $0x150] sm:$0xff]
      %v1731 = vld [vmem:[#allocation4 + $0x158] sm:$0xff]
      %v1732 = vld [vmem:[#allocation4 + $0x160] sm:$0xff]
      %v1733 = vld [vmem:[#allocation4 + $0x168] sm:$0xff]
      %v1734 = vld [vmem:[#allocation4 + $0x170] sm:$0xff]
      %v1735 = vld [vmem:[#allocation4 + $0x178] sm:$0xff]
      %v1736 = vld [vmem:[#allocation4 + $0x180] sm:$0xff]
      %v1737 = vld [vmem:[#allocation4 + $0x188] sm:$0xff]
      %v1738 = vld [vmem:[#allocation4 + $0x190] sm:$0xff]
      %v1739 = vld [vmem:[#allocation4 + $0x198] sm:$0xff]
      %v1740 = vld [vmem:[#allocation4 + $0x1a0] sm:$0xff]
      %v1741 = vld [vmem:[#allocation4 + $0x1a8] sm:$0xff]
      %v1742 = vld [vmem:[#allocation4 + $0x1b0] sm:$0xff]
      %v1743 = vld [vmem:[#allocation4 + $0x1b8] sm:$0xff]
      %v1744 = vld [vmem:[#allocation4 + $0x1c0] sm:$0xff]
      %v1745 = vld [vmem:[#allocation4 + $0x1c8] sm:$0xff]
      %v1746 = vld [vmem:[#allocation4 + $0x1d0] sm:$0xff]
      %v1747 = vld [vmem:[#allocation4 + $0x1d8] sm:$0xff]
      %v1748 = vld [vmem:[#allocation4 + $0x1e0] sm:$0xff]
      %v1749 = vld [vmem:[#allocation4 + $0x1e8] sm:$0xff]
      %v1750 = vld [vmem:[#allocation4 + $0x1f0] sm:$0xff]
      %v1751 = vld [vmem:[#allocation4 + $0x1f8] sm:$0xff]
      %v1752 = vld [vmem:[#allocation4 + $0x200] sm:$0xff]
      %v1753 = vld [vmem:[#allocation4 + $0x208] sm:$0xff]
      %v1754 = vld [vmem:[#allocation4 + $0x210] sm:$0x7]
      %v1755 = vld [vmem:[#allocation4 + $0x218] sm:$0x7]
      %v1756 = vld [vmem:[#allocation4 + $0x220] sm:$0x7]
      %v1757 = vld [vmem:[#allocation4 + $0x228] sm:$0x7]
      %v1758 = vld [vmem:[#allocation4 + $0x230] sm:$0x7]
      %v1759 = vld [vmem:[#allocation4 + $0x238] sm:$0x7]
      %v1760 = vld [vmem:[#allocation4 + $0x240] sm:$0x7]
      %v1761 = vld [vmem:[#allocation4 + $0x248] sm:$0x7]
      %v1762 = vld [vmem:[#allocation4 + $0x250] sm:$0x7]
      %v1763 = vld [vmem:[#allocation4 + $0x258] sm:$0x7]
      %v1764 = vld [vmem:[#allocation4 + $0x260] sm:$0x7]
      %v1765 = vld [vmem:[#allocation4 + $0x268] sm:$0x7]
      %v1766 = vld [vmem:[#allocation4 + $0x270] sm:$0x7]
      %v1767 = vld [vmem:[#allocation4 + $0x278] sm:$0x7]
      %v1768 = vld [vmem:[#allocation4 + $0x280] sm:$0x7]
      %v1769 = vld [vmem:[#allocation4 + $0x288] sm:$0x7]
      %v1770 = vld [vmem:[#allocation4 + $0x290] sm:$0x7]
      %v1771 = vld [vmem:[#allocation4 + $0x298] sm:$0x7]
      %v1772 = vld [vmem:[#allocation4 + $0x2a0] sm:$0x7]
      %v1773 = vld [vmem:[#allocation4 + $0x2a8] sm:$0x7]
      %v1774 = vld [vmem:[#allocation4 + $0x2b0] sm:$0x7]
      %v1775 = vld [vmem:[#allocation4 + $0x2b8] sm:$0x7]
      %v1776 = vld [vmem:[%s2] sm:$0xff]
      %v1777 = vld [vmem:[%s2 + $0x8] sm:$0xf]
      %1779 = vset.pattern.permute.xlu0 0
      %1780 = vperm.xlu0 %1779, %v1776
      %v1781 = vpop.permute.xlu0 %1780
      %1784 = vset.pattern.permute.xlu0 0
      %1785 = vperm.xlu0 %1784, %v1777
      %v1786 = vpop.permute.xlu0 %1785
      %vm1788 = vcmask 220160
      %v1790 = vsel %vm1788, %v1686, 0
      %v1793 = vsel %vm1788, %v1687, 0
      %vm1795 = vcmask 1042432
      %v1797 = vsel %vm1795, %v1754, 0
      %v1800 = vsel %vm1795, %v1755, 0
      %v1803 = vsel %vm1795, %v1756, 0
      %v1806 = vsel %vm1795, %v1757, 0
      %v1809 = vsel %vm1795, %v1758, 0
      %v1812 = vsel %vm1795, %v1759, 0
      %v1815 = vsel %vm1795, %v1760, 0
      %v1818 = vsel %vm1795, %v1761, 0
      %v1821 = vsel %vm1795, %v1762, 0
      %v1824 = vsel %vm1795, %v1763, 0
      %v1827 = vsel %vm1795, %v1764, 0
      %v1830 = vsel %vm1795, %v1765, 0
      %v1833 = vsel %vm1795, %v1766, 0
      %v1836 = vsel %vm1795, %v1767, 0
      %v1839 = vsel %vm1795, %v1768, 0
      %v1842 = vsel %vm1795, %v1769, 0
      %v1845 = vsel %vm1795, %v1770, 0
      %v1848 = vsel %vm1795, %v1771, 0
      %v1851 = vsel %vm1795, %v1772, 0
      %v1854 = vsel %vm1795, %v1773, 0
      %v1857 = vsel %vm1795, %v1774, 0
      %v1860 = vsel %vm1795, %v1775, 0
      %1862 = vmatprep.subr.mxu0 %v1689
      %1863 = vmatpush1.msra.mxu0 %v1688
      %1864 = vmatprep.subr.mxu0 %v1711
      %1865 = vmatpush1.msra.mxu0 %v1710
      %1866 = vmatprep.subr.mxu0 %v1733
      %1867 = vmatpush1.msra.mxu0 %v1732
      %1868 = vmatprep.subr.mxu0 %v1800
      %1869 = vmatpush1.msra.mxu0 %v1797
      %1870 = vmatprep.subr.mxu0 0.0
      %1871 = vmatpush1.msra.mxu0 0.0
      %1872 = vmatprep.subr.mxu0 0.0
      %1873 = vmatpush1.msra.mxu0 0.0
      %1874 = vmatprep.subr.mxu0 0.0
      %1875 = vmatpush1.msra.mxu0 0.0
      %1876 = vmatprep.subr.mxu0 0.0
      %1877 = vmatpush1.msra.mxu0 0.0
      %1878 = vmatprep.subr.mxu0 0.0
      %1879 = vmatpush1.msra.mxu0 0.0
      %1880 = vmatprep.subr.mxu0 0.0
      %1881 = vmatpush1.msra.mxu0 0.0
      %1882 = vmatprep.subr.mxu0 0.0
      %1883 = vmatpush1.msra.mxu0 0.0
      %1884 = vmatprep.subr.mxu0 0.0
      %1885 = vmatpush1.msra.mxu0 0.0
      %1886 = vmatprep.subr.mxu0 0.0
      %1887 = vmatpush1.msra.mxu0 0.0
      %1888 = vmatprep.subr.mxu0 0.0
      %1889 = vmatpush1.msra.mxu0 0.0
      %1890 = vmatprep.subr.mxu0 0.0
      %1891 = vmatpush1.msra.mxu0 0.0
      %1892 = vmatprep.subr.mxu0 0.0
      %1893 = vmatpush1.msra.mxu0 0.0
      %1894 = vmatprep.subr.mxu0 0.0
      %1895 = vmatpush1.msra.mxu0 0.0
      %1896 = vmatprep.subr.mxu0 0.0
      %1897 = vmatpush1.msra.mxu0 0.0
      %1898 = vmatprep.subr.mxu0 0.0
      %1899 = vmatpush1.msra.mxu0 0.0
      %1900 = vmatprep.subr.mxu0 0.0
      %1901 = vmatpush1.msra.mxu0 0.0
      %1902 = vmatprep.subr.mxu0 0.0
      %1903 = vmatpush1.msra.mxu0 0.0
      %1904 = vmatprep.subr.mxu0 0.0
      %1905 = vmatpush1.msra.mxu0 0.0
      %1906 = vmatprep.subr.mxu0 0.0
      %1907 = vmatpush1.msra.mxu0 0.0
      %1908 = vmatprep.subr.mxu0 0.0
      %1909 = vmatpush1.msra.mxu0 0.0
      %1910 = vmatprep.subr.mxu0 0.0
      %1911 = vmatpush1.msra.mxu0 0.0
      %1912 = vmatprep.subr.mxu0 0.0
      %1913 = vmatpush1.msra.mxu0 0.0
      %1914 = vmatprep.subr.mxu0 0.0
      %1915 = vmatpush1.msra.mxu0 0.0
      %1916 = vmatprep.subr.mxu0 0.0
      %1917 = vmatpush1.msra.mxu0 0.0
      %1918 = vmatprep.subr.mxu0 0.0
      %1919 = vmatpush1.msra.mxu0 0.0
      %1920 = vmatprep.subr.mxu0 0.0
      %1921 = vmatpush1.msra.mxu0 0.0
      %1922 = vmatprep.subr.mxu0 0.0
      %1923 = vmatpush1.msra.mxu0 0.0
      %1924 = vmatprep.subr.mxu0 0.0
      %1925 = vmatpush1.msra.mxu0 0.0
      %1926 = vmatprep.mubr.f32.mxu0 0.0
      %1927 = vmatmul.mubr.f32.gmra.mrb[0].mxu0 %v1790
      %v1928 = vpop.f32.mrb[0].mxu0
      %v1929 = vadd.f32 %v1781, %v1928
      %v1930 = vpop.f32.mrb[0].mxu0
      %v1931 = vadd.f32 %v1781, %v1930
      %1932 = vmatprep.mubr.f32.mxu0 0.0
      %1933 = vmatmul.mubr.f32.gmra.mrb[0].mxu0 %v1793
      %v1934 = vpop.f32.mrb[0].mxu0
      %v1935 = vadd.f32 %v1786, %v1934
      %v1936 = vpop.f32.mrb[0].mxu0
      %v1937 = vadd.f32 %v1786, %v1936
      %1938 = vdwg.mxu0
      %1939 = vmatprep.subr.mxu0 %v1691
      %1940 = vmatpush1.msra.mxu0 %v1690
      %1941 = vmatprep.subr.mxu0 %v1713
      %1942 = vmatpush1.msra.mxu0 %v1712
      %1943 = vmatprep.subr.mxu0 %v1735
      %1944 = vmatpush1.msra.mxu0 %v1734
      %1945 = vmatprep.subr.mxu0 %v1806
      %1946 = vmatpush1.msra.mxu0 %v1803
      %1947 = vmatprep.subr.mxu0 0.0
      %1948 = vmatpush1.msra.mxu0 0.0
      %1949 = vmatprep.subr.mxu0 0.0
      %1950 = vmatpush1.msra.mxu0 0.0
      %1951 = vmatprep.subr.mxu0 0.0
      %1952 = vmatpush1.msra.mxu0 0.0
      %1953 = vmatprep.subr.mxu0 0.0
      %1954 = vmatpush1.msra.mxu0 0.0
      %1955 = vmatprep.subr.mxu0 0.0
      %1956 = vmatpush1.msra.mxu0 0.0
      %1957 = vmatprep.subr.mxu0 0.0
      %1958 = vmatpush1.msra.mxu0 0.0
      %1959 = vmatprep.subr.mxu0 0.0
      %1960 = vmatpush1.msra.mxu0 0.0
      %1961 = vmatprep.subr.mxu0 0.0
      %1962 = vmatpush1.msra.mxu0 0.0
      %1963 = vmatprep.subr.mxu0 0.0
      %1964 = vmatpush1.msra.mxu0 0.0
      %1965 = vmatprep.subr.mxu0 0.0
      %1966 = vmatpush1.msra.mxu0 0.0
      %1967 = vmatprep.subr.mxu0 0.0
      %1968 = vmatpush1.msra.mxu0 0.0
      %1969 = vmatprep.subr.mxu0 0.0
      %1970 = vmatpush1.msra.mxu0 0.0
      %1971 = vmatprep.subr.mxu0 0.0
      %1972 = vmatpush1.msra.mxu0 0.0
      %1973 = vmatprep.subr.mxu0 0.0
      %1974 = vmatpush1.msra.mxu0 0.0
      %1975 = vmatprep.subr.mxu0 0.0
      %1976 = vmatpush1.msra.mxu0 0.0
      %1977 = vmatprep.subr.mxu0 0.0
      %1978 = vmatpush1.msra.mxu0 0.0
      %1979 = vmatprep.subr.mxu0 0.0
      %1980 = vmatpush1.msra.mxu0 0.0
      %1981 = vmatprep.subr.mxu0 0.0
      %1982 = vmatpush1.msra.mxu0 0.0
      %1983 = vmatprep.subr.mxu0 0.0
      %1984 = vmatpush1.msra.mxu0 0.0
      %1985 = vmatprep.subr.mxu0 0.0
      %1986 = vmatpush1.msra.mxu0 0.0
      %1987 = vmatprep.subr.mxu0 0.0
      %1988 = vmatpush1.msra.mxu0 0.0
      %1989 = vmatprep.subr.mxu0 0.0
      %1990 = vmatpush1.msra.mxu0 0.0
      %1991 = vmatprep.subr.mxu0 0.0
      %1992 = vmatpush1.msra.mxu0 0.0
      %1993 = vmatprep.subr.mxu0 0.0
      %1994 = vmatpush1.msra.mxu0 0.0
      %1995 = vmatprep.subr.mxu0 0.0
      %1996 = vmatpush1.msra.mxu0 0.0
      %1997 = vmatprep.subr.mxu0 0.0
      %1998 = vmatpush1.msra.mxu0 0.0
      %1999 = vmatprep.subr.mxu0 0.0
      %2000 = vmatpush1.msra.mxu0 0.0
      %2001 = vmatprep.subr.mxu0 0.0
      %2002 = vmatpush1.msra.mxu0 0.0
      %2003 = vmatprep.mubr.f32.mxu0 0.0
      %2004 = vmatmul.mubr.f32.gmra.mrb[0].mxu0 %v1790
      %v2005 = vpop.f32.mrb[0].mxu0
      %v2006 = vadd.f32 %v1781, %v2005
      %v2007 = vpop.f32.mrb[0].mxu0
      %v2008 = vadd.f32 %v1781, %v2007
      %2009 = vmatprep.mubr.f32.mxu0 0.0
      %2010 = vmatmul.mubr.f32.gmra.mrb[0].mxu0 %v1793
      %v2011 = vpop.f32.mrb[0].mxu0
      %v2012 = vadd.f32 %v1786, %v2011
      %v2013 = vpop.f32.mrb[0].mxu0
      %v2014 = vadd.f32 %v1786, %v2013
      %2015 = vdwg.mxu0
      %2016 = vmatprep.subr.mxu0 %v1693
      %2017 = vmatpush1.msra.mxu0 %v1692
      %2018 = vmatprep.subr.mxu0 %v1715
      %2019 = vmatpush1.msra.mxu0 %v1714
      %2020 = vmatprep.subr.mxu0 %v1737
      %2021 = vmatpush1.msra.mxu0 %v1736
      %2022 = vmatprep.subr.mxu0 %v1812
      %2023 = vmatpush1.msra.mxu0 %v1809
      %2024 = vmatprep.subr.mxu0 0.0
      %2025 = vmatpush1.msra.mxu0 0.0
      %2026 = vmatprep.subr.mxu0 0.0
      %2027 = vmatpush1.msra.mxu0 0.0
      %2028 = vmatprep.subr.mxu0 0.0
      %2029 = vmatpush1.msra.mxu0 0.0
      %2030 = vmatprep.subr.mxu0 0.0
      %2031 = vmatpush1.msra.mxu0 0.0
      %2032 = vmatprep.subr.mxu0 0.0
      %2033 = vmatpush1.msra.mxu0 0.0
      %2034 = vmatprep.subr.mxu0 0.0
      %2035 = vmatpush1.msra.mxu0 0.0
      %2036 = vmatprep.subr.mxu0 0.0
      %2037 = vmatpush1.msra.mxu0 0.0
      %2038 = vmatprep.subr.mxu0 0.0
      %2039 = vmatpush1.msra.mxu0 0.0
      %2040 = vmatprep.subr.mxu0 0.0
      %2041 = vmatpush1.msra.mxu0 0.0
      %2042 = vmatprep.subr.mxu0 0.0
      %2043 = vmatpush1.msra.mxu0 0.0
      %2044 = vmatprep.subr.mxu0 0.0
      %2045 = vmatpush1.msra.mxu0 0.0
      %2046 = vmatprep.subr.mxu0 0.0
      %2047 = vmatpush1.msra.mxu0 0.0
      %2048 = vmatprep.subr.mxu0 0.0
      %2049 = vmatpush1.msra.mxu0 0.0
      %2050 = vmatprep.subr.mxu0 0.0
      %2051 = vmatpush1.msra.mxu0 0.0
      %2052 = vmatprep.subr.mxu0 0.0
      %2053 = vmatpush1.msra.mxu0 0.0
      %2054 = vmatprep.subr.mxu0 0.0
      %2055 = vmatpush1.msra.mxu0 0.0
      %2056 = vmatprep.subr.mxu0 0.0
      %2057 = vmatpush1.msra.mxu0 0.0
      %2058 = vmatprep.subr.mxu0 0.0
      %2059 = vmatpush1.msra.mxu0 0.0
      %2060 = vmatprep.subr.mxu0 0.0
      %2061 = vmatpush1.msra.mxu0 0.0
      %2062 = vmatprep.subr.mxu0 0.0
      %2063 = vmatpush1.msra.mxu0 0.0
      %2064 = vmatprep.subr.mxu0 0.0
      %2065 = vmatpush1.msra.mxu0 0.0
      %2066 = vmatprep.subr.mxu0 0.0
      %2067 = vmatpush1.msra.mxu0 0.0
      %2068 = vmatprep.subr.mxu0 0.0
      %2069 = vmatpush1.msra.mxu0 0.0
      %2070 = vmatprep.subr.mxu0 0.0
      %2071 = vmatpush1.msra.mxu0 0.0
      %2072 = vmatprep.subr.mxu0 0.0
      %2073 = vmatpush1.msra.mxu0 0.0
      %2074 = vmatprep.subr.mxu0 0.0
      %2075 = vmatpush1.msra.mxu0 0.0
      %2076 = vmatprep.subr.mxu0 0.0
      %2077 = vmatpush1.msra.mxu0 0.0
      %2078 = vmatprep.subr.mxu0 0.0
      %2079 = vmatpush1.msra.mxu0 0.0
      %2080 = vmatprep.mubr.f32.mxu0 0.0
      %2081 = vmatmul.mubr.f32.gmra.mrb[0].mxu0 %v1790
      %v2082 = vpop.f32.mrb[0].mxu0
      %v2083 = vadd.f32 %v1781, %v2082
      %v2084 = vpop.f32.mrb[0].mxu0
      %v2085 = vadd.f32 %v1781, %v2084
      %2086 = vmatprep.mubr.f32.mxu0 0.0
      %2087 = vmatmul.mubr.f32.gmra.mrb[0].mxu0 %v1793
      %v2088 = vpop.f32.mrb[0].mxu0
      %v2089 = vadd.f32 %v1786, %v2088
      %v2090 = vpop.f32.mrb[0].mxu0
      %v2091 = vadd.f32 %v1786, %v2090
      %2092 = vdwg.mxu0
      %2093 = vmatprep.subr.mxu0 %v1695
      %2094 = vmatpush1.msra.mxu0 %v1694
      %2095 = vmatprep.subr.mxu0 %v1717
      %2096 = vmatpush1.msra.mxu0 %v1716
      %2097 = vmatprep.subr.mxu0 %v1739
      %2098 = vmatpush1.msra.mxu0 %v1738
      %2099 = vmatprep.subr.mxu0 %v1818
      %2100 = vmatpush1.msra.mxu0 %v1815
      %2101 = vmatprep.subr.mxu0 0.0
      %2102 = vmatpush1.msra.mxu0 0.0
      %2103 = vmatprep.subr.mxu0 0.0
      %2104 = vmatpush1.msra.mxu0 0.0
      %2105 = vmatprep.subr.mxu0 0.0
      %2106 = vmatpush1.msra.mxu0 0.0
      %2107 = vmatprep.subr.mxu0 0.0
      %2108 = vmatpush1.msra.mxu0 0.0
      %2109 = vmatprep.subr.mxu0 0.0
      %2110 = vmatpush1.msra.mxu0 0.0
      %2111 = vmatprep.subr.mxu0 0.0
      %2112 = vmatpush1.msra.mxu0 0.0
      %2113 = vmatprep.subr.mxu0 0.0
      %2114 = vmatpush1.msra.mxu0 0.0
      %2115 = vmatprep.subr.mxu0 0.0
      %2116 = vmatpush1.msra.mxu0 0.0
      %2117 = vmatprep.subr.mxu0 0.0
      %2118 = vmatpush1.msra.mxu0 0.0
      %2119 = vmatprep.subr.mxu0 0.0
      %2120 = vmatpush1.msra.mxu0 0.0
      %2121 = vmatprep.subr.mxu0 0.0
      %2122 = vmatpush1.msra.mxu0 0.0
      %2123 = vmatprep.subr.mxu0 0.0
      %2124 = vmatpush1.msra.mxu0 0.0
      %2125 = vmatprep.subr.mxu0 0.0
      %2126 = vmatpush1.msra.mxu0 0.0
      %2127 = vmatprep.subr.mxu0 0.0
      %2128 = vmatpush1.msra.mxu0 0.0
      %2129 = vmatprep.subr.mxu0 0.0
      %2130 = vmatpush1.msra.mxu0 0.0
      %2131 = vmatprep.subr.mxu0 0.0
      %2132 = vmatpush1.msra.mxu0 0.0
      %2133 = vmatprep.subr.mxu0 0.0
      %2134 = vmatpush1.msra.mxu0 0.0
      %2135 = vmatprep.subr.mxu0 0.0
      %2136 = vmatpush1.msra.mxu0 0.0
      %2137 = vmatprep.subr.mxu0 0.0
      %2138 = vmatpush1.msra.mxu0 0.0
      %2139 = vmatprep.subr.mxu0 0.0
      %2140 = vmatpush1.msra.mxu0 0.0
      %2141 = vmatprep.subr.mxu0 0.0
      %2142 = vmatpush1.msra.mxu0 0.0
      %2143 = vmatprep.subr.mxu0 0.0
      %2144 = vmatpush1.msra.mxu0 0.0
      %2145 = vmatprep.subr.mxu0 0.0
      %2146 = vmatpush1.msra.mxu0 0.0
      %2147 = vmatprep.subr.mxu0 0.0
      %2148 = vmatpush1.msra.mxu0 0.0
      %2149 = vmatprep.subr.mxu0 0.0
      %2150 = vmatpush1.msra.mxu0 0.0
      %2151 = vmatprep.subr.mxu0 0.0
      %2152 = vmatpush1.msra.mxu0 0.0
      %2153 = vmatprep.subr.mxu0 0.0
      %2154 = vmatpush1.msra.mxu0 0.0
      %2155 = vmatprep.subr.mxu0 0.0
      %2156 = vmatpush1.msra.mxu0 0.0
      %2157 = vmatprep.mubr.f32.mxu0 0.0
      %2158 = vmatmul.mubr.f32.gmra.mrb[0].mxu0 %v1790
      %v2159 = vpop.f32.mrb[0].mxu0
      %v2160 = vadd.f32 %v1781, %v2159
      %v2161 = vpop.f32.mrb[0].mxu0
      %v2162 = vadd.f32 %v1781, %v2161
      %2163 = vmatprep.mubr.f32.mxu0 0.0
      %2164 = vmatmul.mubr.f32.gmra.mrb[0].mxu0 %v1793
      %v2165 = vpop.f32.mrb[0].mxu0
      %v2166 = vadd.f32 %v1786, %v2165
      %v2167 = vpop.f32.mrb[0].mxu0
      %v2168 = vadd.f32 %v1786, %v2167
      %2169 = vdwg.mxu0
      %2170 = vmatprep.subr.mxu0 %v1697
      %2171 = vmatpush1.msra.mxu0 %v1696
      %2172 = vmatprep.subr.mxu0 %v1719
      %2173 = vmatpush1.msra.mxu0 %v1718
      %2174 = vmatprep.subr.mxu0 %v1741
      %2175 = vmatpush1.msra.mxu0 %v1740
      %2176 = vmatprep.subr.mxu0 %v1824
      %2177 = vmatpush1.msra.mxu0 %v1821
      %2178 = vmatprep.subr.mxu0 0.0
      %2179 = vmatpush1.msra.mxu0 0.0
      %2180 = vmatprep.subr.mxu0 0.0
      %2181 = vmatpush1.msra.mxu0 0.0
      %2182 = vmatprep.subr.mxu0 0.0
      %2183 = vmatpush1.msra.mxu0 0.0
      %2184 = vmatprep.subr.mxu0 0.0
      %2185 = vmatpush1.msra.mxu0 0.0
      %2186 = vmatprep.subr.mxu0 0.0
      %2187 = vmatpush1.msra.mxu0 0.0
      %2188 = vmatprep.subr.mxu0 0.0
      %2189 = vmatpush1.msra.mxu0 0.0
      %2190 = vmatprep.subr.mxu0 0.0
      %2191 = vmatpush1.msra.mxu0 0.0
      %2192 = vmatprep.subr.mxu0 0.0
      %2193 = vmatpush1.msra.mxu0 0.0
      %2194 = vmatprep.subr.mxu0 0.0
      %2195 = vmatpush1.msra.mxu0 0.0
      %2196 = vmatprep.subr.mxu0 0.0
      %2197 = vmatpush1.msra.mxu0 0.0
      %2198 = vmatprep.subr.mxu0 0.0
      %2199 = vmatpush1.msra.mxu0 0.0
      %2200 = vmatprep.subr.mxu0 0.0
      %2201 = vmatpush1.msra.mxu0 0.0
      %2202 = vmatprep.subr.mxu0 0.0
      %2203 = vmatpush1.msra.mxu0 0.0
      %2204 = vmatprep.subr.mxu0 0.0
      %2205 = vmatpush1.msra.mxu0 0.0
      %2206 = vmatprep.subr.mxu0 0.0
      %2207 = vmatpush1.msra.mxu0 0.0
      %2208 = vmatprep.subr.mxu0 0.0
      %2209 = vmatpush1.msra.mxu0 0.0
      %2210 = vmatprep.subr.mxu0 0.0
      %2211 = vmatpush1.msra.mxu0 0.0
      %2212 = vmatprep.subr.mxu0 0.0
      %2213 = vmatpush1.msra.mxu0 0.0
      %2214 = vmatprep.subr.mxu0 0.0
      %2215 = vmatpush1.msra.mxu0 0.0
      %2216 = vmatprep.subr.mxu0 0.0
      %2217 = vmatpush1.msra.mxu0 0.0
      %2218 = vmatprep.subr.mxu0 0.0
      %2219 = vmatpush1.msra.mxu0 0.0
      %2220 = vmatprep.subr.mxu0 0.0
      %2221 = vmatpush1.msra.mxu0 0.0
      %2222 = vmatprep.subr.mxu0 0.0
      %2223 = vmatpush1.msra.mxu0 0.0
      %2224 = vmatprep.subr.mxu0 0.0
      %2225 = vmatpush1.msra.mxu0 0.0
      %2226 = vmatprep.subr.mxu0 0.0
      %2227 = vmatpush1.msra.mxu0 0.0
      %2228 = vmatprep.subr.mxu0 0.0
      %2229 = vmatpush1.msra.mxu0 0.0
      %2230 = vmatprep.subr.mxu0 0.0
      %2231 = vmatpush1.msra.mxu0 0.0
      %2232 = vmatprep.subr.mxu0 0.0
      %2233 = vmatpush1.msra.mxu0 0.0
      %2234 = vmatprep.mubr.f32.mxu0 0.0
      %2235 = vmatmul.mubr.f32.gmra.mrb[0].mxu0 %v1790
      %v2236 = vpop.f32.mrb[0].mxu0
      %v2237 = vadd.f32 %v1781, %v2236
      %v2238 = vpop.f32.mrb[0].mxu0
      %v2239 = vadd.f32 %v1781, %v2238
      %2240 = vmatprep.mubr.f32.mxu0 0.0
      %2241 = vmatmul.mubr.f32.gmra.mrb[0].mxu0 %v1793
      %v2242 = vpop.f32.mrb[0].mxu0
      %v2243 = vadd.f32 %v1786, %v2242
      %v2244 = vpop.f32.mrb[0].mxu0
      %v2245 = vadd.f32 %v1786, %v2244
      %2246 = vdwg.mxu0
      %2247 = vmatprep.subr.mxu0 %v1699
      %2248 = vmatpush1.msra.mxu0 %v1698
      %2249 = vmatprep.subr.mxu0 %v1721
      %2250 = vmatpush1.msra.mxu0 %v1720
      %2251 = vmatprep.subr.mxu0 %v1743
      %2252 = vmatpush1.msra.mxu0 %v1742
      %2253 = vmatprep.subr.mxu0 %v1830
      %2254 = vmatpush1.msra.mxu0 %v1827
      %2255 = vmatprep.subr.mxu0 0.0
      %2256 = vmatpush1.msra.mxu0 0.0
      %2257 = vmatprep.subr.mxu0 0.0
      %2258 = vmatpush1.msra.mxu0 0.0
      %2259 = vmatprep.subr.mxu0 0.0
      %2260 = vmatpush1.msra.mxu0 0.0
      %2261 = vmatprep.subr.mxu0 0.0
      %2262 = vmatpush1.msra.mxu0 0.0
      %2263 = vmatprep.subr.mxu0 0.0
      %2264 = vmatpush1.msra.mxu0 0.0
      %2265 = vmatprep.subr.mxu0 0.0
      %2266 = vmatpush1.msra.mxu0 0.0
      %2267 = vmatprep.subr.mxu0 0.0
      %2268 = vmatpush1.msra.mxu0 0.0
      %2269 = vmatprep.subr.mxu0 0.0
      %2270 = vmatpush1.msra.mxu0 0.0
      %2271 = vmatprep.subr.mxu0 0.0
      %2272 = vmatpush1.msra.mxu0 0.0
      %2273 = vmatprep.subr.mxu0 0.0
      %2274 = vmatpush1.msra.mxu0 0.0
      %2275 = vmatprep.subr.mxu0 0.0
      %2276 = vmatpush1.msra.mxu0 0.0
      %2277 = vmatprep.subr.mxu0 0.0
      %2278 = vmatpush1.msra.mxu0 0.0
      %2279 = vmatprep.subr.mxu0 0.0
      %2280 = vmatpush1.msra.mxu0 0.0
      %2281 = vmatprep.subr.mxu0 0.0
      %2282 = vmatpush1.msra.mxu0 0.0
      %2283 = vmatprep.subr.mxu0 0.0
      %2284 = vmatpush1.msra.mxu0 0.0
      %2285 = vmatprep.subr.mxu0 0.0
      %2286 = vmatpush1.msra.mxu0 0.0
      %2287 = vmatprep.subr.mxu0 0.0
      %2288 = vmatpush1.msra.mxu0 0.0
      %2289 = vmatprep.subr.mxu0 0.0
      %2290 = vmatpush1.msra.mxu0 0.0
      %2291 = vmatprep.subr.mxu0 0.0
      %2292 = vmatpush1.msra.mxu0 0.0
      %2293 = vmatprep.subr.mxu0 0.0
      %2294 = vmatpush1.msra.mxu0 0.0
      %2295 = vmatprep.subr.mxu0 0.0
      %2296 = vmatpush1.msra.mxu0 0.0
      %2297 = vmatprep.subr.mxu0 0.0
      %2298 = vmatpush1.msra.mxu0 0.0
      %2299 = vmatprep.subr.mxu0 0.0
      %2300 = vmatpush1.msra.mxu0 0.0
      %2301 = vmatprep.subr.mxu0 0.0
      %2302 = vmatpush1.msra.mxu0 0.0
      %2303 = vmatprep.subr.mxu0 0.0
      %2304 = vmatpush1.msra.mxu0 0.0
      %2305 = vmatprep.subr.mxu0 0.0
      %2306 = vmatpush1.msra.mxu0 0.0
      %2307 = vmatprep.subr.mxu0 0.0
      %2308 = vmatpush1.msra.mxu0 0.0
      %2309 = vmatprep.subr.mxu0 0.0
      %2310 = vmatpush1.msra.mxu0 0.0
      %2311 = vmatprep.mubr.f32.mxu0 0.0
      %2312 = vmatmul.mubr.f32.gmra.mrb[0].mxu0 %v1790
      %v2313 = vpop.f32.mrb[0].mxu0
      %v2314 = vadd.f32 %v1781, %v2313
      %v2315 = vpop.f32.mrb[0].mxu0
      %v2316 = vadd.f32 %v1781, %v2315
      %2317 = vmatprep.mubr.f32.mxu0 0.0
      %2318 = vmatmul.mubr.f32.gmra.mrb[0].mxu0 %v1793
      %v2319 = vpop.f32.mrb[0].mxu0
      %v2320 = vadd.f32 %v1786, %v2319
      %v2321 = vpop.f32.mrb[0].mxu0
      %v2322 = vadd.f32 %v1786, %v2321
      %2323 = vdwg.mxu0
      %2324 = vmatprep.subr.mxu0 %v1701
      %2325 = vmatpush1.msra.mxu0 %v1700
      %2326 = vmatprep.subr.mxu0 %v1723
      %2327 = vmatpush1.msra.mxu0 %v1722
      %2328 = vmatprep.subr.mxu0 %v1745
      %2329 = vmatpush1.msra.mxu0 %v1744
      %2330 = vmatprep.subr.mxu0 %v1836
      %2331 = vmatpush1.msra.mxu0 %v1833
      %2332 = vmatprep.subr.mxu0 0.0
      %2333 = vmatpush1.msra.mxu0 0.0
      %2334 = vmatprep.subr.mxu0 0.0
      %2335 = vmatpush1.msra.mxu0 0.0
      %2336 = vmatprep.subr.mxu0 0.0
      %2337 = vmatpush1.msra.mxu0 0.0
      %2338 = vmatprep.subr.mxu0 0.0
      %2339 = vmatpush1.msra.mxu0 0.0
      %2340 = vmatprep.subr.mxu0 0.0
      %2341 = vmatpush1.msra.mxu0 0.0
      %2342 = vmatprep.subr.mxu0 0.0
      %2343 = vmatpush1.msra.mxu0 0.0
      %2344 = vmatprep.subr.mxu0 0.0
      %2345 = vmatpush1.msra.mxu0 0.0
      %2346 = vmatprep.subr.mxu0 0.0
      %2347 = vmatpush1.msra.mxu0 0.0
      %2348 = vmatprep.subr.mxu0 0.0
      %2349 = vmatpush1.msra.mxu0 0.0
      %2350 = vmatprep.subr.mxu0 0.0
      %2351 = vmatpush1.msra.mxu0 0.0
      %2352 = vmatprep.subr.mxu0 0.0
      %2353 = vmatpush1.msra.mxu0 0.0
      %2354 = vmatprep.subr.mxu0 0.0
      %2355 = vmatpush1.msra.mxu0 0.0
      %2356 = vmatprep.subr.mxu0 0.0
      %2357 = vmatpush1.msra.mxu0 0.0
      %2358 = vmatprep.subr.mxu0 0.0
      %2359 = vmatpush1.msra.mxu0 0.0
      %2360 = vmatprep.subr.mxu0 0.0
      %2361 = vmatpush1.msra.mxu0 0.0
      %2362 = vmatprep.subr.mxu0 0.0
      %2363 = vmatpush1.msra.mxu0 0.0
      %2364 = vmatprep.subr.mxu0 0.0
      %2365 = vmatpush1.msra.mxu0 0.0
      %2366 = vmatprep.subr.mxu0 0.0
      %2367 = vmatpush1.msra.mxu0 0.0
      %2368 = vmatprep.subr.mxu0 0.0
      %2369 = vmatpush1.msra.mxu0 0.0
      %2370 = vmatprep.subr.mxu0 0.0
      %2371 = vmatpush1.msra.mxu0 0.0
      %2372 = vmatprep.subr.mxu0 0.0
      %2373 = vmatpush1.msra.mxu0 0.0
      %2374 = vmatprep.subr.mxu0 0.0
      %2375 = vmatpush1.msra.mxu0 0.0
      %2376 = vmatprep.subr.mxu0 0.0
      %2377 = vmatpush1.msra.mxu0 0.0
      %2378 = vmatprep.subr.mxu0 0.0
      %2379 = vmatpush1.msra.mxu0 0.0
      %2380 = vmatprep.subr.mxu0 0.0
      %2381 = vmatpush1.msra.mxu0 0.0
      %2382 = vmatprep.subr.mxu0 0.0
      %2383 = vmatpush1.msra.mxu0 0.0
      %2384 = vmatprep.subr.mxu0 0.0
      %2385 = vmatpush1.msra.mxu0 0.0
      %2386 = vmatprep.subr.mxu0 0.0
      %2387 = vmatpush1.msra.mxu0 0.0
      %2388 = vmatprep.mubr.f32.mxu0 0.0
      %2389 = vmatmul.mubr.f32.gmra.mrb[0].mxu0 %v1790
      %v2390 = vpop.f32.mrb[0].mxu0
      %v2391 = vadd.f32 %v1781, %v2390
      %v2392 = vpop.f32.mrb[0].mxu0
      %v2393 = vadd.f32 %v1781, %v2392
      %2394 = vmatprep.mubr.f32.mxu0 0.0
      %2395 = vmatmul.mubr.f32.gmra.mrb[0].mxu0 %v1793
      %v2396 = vpop.f32.mrb[0].mxu0
      %v2397 = vadd.f32 %v1786, %v2396
      %v2398 = vpop.f32.mrb[0].mxu0
      %v2399 = vadd.f32 %v1786, %v2398
      %2400 = vdwg.mxu0
      %2401 = vmatprep.subr.mxu0 %v1703
      %2402 = vmatpush1.msra.mxu0 %v1702
      %2403 = vmatprep.subr.mxu0 %v1725
      %2404 = vmatpush1.msra.mxu0 %v1724
      %2405 = vmatprep.subr.mxu0 %v1747
      %2406 = vmatpush1.msra.mxu0 %v1746
      %2407 = vmatprep.subr.mxu0 %v1842
      %2408 = vmatpush1.msra.mxu0 %v1839
      %2409 = vmatprep.subr.mxu0 0.0
      %2410 = vmatpush1.msra.mxu0 0.0
      %2411 = vmatprep.subr.mxu0 0.0
      %2412 = vmatpush1.msra.mxu0 0.0
      %2413 = vmatprep.subr.mxu0 0.0
      %2414 = vmatpush1.msra.mxu0 0.0
      %2415 = vmatprep.subr.mxu0 0.0
      %2416 = vmatpush1.msra.mxu0 0.0
      %2417 = vmatprep.subr.mxu0 0.0
      %2418 = vmatpush1.msra.mxu0 0.0
      %2419 = vmatprep.subr.mxu0 0.0
      %2420 = vmatpush1.msra.mxu0 0.0
      %2421 = vmatprep.subr.mxu0 0.0
      %2422 = vmatpush1.msra.mxu0 0.0
      %2423 = vmatprep.subr.mxu0 0.0
      %2424 = vmatpush1.msra.mxu0 0.0
      %2425 = vmatprep.subr.mxu0 0.0
      %2426 = vmatpush1.msra.mxu0 0.0
      %2427 = vmatprep.subr.mxu0 0.0
      %2428 = vmatpush1.msra.mxu0 0.0
      %2429 = vmatprep.subr.mxu0 0.0
      %2430 = vmatpush1.msra.mxu0 0.0
      %2431 = vmatprep.subr.mxu0 0.0
      %2432 = vmatpush1.msra.mxu0 0.0
      %2433 = vmatprep.subr.mxu0 0.0
      %2434 = vmatpush1.msra.mxu0 0.0
      %2435 = vmatprep.subr.mxu0 0.0
      %2436 = vmatpush1.msra.mxu0 0.0
      %2437 = vmatprep.subr.mxu0 0.0
      %2438 = vmatpush1.msra.mxu0 0.0
      %2439 = vmatprep.subr.mxu0 0.0
      %2440 = vmatpush1.msra.mxu0 0.0
      %2441 = vmatprep.subr.mxu0 0.0
      %2442 = vmatpush1.msra.mxu0 0.0
      %2443 = vmatprep.subr.mxu0 0.0
      %2444 = vmatpush1.msra.mxu0 0.0
      %2445 = vmatprep.subr.mxu0 0.0
      %2446 = vmatpush1.msra.mxu0 0.0
      %2447 = vmatprep.subr.mxu0 0.0
      %2448 = vmatpush1.msra.mxu0 0.0
      %2449 = vmatprep.subr.mxu0 0.0
      %2450 = vmatpush1.msra.mxu0 0.0
      %2451 = vmatprep.subr.mxu0 0.0
      %2452 = vmatpush1.msra.mxu0 0.0
      %2453 = vmatprep.subr.mxu0 0.0
      %2454 = vmatpush1.msra.mxu0 0.0
      %2455 = vmatprep.subr.mxu0 0.0
      %2456 = vmatpush1.msra.mxu0 0.0
      %2457 = vmatprep.subr.mxu0 0.0
      %2458 = vmatpush1.msra.mxu0 0.0
      %2459 = vmatprep.subr.mxu0 0.0
      %2460 = vmatpush1.msra.mxu0 0.0
      %2461 = vmatprep.subr.mxu0 0.0
      %2462 = vmatpush1.msra.mxu0 0.0
      %2463 = vmatprep.subr.mxu0 0.0
      %2464 = vmatpush1.msra.mxu0 0.0
      %2465 = vmatprep.mubr.f32.mxu0 0.0
      %2466 = vmatmul.mubr.f32.gmra.mrb[0].mxu0 %v1790
      %v2467 = vpop.f32.mrb[0].mxu0
      %v2468 = vadd.f32 %v1781, %v2467
      %v2469 = vpop.f32.mrb[0].mxu0
      %v2470 = vadd.f32 %v1781, %v2469
      %2471 = vmatprep.mubr.f32.mxu0 0.0
      %2472 = vmatmul.mubr.f32.gmra.mrb[0].mxu0 %v1793
      %v2473 = vpop.f32.mrb[0].mxu0
      %v2474 = vadd.f32 %v1786, %v2473
      %v2475 = vpop.f32.mrb[0].mxu0
      %v2476 = vadd.f32 %v1786, %v2475
      %2477 = vdwg.mxu0
      %2478 = vmatprep.subr.mxu0 %v1705
      %2479 = vmatpush1.msra.mxu0 %v1704
      %2480 = vmatprep.subr.mxu0 %v1727
      %2481 = vmatpush1.msra.mxu0 %v1726
      %2482 = vmatprep.subr.mxu0 %v1749
      %2483 = vmatpush1.msra.mxu0 %v1748
      %2484 = vmatprep.subr.mxu0 %v1848
      %2485 = vmatpush1.msra.mxu0 %v1845
      %2486 = vmatprep.subr.mxu0 0.0
      %2487 = vmatpush1.msra.mxu0 0.0
      %2488 = vmatprep.subr.mxu0 0.0
      %2489 = vmatpush1.msra.mxu0 0.0
      %2490 = vmatprep.subr.mxu0 0.0
      %2491 = vmatpush1.msra.mxu0 0.0
      %2492 = vmatprep.subr.mxu0 0.0
      %2493 = vmatpush1.msra.mxu0 0.0
      %2494 = vmatprep.subr.mxu0 0.0
      %2495 = vmatpush1.msra.mxu0 0.0
      %2496 = vmatprep.subr.mxu0 0.0
      %2497 = vmatpush1.msra.mxu0 0.0
      %2498 = vmatprep.subr.mxu0 0.0
      %2499 = vmatpush1.msra.mxu0 0.0
      %2500 = vmatprep.subr.mxu0 0.0
      %2501 = vmatpush1.msra.mxu0 0.0
      %2502 = vmatprep.subr.mxu0 0.0
      %2503 = vmatpush1.msra.mxu0 0.0
      %2504 = vmatprep.subr.mxu0 0.0
      %2505 = vmatpush1.msra.mxu0 0.0
      %2506 = vmatprep.subr.mxu0 0.0
      %2507 = vmatpush1.msra.mxu0 0.0
      %2508 = vmatprep.subr.mxu0 0.0
      %2509 = vmatpush1.msra.mxu0 0.0
      %2510 = vmatprep.subr.mxu0 0.0
      %2511 = vmatpush1.msra.mxu0 0.0
      %2512 = vmatprep.subr.mxu0 0.0
      %2513 = vmatpush1.msra.mxu0 0.0
      %2514 = vmatprep.subr.mxu0 0.0
      %2515 = vmatpush1.msra.mxu0 0.0
      %2516 = vmatprep.subr.mxu0 0.0
      %2517 = vmatpush1.msra.mxu0 0.0
      %2518 = vmatprep.subr.mxu0 0.0
      %2519 = vmatpush1.msra.mxu0 0.0
      %2520 = vmatprep.subr.mxu0 0.0
      %2521 = vmatpush1.msra.mxu0 0.0
      %2522 = vmatprep.subr.mxu0 0.0
      %2523 = vmatpush1.msra.mxu0 0.0
      %2524 = vmatprep.subr.mxu0 0.0
      %2525 = vmatpush1.msra.mxu0 0.0
      %2526 = vmatprep.subr.mxu0 0.0
      %2527 = vmatpush1.msra.mxu0 0.0
      %2528 = vmatprep.subr.mxu0 0.0
      %2529 = vmatpush1.msra.mxu0 0.0
      %2530 = vmatprep.subr.mxu0 0.0
      %2531 = vmatpush1.msra.mxu0 0.0
      %2532 = vmatprep.subr.mxu0 0.0
      %2533 = vmatpush1.msra.mxu0 0.0
      %2534 = vmatprep.subr.mxu0 0.0
      %2535 = vmatpush1.msra.mxu0 0.0
      %2536 = vmatprep.subr.mxu0 0.0
      %2537 = vmatpush1.msra.mxu0 0.0
      %2538 = vmatprep.subr.mxu0 0.0
      %2539 = vmatpush1.msra.mxu0 0.0
      %2540 = vmatprep.subr.mxu0 0.0
      %2541 = vmatpush1.msra.mxu0 0.0
      %2542 = vmatprep.mubr.f32.mxu0 0.0
      %2543 = vmatmul.mubr.f32.gmra.mrb[0].mxu0 %v1790
      %v2544 = vpop.f32.mrb[0].mxu0
      %v2545 = vadd.f32 %v1781, %v2544
      %v2546 = vpop.f32.mrb[0].mxu0
      %v2547 = vadd.f32 %v1781, %v2546
      %2548 = vmatprep.mubr.f32.mxu0 0.0
      %2549 = vmatmul.mubr.f32.gmra.mrb[0].mxu0 %v1793
      %v2550 = vpop.f32.mrb[0].mxu0
      %v2551 = vadd.f32 %v1786, %v2550
      %v2552 = vpop.f32.mrb[0].mxu0
      %v2553 = vadd.f32 %v1786, %v2552
      %2554 = vdwg.mxu0
      %2555 = vmatprep.subr.mxu0 %v1707
      %2556 = vmatpush1.msra.mxu0 %v1706
      %2557 = vmatprep.subr.mxu0 %v1729
      %2558 = vmatpush1.msra.mxu0 %v1728
      %2559 = vmatprep.subr.mxu0 %v1751
      %2560 = vmatpush1.msra.mxu0 %v1750
      %2561 = vmatprep.subr.mxu0 %v1854
      %2562 = vmatpush1.msra.mxu0 %v1851
      %2563 = vmatprep.subr.mxu0 0.0
      %2564 = vmatpush1.msra.mxu0 0.0
      %2565 = vmatprep.subr.mxu0 0.0
      %2566 = vmatpush1.msra.mxu0 0.0
      %2567 = vmatprep.subr.mxu0 0.0
      %2568 = vmatpush1.msra.mxu0 0.0
      %2569 = vmatprep.subr.mxu0 0.0
      %2570 = vmatpush1.msra.mxu0 0.0
      %2571 = vmatprep.subr.mxu0 0.0
      %2572 = vmatpush1.msra.mxu0 0.0
      %2573 = vmatprep.subr.mxu0 0.0
      %2574 = vmatpush1.msra.mxu0 0.0
      %2575 = vmatprep.subr.mxu0 0.0
      %2576 = vmatpush1.msra.mxu0 0.0
      %2577 = vmatprep.subr.mxu0 0.0
      %2578 = vmatpush1.msra.mxu0 0.0
      %2579 = vmatprep.subr.mxu0 0.0
      %2580 = vmatpush1.msra.mxu0 0.0
      %2581 = vmatprep.subr.mxu0 0.0
      %2582 = vmatpush1.msra.mxu0 0.0
      %2583 = vmatprep.subr.mxu0 0.0
      %2584 = vmatpush1.msra.mxu0 0.0
      %2585 = vmatprep.subr.mxu0 0.0
      %2586 = vmatpush1.msra.mxu0 0.0
      %2587 = vmatprep.subr.mxu0 0.0
      %2588 = vmatpush1.msra.mxu0 0.0
      %2589 = vmatprep.subr.mxu0 0.0
      %2590 = vmatpush1.msra.mxu0 0.0
      %2591 = vmatprep.subr.mxu0 0.0
      %2592 = vmatpush1.msra.mxu0 0.0
      %2593 = vmatprep.subr.mxu0 0.0
      %2594 = vmatpush1.msra.mxu0 0.0
      %2595 = vmatprep.subr.mxu0 0.0
      %2596 = vmatpush1.msra.mxu0 0.0
      %2597 = vmatprep.subr.mxu0 0.0
      %2598 = vmatpush1.msra.mxu0 0.0
      %2599 = vmatprep.subr.mxu0 0.0
      %2600 = vmatpush1.msra.mxu0 0.0
      %2601 = vmatprep.subr.mxu0 0.0
      %2602 = vmatpush1.msra.mxu0 0.0
      %2603 = vmatprep.subr.mxu0 0.0
      %2604 = vmatpush1.msra.mxu0 0.0
      %2605 = vmatprep.subr.mxu0 0.0
      %2606 = vmatpush1.msra.mxu0 0.0
      %2607 = vmatprep.subr.mxu0 0.0
      %2608 = vmatpush1.msra.mxu0 0.0
      %2609 = vmatprep.subr.mxu0 0.0
      %2610 = vmatpush1.msra.mxu0 0.0
      %2611 = vmatprep.subr.mxu0 0.0
      %2612 = vmatpush1.msra.mxu0 0.0
      %2613 = vmatprep.subr.mxu0 0.0
      %2614 = vmatpush1.msra.mxu0 0.0
      %2615 = vmatprep.subr.mxu0 0.0
      %2616 = vmatpush1.msra.mxu0 0.0
      %2617 = vmatprep.subr.mxu0 0.0
      %2618 = vmatpush1.msra.mxu0 0.0
      %2619 = vmatprep.mubr.f32.mxu0 0.0
      %2620 = vmatmul.mubr.f32.gmra.mrb[0].mxu0 %v1790
      %v2621 = vpop.f32.mrb[0].mxu0
      %v2622 = vadd.f32 %v1781, %v2621
      %v2623 = vpop.f32.mrb[0].mxu0
      %v2624 = vadd.f32 %v1781, %v2623
      %2625 = vmatprep.mubr.f32.mxu0 0.0
      %2626 = vmatmul.mubr.f32.gmra.mrb[0].mxu0 %v1793
      %v2627 = vpop.f32.mrb[0].mxu0
      %v2628 = vadd.f32 %v1786, %v2627
      %v2629 = vpop.f32.mrb[0].mxu0
      %v2630 = vadd.f32 %v1786, %v2629
      %2631 = vdwg.mxu0
      %2632 = vmatprep.subr.mxu0 %v1709
      %2633 = vmatpush1.msra.mxu0 %v1708
      %2634 = vmatprep.subr.mxu0 %v1731
      %2635 = vmatpush1.msra.mxu0 %v1730
      %2636 = vmatprep.subr.mxu0 %v1753
      %2637 = vmatpush1.msra.mxu0 %v1752
      %2638 = vmatprep.subr.mxu0 %v1860
      %2639 = vmatpush1.msra.mxu0 %v1857
      %2640 = vmatprep.subr.mxu0 0.0
      %2641 = vmatpush1.msra.mxu0 0.0
      %2642 = vmatprep.subr.mxu0 0.0
      %2643 = vmatpush1.msra.mxu0 0.0
      %2644 = vmatprep.subr.mxu0 0.0
      %2645 = vmatpush1.msra.mxu0 0.0
      %2646 = vmatprep.subr.mxu0 0.0
      %2647 = vmatpush1.msra.mxu0 0.0
      %2648 = vmatprep.subr.mxu0 0.0
      %2649 = vmatpush1.msra.mxu0 0.0
      %2650 = vmatprep.subr.mxu0 0.0
      %2651 = vmatpush1.msra.mxu0 0.0
      %2652 = vmatprep.subr.mxu0 0.0
      %2653 = vmatpush1.msra.mxu0 0.0
      %2654 = vmatprep.subr.mxu0 0.0
      %2655 = vmatpush1.msra.mxu0 0.0
      %2656 = vmatprep.subr.mxu0 0.0
      %2657 = vmatpush1.msra.mxu0 0.0
      %2658 = vmatprep.subr.mxu0 0.0
      %2659 = vmatpush1.msra.mxu0 0.0
      %2660 = vmatprep.subr.mxu0 0.0
      %2661 = vmatpush1.msra.mxu0 0.0
      %2662 = vmatprep.subr.mxu0 0.0
      %2663 = vmatpush1.msra.mxu0 0.0
      %2664 = vmatprep.subr.mxu0 0.0
      %2665 = vmatpush1.msra.mxu0 0.0
      %2666 = vmatprep.subr.mxu0 0.0
      %2667 = vmatpush1.msra.mxu0 0.0
      %2668 = vmatprep.subr.mxu0 0.0
      %2669 = vmatpush1.msra.mxu0 0.0
      %2670 = vmatprep.subr.mxu0 0.0
      %2671 = vmatpush1.msra.mxu0 0.0
      %2672 = vmatprep.subr.mxu0 0.0
      %2673 = vmatpush1.msra.mxu0 0.0
      %2674 = vmatprep.subr.mxu0 0.0
      %2675 = vmatpush1.msra.mxu0 0.0
      %2676 = vmatprep.subr.mxu0 0.0
      %2677 = vmatpush1.msra.mxu0 0.0
      %2678 = vmatprep.subr.mxu0 0.0
      %2679 = vmatpush1.msra.mxu0 0.0
      %2680 = vmatprep.subr.mxu0 0.0
      %2681 = vmatpush1.msra.mxu0 0.0
      %2682 = vmatprep.subr.mxu0 0.0
      %2683 = vmatpush1.msra.mxu0 0.0
      %2684 = vmatprep.subr.mxu0 0.0
      %2685 = vmatpush1.msra.mxu0 0.0
      %2686 = vmatprep.subr.mxu0 0.0
      %2687 = vmatpush1.msra.mxu0 0.0
      %2688 = vmatprep.subr.mxu0 0.0
      %2689 = vmatpush1.msra.mxu0 0.0
      %2690 = vmatprep.subr.mxu0 0.0
      %2691 = vmatpush1.msra.mxu0 0.0
      %2692 = vmatprep.subr.mxu0 0.0
      %2693 = vmatpush1.msra.mxu0 0.0
      %2694 = vmatprep.subr.mxu0 0.0
      %2695 = vmatpush1.msra.mxu0 0.0
      %2696 = vmatprep.mubr.f32.mxu0 0.0
      %2697 = vmatmul.mubr.f32.gmra.mrb[0].mxu0 %v1790
      %v2698 = vpop.f32.mrb[0].mxu0
      %v2699 = vadd.f32 %v1781, %v2698
      %v2700 = vpop.f32.mrb[0].mxu0
      %v2701 = vadd.f32 %v1781, %v2700
      %2702 = vmatprep.mubr.f32.mxu0 0.0
      %2703 = vmatmul.mubr.f32.gmra.mrb[0].mxu0 %v1793
      %v2704 = vpop.f32.mrb[0].mxu0
      %v2705 = vadd.f32 %v1786, %v2704
      %v2706 = vpop.f32.mrb[0].mxu0
      %v2707 = vadd.f32 %v1786, %v2706
      %2708 = vdwg.mxu0
      %2709 = vst [vmem:[#allocation5] sm:$0xff] %v1929
      %2710 = vst [vmem:[#allocation5 + $0x8] sm:$0xff] %v1931
      %2711 = vst [vmem:[#allocation5 + $0x10] sm:$0xff] %v2006
      %2712 = vst [vmem:[#allocation5 + $0x18] sm:$0xff] %v2008
      %2713 = vst [vmem:[#allocation5 + $0x20] sm:$0xff] %v2083
      %2714 = vst [vmem:[#allocation5 + $0x28] sm:$0xff] %v2085
      %2715 = vst [vmem:[#allocation5 + $0x30] sm:$0xff] %v2160
      %2716 = vst [vmem:[#allocation5 + $0x38] sm:$0xff] %v2162
      %2717 = vst [vmem:[#allocation5 + $0x40] sm:$0xff] %v2237
      %2718 = vst [vmem:[#allocation5 + $0x48] sm:$0xff] %v2239
      %2719 = vst [vmem:[#allocation5 + $0x50] sm:$0xff] %v2314
      %2720 = vst [vmem:[#allocation5 + $0x58] sm:$0xff] %v2316
      %2721 = vst [vmem:[#allocation5 + $0x60] sm:$0xff] %v2391
      %2722 = vst [vmem:[#allocation5 + $0x68] sm:$0xff] %v2393
      %2723 = vst [vmem:[#allocation5 + $0x70] sm:$0xff] %v2468
      %2724 = vst [vmem:[#allocation5 + $0x78] sm:$0xff] %v2470
      %2725 = vst [vmem:[#allocation5 + $0x80] sm:$0xff] %v2545
      %2726 = vst [vmem:[#allocation5 + $0x88] sm:$0xff] %v2547
      %2727 = vst [vmem:[#allocation5 + $0x90] sm:$0xff] %v2622
      %2728 = vst [vmem:[#allocation5 + $0x98] sm:$0xff] %v2624
      %2729 = vst [vmem:[#allocation5 + $0xa0] sm:$0xff] %v2699
      %2730 = vst [vmem:[#allocation5 + $0xa8] sm:$0xff] %v2701
      %2731 = vst [vmem:[#allocation5 + $0xb0] sm:$0xf] %v1935
      %2732 = vst [vmem:[#allocation5 + $0xb8] sm:$0xf] %v1937
      %2733 = vst [vmem:[#allocation5 + $0xc0] sm:$0xf] %v2012
      %2734 = vst [vmem:[#allocation5 + $0xc8] sm:$0xf] %v2014
      %2735 = vst [vmem:[#allocation5 + $0xd0] sm:$0xf] %v2089
      %2736 = vst [vmem:[#allocation5 + $0xd8] sm:$0xf] %v2091
      %2737 = vst [vmem:[#allocation5 + $0xe0] sm:$0xf] %v2166
      %2738 = vst [vmem:[#allocation5 + $0xe8] sm:$0xf] %v2168
      %2739 = vst [vmem:[#allocation5 + $0xf0] sm:$0xf] %v2243
      %2740 = vst [vmem:[#allocation5 + $0xf8] sm:$0xf] %v2245
      %2741 = vst [vmem:[#allocation5 + $0x100] sm:$0xf] %v2320
      %2742 = vst [vmem:[#allocation5 + $0x108] sm:$0xf] %v2322
      %2743 = vst [vmem:[#allocation5 + $0x110] sm:$0xf] %v2397
      %2744 = vst [vmem:[#allocation5 + $0x118] sm:$0xf] %v2399
      %2745 = vst [vmem:[#allocation5 + $0x120] sm:$0xf] %v2474
      %2746 = vst [vmem:[#allocation5 + $0x128] sm:$0xf] %v2476
      %2747 = vst [vmem:[#allocation5 + $0x130] sm:$0xf] %v2551
      %2748 = vst [vmem:[#allocation5 + $0x138] sm:$0xf] %v2553
      %2749 = vst [vmem:[#allocation5 + $0x140] sm:$0xf] %v2628
      %2750 = vst [vmem:[#allocation5 + $0x148] sm:$0xf] %v2630
      %2751 = vst [vmem:[#allocation5 + $0x150] sm:$0xf] %v2705
      %2752 = vst [vmem:[#allocation5 + $0x158] sm:$0xf] %v2707
      %v2753 = vld [vmem:[%s3] sm:$0x7]
      %v2754 = vld [vmem:[#allocation5] sm:$0xff]
      %v2755 = vld [vmem:[#allocation5 + $0x8] sm:$0xff]
      %v2756 = vld [vmem:[#allocation5 + $0x10] sm:$0xff]
      %v2757 = vld [vmem:[#allocation5 + $0x18] sm:$0xff]
      %v2758 = vld [vmem:[#allocation5 + $0x20] sm:$0xff]
      %v2759 = vld [vmem:[#allocation5 + $0x28] sm:$0xff]
      %v2760 = vld [vmem:[#allocation5 + $0x30] sm:$0xff]
      %v2761 = vld [vmem:[#allocation5 + $0x38] sm:$0xff]
      %v2762 = vld [vmem:[#allocation5 + $0x40] sm:$0xff]
      %v2763 = vld [vmem:[#allocation5 + $0x48] sm:$0xff]
      %v2764 = vld [vmem:[#allocation5 + $0x50] sm:$0xff]
      %v2765 = vld [vmem:[#allocation5 + $0x58] sm:$0xff]
      %v2766 = vld [vmem:[#allocation5 + $0x60] sm:$0xff]
      %v2767 = vld [vmem:[#allocation5 + $0x68] sm:$0xff]
      %v2768 = vld [vmem:[#allocation5 + $0x70] sm:$0xff]
      %v2769 = vld [vmem:[#allocation5 + $0x78] sm:$0xff]
      %v2770 = vld [vmem:[#allocation5 + $0x80] sm:$0xff]
      %v2771 = vld [vmem:[#allocation5 + $0x88] sm:$0xff]
      %v2772 = vld [vmem:[#allocation5 + $0x90] sm:$0xff]
      %v2773 = vld [vmem:[#allocation5 + $0x98] sm:$0xff]
      %v2774 = vld [vmem:[#allocation5 + $0xa0] sm:$0xff]
      %v2775 = vld [vmem:[#allocation5 + $0xa8] sm:$0xff]
      %v2776 = vld [vmem:[#allocation5 + $0xb0] sm:$0xf]
      %v2777 = vld [vmem:[#allocation5 + $0xb8] sm:$0xf]
      %v2778 = vld [vmem:[#allocation5 + $0xc0] sm:$0xf]
      %v2779 = vld [vmem:[#allocation5 + $0xc8] sm:$0xf]
      %v2780 = vld [vmem:[#allocation5 + $0xd0] sm:$0xf]
      %v2781 = vld [vmem:[#allocation5 + $0xd8] sm:$0xf]
      %v2782 = vld [vmem:[#allocation5 + $0xe0] sm:$0xf]
      %v2783 = vld [vmem:[#allocation5 + $0xe8] sm:$0xf]
      %v2784 = vld [vmem:[#allocation5 + $0xf0] sm:$0xf]
      %v2785 = vld [vmem:[#allocation5 + $0xf8] sm:$0xf]
      %v2786 = vld [vmem:[#allocation5 + $0x100] sm:$0xf]
      %v2787 = vld [vmem:[#allocation5 + $0x108] sm:$0xf]
      %v2788 = vld [vmem:[#allocation5 + $0x110] sm:$0xf]
      %v2789 = vld [vmem:[#allocation5 + $0x118] sm:$0xf]
      %v2790 = vld [vmem:[#allocation5 + $0x120] sm:$0xf]
      %v2791 = vld [vmem:[#allocation5 + $0x128] sm:$0xf]
      %v2792 = vld [vmem:[#allocation5 + $0x130] sm:$0xf]
      %v2793 = vld [vmem:[#allocation5 + $0x138] sm:$0xf]
      %v2794 = vld [vmem:[#allocation5 + $0x140] sm:$0xf]
      %v2795 = vld [vmem:[#allocation5 + $0x148] sm:$0xf]
      %v2796 = vld [vmem:[#allocation5 + $0x150] sm:$0xf]
      %v2797 = vld [vmem:[#allocation5 + $0x158] sm:$0xf]
      %v2798 = vld [vmem:[%s4] sm:$0x7]
      %2800 = vset.pattern.permute.xlu0 0
      %2801 = vperm.xlu0 %2800, %v2798
      %v2802 = vpop.permute.xlu0 %2801
      %vm2804 = vcmask 97280
      %v2806 = vsel %vm2804, %v2753, 0
      %vm2808 = vcmask 1043456
      %v2810 = vsel %vm2808, %v2776, 0
      %v2813 = vsel %vm2808, %v2777, 0
      %v2816 = vsel %vm2808, %v2778, 0
      %v2819 = vsel %vm2808, %v2779, 0
      %v2822 = vsel %vm2808, %v2780, 0
      %v2825 = vsel %vm2808, %v2781, 0
      %v2828 = vsel %vm2808, %v2782, 0
      %v2831 = vsel %vm2808, %v2783, 0
      %v2834 = vsel %vm2808, %v2784, 0
      %v2837 = vsel %vm2808, %v2785, 0
      %v2840 = vsel %vm2808, %v2786, 0
      %v2843 = vsel %vm2808, %v2787, 0
      %v2846 = vsel %vm2808, %v2788, 0
      %v2849 = vsel %vm2808, %v2789, 0
      %v2852 = vsel %vm2808, %v2790, 0
      %v2855 = vsel %vm2808, %v2791, 0
      %v2858 = vsel %vm2808, %v2792, 0
      %v2861 = vsel %vm2808, %v2793, 0
      %v2864 = vsel %vm2808, %v2794, 0
      %v2867 = vsel %vm2808, %v2795, 0
      %v2870 = vsel %vm2808, %v2796, 0
      %v2873 = vsel %vm2808, %v2797, 0
      %2875 = vmatprep.subr.mxu0 %v2755
      %2876 = vmatpush1.msra.mxu0 %v2754
      %2877 = vmatprep.subr.mxu0 %v2813
      %2878 = vmatpush1.msra.mxu0 %v2810
      %2879 = vmatprep.subr.mxu0 0.0
      %2880 = vmatpush1.msra.mxu0 0.0
      %2881 = vmatprep.subr.mxu0 0.0
      %2882 = vmatpush1.msra.mxu0 0.0
      %2883 = vmatprep.subr.mxu0 0.0
      %2884 = vmatpush1.msra.mxu0 0.0
      %2885 = vmatprep.subr.mxu0 0.0
      %2886 = vmatpush1.msra.mxu0 0.0
      %2887 = vmatprep.subr.mxu0 0.0
      %2888 = vmatpush1.msra.mxu0 0.0
      %2889 = vmatprep.subr.mxu0 0.0
      %2890 = vmatpush1.msra.mxu0 0.0
      %2891 = vmatprep.subr.mxu0 0.0
      %2892 = vmatpush1.msra.mxu0 0.0
      %2893 = vmatprep.subr.mxu0 0.0
      %2894 = vmatpush1.msra.mxu0 0.0
      %2895 = vmatprep.subr.mxu0 0.0
      %2896 = vmatpush1.msra.mxu0 0.0
      %2897 = vmatprep.subr.mxu0 0.0
      %2898 = vmatpush1.msra.mxu0 0.0
      %2899 = vmatprep.subr.mxu0 0.0
      %2900 = vmatpush1.msra.mxu0 0.0
      %2901 = vmatprep.subr.mxu0 0.0
      %2902 = vmatpush1.msra.mxu0 0.0
      %2903 = vmatprep.subr.mxu0 0.0
      %2904 = vmatpush1.msra.mxu0 0.0
      %2905 = vmatprep.subr.mxu0 0.0
      %2906 = vmatpush1.msra.mxu0 0.0
      %2907 = vmatprep.subr.mxu0 0.0
      %2908 = vmatpush1.msra.mxu0 0.0
      %2909 = vmatprep.subr.mxu0 0.0
      %2910 = vmatpush1.msra.mxu0 0.0
      %2911 = vmatprep.subr.mxu0 0.0
      %2912 = vmatpush1.msra.mxu0 0.0
      %2913 = vmatprep.subr.mxu0 0.0
      %2914 = vmatpush1.msra.mxu0 0.0
      %2915 = vmatprep.subr.mxu0 0.0
      %2916 = vmatpush1.msra.mxu0 0.0
      %2917 = vmatprep.subr.mxu0 0.0
      %2918 = vmatpush1.msra.mxu0 0.0
      %2919 = vmatprep.subr.mxu0 0.0
      %2920 = vmatpush1.msra.mxu0 0.0
      %2921 = vmatprep.subr.mxu0 0.0
      %2922 = vmatpush1.msra.mxu0 0.0
      %2923 = vmatprep.subr.mxu0 0.0
      %2924 = vmatpush1.msra.mxu0 0.0
      %2925 = vmatprep.subr.mxu0 0.0
      %2926 = vmatpush1.msra.mxu0 0.0
      %2927 = vmatprep.subr.mxu0 0.0
      %2928 = vmatpush1.msra.mxu0 0.0
      %2929 = vmatprep.subr.mxu0 0.0
      %2930 = vmatpush1.msra.mxu0 0.0
      %2931 = vmatprep.subr.mxu0 0.0
      %2932 = vmatpush1.msra.mxu0 0.0
      %2933 = vmatprep.subr.mxu0 0.0
      %2934 = vmatpush1.msra.mxu0 0.0
      %2935 = vmatprep.subr.mxu0 0.0
      %2936 = vmatpush1.msra.mxu0 0.0
      %2937 = vmatprep.subr.mxu0 0.0
      %2938 = vmatpush1.msra.mxu0 0.0
      %2939 = vmatprep.mubr.f32.mxu0 0.0
      %2940 = vmatmul.mubr.f32.gmra.mrb[0].mxu0 %v2806
      %v2941 = vpop.f32.mrb[0].mxu0
      %v2942 = vadd.f32 %v2802, %v2941
      %v2943 = vpop.f32.mrb[0].mxu0
      %v2944 = vadd.f32 %v2802, %v2943
      %2945 = vdwg.mxu0
      %2946 = vmatprep.subr.mxu0 %v2757
      %2947 = vmatpush1.msra.mxu0 %v2756
      %2948 = vmatprep.subr.mxu0 %v2819
      %2949 = vmatpush1.msra.mxu0 %v2816
      %2950 = vmatprep.subr.mxu0 0.0
      %2951 = vmatpush1.msra.mxu0 0.0
      %2952 = vmatprep.subr.mxu0 0.0
      %2953 = vmatpush1.msra.mxu0 0.0
      %2954 = vmatprep.subr.mxu0 0.0
      %2955 = vmatpush1.msra.mxu0 0.0
      %2956 = vmatprep.subr.mxu0 0.0
      %2957 = vmatpush1.msra.mxu0 0.0
      %2958 = vmatprep.subr.mxu0 0.0
      %2959 = vmatpush1.msra.mxu0 0.0
      %2960 = vmatprep.subr.mxu0 0.0
      %2961 = vmatpush1.msra.mxu0 0.0
      %2962 = vmatprep.subr.mxu0 0.0
      %2963 = vmatpush1.msra.mxu0 0.0
      %2964 = vmatprep.subr.mxu0 0.0
      %2965 = vmatpush1.msra.mxu0 0.0
      %2966 = vmatprep.subr.mxu0 0.0
      %2967 = vmatpush1.msra.mxu0 0.0
      %2968 = vmatprep.subr.mxu0 0.0
      %2969 = vmatpush1.msra.mxu0 0.0
      %2970 = vmatprep.subr.mxu0 0.0
      %2971 = vmatpush1.msra.mxu0 0.0
      %2972 = vmatprep.subr.mxu0 0.0
      %2973 = vmatpush1.msra.mxu0 0.0
      %2974 = vmatprep.subr.mxu0 0.0
      %2975 = vmatpush1.msra.mxu0 0.0
      %2976 = vmatprep.subr.mxu0 0.0
      %2977 = vmatpush1.msra.mxu0 0.0
      %2978 = vmatprep.subr.mxu0 0.0
      %2979 = vmatpush1.msra.mxu0 0.0
      %2980 = vmatprep.subr.mxu0 0.0
      %2981 = vmatpush1.msra.mxu0 0.0
      %2982 = vmatprep.subr.mxu0 0.0
      %2983 = vmatpush1.msra.mxu0 0.0
      %2984 = vmatprep.subr.mxu0 0.0
      %2985 = vmatpush1.msra.mxu0 0.0
      %2986 = vmatprep.subr.mxu0 0.0
      %2987 = vmatpush1.msra.mxu0 0.0
      %2988 = vmatprep.subr.mxu0 0.0
      %2989 = vmatpush1.msra.mxu0 0.0
      %2990 = vmatprep.subr.mxu0 0.0
      %2991 = vmatpush1.msra.mxu0 0.0
      %2992 = vmatprep.subr.mxu0 0.0
      %2993 = vmatpush1.msra.mxu0 0.0
      %2994 = vmatprep.subr.mxu0 0.0
      %2995 = vmatpush1.msra.mxu0 0.0
      %2996 = vmatprep.subr.mxu0 0.0
      %2997 = vmatpush1.msra.mxu0 0.0
      %2998 = vmatprep.subr.mxu0 0.0
      %2999 = vmatpush1.msra.mxu0 0.0
      %3000 = vmatprep.subr.mxu0 0.0
      %3001 = vmatpush1.msra.mxu0 0.0
      %3002 = vmatprep.subr.mxu0 0.0
      %3003 = vmatpush1.msra.mxu0 0.0
      %3004 = vmatprep.subr.mxu0 0.0
      %3005 = vmatpush1.msra.mxu0 0.0
      %3006 = vmatprep.subr.mxu0 0.0
      %3007 = vmatpush1.msra.mxu0 0.0
      %3008 = vmatprep.subr.mxu0 0.0
      %3009 = vmatpush1.msra.mxu0 0.0
      %3010 = vmatprep.mubr.f32.mxu0 0.0
      %3011 = vmatmul.mubr.f32.gmra.mrb[0].mxu0 %v2806
      %v3012 = vpop.f32.mrb[0].mxu0
      %v3013 = vadd.f32 %v2802, %v3012
      %v3014 = vpop.f32.mrb[0].mxu0
      %v3015 = vadd.f32 %v2802, %v3014
      %3016 = vdwg.mxu0
      %3017 = vmatprep.subr.mxu0 %v2759
      %3018 = vmatpush1.msra.mxu0 %v2758
      %3019 = vmatprep.subr.mxu0 %v2825
      %3020 = vmatpush1.msra.mxu0 %v2822
      %3021 = vmatprep.subr.mxu0 0.0
      %3022 = vmatpush1.msra.mxu0 0.0
      %3023 = vmatprep.subr.mxu0 0.0
      %3024 = vmatpush1.msra.mxu0 0.0
      %3025 = vmatprep.subr.mxu0 0.0
      %3026 = vmatpush1.msra.mxu0 0.0
      %3027 = vmatprep.subr.mxu0 0.0
      %3028 = vmatpush1.msra.mxu0 0.0
      %3029 = vmatprep.subr.mxu0 0.0
      %3030 = vmatpush1.msra.mxu0 0.0
      %3031 = vmatprep.subr.mxu0 0.0
      %3032 = vmatpush1.msra.mxu0 0.0
      %3033 = vmatprep.subr.mxu0 0.0
      %3034 = vmatpush1.msra.mxu0 0.0
      %3035 = vmatprep.subr.mxu0 0.0
      %3036 = vmatpush1.msra.mxu0 0.0
      %3037 = vmatprep.subr.mxu0 0.0
      %3038 = vmatpush1.msra.mxu0 0.0
      %3039 = vmatprep.subr.mxu0 0.0
      %3040 = vmatpush1.msra.mxu0 0.0
      %3041 = vmatprep.subr.mxu0 0.0
      %3042 = vmatpush1.msra.mxu0 0.0
      %3043 = vmatprep.subr.mxu0 0.0
      %3044 = vmatpush1.msra.mxu0 0.0
      %3045 = vmatprep.subr.mxu0 0.0
      %3046 = vmatpush1.msra.mxu0 0.0
      %3047 = vmatprep.subr.mxu0 0.0
      %3048 = vmatpush1.msra.mxu0 0.0
      %3049 = vmatprep.subr.mxu0 0.0
      %3050 = vmatpush1.msra.mxu0 0.0
      %3051 = vmatprep.subr.mxu0 0.0
      %3052 = vmatpush1.msra.mxu0 0.0
      %3053 = vmatprep.subr.mxu0 0.0
      %3054 = vmatpush1.msra.mxu0 0.0
      %3055 = vmatprep.subr.mxu0 0.0
      %3056 = vmatpush1.msra.mxu0 0.0
      %3057 = vmatprep.subr.mxu0 0.0
      %3058 = vmatpush1.msra.mxu0 0.0
      %3059 = vmatprep.subr.mxu0 0.0
      %3060 = vmatpush1.msra.mxu0 0.0
      %3061 = vmatprep.subr.mxu0 0.0
      %3062 = vmatpush1.msra.mxu0 0.0
      %3063 = vmatprep.subr.mxu0 0.0
      %3064 = vmatpush1.msra.mxu0 0.0
      %3065 = vmatprep.subr.mxu0 0.0
      %3066 = vmatpush1.msra.mxu0 0.0
      %3067 = vmatprep.subr.mxu0 0.0
      %3068 = vmatpush1.msra.mxu0 0.0
      %3069 = vmatprep.subr.mxu0 0.0
      %3070 = vmatpush1.msra.mxu0 0.0
      %3071 = vmatprep.subr.mxu0 0.0
      %3072 = vmatpush1.msra.mxu0 0.0
      %3073 = vmatprep.subr.mxu0 0.0
      %3074 = vmatpush1.msra.mxu0 0.0
      %3075 = vmatprep.subr.mxu0 0.0
      %3076 = vmatpush1.msra.mxu0 0.0
      %3077 = vmatprep.subr.mxu0 0.0
      %3078 = vmatpush1.msra.mxu0 0.0
      %3079 = vmatprep.subr.mxu0 0.0
      %3080 = vmatpush1.msra.mxu0 0.0
      %3081 = vmatprep.mubr.f32.mxu0 0.0
      %3082 = vmatmul.mubr.f32.gmra.mrb[0].mxu0 %v2806
      %v3083 = vpop.f32.mrb[0].mxu0
      %v3084 = vadd.f32 %v2802, %v3083
      %v3085 = vpop.f32.mrb[0].mxu0
      %v3086 = vadd.f32 %v2802, %v3085
      %3087 = vdwg.mxu0
      %3088 = vmatprep.subr.mxu0 %v2761
      %3089 = vmatpush1.msra.mxu0 %v2760
      %3090 = vmatprep.subr.mxu0 %v2831
      %3091 = vmatpush1.msra.mxu0 %v2828
      %3092 = vmatprep.subr.mxu0 0.0
      %3093 = vmatpush1.msra.mxu0 0.0
      %3094 = vmatprep.subr.mxu0 0.0
      %3095 = vmatpush1.msra.mxu0 0.0
      %3096 = vmatprep.subr.mxu0 0.0
      %3097 = vmatpush1.msra.mxu0 0.0
      %3098 = vmatprep.subr.mxu0 0.0
      %3099 = vmatpush1.msra.mxu0 0.0
      %3100 = vmatprep.subr.mxu0 0.0
      %3101 = vmatpush1.msra.mxu0 0.0
      %3102 = vmatprep.subr.mxu0 0.0
      %3103 = vmatpush1.msra.mxu0 0.0
      %3104 = vmatprep.subr.mxu0 0.0
      %3105 = vmatpush1.msra.mxu0 0.0
      %3106 = vmatprep.subr.mxu0 0.0
      %3107 = vmatpush1.msra.mxu0 0.0
      %3108 = vmatprep.subr.mxu0 0.0
      %3109 = vmatpush1.msra.mxu0 0.0
      %3110 = vmatprep.subr.mxu0 0.0
      %3111 = vmatpush1.msra.mxu0 0.0
      %3112 = vmatprep.subr.mxu0 0.0
      %3113 = vmatpush1.msra.mxu0 0.0
      %3114 = vmatprep.subr.mxu0 0.0
      %3115 = vmatpush1.msra.mxu0 0.0
      %3116 = vmatprep.subr.mxu0 0.0
      %3117 = vmatpush1.msra.mxu0 0.0
      %3118 = vmatprep.subr.mxu0 0.0
      %3119 = vmatpush1.msra.mxu0 0.0
      %3120 = vmatprep.subr.mxu0 0.0
      %3121 = vmatpush1.msra.mxu0 0.0
      %3122 = vmatprep.subr.mxu0 0.0
      %3123 = vmatpush1.msra.mxu0 0.0
      %3124 = vmatprep.subr.mxu0 0.0
      %3125 = vmatpush1.msra.mxu0 0.0
      %3126 = vmatprep.subr.mxu0 0.0
      %3127 = vmatpush1.msra.mxu0 0.0
      %3128 = vmatprep.subr.mxu0 0.0
      %3129 = vmatpush1.msra.mxu0 0.0
      %3130 = vmatprep.subr.mxu0 0.0
      %3131 = vmatpush1.msra.mxu0 0.0
      %3132 = vmatprep.subr.mxu0 0.0
      %3133 = vmatpush1.msra.mxu0 0.0
      %3134 = vmatprep.subr.mxu0 0.0
      %3135 = vmatpush1.msra.mxu0 0.0
      %3136 = vmatprep.subr.mxu0 0.0
      %3137 = vmatpush1.msra.mxu0 0.0
      %3138 = vmatprep.subr.mxu0 0.0
      %3139 = vmatpush1.msra.mxu0 0.0
      %3140 = vmatprep.subr.mxu0 0.0
      %3141 = vmatpush1.msra.mxu0 0.0
      %3142 = vmatprep.subr.mxu0 0.0
      %3143 = vmatpush1.msra.mxu0 0.0
      %3144 = vmatprep.subr.mxu0 0.0
      %3145 = vmatpush1.msra.mxu0 0.0
      %3146 = vmatprep.subr.mxu0 0.0
      %3147 = vmatpush1.msra.mxu0 0.0
      %3148 = vmatprep.subr.mxu0 0.0
      %3149 = vmatpush1.msra.mxu0 0.0
      %3150 = vmatprep.subr.mxu0 0.0
      %3151 = vmatpush1.msra.mxu0 0.0
      %3152 = vmatprep.mubr.f32.mxu0 0.0
      %3153 = vmatmul.mubr.f32.gmra.mrb[0].mxu0 %v2806
      %v3154 = vpop.f32.mrb[0].mxu0
      %v3155 = vadd.f32 %v2802, %v3154
      %v3156 = vpop.f32.mrb[0].mxu0
      %v3157 = vadd.f32 %v2802, %v3156
      %3158 = vdwg.mxu0
      %3159 = vmatprep.subr.mxu0 %v2763
      %3160 = vmatpush1.msra.mxu0 %v2762
      %3161 = vmatprep.subr.mxu0 %v2837
      %3162 = vmatpush1.msra.mxu0 %v2834
      %3163 = vmatprep.subr.mxu0 0.0
      %3164 = vmatpush1.msra.mxu0 0.0
      %3165 = vmatprep.subr.mxu0 0.0
      %3166 = vmatpush1.msra.mxu0 0.0
      %3167 = vmatprep.subr.mxu0 0.0
      %3168 = vmatpush1.msra.mxu0 0.0
      %3169 = vmatprep.subr.mxu0 0.0
      %3170 = vmatpush1.msra.mxu0 0.0
      %3171 = vmatprep.subr.mxu0 0.0
      %3172 = vmatpush1.msra.mxu0 0.0
      %3173 = vmatprep.subr.mxu0 0.0
      %3174 = vmatpush1.msra.mxu0 0.0
      %3175 = vmatprep.subr.mxu0 0.0
      %3176 = vmatpush1.msra.mxu0 0.0
      %3177 = vmatprep.subr.mxu0 0.0
      %3178 = vmatpush1.msra.mxu0 0.0
      %3179 = vmatprep.subr.mxu0 0.0
      %3180 = vmatpush1.msra.mxu0 0.0
      %3181 = vmatprep.subr.mxu0 0.0
      %3182 = vmatpush1.msra.mxu0 0.0
      %3183 = vmatprep.subr.mxu0 0.0
      %3184 = vmatpush1.msra.mxu0 0.0
      %3185 = vmatprep.subr.mxu0 0.0
      %3186 = vmatpush1.msra.mxu0 0.0
      %3187 = vmatprep.subr.mxu0 0.0
      %3188 = vmatpush1.msra.mxu0 0.0
      %3189 = vmatprep.subr.mxu0 0.0
      %3190 = vmatpush1.msra.mxu0 0.0
      %3191 = vmatprep.subr.mxu0 0.0
      %3192 = vmatpush1.msra.mxu0 0.0
      %3193 = vmatprep.subr.mxu0 0.0
      %3194 = vmatpush1.msra.mxu0 0.0
      %3195 = vmatprep.subr.mxu0 0.0
      %3196 = vmatpush1.msra.mxu0 0.0
      %3197 = vmatprep.subr.mxu0 0.0
      %3198 = vmatpush1.msra.mxu0 0.0
      %3199 = vmatprep.subr.mxu0 0.0
      %3200 = vmatpush1.msra.mxu0 0.0
      %3201 = vmatprep.subr.mxu0 0.0
      %3202 = vmatpush1.msra.mxu0 0.0
      %3203 = vmatprep.subr.mxu0 0.0
      %3204 = vmatpush1.msra.mxu0 0.0
      %3205 = vmatprep.subr.mxu0 0.0
      %3206 = vmatpush1.msra.mxu0 0.0
      %3207 = vmatprep.subr.mxu0 0.0
      %3208 = vmatpush1.msra.mxu0 0.0
      %3209 = vmatprep.subr.mxu0 0.0
      %3210 = vmatpush1.msra.mxu0 0.0
      %3211 = vmatprep.subr.mxu0 0.0
      %3212 = vmatpush1.msra.mxu0 0.0
      %3213 = vmatprep.subr.mxu0 0.0
      %3214 = vmatpush1.msra.mxu0 0.0
      %3215 = vmatprep.subr.mxu0 0.0
      %3216 = vmatpush1.msra.mxu0 0.0
      %3217 = vmatprep.subr.mxu0 0.0
      %3218 = vmatpush1.msra.mxu0 0.0
      %3219 = vmatprep.subr.mxu0 0.0
      %3220 = vmatpush1.msra.mxu0 0.0
      %3221 = vmatprep.subr.mxu0 0.0
      %3222 = vmatpush1.msra.mxu0 0.0
      %3223 = vmatprep.mubr.f32.mxu0 0.0
      %3224 = vmatmul.mubr.f32.gmra.mrb[0].mxu0 %v2806
      %v3225 = vpop.f32.mrb[0].mxu0
      %v3226 = vadd.f32 %v2802, %v3225
      %v3227 = vpop.f32.mrb[0].mxu0
      %v3228 = vadd.f32 %v2802, %v3227
      %3229 = vdwg.mxu0
      %3230 = vmatprep.subr.mxu0 %v2765
      %3231 = vmatpush1.msra.mxu0 %v2764
      %3232 = vmatprep.subr.mxu0 %v2843
      %3233 = vmatpush1.msra.mxu0 %v2840
      %3234 = vmatprep.subr.mxu0 0.0
      %3235 = vmatpush1.msra.mxu0 0.0
      %3236 = vmatprep.subr.mxu0 0.0
      %3237 = vmatpush1.msra.mxu0 0.0
      %3238 = vmatprep.subr.mxu0 0.0
      %3239 = vmatpush1.msra.mxu0 0.0
      %3240 = vmatprep.subr.mxu0 0.0
      %3241 = vmatpush1.msra.mxu0 0.0
      %3242 = vmatprep.subr.mxu0 0.0
      %3243 = vmatpush1.msra.mxu0 0.0
      %3244 = vmatprep.subr.mxu0 0.0
      %3245 = vmatpush1.msra.mxu0 0.0
      %3246 = vmatprep.subr.mxu0 0.0
      %3247 = vmatpush1.msra.mxu0 0.0
      %3248 = vmatprep.subr.mxu0 0.0
      %3249 = vmatpush1.msra.mxu0 0.0
      %3250 = vmatprep.subr.mxu0 0.0
      %3251 = vmatpush1.msra.mxu0 0.0
      %3252 = vmatprep.subr.mxu0 0.0
      %3253 = vmatpush1.msra.mxu0 0.0
      %3254 = vmatprep.subr.mxu0 0.0
      %3255 = vmatpush1.msra.mxu0 0.0
      %3256 = vmatprep.subr.mxu0 0.0
      %3257 = vmatpush1.msra.mxu0 0.0
      %3258 = vmatprep.subr.mxu0 0.0
      %3259 = vmatpush1.msra.mxu0 0.0
      %3260 = vmatprep.subr.mxu0 0.0
      %3261 = vmatpush1.msra.mxu0 0.0
      %3262 = vmatprep.subr.mxu0 0.0
      %3263 = vmatpush1.msra.mxu0 0.0
      %3264 = vmatprep.subr.mxu0 0.0
      %3265 = vmatpush1.msra.mxu0 0.0
      %3266 = vmatprep.subr.mxu0 0.0
      %3267 = vmatpush1.msra.mxu0 0.0
      %3268 = vmatprep.subr.mxu0 0.0
      %3269 = vmatpush1.msra.mxu0 0.0
      %3270 = vmatprep.subr.mxu0 0.0
      %3271 = vmatpush1.msra.mxu0 0.0
      %3272 = vmatprep.subr.mxu0 0.0
      %3273 = vmatpush1.msra.mxu0 0.0
      %3274 = vmatprep.subr.mxu0 0.0
      %3275 = vmatpush1.msra.mxu0 0.0
      %3276 = vmatprep.subr.mxu0 0.0
      %3277 = vmatpush1.msra.mxu0 0.0
      %3278 = vmatprep.subr.mxu0 0.0
      %3279 = vmatpush1.msra.mxu0 0.0
      %3280 = vmatprep.subr.mxu0 0.0
      %3281 = vmatpush1.msra.mxu0 0.0
      %3282 = vmatprep.subr.mxu0 0.0
      %3283 = vmatpush1.msra.mxu0 0.0
      %3284 = vmatprep.subr.mxu0 0.0
      %3285 = vmatpush1.msra.mxu0 0.0
      %3286 = vmatprep.subr.mxu0 0.0
      %3287 = vmatpush1.msra.mxu0 0.0
      %3288 = vmatprep.subr.mxu0 0.0
      %3289 = vmatpush1.msra.mxu0 0.0
      %3290 = vmatprep.subr.mxu0 0.0
      %3291 = vmatpush1.msra.mxu0 0.0
      %3292 = vmatprep.subr.mxu0 0.0
      %3293 = vmatpush1.msra.mxu0 0.0
      %3294 = vmatprep.mubr.f32.mxu0 0.0
      %3295 = vmatmul.mubr.f32.gmra.mrb[0].mxu0 %v2806
      %v3296 = vpop.f32.mrb[0].mxu0
      %v3297 = vadd.f32 %v2802, %v3296
      %v3298 = vpop.f32.mrb[0].mxu0
      %v3299 = vadd.f32 %v2802, %v3298
      %3300 = vdwg.mxu0
      %3301 = vmatprep.subr.mxu0 %v2767
      %3302 = vmatpush1.msra.mxu0 %v2766
      %3303 = vmatprep.subr.mxu0 %v2849
      %3304 = vmatpush1.msra.mxu0 %v2846
      %3305 = vmatprep.subr.mxu0 0.0
      %3306 = vmatpush1.msra.mxu0 0.0
      %3307 = vmatprep.subr.mxu0 0.0
      %3308 = vmatpush1.msra.mxu0 0.0
      %3309 = vmatprep.subr.mxu0 0.0
      %3310 = vmatpush1.msra.mxu0 0.0
      %3311 = vmatprep.subr.mxu0 0.0
      %3312 = vmatpush1.msra.mxu0 0.0
      %3313 = vmatprep.subr.mxu0 0.0
      %3314 = vmatpush1.msra.mxu0 0.0
      %3315 = vmatprep.subr.mxu0 0.0
      %3316 = vmatpush1.msra.mxu0 0.0
      %3317 = vmatprep.subr.mxu0 0.0
      %3318 = vmatpush1.msra.mxu0 0.0
      %3319 = vmatprep.subr.mxu0 0.0
      %3320 = vmatpush1.msra.mxu0 0.0
      %3321 = vmatprep.subr.mxu0 0.0
      %3322 = vmatpush1.msra.mxu0 0.0
      %3323 = vmatprep.subr.mxu0 0.0
      %3324 = vmatpush1.msra.mxu0 0.0
      %3325 = vmatprep.subr.mxu0 0.0
      %3326 = vmatpush1.msra.mxu0 0.0
      %3327 = vmatprep.subr.mxu0 0.0
      %3328 = vmatpush1.msra.mxu0 0.0
      %3329 = vmatprep.subr.mxu0 0.0
      %3330 = vmatpush1.msra.mxu0 0.0
      %3331 = vmatprep.subr.mxu0 0.0
      %3332 = vmatpush1.msra.mxu0 0.0
      %3333 = vmatprep.subr.mxu0 0.0
      %3334 = vmatpush1.msra.mxu0 0.0
      %3335 = vmatprep.subr.mxu0 0.0
      %3336 = vmatpush1.msra.mxu0 0.0
      %3337 = vmatprep.subr.mxu0 0.0
      %3338 = vmatpush1.msra.mxu0 0.0
      %3339 = vmatprep.subr.mxu0 0.0
      %3340 = vmatpush1.msra.mxu0 0.0
      %3341 = vmatprep.subr.mxu0 0.0
      %3342 = vmatpush1.msra.mxu0 0.0
      %3343 = vmatprep.subr.mxu0 0.0
      %3344 = vmatpush1.msra.mxu0 0.0
      %3345 = vmatprep.subr.mxu0 0.0
      %3346 = vmatpush1.msra.mxu0 0.0
      %3347 = vmatprep.subr.mxu0 0.0
      %3348 = vmatpush1.msra.mxu0 0.0
      %3349 = vmatprep.subr.mxu0 0.0
      %3350 = vmatpush1.msra.mxu0 0.0
      %3351 = vmatprep.subr.mxu0 0.0
      %3352 = vmatpush1.msra.mxu0 0.0
      %3353 = vmatprep.subr.mxu0 0.0
      %3354 = vmatpush1.msra.mxu0 0.0
      %3355 = vmatprep.subr.mxu0 0.0
      %3356 = vmatpush1.msra.mxu0 0.0
      %3357 = vmatprep.subr.mxu0 0.0
      %3358 = vmatpush1.msra.mxu0 0.0
      %3359 = vmatprep.subr.mxu0 0.0
      %3360 = vmatpush1.msra.mxu0 0.0
      %3361 = vmatprep.subr.mxu0 0.0
      %3362 = vmatpush1.msra.mxu0 0.0
      %3363 = vmatprep.subr.mxu0 0.0
      %3364 = vmatpush1.msra.mxu0 0.0
      %3365 = vmatprep.mubr.f32.mxu0 0.0
      %3366 = vmatmul.mubr.f32.gmra.mrb[0].mxu0 %v2806
      %v3367 = vpop.f32.mrb[0].mxu0
      %v3368 = vadd.f32 %v2802, %v3367
      %v3369 = vpop.f32.mrb[0].mxu0
      %v3370 = vadd.f32 %v2802, %v3369
      %3371 = vdwg.mxu0
      %3372 = vmatprep.subr.mxu0 %v2769
      %3373 = vmatpush1.msra.mxu0 %v2768
      %3374 = vmatprep.subr.mxu0 %v2855
      %3375 = vmatpush1.msra.mxu0 %v2852
      %3376 = vmatprep.subr.mxu0 0.0
      %3377 = vmatpush1.msra.mxu0 0.0
      %3378 = vmatprep.subr.mxu0 0.0
      %3379 = vmatpush1.msra.mxu0 0.0
      %3380 = vmatprep.subr.mxu0 0.0
      %3381 = vmatpush1.msra.mxu0 0.0
      %3382 = vmatprep.subr.mxu0 0.0
      %3383 = vmatpush1.msra.mxu0 0.0
      %3384 = vmatprep.subr.mxu0 0.0
      %3385 = vmatpush1.msra.mxu0 0.0
      %3386 = vmatprep.subr.mxu0 0.0
      %3387 = vmatpush1.msra.mxu0 0.0
      %3388 = vmatprep.subr.mxu0 0.0
      %3389 = vmatpush1.msra.mxu0 0.0
      %3390 = vmatprep.subr.mxu0 0.0
      %3391 = vmatpush1.msra.mxu0 0.0
      %3392 = vmatprep.subr.mxu0 0.0
      %3393 = vmatpush1.msra.mxu0 0.0
      %3394 = vmatprep.subr.mxu0 0.0
      %3395 = vmatpush1.msra.mxu0 0.0
      %3396 = vmatprep.subr.mxu0 0.0
      %3397 = vmatpush1.msra.mxu0 0.0
      %3398 = vmatprep.subr.mxu0 0.0
      %3399 = vmatpush1.msra.mxu0 0.0
      %3400 = vmatprep.subr.mxu0 0.0
      %3401 = vmatpush1.msra.mxu0 0.0
      %3402 = vmatprep.subr.mxu0 0.0
      %3403 = vmatpush1.msra.mxu0 0.0
      %3404 = vmatprep.subr.mxu0 0.0
      %3405 = vmatpush1.msra.mxu0 0.0
      %3406 = vmatprep.subr.mxu0 0.0
      %3407 = vmatpush1.msra.mxu0 0.0
      %3408 = vmatprep.subr.mxu0 0.0
      %3409 = vmatpush1.msra.mxu0 0.0
      %3410 = vmatprep.subr.mxu0 0.0
      %3411 = vmatpush1.msra.mxu0 0.0
      %3412 = vmatprep.subr.mxu0 0.0
      %3413 = vmatpush1.msra.mxu0 0.0
      %3414 = vmatprep.subr.mxu0 0.0
      %3415 = vmatpush1.msra.mxu0 0.0
      %3416 = vmatprep.subr.mxu0 0.0
      %3417 = vmatpush1.msra.mxu0 0.0
      %3418 = vmatprep.subr.mxu0 0.0
      %3419 = vmatpush1.msra.mxu0 0.0
      %3420 = vmatprep.subr.mxu0 0.0
      %3421 = vmatpush1.msra.mxu0 0.0
      %3422 = vmatprep.subr.mxu0 0.0
      %3423 = vmatpush1.msra.mxu0 0.0
      %3424 = vmatprep.subr.mxu0 0.0
      %3425 = vmatpush1.msra.mxu0 0.0
      %3426 = vmatprep.subr.mxu0 0.0
      %3427 = vmatpush1.msra.mxu0 0.0
      %3428 = vmatprep.subr.mxu0 0.0
      %3429 = vmatpush1.msra.mxu0 0.0
      %3430 = vmatprep.subr.mxu0 0.0
      %3431 = vmatpush1.msra.mxu0 0.0
      %3432 = vmatprep.subr.mxu0 0.0
      %3433 = vmatpush1.msra.mxu0 0.0
      %3434 = vmatprep.subr.mxu0 0.0
      %3435 = vmatpush1.msra.mxu0 0.0
      %3436 = vmatprep.mubr.f32.mxu0 0.0
      %3437 = vmatmul.mubr.f32.gmra.mrb[0].mxu0 %v2806
      %v3438 = vpop.f32.mrb[0].mxu0
      %v3439 = vadd.f32 %v2802, %v3438
      %v3440 = vpop.f32.mrb[0].mxu0
      %v3441 = vadd.f32 %v2802, %v3440
      %3442 = vdwg.mxu0
      %3443 = vmatprep.subr.mxu0 %v2771
      %3444 = vmatpush1.msra.mxu0 %v2770
      %3445 = vmatprep.subr.mxu0 %v2861
      %3446 = vmatpush1.msra.mxu0 %v2858
      %3447 = vmatprep.subr.mxu0 0.0
      %3448 = vmatpush1.msra.mxu0 0.0
      %3449 = vmatprep.subr.mxu0 0.0
      %3450 = vmatpush1.msra.mxu0 0.0
      %3451 = vmatprep.subr.mxu0 0.0
      %3452 = vmatpush1.msra.mxu0 0.0
      %3453 = vmatprep.subr.mxu0 0.0
      %3454 = vmatpush1.msra.mxu0 0.0
      %3455 = vmatprep.subr.mxu0 0.0
      %3456 = vmatpush1.msra.mxu0 0.0
      %3457 = vmatprep.subr.mxu0 0.0
      %3458 = vmatpush1.msra.mxu0 0.0
      %3459 = vmatprep.subr.mxu0 0.0
      %3460 = vmatpush1.msra.mxu0 0.0
      %3461 = vmatprep.subr.mxu0 0.0
      %3462 = vmatpush1.msra.mxu0 0.0
      %3463 = vmatprep.subr.mxu0 0.0
      %3464 = vmatpush1.msra.mxu0 0.0
      %3465 = vmatprep.subr.mxu0 0.0
      %3466 = vmatpush1.msra.mxu0 0.0
      %3467 = vmatprep.subr.mxu0 0.0
      %3468 = vmatpush1.msra.mxu0 0.0
      %3469 = vmatprep.subr.mxu0 0.0
      %3470 = vmatpush1.msra.mxu0 0.0
      %3471 = vmatprep.subr.mxu0 0.0
      %3472 = vmatpush1.msra.mxu0 0.0
      %3473 = vmatprep.subr.mxu0 0.0
      %3474 = vmatpush1.msra.mxu0 0.0
      %3475 = vmatprep.subr.mxu0 0.0
      %3476 = vmatpush1.msra.mxu0 0.0
      %3477 = vmatprep.subr.mxu0 0.0
      %3478 = vmatpush1.msra.mxu0 0.0
      %3479 = vmatprep.subr.mxu0 0.0
      %3480 = vmatpush1.msra.mxu0 0.0
      %3481 = vmatprep.subr.mxu0 0.0
      %3482 = vmatpush1.msra.mxu0 0.0
      %3483 = vmatprep.subr.mxu0 0.0
      %3484 = vmatpush1.msra.mxu0 0.0
      %3485 = vmatprep.subr.mxu0 0.0
      %3486 = vmatpush1.msra.mxu0 0.0
      %3487 = vmatprep.subr.mxu0 0.0
      %3488 = vmatpush1.msra.mxu0 0.0
      %3489 = vmatprep.subr.mxu0 0.0
      %3490 = vmatpush1.msra.mxu0 0.0
      %3491 = vmatprep.subr.mxu0 0.0
      %3492 = vmatpush1.msra.mxu0 0.0
      %3493 = vmatprep.subr.mxu0 0.0
      %3494 = vmatpush1.msra.mxu0 0.0
      %3495 = vmatprep.subr.mxu0 0.0
      %3496 = vmatpush1.msra.mxu0 0.0
      %3497 = vmatprep.subr.mxu0 0.0
      %3498 = vmatpush1.msra.mxu0 0.0
      %3499 = vmatprep.subr.mxu0 0.0
      %3500 = vmatpush1.msra.mxu0 0.0
      %3501 = vmatprep.subr.mxu0 0.0
      %3502 = vmatpush1.msra.mxu0 0.0
      %3503 = vmatprep.subr.mxu0 0.0
      %3504 = vmatpush1.msra.mxu0 0.0
      %3505 = vmatprep.subr.mxu0 0.0
      %3506 = vmatpush1.msra.mxu0 0.0
      %3507 = vmatprep.mubr.f32.mxu0 0.0
      %3508 = vmatmul.mubr.f32.gmra.mrb[0].mxu0 %v2806
      %v3509 = vpop.f32.mrb[0].mxu0
      %v3510 = vadd.f32 %v2802, %v3509
      %v3511 = vpop.f32.mrb[0].mxu0
      %v3512 = vadd.f32 %v2802, %v3511
      %3513 = vdwg.mxu0
      %3514 = vmatprep.subr.mxu0 %v2773
      %3515 = vmatpush1.msra.mxu0 %v2772
      %3516 = vmatprep.subr.mxu0 %v2867
      %3517 = vmatpush1.msra.mxu0 %v2864
      %3518 = vmatprep.subr.mxu0 0.0
      %3519 = vmatpush1.msra.mxu0 0.0
      %3520 = vmatprep.subr.mxu0 0.0
      %3521 = vmatpush1.msra.mxu0 0.0
      %3522 = vmatprep.subr.mxu0 0.0
      %3523 = vmatpush1.msra.mxu0 0.0
      %3524 = vmatprep.subr.mxu0 0.0
      %3525 = vmatpush1.msra.mxu0 0.0
      %3526 = vmatprep.subr.mxu0 0.0
      %3527 = vmatpush1.msra.mxu0 0.0
      %3528 = vmatprep.subr.mxu0 0.0
      %3529 = vmatpush1.msra.mxu0 0.0
      %3530 = vmatprep.subr.mxu0 0.0
      %3531 = vmatpush1.msra.mxu0 0.0
      %3532 = vmatprep.subr.mxu0 0.0
      %3533 = vmatpush1.msra.mxu0 0.0
      %3534 = vmatprep.subr.mxu0 0.0
      %3535 = vmatpush1.msra.mxu0 0.0
      %3536 = vmatprep.subr.mxu0 0.0
      %3537 = vmatpush1.msra.mxu0 0.0
      %3538 = vmatprep.subr.mxu0 0.0
      %3539 = vmatpush1.msra.mxu0 0.0
      %3540 = vmatprep.subr.mxu0 0.0
      %3541 = vmatpush1.msra.mxu0 0.0
      %3542 = vmatprep.subr.mxu0 0.0
      %3543 = vmatpush1.msra.mxu0 0.0
      %3544 = vmatprep.subr.mxu0 0.0
      %3545 = vmatpush1.msra.mxu0 0.0
      %3546 = vmatprep.subr.mxu0 0.0
      %3547 = vmatpush1.msra.mxu0 0.0
      %3548 = vmatprep.subr.mxu0 0.0
      %3549 = vmatpush1.msra.mxu0 0.0
      %3550 = vmatprep.subr.mxu0 0.0
      %3551 = vmatpush1.msra.mxu0 0.0
      %3552 = vmatprep.subr.mxu0 0.0
      %3553 = vmatpush1.msra.mxu0 0.0
      %3554 = vmatprep.subr.mxu0 0.0
      %3555 = vmatpush1.msra.mxu0 0.0
      %3556 = vmatprep.subr.mxu0 0.0
      %3557 = vmatpush1.msra.mxu0 0.0
      %3558 = vmatprep.subr.mxu0 0.0
      %3559 = vmatpush1.msra.mxu0 0.0
      %3560 = vmatprep.subr.mxu0 0.0
      %3561 = vmatpush1.msra.mxu0 0.0
      %3562 = vmatprep.subr.mxu0 0.0
      %3563 = vmatpush1.msra.mxu0 0.0
      %3564 = vmatprep.subr.mxu0 0.0
      %3565 = vmatpush1.msra.mxu0 0.0
      %3566 = vmatprep.subr.mxu0 0.0
      %3567 = vmatpush1.msra.mxu0 0.0
      %3568 = vmatprep.subr.mxu0 0.0
      %3569 = vmatpush1.msra.mxu0 0.0
      %3570 = vmatprep.subr.mxu0 0.0
      %3571 = vmatpush1.msra.mxu0 0.0
      %3572 = vmatprep.subr.mxu0 0.0
      %3573 = vmatpush1.msra.mxu0 0.0
      %3574 = vmatprep.subr.mxu0 0.0
      %3575 = vmatpush1.msra.mxu0 0.0
      %3576 = vmatprep.subr.mxu0 0.0
      %3577 = vmatpush1.msra.mxu0 0.0
      %3578 = vmatprep.mubr.f32.mxu0 0.0
      %3579 = vmatmul.mubr.f32.gmra.mrb[0].mxu0 %v2806
      %v3580 = vpop.f32.mrb[0].mxu0
      %v3581 = vadd.f32 %v2802, %v3580
      %v3582 = vpop.f32.mrb[0].mxu0
      %v3583 = vadd.f32 %v2802, %v3582
      %3584 = vdwg.mxu0
      %3585 = vmatprep.subr.mxu0 %v2775
      %3586 = vmatpush1.msra.mxu0 %v2774
      %3587 = vmatprep.subr.mxu0 %v2873
      %3588 = vmatpush1.msra.mxu0 %v2870
      %3589 = vmatprep.subr.mxu0 0.0
      %3590 = vmatpush1.msra.mxu0 0.0
      %3591 = vmatprep.subr.mxu0 0.0
      %3592 = vmatpush1.msra.mxu0 0.0
      %3593 = vmatprep.subr.mxu0 0.0
      %3594 = vmatpush1.msra.mxu0 0.0
      %3595 = vmatprep.subr.mxu0 0.0
      %3596 = vmatpush1.msra.mxu0 0.0
      %3597 = vmatprep.subr.mxu0 0.0
      %3598 = vmatpush1.msra.mxu0 0.0
      %3599 = vmatprep.subr.mxu0 0.0
      %3600 = vmatpush1.msra.mxu0 0.0
      %3601 = vmatprep.subr.mxu0 0.0
      %3602 = vmatpush1.msra.mxu0 0.0
      %3603 = vmatprep.subr.mxu0 0.0
      %3604 = vmatpush1.msra.mxu0 0.0
      %3605 = vmatprep.subr.mxu0 0.0
      %3606 = vmatpush1.msra.mxu0 0.0
      %3607 = vmatprep.subr.mxu0 0.0
      %3608 = vmatpush1.msra.mxu0 0.0
      %3609 = vmatprep.subr.mxu0 0.0
      %3610 = vmatpush1.msra.mxu0 0.0
      %3611 = vmatprep.subr.mxu0 0.0
      %3612 = vmatpush1.msra.mxu0 0.0
      %3613 = vmatprep.subr.mxu0 0.0
      %3614 = vmatpush1.msra.mxu0 0.0
      %3615 = vmatprep.subr.mxu0 0.0
      %3616 = vmatpush1.msra.mxu0 0.0
      %3617 = vmatprep.subr.mxu0 0.0
      %3618 = vmatpush1.msra.mxu0 0.0
      %3619 = vmatprep.subr.mxu0 0.0
      %3620 = vmatpush1.msra.mxu0 0.0
      %3621 = vmatprep.subr.mxu0 0.0
      %3622 = vmatpush1.msra.mxu0 0.0
      %3623 = vmatprep.subr.mxu0 0.0
      %3624 = vmatpush1.msra.mxu0 0.0
      %3625 = vmatprep.subr.mxu0 0.0
      %3626 = vmatpush1.msra.mxu0 0.0
      %3627 = vmatprep.subr.mxu0 0.0
      %3628 = vmatpush1.msra.mxu0 0.0
      %3629 = vmatprep.subr.mxu0 0.0
      %3630 = vmatpush1.msra.mxu0 0.0
      %3631 = vmatprep.subr.mxu0 0.0
      %3632 = vmatpush1.msra.mxu0 0.0
      %3633 = vmatprep.subr.mxu0 0.0
      %3634 = vmatpush1.msra.mxu0 0.0
      %3635 = vmatprep.subr.mxu0 0.0
      %3636 = vmatpush1.msra.mxu0 0.0
      %3637 = vmatprep.subr.mxu0 0.0
      %3638 = vmatpush1.msra.mxu0 0.0
      %3639 = vmatprep.subr.mxu0 0.0
      %3640 = vmatpush1.msra.mxu0 0.0
      %3641 = vmatprep.subr.mxu0 0.0
      %3642 = vmatpush1.msra.mxu0 0.0
      %3643 = vmatprep.subr.mxu0 0.0
      %3644 = vmatpush1.msra.mxu0 0.0
      %3645 = vmatprep.subr.mxu0 0.0
      %3646 = vmatpush1.msra.mxu0 0.0
      %3647 = vmatprep.subr.mxu0 0.0
      %3648 = vmatpush1.msra.mxu0 0.0
      %3649 = vmatprep.mubr.f32.mxu0 0.0
      %3650 = vmatmul.mubr.f32.gmra.mrb[0].mxu0 %v2806
      %v3651 = vpop.f32.mrb[0].mxu0
      %v3652 = vadd.f32 %v2802, %v3651
      %v3653 = vpop.f32.mrb[0].mxu0
      %v3654 = vadd.f32 %v2802, %v3653
      %3655 = vdwg.mxu0
      %v3678 = vcombine.low %v2942, %v2944
      %v3679 = vcombine.low %v3013, %v3015
      %v3680 = vcombine.low %v3084, %v3086
      %v3681 = vcombine.low %v3155, %v3157
      %v3682 = vcombine.low %v3226, %v3228
      %v3683 = vcombine.low %v3297, %v3299
      %v3684 = vcombine.low %v3368, %v3370
      %v3685 = vcombine.low %v3439, %v3441
      %v3686 = vcombine.low %v3510, %v3512
      %v3687 = vcombine.low %v3581, %v3583
      %v3688 = vcombine.low %v3652, %v3654
      %3700 = vst [vmem:[#allocation3 + $0x4] sm:$0x77] %v3678
      %3701 = vst [vmem:[#allocation3 + $0xc] sm:$0x77] %v3679
      %3702 = vst [vmem:[#allocation3 + $0x14] sm:$0x77] %v3680
      %3703 = vst [vmem:[#allocation3 + $0x1c] sm:$0x77] %v3681
      %3704 = vst [vmem:[#allocation3 + $0x24] sm:$0x77] %v3682
      %3705 = vst [vmem:[#allocation3 + $0x2c] sm:$0x77] %v3683
      %3706 = vst [vmem:[#allocation3 + $0x34] sm:$0x77] %v3684
      %3707 = vst [vmem:[#allocation3 + $0x3c] sm:$0x77] %v3685
      %3708 = vst [vmem:[#allocation3 + $0x44] sm:$0x77] %v3686
      %3709 = vst [vmem:[#allocation3 + $0x4c] sm:$0x77] %v3687
      %3710 = vst [vmem:[#allocation3 + $0x54] sm:$0x77] %v3688
      %v3711 = vld [vmem:[#allocation3] sm:$0x77]
      %v3712 = vld [vmem:[#allocation3 + $0x8] sm:$0x77]
      %v3713 = vld [vmem:[#allocation3 + $0x10] sm:$0x77]
      %v3714 = vld [vmem:[#allocation3 + $0x18] sm:$0x77]
      %v3715 = vld [vmem:[#allocation3 + $0x20] sm:$0x77]
      %v3716 = vld [vmem:[#allocation3 + $0x28] sm:$0x77]
      %v3717 = vld [vmem:[#allocation3 + $0x30] sm:$0x77]
      %v3718 = vld [vmem:[#allocation3 + $0x38] sm:$0x77]
      %v3719 = vld [vmem:[#allocation3 + $0x40] sm:$0x77]
      %v3720 = vld [vmem:[#allocation3 + $0x48] sm:$0x77]
      %v3721 = vld [vmem:[#allocation3 + $0x50] sm:$0x77]
      %v3722 = vld [vmem:[#allocation3 + $0x58] sm:$0x7]
      %v3735 = vcombine.high %v3711, %v3711
      %v3736 = vcombine.high %v3712, %v3712
      %v3737 = vcombine.high %v3713, %v3713
      %v3738 = vcombine.high %v3714, %v3714
      %v3739 = vcombine.high %v3715, %v3715
      %v3740 = vcombine.high %v3716, %v3716
      %v3741 = vcombine.high %v3717, %v3717
      %v3742 = vcombine.high %v3718, %v3718
      %v3743 = vcombine.high %v3719, %v3719
      %v3744 = vcombine.high %v3720, %v3720
      %v3745 = vcombine.high %v3721, %v3721
      %3746 = vrot.lane.b32.xlu0 %v3711, 37
      %v3747 = vpop.permute.xlu0 %3746
      %3748 = vrot.lane.b32.xlu0 %v3735, 37
      %v3749 = vpop.permute.xlu0 %3748
      %3750 = vrot.lane.b32.xlu0 %v3712, 37
      %v3751 = vpop.permute.xlu0 %3750
      %3752 = vrot.lane.b32.xlu0 %v3736, 37
      %v3753 = vpop.permute.xlu0 %3752
      %3754 = vrot.lane.b32.xlu0 %v3713, 37
      %v3755 = vpop.permute.xlu0 %3754
      %3756 = vrot.lane.b32.xlu0 %v3737, 37
      %v3757 = vpop.permute.xlu0 %3756
      %3758 = vrot.lane.b32.xlu0 %v3714, 37
      %v3759 = vpop.permute.xlu0 %3758
      %3760 = vrot.lane.b32.xlu0 %v3738, 37
      %v3761 = vpop.permute.xlu0 %3760
      %3762 = vrot.lane.b32.xlu0 %v3715, 37
      %v3763 = vpop.permute.xlu0 %3762
      %3764 = vrot.lane.b32.xlu0 %v3739, 37
      %v3765 = vpop.permute.xlu0 %3764
      %3766 = vrot.lane.b32.xlu0 %v3716, 37
      %v3767 = vpop.permute.xlu0 %3766
      %3768 = vrot.lane.b32.xlu0 %v3740, 37
      %v3769 = vpop.permute.xlu0 %3768
      %3770 = vrot.lane.b32.xlu0 %v3717, 37
      %v3771 = vpop.permute.xlu0 %3770
      %3772 = vrot.lane.b32.xlu0 %v3741, 37
      %v3773 = vpop.permute.xlu0 %3772
      %3774 = vrot.lane.b32.xlu0 %v3718, 37
      %v3775 = vpop.permute.xlu0 %3774
      %3776 = vrot.lane.b32.xlu0 %v3742, 37
      %v3777 = vpop.permute.xlu0 %3776
      %3778 = vrot.lane.b32.xlu0 %v3719, 37
      %v3779 = vpop.permute.xlu0 %3778
      %3780 = vrot.lane.b32.xlu0 %v3743, 37
      %v3781 = vpop.permute.xlu0 %3780
      %3782 = vrot.lane.b32.xlu0 %v3720, 37
      %v3783 = vpop.permute.xlu0 %3782
      %3784 = vrot.lane.b32.xlu0 %v3744, 37
      %v3785 = vpop.permute.xlu0 %3784
      %3786 = vrot.lane.b32.xlu0 %v3721, 37
      %v3787 = vpop.permute.xlu0 %3786
      %3788 = vrot.lane.b32.xlu0 %v3745, 37
      %v3789 = vpop.permute.xlu0 %3788
      %3790 = vrot.lane.b32.xlu0 %v3722, 37
      %v3791 = vpop.permute.xlu0 %3790
      %v3792 = vsel %vm335, %v3747, %v3749
      %v3793 = vsel %vm335, %v3749, %v3751
      %v3794 = vsel %vm335, %v3751, %v3753
      %v3795 = vsel %vm335, %v3753, %v3755
      %v3796 = vsel %vm335, %v3755, %v3757
      %v3797 = vsel %vm335, %v3757, %v3759
      %v3798 = vsel %vm335, %v3759, %v3761
      %v3799 = vsel %vm335, %v3761, %v3763
      %v3800 = vsel %vm335, %v3763, %v3765
      %v3801 = vsel %vm335, %v3765, %v3767
      %v3802 = vsel %vm335, %v3767, %v3769
      %v3803 = vsel %vm335, %v3769, %v3771
      %v3804 = vsel %vm335, %v3771, %v3773
      %v3805 = vsel %vm335, %v3773, %v3775
      %v3806 = vsel %vm335, %v3775, %v3777
      %v3807 = vsel %vm335, %v3777, %v3779
      %v3808 = vsel %vm335, %v3779, %v3781
      %v3809 = vsel %vm335, %v3781, %v3783
      %v3810 = vsel %vm335, %v3783, %v3785
      %v3811 = vsel %vm335, %v3785, %v3787
      %v3812 = vsel %vm335, %v3787, %v3789
      %v3813 = vsel %vm335, %v3789, %v3791
      %3836 = vst [vmem:[#allocation4] sm:$0x7] %v3792
      %3837 = vst [vmem:[#allocation4 + $0x8] sm:$0x7] %v3793
      %3838 = vst [vmem:[#allocation4 + $0x10] sm:$0x7] %v3794
      %3839 = vst [vmem:[#allocation4 + $0x18] sm:$0x7] %v3795
      %3840 = vst [vmem:[#allocation4 + $0x20] sm:$0x7] %v3796
      %3841 = vst [vmem:[#allocation4 + $0x28] sm:$0x7] %v3797
      %3842 = vst [vmem:[#allocation4 + $0x30] sm:$0x7] %v3798
      %3843 = vst [vmem:[#allocation4 + $0x38] sm:$0x7] %v3799
      %3844 = vst [vmem:[#allocation4 + $0x40] sm:$0x7] %v3800
      %3845 = vst [vmem:[#allocation4 + $0x48] sm:$0x7] %v3801
      %3846 = vst [vmem:[#allocation4 + $0x50] sm:$0x7] %v3802
      %3847 = vst [vmem:[#allocation4 + $0x58] sm:$0x7] %v3803
      %3848 = vst [vmem:[#allocation4 + $0x60] sm:$0x7] %v3804
      %3849 = vst [vmem:[#allocation4 + $0x68] sm:$0x7] %v3805
      %3850 = vst [vmem:[#allocation4 + $0x70] sm:$0x7] %v3806
      %3851 = vst [vmem:[#allocation4 + $0x78] sm:$0x7] %v3807
      %3852 = vst [vmem:[#allocation4 + $0x80] sm:$0x7] %v3808
      %3853 = vst [vmem:[#allocation4 + $0x88] sm:$0x7] %v3809
      %3854 = vst [vmem:[#allocation4 + $0x90] sm:$0x7] %v3810
      %3855 = vst [vmem:[#allocation4 + $0x98] sm:$0x7] %v3811
      %3856 = vst [vmem:[#allocation4 + $0xa0] sm:$0x7] %v3812
      %3857 = vst [vmem:[#allocation4 + $0xa8] sm:$0x7] %v3813
      %v3858 = vld [vmem:[#allocation3] sm:$0x77]
      %v3859 = vld [vmem:[#allocation3 + $0x8] sm:$0x77]
      %v3860 = vld [vmem:[#allocation3 + $0x10] sm:$0x77]
      %v3861 = vld [vmem:[#allocation3 + $0x18] sm:$0x77]
      %v3862 = vld [vmem:[#allocation3 + $0x20] sm:$0x77]
      %v3863 = vld [vmem:[#allocation3 + $0x28] sm:$0x77]
      %v3864 = vld [vmem:[#allocation3 + $0x30] sm:$0x77]
      %v3865 = vld [vmem:[#allocation3 + $0x38] sm:$0x77]
      %v3866 = vld [vmem:[#allocation3 + $0x40] sm:$0x77]
      %v3867 = vld [vmem:[#allocation3 + $0x48] sm:$0x77]
      %v3868 = vld [vmem:[#allocation3 + $0x50] sm:$0x77]
      %v3869 = vld [vmem:[#allocation3 + $0x58] sm:$0x7]
      %v3882 = vcombine.high %v3858, %v3858
      %v3883 = vcombine.high %v3859, %v3859
      %v3884 = vcombine.high %v3860, %v3860
      %v3885 = vcombine.high %v3861, %v3861
      %v3886 = vcombine.high %v3862, %v3862
      %v3887 = vcombine.high %v3863, %v3863
      %v3888 = vcombine.high %v3864, %v3864
      %v3889 = vcombine.high %v3865, %v3865
      %v3890 = vcombine.high %v3866, %v3866
      %v3891 = vcombine.high %v3867, %v3867
      %v3892 = vcombine.high %v3868, %v3868
      %v3893 = vrot.slane %v3858, 5
      %v3894 = vrot.slane %v3882, 5
      %v3895 = vrot.slane %v3859, 5
      %v3896 = vrot.slane %v3883, 5
      %v3897 = vrot.slane %v3860, 5
      %v3898 = vrot.slane %v3884, 5
      %v3899 = vrot.slane %v3861, 5
      %v3900 = vrot.slane %v3885, 5
      %v3901 = vrot.slane %v3862, 5
      %v3902 = vrot.slane %v3886, 5
      %v3903 = vrot.slane %v3863, 5
      %v3904 = vrot.slane %v3887, 5
      %v3905 = vrot.slane %v3864, 5
      %v3906 = vrot.slane %v3888, 5
      %v3907 = vrot.slane %v3865, 5
      %v3908 = vrot.slane %v3889, 5
      %v3909 = vrot.slane %v3866, 5
      %v3910 = vrot.slane %v3890, 5
      %v3911 = vrot.slane %v3867, 5
      %v3912 = vrot.slane %v3891, 5
      %v3913 = vrot.slane %v3868, 5
      %v3914 = vrot.slane %v3892, 5
      %v3915 = vrot.slane %v3869, 5
      %3916 = vrot.lane.b32.xlu0 %v3893, 36
      %v3917 = vpop.permute.xlu0 %3916
      %3918 = vrot.lane.b32.xlu0 %v3894, 36
      %v3919 = vpop.permute.xlu0 %3918
      %3920 = vrot.lane.b32.xlu0 %v3895, 36
      %v3921 = vpop.permute.xlu0 %3920
      %3922 = vrot.lane.b32.xlu0 %v3896, 36
      %v3923 = vpop.permute.xlu0 %3922
      %3924 = vrot.lane.b32.xlu0 %v3897, 36
      %v3925 = vpop.permute.xlu0 %3924
      %3926 = vrot.lane.b32.xlu0 %v3898, 36
      %v3927 = vpop.permute.xlu0 %3926
      %3928 = vrot.lane.b32.xlu0 %v3899, 36
      %v3929 = vpop.permute.xlu0 %3928
      %3930 = vrot.lane.b32.xlu0 %v3900, 36
      %v3931 = vpop.permute.xlu0 %3930
      %3932 = vrot.lane.b32.xlu0 %v3901, 36
      %v3933 = vpop.permute.xlu0 %3932
      %3934 = vrot.lane.b32.xlu0 %v3902, 36
      %v3935 = vpop.permute.xlu0 %3934
      %3936 = vrot.lane.b32.xlu0 %v3903, 36
      %v3937 = vpop.permute.xlu0 %3936
      %3938 = vrot.lane.b32.xlu0 %v3904, 36
      %v3939 = vpop.permute.xlu0 %3938
      %3940 = vrot.lane.b32.xlu0 %v3905, 36
      %v3941 = vpop.permute.xlu0 %3940
      %3942 = vrot.lane.b32.xlu0 %v3906, 36
      %v3943 = vpop.permute.xlu0 %3942
      %3944 = vrot.lane.b32.xlu0 %v3907, 36
      %v3945 = vpop.permute.xlu0 %3944
      %3946 = vrot.lane.b32.xlu0 %v3908, 36
      %v3947 = vpop.permute.xlu0 %3946
      %3948 = vrot.lane.b32.xlu0 %v3909, 36
      %v3949 = vpop.permute.xlu0 %3948
      %3950 = vrot.lane.b32.xlu0 %v3910, 36
      %v3951 = vpop.permute.xlu0 %3950
      %3952 = vrot.lane.b32.xlu0 %v3911, 36
      %v3953 = vpop.permute.xlu0 %3952
      %3954 = vrot.lane.b32.xlu0 %v3912, 36
      %v3955 = vpop.permute.xlu0 %3954
      %3956 = vrot.lane.b32.xlu0 %v3913, 36
      %v3957 = vpop.permute.xlu0 %3956
      %3958 = vrot.lane.b32.xlu0 %v3914, 36
      %v3959 = vpop.permute.xlu0 %3958
      %3960 = vrot.lane.b32.xlu0 %v3915, 36
      %v3961 = vpop.permute.xlu0 %3960
      %v3962 = vsel %vm506, %v3917, %v3919
      %v3963 = vsel %vm506, %v3919, %v3921
      %v3964 = vsel %vm506, %v3921, %v3923
      %v3965 = vsel %vm506, %v3923, %v3925
      %v3966 = vsel %vm506, %v3925, %v3927
      %v3967 = vsel %vm506, %v3927, %v3929
      %v3968 = vsel %vm506, %v3929, %v3931
      %v3969 = vsel %vm506, %v3931, %v3933
      %v3970 = vsel %vm506, %v3933, %v3935
      %v3971 = vsel %vm506, %v3935, %v3937
      %v3972 = vsel %vm506, %v3937, %v3939
      %v3973 = vsel %vm506, %v3939, %v3941
      %v3974 = vsel %vm506, %v3941, %v3943
      %v3975 = vsel %vm506, %v3943, %v3945
      %v3976 = vsel %vm506, %v3945, %v3947
      %v3977 = vsel %vm506, %v3947, %v3949
      %v3978 = vsel %vm506, %v3949, %v3951
      %v3979 = vsel %vm506, %v3951, %v3953
      %v3980 = vsel %vm506, %v3953, %v3955
      %v3981 = vsel %vm506, %v3955, %v3957
      %v3982 = vsel %vm506, %v3957, %v3959
      %v3983 = vsel %vm506, %v3959, %v3961
      %4006 = vst [vmem:[#allocation4] sm:$0x38] %v3962
      %4007 = vst [vmem:[#allocation4 + $0x8] sm:$0x38] %v3963
      %4008 = vst [vmem:[#allocation4 + $0x10] sm:$0x38] %v3964
      %4009 = vst [vmem:[#allocation4 + $0x18] sm:$0x38] %v3965
      %4010 = vst [vmem:[#allocation4 + $0x20] sm:$0x38] %v3966
      %4011 = vst [vmem:[#allocation4 + $0x28] sm:$0x38] %v3967
      %4012 = vst [vmem:[#allocation4 + $0x30] sm:$0x38] %v3968
      %4013 = vst [vmem:[#allocation4 + $0x38] sm:$0x38] %v3969
      %4014 = vst [vmem:[#allocation4 + $0x40] sm:$0x38] %v3970
      %4015 = vst [vmem:[#allocation4 + $0x48] sm:$0x38] %v3971
      %4016 = vst [vmem:[#allocation4 + $0x50] sm:$0x38] %v3972
      %4017 = vst [vmem:[#allocation4 + $0x58] sm:$0x38] %v3973
      %4018 = vst [vmem:[#allocation4 + $0x60] sm:$0x38] %v3974
      %4019 = vst [vmem:[#allocation4 + $0x68] sm:$0x38] %v3975
      %4020 = vst [vmem:[#allocation4 + $0x70] sm:$0x38] %v3976
      %4021 = vst [vmem:[#allocation4 + $0x78] sm:$0x38] %v3977
      %4022 = vst [vmem:[#allocation4 + $0x80] sm:$0x38] %v3978
      %4023 = vst [vmem:[#allocation4 + $0x88] sm:$0x38] %v3979
      %4024 = vst [vmem:[#allocation4 + $0x90] sm:$0x38] %v3980
      %4025 = vst [vmem:[#allocation4 + $0x98] sm:$0x38] %v3981
      %4026 = vst [vmem:[#allocation4 + $0xa0] sm:$0x38] %v3982
      %4027 = vst [vmem:[#allocation4 + $0xa8] sm:$0x38] %v3983
      %v4028 = vld [vmem:[#allocation3] sm:$0x77]
      %v4029 = vld [vmem:[#allocation3 + $0x8] sm:$0x77]
      %v4030 = vld [vmem:[#allocation3 + $0x10] sm:$0x77]
      %v4031 = vld [vmem:[#allocation3 + $0x18] sm:$0x77]
      %v4032 = vld [vmem:[#allocation3 + $0x20] sm:$0x77]
      %v4033 = vld [vmem:[#allocation3 + $0x28] sm:$0x77]
      %v4034 = vld [vmem:[#allocation3 + $0x30] sm:$0x77]
      %v4035 = vld [vmem:[#allocation3 + $0x38] sm:$0x77]
      %v4036 = vld [vmem:[#allocation3 + $0x40] sm:$0x77]
      %v4037 = vld [vmem:[#allocation3 + $0x48] sm:$0x77]
      %v4038 = vld [vmem:[#allocation3 + $0x50] sm:$0x77]
      %v4039 = vld [vmem:[#allocation3 + $0x58] sm:$0x7]
      %v4052 = vcombine.high %v4028, %v4028
      %v4053 = vcombine.high %v4029, %v4029
      %v4054 = vcombine.high %v4030, %v4030
      %v4055 = vcombine.high %v4031, %v4031
      %v4056 = vcombine.high %v4032, %v4032
      %v4057 = vcombine.high %v4033, %v4033
      %v4058 = vcombine.high %v4034, %v4034
      %v4059 = vcombine.high %v4035, %v4035
      %v4060 = vcombine.high %v4036, %v4036
      %v4061 = vcombine.high %v4037, %v4037
      %v4062 = vcombine.high %v4038, %v4038
      %v4063 = vrot.slane %v4028, 2
      %v4064 = vrot.slane %v4052, 2
      %v4065 = vrot.slane %v4029, 2
      %v4066 = vrot.slane %v4053, 2
      %v4067 = vrot.slane %v4030, 2
      %v4068 = vrot.slane %v4054, 2
      %v4069 = vrot.slane %v4031, 2
      %v4070 = vrot.slane %v4055, 2
      %v4071 = vrot.slane %v4032, 2
      %v4072 = vrot.slane %v4056, 2
      %v4073 = vrot.slane %v4033, 2
      %v4074 = vrot.slane %v4057, 2
      %v4075 = vrot.slane %v4034, 2
      %v4076 = vrot.slane %v4058, 2
      %v4077 = vrot.slane %v4035, 2
      %v4078 = vrot.slane %v4059, 2
      %v4079 = vrot.slane %v4036, 2
      %v4080 = vrot.slane %v4060, 2
      %v4081 = vrot.slane %v4037, 2
      %v4082 = vrot.slane %v4061, 2
      %v4083 = vrot.slane %v4038, 2
      %v4084 = vrot.slane %v4062, 2
      %v4085 = vrot.slane %v4039, 2
      %4086 = vrot.lane.b32.xlu0 %v4063, 35
      %v4087 = vpop.permute.xlu0 %4086
      %4088 = vrot.lane.b32.xlu0 %v4064, 35
      %v4089 = vpop.permute.xlu0 %4088
      %4090 = vrot.lane.b32.xlu0 %v4065, 35
      %v4091 = vpop.permute.xlu0 %4090
      %4092 = vrot.lane.b32.xlu0 %v4066, 35
      %v4093 = vpop.permute.xlu0 %4092
      %4094 = vrot.lane.b32.xlu0 %v4067, 35
      %v4095 = vpop.permute.xlu0 %4094
      %4096 = vrot.lane.b32.xlu0 %v4068, 35
      %v4097 = vpop.permute.xlu0 %4096
      %4098 = vrot.lane.b32.xlu0 %v4069, 35
      %v4099 = vpop.permute.xlu0 %4098
      %4100 = vrot.lane.b32.xlu0 %v4070, 35
      %v4101 = vpop.permute.xlu0 %4100
      %4102 = vrot.lane.b32.xlu0 %v4071, 35
      %v4103 = vpop.permute.xlu0 %4102
      %4104 = vrot.lane.b32.xlu0 %v4072, 35
      %v4105 = vpop.permute.xlu0 %4104
      %4106 = vrot.lane.b32.xlu0 %v4073, 35
      %v4107 = vpop.permute.xlu0 %4106
      %4108 = vrot.lane.b32.xlu0 %v4074, 35
      %v4109 = vpop.permute.xlu0 %4108
      %4110 = vrot.lane.b32.xlu0 %v4075, 35
      %v4111 = vpop.permute.xlu0 %4110
      %4112 = vrot.lane.b32.xlu0 %v4076, 35
      %v4113 = vpop.permute.xlu0 %4112
      %4114 = vrot.lane.b32.xlu0 %v4077, 35
      %v4115 = vpop.permute.xlu0 %4114
      %4116 = vrot.lane.b32.xlu0 %v4078, 35
      %v4117 = vpop.permute.xlu0 %4116
      %4118 = vrot.lane.b32.xlu0 %v4079, 35
      %v4119 = vpop.permute.xlu0 %4118
      %4120 = vrot.lane.b32.xlu0 %v4080, 35
      %v4121 = vpop.permute.xlu0 %4120
      %4122 = vrot.lane.b32.xlu0 %v4081, 35
      %v4123 = vpop.permute.xlu0 %4122
      %4124 = vrot.lane.b32.xlu0 %v4082, 35
      %v4125 = vpop.permute.xlu0 %4124
      %4126 = vrot.lane.b32.xlu0 %v4083, 35
      %v4127 = vpop.permute.xlu0 %4126
      %4128 = vrot.lane.b32.xlu0 %v4084, 35
      %v4129 = vpop.permute.xlu0 %4128
      %4130 = vrot.lane.b32.xlu0 %v4085, 35
      %v4131 = vpop.permute.xlu0 %4130
      %v4132 = vsel %vm677, %v4087, %v4089
      %v4133 = vsel %vm677, %v4089, %v4091
      %v4134 = vsel %vm677, %v4091, %v4093
      %v4135 = vsel %vm677, %v4093, %v4095
      %v4136 = vsel %vm677, %v4095, %v4097
      %v4137 = vsel %vm677, %v4097, %v4099
      %v4138 = vsel %vm677, %v4099, %v4101
      %v4139 = vsel %vm677, %v4101, %v4103
      %v4140 = vsel %vm677, %v4103, %v4105
      %v4141 = vsel %vm677, %v4105, %v4107
      %v4142 = vsel %vm677, %v4107, %v4109
      %v4143 = vsel %vm677, %v4109, %v4111
      %v4144 = vsel %vm677, %v4111, %v4113
      %v4145 = vsel %vm677, %v4113, %v4115
      %v4146 = vsel %vm677, %v4115, %v4117
      %v4147 = vsel %vm677, %v4117, %v4119
      %v4148 = vsel %vm677, %v4119, %v4121
      %v4149 = vsel %vm677, %v4121, %v4123
      %v4150 = vsel %vm677, %v4123, %v4125
      %v4151 = vsel %vm677, %v4125, %v4127
      %v4152 = vsel %vm677, %v4127, %v4129
      %v4153 = vsel %vm677, %v4129, %v4131
      %4176 = vst [vmem:[#allocation4] sm:$0xc0] %v4132
      %4177 = vst [vmem:[#allocation4 + $0x8] sm:$0xc0] %v4133
      %4178 = vst [vmem:[#allocation4 + $0x10] sm:$0xc0] %v4134
      %4179 = vst [vmem:[#allocation4 + $0x18] sm:$0xc0] %v4135
      %4180 = vst [vmem:[#allocation4 + $0x20] sm:$0xc0] %v4136
      %4181 = vst [vmem:[#allocation4 + $0x28] sm:$0xc0] %v4137
      %4182 = vst [vmem:[#allocation4 + $0x30] sm:$0xc0] %v4138
      %4183 = vst [vmem:[#allocation4 + $0x38] sm:$0xc0] %v4139
      %4184 = vst [vmem:[#allocation4 + $0x40] sm:$0xc0] %v4140
      %4185 = vst [vmem:[#allocation4 + $0x48] sm:$0xc0] %v4141
      %4186 = vst [vmem:[#allocation4 + $0x50] sm:$0xc0] %v4142
      %4187 = vst [vmem:[#allocation4 + $0x58] sm:$0xc0] %v4143
      %4188 = vst [vmem:[#allocation4 + $0x60] sm:$0xc0] %v4144
      %4189 = vst [vmem:[#allocation4 + $0x68] sm:$0xc0] %v4145
      %4190 = vst [vmem:[#allocation4 + $0x70] sm:$0xc0] %v4146
      %4191 = vst [vmem:[#allocation4 + $0x78] sm:$0xc0] %v4147
      %4192 = vst [vmem:[#allocation4 + $0x80] sm:$0xc0] %v4148
      %4193 = vst [vmem:[#allocation4 + $0x88] sm:$0xc0] %v4149
      %4194 = vst [vmem:[#allocation4 + $0x90] sm:$0xc0] %v4150
      %4195 = vst [vmem:[#allocation4 + $0x98] sm:$0xc0] %v4151
      %4196 = vst [vmem:[#allocation4 + $0xa0] sm:$0xc0] %v4152
      %4197 = vst [vmem:[#allocation4 + $0xa8] sm:$0xc0] %v4153
      %4198 = vst [vmem:[#allocation4 + $0xb0] sm:$0x1] %v4132
      %4199 = vst [vmem:[#allocation4 + $0xb8] sm:$0x1] %v4133
      %4200 = vst [vmem:[#allocation4 + $0xc0] sm:$0x1] %v4134
      %4201 = vst [vmem:[#allocation4 + $0xc8] sm:$0x1] %v4135
      %4202 = vst [vmem:[#allocation4 + $0xd0] sm:$0x1] %v4136
      %4203 = vst [vmem:[#allocation4 + $0xd8] sm:$0x1] %v4137
      %4204 = vst [vmem:[#allocation4 + $0xe0] sm:$0x1] %v4138
      %4205 = vst [vmem:[#allocation4 + $0xe8] sm:$0x1] %v4139
      %4206 = vst [vmem:[#allocation4 + $0xf0] sm:$0x1] %v4140
      %4207 = vst [vmem:[#allocation4 + $0xf8] sm:$0x1] %v4141
      %4208 = vst [vmem:[#allocation4 + $0x100] sm:$0x1] %v4142
      %4209 = vst [vmem:[#allocation4 + $0x108] sm:$0x1] %v4143
      %4210 = vst [vmem:[#allocation4 + $0x110] sm:$0x1] %v4144
      %4211 = vst [vmem:[#allocation4 + $0x118] sm:$0x1] %v4145
      %4212 = vst [vmem:[#allocation4 + $0x120] sm:$0x1] %v4146
      %4213 = vst [vmem:[#allocation4 + $0x128] sm:$0x1] %v4147
      %4214 = vst [vmem:[#allocation4 + $0x130] sm:$0x1] %v4148
      %4215 = vst [vmem:[#allocation4 + $0x138] sm:$0x1] %v4149
      %4216 = vst [vmem:[#allocation4 + $0x140] sm:$0x1] %v4150
      %4217 = vst [vmem:[#allocation4 + $0x148] sm:$0x1] %v4151
      %4218 = vst [vmem:[#allocation4 + $0x150] sm:$0x1] %v4152
      %4219 = vst [vmem:[#allocation4 + $0x158] sm:$0x1] %v4153
      %v4220 = vld [vmem:[#allocation3] sm:$0x77]
      %v4221 = vld [vmem:[#allocation3 + $0x8] sm:$0x77]
      %v4222 = vld [vmem:[#allocation3 + $0x10] sm:$0x77]
      %v4223 = vld [vmem:[#allocation3 + $0x18] sm:$0x77]
      %v4224 = vld [vmem:[#allocation3 + $0x20] sm:$0x77]
      %v4225 = vld [vmem:[#allocation3 + $0x28] sm:$0x77]
      %v4226 = vld [vmem:[#allocation3 + $0x30] sm:$0x77]
      %v4227 = vld [vmem:[#allocation3 + $0x38] sm:$0x77]
      %v4228 = vld [vmem:[#allocation3 + $0x40] sm:$0x77]
      %v4229 = vld [vmem:[#allocation3 + $0x48] sm:$0x77]
      %v4230 = vld [vmem:[#allocation3 + $0x50] sm:$0x77]
      %v4231 = vld [vmem:[#allocation3 + $0x58] sm:$0x7]
      %v4244 = vcombine.high %v4220, %v4220
      %v4245 = vcombine.high %v4221, %v4221
      %v4246 = vcombine.high %v4222, %v4222
      %v4247 = vcombine.high %v4223, %v4223
      %v4248 = vcombine.high %v4224, %v4224
      %v4249 = vcombine.high %v4225, %v4225
      %v4250 = vcombine.high %v4226, %v4226
      %v4251 = vcombine.high %v4227, %v4227
      %v4252 = vcombine.high %v4228, %v4228
      %v4253 = vcombine.high %v4229, %v4229
      %v4254 = vcombine.high %v4230, %v4230
      %v4255 = vrot.slane %v4220, 7
      %v4256 = vrot.slane %v4244, 7
      %v4257 = vrot.slane %v4221, 7
      %v4258 = vrot.slane %v4245, 7
      %v4259 = vrot.slane %v4222, 7
      %v4260 = vrot.slane %v4246, 7
      %v4261 = vrot.slane %v4223, 7
      %v4262 = vrot.slane %v4247, 7
      %v4263 = vrot.slane %v4224, 7
      %v4264 = vrot.slane %v4248, 7
      %v4265 = vrot.slane %v4225, 7
      %v4266 = vrot.slane %v4249, 7
      %v4267 = vrot.slane %v4226, 7
      %v4268 = vrot.slane %v4250, 7
      %v4269 = vrot.slane %v4227, 7
      %v4270 = vrot.slane %v4251, 7
      %v4271 = vrot.slane %v4228, 7
      %v4272 = vrot.slane %v4252, 7
      %v4273 = vrot.slane %v4229, 7
      %v4274 = vrot.slane %v4253, 7
      %v4275 = vrot.slane %v4230, 7
      %v4276 = vrot.slane %v4254, 7
      %v4277 = vrot.slane %v4231, 7
      %4278 = vrot.lane.b32.xlu0 %v4255, 1
      %v4279 = vpop.permute.xlu0 %4278
      %4280 = vrot.lane.b32.xlu0 %v4256, 1
      %v4281 = vpop.permute.xlu0 %4280
      %4282 = vrot.lane.b32.xlu0 %v4257, 1
      %v4283 = vpop.permute.xlu0 %4282
      %4284 = vrot.lane.b32.xlu0 %v4258, 1
      %v4285 = vpop.permute.xlu0 %4284
      %4286 = vrot.lane.b32.xlu0 %v4259, 1
      %v4287 = vpop.permute.xlu0 %4286
      %4288 = vrot.lane.b32.xlu0 %v4260, 1
      %v4289 = vpop.permute.xlu0 %4288
      %4290 = vrot.lane.b32.xlu0 %v4261, 1
      %v4291 = vpop.permute.xlu0 %4290
      %4292 = vrot.lane.b32.xlu0 %v4262, 1
      %v4293 = vpop.permute.xlu0 %4292
      %4294 = vrot.lane.b32.xlu0 %v4263, 1
      %v4295 = vpop.permute.xlu0 %4294
      %4296 = vrot.lane.b32.xlu0 %v4264, 1
      %v4297 = vpop.permute.xlu0 %4296
      %4298 = vrot.lane.b32.xlu0 %v4265, 1
      %v4299 = vpop.permute.xlu0 %4298
      %4300 = vrot.lane.b32.xlu0 %v4266, 1
      %v4301 = vpop.permute.xlu0 %4300
      %4302 = vrot.lane.b32.xlu0 %v4267, 1
      %v4303 = vpop.permute.xlu0 %4302
      %4304 = vrot.lane.b32.xlu0 %v4268, 1
      %v4305 = vpop.permute.xlu0 %4304
      %4306 = vrot.lane.b32.xlu0 %v4269, 1
      %v4307 = vpop.permute.xlu0 %4306
      %4308 = vrot.lane.b32.xlu0 %v4270, 1
      %v4309 = vpop.permute.xlu0 %4308
      %4310 = vrot.lane.b32.xlu0 %v4271, 1
      %v4311 = vpop.permute.xlu0 %4310
      %4312 = vrot.lane.b32.xlu0 %v4272, 1
      %v4313 = vpop.permute.xlu0 %4312
      %4314 = vrot.lane.b32.xlu0 %v4273, 1
      %v4315 = vpop.permute.xlu0 %4314
      %4316 = vrot.lane.b32.xlu0 %v4274, 1
      %v4317 = vpop.permute.xlu0 %4316
      %4318 = vrot.lane.b32.xlu0 %v4275, 1
      %v4319 = vpop.permute.xlu0 %4318
      %4320 = vrot.lane.b32.xlu0 %v4276, 1
      %v4321 = vpop.permute.xlu0 %4320
      %4322 = vrot.lane.b32.xlu0 %v4277, 1
      %v4323 = vpop.permute.xlu0 %4322
      %v4324 = vsel %vm870, %v4279, %v4281
      %v4325 = vsel %vm870, %v4281, %v4283
      %v4326 = vsel %vm870, %v4283, %v4285
      %v4327 = vsel %vm870, %v4285, %v4287
      %v4328 = vsel %vm870, %v4287, %v4289
      %v4329 = vsel %vm870, %v4289, %v4291
      %v4330 = vsel %vm870, %v4291, %v4293
      %v4331 = vsel %vm870, %v4293, %v4295
      %v4332 = vsel %vm870, %v4295, %v4297
      %v4333 = vsel %vm870, %v4297, %v4299
      %v4334 = vsel %vm870, %v4299, %v4301
      %v4335 = vsel %vm870, %v4301, %v4303
      %v4336 = vsel %vm870, %v4303, %v4305
      %v4337 = vsel %vm870, %v4305, %v4307
      %v4338 = vsel %vm870, %v4307, %v4309
      %v4339 = vsel %vm870, %v4309, %v4311
      %v4340 = vsel %vm870, %v4311, %v4313
      %v4341 = vsel %vm870, %v4313, %v4315
      %v4342 = vsel %vm870, %v4315, %v4317
      %v4343 = vsel %vm870, %v4317, %v4319
      %v4344 = vsel %vm870, %v4319, %v4321
      %v4345 = vsel %vm870, %v4321, %v4323
      %4368 = vst [vmem:[#allocation4 + $0xb0] sm:$0xe] %v4324
      %4369 = vst [vmem:[#allocation4 + $0xb8] sm:$0xe] %v4325
      %4370 = vst [vmem:[#allocation4 + $0xc0] sm:$0xe] %v4326
      %4371 = vst [vmem:[#allocation4 + $0xc8] sm:$0xe] %v4327
      %4372 = vst [vmem:[#allocation4 + $0xd0] sm:$0xe] %v4328
      %4373 = vst [vmem:[#allocation4 + $0xd8] sm:$0xe] %v4329
      %4374 = vst [vmem:[#allocation4 + $0xe0] sm:$0xe] %v4330
      %4375 = vst [vmem:[#allocation4 + $0xe8] sm:$0xe] %v4331
      %4376 = vst [vmem:[#allocation4 + $0xf0] sm:$0xe] %v4332
      %4377 = vst [vmem:[#allocation4 + $0xf8] sm:$0xe] %v4333
      %4378 = vst [vmem:[#allocation4 + $0x100] sm:$0xe] %v4334
      %4379 = vst [vmem:[#allocation4 + $0x108] sm:$0xe] %v4335
      %4380 = vst [vmem:[#allocation4 + $0x110] sm:$0xe] %v4336
      %4381 = vst [vmem:[#allocation4 + $0x118] sm:$0xe] %v4337
      %4382 = vst [vmem:[#allocation4 + $0x120] sm:$0xe] %v4338
      %4383 = vst [vmem:[#allocation4 + $0x128] sm:$0xe] %v4339
      %4384 = vst [vmem:[#allocation4 + $0x130] sm:$0xe] %v4340
      %4385 = vst [vmem:[#allocation4 + $0x138] sm:$0xe] %v4341
      %4386 = vst [vmem:[#allocation4 + $0x140] sm:$0xe] %v4342
      %4387 = vst [vmem:[#allocation4 + $0x148] sm:$0xe] %v4343
      %4388 = vst [vmem:[#allocation4 + $0x150] sm:$0xe] %v4344
      %4389 = vst [vmem:[#allocation4 + $0x158] sm:$0xe] %v4345
      %v4390 = vld [vmem:[#allocation3 + $0x4] sm:$0x77]
      %v4391 = vld [vmem:[#allocation3 + $0xc] sm:$0x77]
      %v4392 = vld [vmem:[#allocation3 + $0x14] sm:$0x77]
      %v4393 = vld [vmem:[#allocation3 + $0x1c] sm:$0x77]
      %v4394 = vld [vmem:[#allocation3 + $0x24] sm:$0x77]
      %v4395 = vld [vmem:[#allocation3 + $0x2c] sm:$0x77]
      %v4396 = vld [vmem:[#allocation3 + $0x34] sm:$0x77]
      %v4397 = vld [vmem:[#allocation3 + $0x3c] sm:$0x77]
      %v4398 = vld [vmem:[#allocation3 + $0x44] sm:$0x77]
      %v4399 = vld [vmem:[#allocation3 + $0x4c] sm:$0x77]
      %v4400 = vld [vmem:[#allocation3 + $0x54] sm:$0x77]
      %v4412 = vcombine.low %v4390, %v4390
      %v4413 = vcombine.low %v4391, %v4391
      %v4414 = vcombine.low %v4392, %v4392
      %v4415 = vcombine.low %v4393, %v4393
      %v4416 = vcombine.low %v4394, %v4394
      %v4417 = vcombine.low %v4395, %v4395
      %v4418 = vcombine.low %v4396, %v4396
      %v4419 = vcombine.low %v4397, %v4397
      %v4420 = vcombine.low %v4398, %v4398
      %v4421 = vcombine.low %v4399, %v4399
      %v4422 = vcombine.low %v4400, %v4400
      %4434 = vst [vmem:[#allocation4 + $0xb0] sm:$0x70] %v4412
      %4435 = vst [vmem:[#allocation4 + $0xb8] sm:$0x70] %v4390
      %4436 = vst [vmem:[#allocation4 + $0xc0] sm:$0x70] %v4413
      %4437 = vst [vmem:[#allocation4 + $0xc8] sm:$0x70] %v4391
      %4438 = vst [vmem:[#allocation4 + $0xd0] sm:$0x70] %v4414
      %4439 = vst [vmem:[#allocation4 + $0xd8] sm:$0x70] %v4392
      %4440 = vst [vmem:[#allocation4 + $0xe0] sm:$0x70] %v4415
      %4441 = vst [vmem:[#allocation4 + $0xe8] sm:$0x70] %v4393
      %4442 = vst [vmem:[#allocation4 + $0xf0] sm:$0x70] %v4416
      %4443 = vst [vmem:[#allocation4 + $0xf8] sm:$0x70] %v4394
      %4444 = vst [vmem:[#allocation4 + $0x100] sm:$0x70] %v4417
      %4445 = vst [vmem:[#allocation4 + $0x108] sm:$0x70] %v4395
      %4446 = vst [vmem:[#allocation4 + $0x110] sm:$0x70] %v4418
      %4447 = vst [vmem:[#allocation4 + $0x118] sm:$0x70] %v4396
      %4448 = vst [vmem:[#allocation4 + $0x120] sm:$0x70] %v4419
      %4449 = vst [vmem:[#allocation4 + $0x128] sm:$0x70] %v4397
      %4450 = vst [vmem:[#allocation4 + $0x130] sm:$0x70] %v4420
      %4451 = vst [vmem:[#allocation4 + $0x138] sm:$0x70] %v4398
      %4452 = vst [vmem:[#allocation4 + $0x140] sm:$0x70] %v4421
      %4453 = vst [vmem:[#allocation4 + $0x148] sm:$0x70] %v4399
      %4454 = vst [vmem:[#allocation4 + $0x150] sm:$0x70] %v4422
      %4455 = vst [vmem:[#allocation4 + $0x158] sm:$0x70] %v4400
      %v4456 = vld [vmem:[#allocation3 + $0x4] sm:$0x77]
      %v4457 = vld [vmem:[#allocation3 + $0xc] sm:$0x77]
      %v4458 = vld [vmem:[#allocation3 + $0x14] sm:$0x77]
      %v4459 = vld [vmem:[#allocation3 + $0x1c] sm:$0x77]
      %v4460 = vld [vmem:[#allocation3 + $0x24] sm:$0x77]
      %v4461 = vld [vmem:[#allocation3 + $0x2c] sm:$0x77]
      %v4462 = vld [vmem:[#allocation3 + $0x34] sm:$0x77]
      %v4463 = vld [vmem:[#allocation3 + $0x3c] sm:$0x77]
      %v4464 = vld [vmem:[#allocation3 + $0x44] sm:$0x77]
      %v4465 = vld [vmem:[#allocation3 + $0x4c] sm:$0x77]
      %v4466 = vld [vmem:[#allocation3 + $0x54] sm:$0x77]
      %v4467 = vld [vmem:[#allocation3 + $0x5c] sm:$0x7]
      %v4480 = vcombine.high %v4456, %v4456
      %v4481 = vcombine.high %v4457, %v4457
      %v4482 = vcombine.high %v4458, %v4458
      %v4483 = vcombine.high %v4459, %v4459
      %v4484 = vcombine.high %v4460, %v4460
      %v4485 = vcombine.high %v4461, %v4461
      %v4486 = vcombine.high %v4462, %v4462
      %v4487 = vcombine.high %v4463, %v4463
      %v4488 = vcombine.high %v4464, %v4464
      %v4489 = vcombine.high %v4465, %v4465
      %v4490 = vcombine.high %v4466, %v4466
      %v4491 = vrot.slane %v4456, 1
      %v4492 = vrot.slane %v4480, 1
      %v4493 = vrot.slane %v4457, 1
      %v4494 = vrot.slane %v4481, 1
      %v4495 = vrot.slane %v4458, 1
      %v4496 = vrot.slane %v4482, 1
      %v4497 = vrot.slane %v4459, 1
      %v4498 = vrot.slane %v4483, 1
      %v4499 = vrot.slane %v4460, 1
      %v4500 = vrot.slane %v4484, 1
      %v4501 = vrot.slane %v4461, 1
      %v4502 = vrot.slane %v4485, 1
      %v4503 = vrot.slane %v4462, 1
      %v4504 = vrot.slane %v4486, 1
      %v4505 = vrot.slane %v4463, 1
      %v4506 = vrot.slane %v4487, 1
      %v4507 = vrot.slane %v4464, 1
      %v4508 = vrot.slane %v4488, 1
      %v4509 = vrot.slane %v4465, 1
      %v4510 = vrot.slane %v4489, 1
      %v4511 = vrot.slane %v4466, 1
      %v4512 = vrot.slane %v4490, 1
      %v4513 = vrot.slane %v4467, 1
      %4514 = vrot.lane.b32.xlu0 %v4491, 127
      %v4515 = vpop.permute.xlu0 %4514
      %4516 = vrot.lane.b32.xlu0 %v4492, 127
      %v4517 = vpop.permute.xlu0 %4516
      %4518 = vrot.lane.b32.xlu0 %v4493, 127
      %v4519 = vpop.permute.xlu0 %4518
      %4520 = vrot.lane.b32.xlu0 %v4494, 127
      %v4521 = vpop.permute.xlu0 %4520
      %4522 = vrot.lane.b32.xlu0 %v4495, 127
      %v4523 = vpop.permute.xlu0 %4522
      %4524 = vrot.lane.b32.xlu0 %v4496, 127
      %v4525 = vpop.permute.xlu0 %4524
      %4526 = vrot.lane.b32.xlu0 %v4497, 127
      %v4527 = vpop.permute.xlu0 %4526
      %4528 = vrot.lane.b32.xlu0 %v4498, 127
      %v4529 = vpop.permute.xlu0 %4528
      %4530 = vrot.lane.b32.xlu0 %v4499, 127
      %v4531 = vpop.permute.xlu0 %4530
      %4532 = vrot.lane.b32.xlu0 %v4500, 127
      %v4533 = vpop.permute.xlu0 %4532
      %4534 = vrot.lane.b32.xlu0 %v4501, 127
      %v4535 = vpop.permute.xlu0 %4534
      %4536 = vrot.lane.b32.xlu0 %v4502, 127
      %v4537 = vpop.permute.xlu0 %4536
      %4538 = vrot.lane.b32.xlu0 %v4503, 127
      %v4539 = vpop.permute.xlu0 %4538
      %4540 = vrot.lane.b32.xlu0 %v4504, 127
      %v4541 = vpop.permute.xlu0 %4540
      %4542 = vrot.lane.b32.xlu0 %v4505, 127
      %v4543 = vpop.permute.xlu0 %4542
      %4544 = vrot.lane.b32.xlu0 %v4506, 127
      %v4545 = vpop.permute.xlu0 %4544
      %4546 = vrot.lane.b32.xlu0 %v4507, 127
      %v4547 = vpop.permute.xlu0 %4546
      %4548 = vrot.lane.b32.xlu0 %v4508, 127
      %v4549 = vpop.permute.xlu0 %4548
      %4550 = vrot.lane.b32.xlu0 %v4509, 127
      %v4551 = vpop.permute.xlu0 %4550
      %4552 = vrot.lane.b32.xlu0 %v4510, 127
      %v4553 = vpop.permute.xlu0 %4552
      %4554 = vrot.lane.b32.xlu0 %v4511, 127
      %v4555 = vpop.permute.xlu0 %4554
      %4556 = vrot.lane.b32.xlu0 %v4512, 127
      %v4557 = vpop.permute.xlu0 %4556
      %4558 = vrot.lane.b32.xlu0 %v4513, 127
      %v4559 = vpop.permute.xlu0 %4558
      %v4560 = vsel %vm1107, %v4515, %v4517
      %v4561 = vsel %vm1107, %v4517, %v4519
      %v4562 = vsel %vm1107, %v4519, %v4521
      %v4563 = vsel %vm1107, %v4521, %v4523
      %v4564 = vsel %vm1107, %v4523, %v4525
      %v4565 = vsel %vm1107, %v4525, %v4527
      %v4566 = vsel %vm1107, %v4527, %v4529
      %v4567 = vsel %vm1107, %v4529, %v4531
      %v4568 = vsel %vm1107, %v4531, %v4533
      %v4569 = vsel %vm1107, %v4533, %v4535
      %v4570 = vsel %vm1107, %v4535, %v4537
      %v4571 = vsel %vm1107, %v4537, %v4539
      %v4572 = vsel %vm1107, %v4539, %v4541
      %v4573 = vsel %vm1107, %v4541, %v4543
      %v4574 = vsel %vm1107, %v4543, %v4545
      %v4575 = vsel %vm1107, %v4545, %v4547
      %v4576 = vsel %vm1107, %v4547, %v4549
      %v4577 = vsel %vm1107, %v4549, %v4551
      %v4578 = vsel %vm1107, %v4551, %v4553
      %v4579 = vsel %vm1107, %v4553, %v4555
      %v4580 = vsel %vm1107, %v4555, %v4557
      %v4581 = vsel %vm1107, %v4557, %v4559
      %4604 = vst [vmem:[#allocation4 + $0xb0] sm:$0x80] %v4560
      %4605 = vst [vmem:[#allocation4 + $0xb8] sm:$0x80] %v4561
      %4606 = vst [vmem:[#allocation4 + $0xc0] sm:$0x80] %v4562
      %4607 = vst [vmem:[#allocation4 + $0xc8] sm:$0x80] %v4563
      %4608 = vst [vmem:[#allocation4 + $0xd0] sm:$0x80] %v4564
      %4609 = vst [vmem:[#allocation4 + $0xd8] sm:$0x80] %v4565
      %4610 = vst [vmem:[#allocation4 + $0xe0] sm:$0x80] %v4566
      %4611 = vst [vmem:[#allocation4 + $0xe8] sm:$0x80] %v4567
      %4612 = vst [vmem:[#allocation4 + $0xf0] sm:$0x80] %v4568
      %4613 = vst [vmem:[#allocation4 + $0xf8] sm:$0x80] %v4569
      %4614 = vst [vmem:[#allocation4 + $0x100] sm:$0x80] %v4570
      %4615 = vst [vmem:[#allocation4 + $0x108] sm:$0x80] %v4571
      %4616 = vst [vmem:[#allocation4 + $0x110] sm:$0x80] %v4572
      %4617 = vst [vmem:[#allocation4 + $0x118] sm:$0x80] %v4573
      %4618 = vst [vmem:[#allocation4 + $0x120] sm:$0x80] %v4574
      %4619 = vst [vmem:[#allocation4 + $0x128] sm:$0x80] %v4575
      %4620 = vst [vmem:[#allocation4 + $0x130] sm:$0x80] %v4576
      %4621 = vst [vmem:[#allocation4 + $0x138] sm:$0x80] %v4577
      %4622 = vst [vmem:[#allocation4 + $0x140] sm:$0x80] %v4578
      %4623 = vst [vmem:[#allocation4 + $0x148] sm:$0x80] %v4579
      %4624 = vst [vmem:[#allocation4 + $0x150] sm:$0x80] %v4580
      %4625 = vst [vmem:[#allocation4 + $0x158] sm:$0x80] %v4581
      %4626 = vst [vmem:[#allocation4 + $0x160] sm:$0x3] %v4560
      %4627 = vst [vmem:[#allocation4 + $0x168] sm:$0x3] %v4561
      %4628 = vst [vmem:[#allocation4 + $0x170] sm:$0x3] %v4562
      %4629 = vst [vmem:[#allocation4 + $0x178] sm:$0x3] %v4563
      %4630 = vst [vmem:[#allocation4 + $0x180] sm:$0x3] %v4564
      %4631 = vst [vmem:[#allocation4 + $0x188] sm:$0x3] %v4565
      %4632 = vst [vmem:[#allocation4 + $0x190] sm:$0x3] %v4566
      %4633 = vst [vmem:[#allocation4 + $0x198] sm:$0x3] %v4567
      %4634 = vst [vmem:[#allocation4 + $0x1a0] sm:$0x3] %v4568
      %4635 = vst [vmem:[#allocation4 + $0x1a8] sm:$0x3] %v4569
      %4636 = vst [vmem:[#allocation4 + $0x1b0] sm:$0x3] %v4570
      %4637 = vst [vmem:[#allocation4 + $0x1b8] sm:$0x3] %v4571
      %4638 = vst [vmem:[#allocation4 + $0x1c0] sm:$0x3] %v4572
      %4639 = vst [vmem:[#allocation4 + $0x1c8] sm:$0x3] %v4573
      %4640 = vst [vmem:[#allocation4 + $0x1d0] sm:$0x3] %v4574
      %4641 = vst [vmem:[#allocation4 + $0x1d8] sm:$0x3] %v4575
      %4642 = vst [vmem:[#allocation4 + $0x1e0] sm:$0x3] %v4576
      %4643 = vst [vmem:[#allocation4 + $0x1e8] sm:$0x3] %v4577
      %4644 = vst [vmem:[#allocation4 + $0x1f0] sm:$0x3] %v4578
      %4645 = vst [vmem:[#allocation4 + $0x1f8] sm:$0x3] %v4579
      %4646 = vst [vmem:[#allocation4 + $0x200] sm:$0x3] %v4580
      %4647 = vst [vmem:[#allocation4 + $0x208] sm:$0x3] %v4581
      %v4648 = vld [vmem:[#allocation3 + $0x4] sm:$0x77]
      %v4649 = vld [vmem:[#allocation3 + $0xc] sm:$0x77]
      %v4650 = vld [vmem:[#allocation3 + $0x14] sm:$0x77]
      %v4651 = vld [vmem:[#allocation3 + $0x1c] sm:$0x77]
      %v4652 = vld [vmem:[#allocation3 + $0x24] sm:$0x77]
      %v4653 = vld [vmem:[#allocation3 + $0x2c] sm:$0x77]
      %v4654 = vld [vmem:[#allocation3 + $0x34] sm:$0x77]
      %v4655 = vld [vmem:[#allocation3 + $0x3c] sm:$0x77]
      %v4656 = vld [vmem:[#allocation3 + $0x44] sm:$0x77]
      %v4657 = vld [vmem:[#allocation3 + $0x4c] sm:$0x77]
      %v4658 = vld [vmem:[#allocation3 + $0x54] sm:$0x77]
      %v4659 = vld [vmem:[#allocation3 + $0x5c] sm:$0x7]
      %v4672 = vcombine.high %v4648, %v4648
      %v4673 = vcombine.high %v4649, %v4649
      %v4674 = vcombine.high %v4650, %v4650
      %v4675 = vcombine.high %v4651, %v4651
      %v4676 = vcombine.high %v4652, %v4652
      %v4677 = vcombine.high %v4653, %v4653
      %v4678 = vcombine.high %v4654, %v4654
      %v4679 = vcombine.high %v4655, %v4655
      %v4680 = vcombine.high %v4656, %v4656
      %v4681 = vcombine.high %v4657, %v4657
      %v4682 = vcombine.high %v4658, %v4658
      %v4683 = vrot.slane %v4648, 6
      %v4684 = vrot.slane %v4672, 6
      %v4685 = vrot.slane %v4649, 6
      %v4686 = vrot.slane %v4673, 6
      %v4687 = vrot.slane %v4650, 6
      %v4688 = vrot.slane %v4674, 6
      %v4689 = vrot.slane %v4651, 6
      %v4690 = vrot.slane %v4675, 6
      %v4691 = vrot.slane %v4652, 6
      %v4692 = vrot.slane %v4676, 6
      %v4693 = vrot.slane %v4653, 6
      %v4694 = vrot.slane %v4677, 6
      %v4695 = vrot.slane %v4654, 6
      %v4696 = vrot.slane %v4678, 6
      %v4697 = vrot.slane %v4655, 6
      %v4698 = vrot.slane %v4679, 6
      %v4699 = vrot.slane %v4656, 6
      %v4700 = vrot.slane %v4680, 6
      %v4701 = vrot.slane %v4657, 6
      %v4702 = vrot.slane %v4681, 6
      %v4703 = vrot.slane %v4658, 6
      %v4704 = vrot.slane %v4682, 6
      %v4705 = vrot.slane %v4659, 6
      %4706 = vrot.lane.b32.xlu0 %v4683, 93
      %v4707 = vpop.permute.xlu0 %4706
      %4708 = vrot.lane.b32.xlu0 %v4684, 93
      %v4709 = vpop.permute.xlu0 %4708
      %4710 = vrot.lane.b32.xlu0 %v4685, 93
      %v4711 = vpop.permute.xlu0 %4710
      %4712 = vrot.lane.b32.xlu0 %v4686, 93
      %v4713 = vpop.permute.xlu0 %4712
      %4714 = vrot.lane.b32.xlu0 %v4687, 93
      %v4715 = vpop.permute.xlu0 %4714
      %4716 = vrot.lane.b32.xlu0 %v4688, 93
      %v4717 = vpop.permute.xlu0 %4716
      %4718 = vrot.lane.b32.xlu0 %v4689, 93
      %v4719 = vpop.permute.xlu0 %4718
      %4720 = vrot.lane.b32.xlu0 %v4690, 93
      %v4721 = vpop.permute.xlu0 %4720
      %4722 = vrot.lane.b32.xlu0 %v4691, 93
      %v4723 = vpop.permute.xlu0 %4722
      %4724 = vrot.lane.b32.xlu0 %v4692, 93
      %v4725 = vpop.permute.xlu0 %4724
      %4726 = vrot.lane.b32.xlu0 %v4693, 93
      %v4727 = vpop.permute.xlu0 %4726
      %4728 = vrot.lane.b32.xlu0 %v4694, 93
      %v4729 = vpop.permute.xlu0 %4728
      %4730 = vrot.lane.b32.xlu0 %v4695, 93
      %v4731 = vpop.permute.xlu0 %4730
      %4732 = vrot.lane.b32.xlu0 %v4696, 93
      %v4733 = vpop.permute.xlu0 %4732
      %4734 = vrot.lane.b32.xlu0 %v4697, 93
      %v4735 = vpop.permute.xlu0 %4734
      %4736 = vrot.lane.b32.xlu0 %v4698, 93
      %v4737 = vpop.permute.xlu0 %4736
      %4738 = vrot.lane.b32.xlu0 %v4699, 93
      %v4739 = vpop.permute.xlu0 %4738
      %4740 = vrot.lane.b32.xlu0 %v4700, 93
      %v4741 = vpop.permute.xlu0 %4740
      %4742 = vrot.lane.b32.xlu0 %v4701, 93
      %v4743 = vpop.permute.xlu0 %4742
      %4744 = vrot.lane.b32.xlu0 %v4702, 93
      %v4745 = vpop.permute.xlu0 %4744
      %4746 = vrot.lane.b32.xlu0 %v4703, 93
      %v4747 = vpop.permute.xlu0 %4746
      %4748 = vrot.lane.b32.xlu0 %v4704, 93
      %v4749 = vpop.permute.xlu0 %4748
      %4750 = vrot.lane.b32.xlu0 %v4705, 93
      %v4751 = vpop.permute.xlu0 %4750
      %v4752 = vsel %vm1300, %v4707, %v4709
      %v4753 = vsel %vm1300, %v4709, %v4711
      %v4754 = vsel %vm1300, %v4711, %v4713
      %v4755 = vsel %vm1300, %v4713, %v4715
      %v4756 = vsel %vm1300, %v4715, %v4717
      %v4757 = vsel %vm1300, %v4717, %v4719
      %v4758 = vsel %vm1300, %v4719, %v4721
      %v4759 = vsel %vm1300, %v4721, %v4723
      %v4760 = vsel %vm1300, %v4723, %v4725
      %v4761 = vsel %vm1300, %v4725, %v4727
      %v4762 = vsel %vm1300, %v4727, %v4729
      %v4763 = vsel %vm1300, %v4729, %v4731
      %v4764 = vsel %vm1300, %v4731, %v4733
      %v4765 = vsel %vm1300, %v4733, %v4735
      %v4766 = vsel %vm1300, %v4735, %v4737
      %v4767 = vsel %vm1300, %v4737, %v4739
      %v4768 = vsel %vm1300, %v4739, %v4741
      %v4769 = vsel %vm1300, %v4741, %v4743
      %v4770 = vsel %vm1300, %v4743, %v4745
      %v4771 = vsel %vm1300, %v4745, %v4747
      %v4772 = vsel %vm1300, %v4747, %v4749
      %v4773 = vsel %vm1300, %v4749, %v4751
      %4796 = vst [vmem:[#allocation4 + $0x160] sm:$0x1c] %v4752
      %4797 = vst [vmem:[#allocation4 + $0x168] sm:$0x1c] %v4753
      %4798 = vst [vmem:[#allocation4 + $0x170] sm:$0x1c] %v4754
      %4799 = vst [vmem:[#allocation4 + $0x178] sm:$0x1c] %v4755
      %4800 = vst [vmem:[#allocation4 + $0x180] sm:$0x1c] %v4756
      %4801 = vst [vmem:[#allocation4 + $0x188] sm:$0x1c] %v4757
      %4802 = vst [vmem:[#allocation4 + $0x190] sm:$0x1c] %v4758
      %4803 = vst [vmem:[#allocation4 + $0x198] sm:$0x1c] %v4759
      %4804 = vst [vmem:[#allocation4 + $0x1a0] sm:$0x1c] %v4760
      %4805 = vst [vmem:[#allocation4 + $0x1a8] sm:$0x1c] %v4761
      %4806 = vst [vmem:[#allocation4 + $0x1b0] sm:$0x1c] %v4762
      %4807 = vst [vmem:[#allocation4 + $0x1b8] sm:$0x1c] %v4763
      %4808 = vst [vmem:[#allocation4 + $0x1c0] sm:$0x1c] %v4764
      %4809 = vst [vmem:[#allocation4 + $0x1c8] sm:$0x1c] %v4765
      %4810 = vst [vmem:[#allocation4 + $0x1d0] sm:$0x1c] %v4766
      %4811 = vst [vmem:[#allocation4 + $0x1d8] sm:$0x1c] %v4767
      %4812 = vst [vmem:[#allocation4 + $0x1e0] sm:$0x1c] %v4768
      %4813 = vst [vmem:[#allocation4 + $0x1e8] sm:$0x1c] %v4769
      %4814 = vst [vmem:[#allocation4 + $0x1f0] sm:$0x1c] %v4770
      %4815 = vst [vmem:[#allocation4 + $0x1f8] sm:$0x1c] %v4771
      %4816 = vst [vmem:[#allocation4 + $0x200] sm:$0x1c] %v4772
      %4817 = vst [vmem:[#allocation4 + $0x208] sm:$0x1c] %v4773
      %v4818 = vld [vmem:[#allocation3 + $0x4] sm:$0x77]
      %v4819 = vld [vmem:[#allocation3 + $0xc] sm:$0x77]
      %v4820 = vld [vmem:[#allocation3 + $0x14] sm:$0x77]
      %v4821 = vld [vmem:[#allocation3 + $0x1c] sm:$0x77]
      %v4822 = vld [vmem:[#allocation3 + $0x24] sm:$0x77]
      %v4823 = vld [vmem:[#allocation3 + $0x2c] sm:$0x77]
      %v4824 = vld [vmem:[#allocation3 + $0x34] sm:$0x77]
      %v4825 = vld [vmem:[#allocation3 + $0x3c] sm:$0x77]
      %v4826 = vld [vmem:[#allocation3 + $0x44] sm:$0x77]
      %v4827 = vld [vmem:[#allocation3 + $0x4c] sm:$0x77]
      %v4828 = vld [vmem:[#allocation3 + $0x54] sm:$0x77]
      %v4829 = vld [vmem:[#allocation3 + $0x5c] sm:$0x7]
      %v4842 = vcombine.high %v4818, %v4818
      %v4843 = vcombine.high %v4819, %v4819
      %v4844 = vcombine.high %v4820, %v4820
      %v4845 = vcombine.high %v4821, %v4821
      %v4846 = vcombine.high %v4822, %v4822
      %v4847 = vcombine.high %v4823, %v4823
      %v4848 = vcombine.high %v4824, %v4824
      %v4849 = vcombine.high %v4825, %v4825
      %v4850 = vcombine.high %v4826, %v4826
      %v4851 = vcombine.high %v4827, %v4827
      %v4852 = vcombine.high %v4828, %v4828
      %v4853 = vrot.slane %v4818, 3
      %v4854 = vrot.slane %v4842, 3
      %v4855 = vrot.slane %v4819, 3
      %v4856 = vrot.slane %v4843, 3
      %v4857 = vrot.slane %v4820, 3
      %v4858 = vrot.slane %v4844, 3
      %v4859 = vrot.slane %v4821, 3
      %v4860 = vrot.slane %v4845, 3
      %v4861 = vrot.slane %v4822, 3
      %v4862 = vrot.slane %v4846, 3
      %v4863 = vrot.slane %v4823, 3
      %v4864 = vrot.slane %v4847, 3
      %v4865 = vrot.slane %v4824, 3
      %v4866 = vrot.slane %v4848, 3
      %v4867 = vrot.slane %v4825, 3
      %v4868 = vrot.slane %v4849, 3
      %v4869 = vrot.slane %v4826, 3
      %v4870 = vrot.slane %v4850, 3
      %v4871 = vrot.slane %v4827, 3
      %v4872 = vrot.slane %v4851, 3
      %v4873 = vrot.slane %v4828, 3
      %v4874 = vrot.slane %v4852, 3
      %v4875 = vrot.slane %v4829, 3
      %4876 = vrot.lane.b32.xlu0 %v4853, 92
      %v4877 = vpop.permute.xlu0 %4876
      %4878 = vrot.lane.b32.xlu0 %v4854, 92
      %v4879 = vpop.permute.xlu0 %4878
      %4880 = vrot.lane.b32.xlu0 %v4855, 92
      %v4881 = vpop.permute.xlu0 %4880
      %4882 = vrot.lane.b32.xlu0 %v4856, 92
      %v4883 = vpop.permute.xlu0 %4882
      %4884 = vrot.lane.b32.xlu0 %v4857, 92
      %v4885 = vpop.permute.xlu0 %4884
      %4886 = vrot.lane.b32.xlu0 %v4858, 92
      %v4887 = vpop.permute.xlu0 %4886
      %4888 = vrot.lane.b32.xlu0 %v4859, 92
      %v4889 = vpop.permute.xlu0 %4888
      %4890 = vrot.lane.b32.xlu0 %v4860, 92
      %v4891 = vpop.permute.xlu0 %4890
      %4892 = vrot.lane.b32.xlu0 %v4861, 92
      %v4893 = vpop.permute.xlu0 %4892
      %4894 = vrot.lane.b32.xlu0 %v4862, 92
      %v4895 = vpop.permute.xlu0 %4894
      %4896 = vrot.lane.b32.xlu0 %v4863, 92
      %v4897 = vpop.permute.xlu0 %4896
      %4898 = vrot.lane.b32.xlu0 %v4864, 92
      %v4899 = vpop.permute.xlu0 %4898
      %4900 = vrot.lane.b32.xlu0 %v4865, 92
      %v4901 = vpop.permute.xlu0 %4900
      %4902 = vrot.lane.b32.xlu0 %v4866, 92
      %v4903 = vpop.permute.xlu0 %4902
      %4904 = vrot.lane.b32.xlu0 %v4867, 92
      %v4905 = vpop.permute.xlu0 %4904
      %4906 = vrot.lane.b32.xlu0 %v4868, 92
      %v4907 = vpop.permute.xlu0 %4906
      %4908 = vrot.lane.b32.xlu0 %v4869, 92
      %v4909 = vpop.permute.xlu0 %4908
      %4910 = vrot.lane.b32.xlu0 %v4870, 92
      %v4911 = vpop.permute.xlu0 %4910
      %4912 = vrot.lane.b32.xlu0 %v4871, 92
      %v4913 = vpop.permute.xlu0 %4912
      %4914 = vrot.lane.b32.xlu0 %v4872, 92
      %v4915 = vpop.permute.xlu0 %4914
      %4916 = vrot.lane.b32.xlu0 %v4873, 92
      %v4917 = vpop.permute.xlu0 %4916
      %4918 = vrot.lane.b32.xlu0 %v4874, 92
      %v4919 = vpop.permute.xlu0 %4918
      %4920 = vrot.lane.b32.xlu0 %v4875, 92
      %v4921 = vpop.permute.xlu0 %4920
      %v4922 = vsel %vm1471, %v4877, %v4879
      %v4923 = vsel %vm1471, %v4879, %v4881
      %v4924 = vsel %vm1471, %v4881, %v4883
      %v4925 = vsel %vm1471, %v4883, %v4885
      %v4926 = vsel %vm1471, %v4885, %v4887
      %v4927 = vsel %vm1471, %v4887, %v4889
      %v4928 = vsel %vm1471, %v4889, %v4891
      %v4929 = vsel %vm1471, %v4891, %v4893
      %v4930 = vsel %vm1471, %v4893, %v4895
      %v4931 = vsel %vm1471, %v4895, %v4897
      %v4932 = vsel %vm1471, %v4897, %v4899
      %v4933 = vsel %vm1471, %v4899, %v4901
      %v4934 = vsel %vm1471, %v4901, %v4903
      %v4935 = vsel %vm1471, %v4903, %v4905
      %v4936 = vsel %vm1471, %v4905, %v4907
      %v4937 = vsel %vm1471, %v4907, %v4909
      %v4938 = vsel %vm1471, %v4909, %v4911
      %v4939 = vsel %vm1471, %v4911, %v4913
      %v4940 = vsel %vm1471, %v4913, %v4915
      %v4941 = vsel %vm1471, %v4915, %v4917
      %v4942 = vsel %vm1471, %v4917, %v4919
      %v4943 = vsel %vm1471, %v4919, %v4921
      %4966 = vst [vmem:[#allocation4 + $0x160] sm:$0xe0] %v4922
      %4967 = vst [vmem:[#allocation4 + $0x168] sm:$0xe0] %v4923
      %4968 = vst [vmem:[#allocation4 + $0x170] sm:$0xe0] %v4924
      %4969 = vst [vmem:[#allocation4 + $0x178] sm:$0xe0] %v4925
      %4970 = vst [vmem:[#allocation4 + $0x180] sm:$0xe0] %v4926
      %4971 = vst [vmem:[#allocation4 + $0x188] sm:$0xe0] %v4927
      %4972 = vst [vmem:[#allocation4 + $0x190] sm:$0xe0] %v4928
      %4973 = vst [vmem:[#allocation4 + $0x198] sm:$0xe0] %v4929
      %4974 = vst [vmem:[#allocation4 + $0x1a0] sm:$0xe0] %v4930
      %4975 = vst [vmem:[#allocation4 + $0x1a8] sm:$0xe0] %v4931
      %4976 = vst [vmem:[#allocation4 + $0x1b0] sm:$0xe0] %v4932
      %4977 = vst [vmem:[#allocation4 + $0x1b8] sm:$0xe0] %v4933
      %4978 = vst [vmem:[#allocation4 + $0x1c0] sm:$0xe0] %v4934
      %4979 = vst [vmem:[#allocation4 + $0x1c8] sm:$0xe0] %v4935
      %4980 = vst [vmem:[#allocation4 + $0x1d0] sm:$0xe0] %v4936
      %4981 = vst [vmem:[#allocation4 + $0x1d8] sm:$0xe0] %v4937
      %4982 = vst [vmem:[#allocation4 + $0x1e0] sm:$0xe0] %v4938
      %4983 = vst [vmem:[#allocation4 + $0x1e8] sm:$0xe0] %v4939
      %4984 = vst [vmem:[#allocation4 + $0x1f0] sm:$0xe0] %v4940
      %4985 = vst [vmem:[#allocation4 + $0x1f8] sm:$0xe0] %v4941
      %4986 = vst [vmem:[#allocation4 + $0x200] sm:$0xe0] %v4942
      %4987 = vst [vmem:[#allocation4 + $0x208] sm:$0xe0] %v4943
      %v4988 = vld [vmem:[#allocation3 + $0x4] sm:$0x77]
      %v4989 = vld [vmem:[#allocation3 + $0xc] sm:$0x77]
      %v4990 = vld [vmem:[#allocation3 + $0x14] sm:$0x77]
      %v4991 = vld [vmem:[#allocation3 + $0x1c] sm:$0x77]
      %v4992 = vld [vmem:[#allocation3 + $0x24] sm:$0x77]
      %v4993 = vld [vmem:[#allocation3 + $0x2c] sm:$0x77]
      %v4994 = vld [vmem:[#allocation3 + $0x34] sm:$0x77]
      %v4995 = vld [vmem:[#allocation3 + $0x3c] sm:$0x77]
      %v4996 = vld [vmem:[#allocation3 + $0x44] sm:$0x77]
      %v4997 = vld [vmem:[#allocation3 + $0x4c] sm:$0x77]
      %v4998 = vld [vmem:[#allocation3 + $0x54] sm:$0x77]
      %v4999 = vld [vmem:[#allocation3 + $0x5c] sm:$0x7]
      %v5012 = vcombine.high %v4988, %v4988
      %v5013 = vcombine.high %v4989, %v4989
      %v5014 = vcombine.high %v4990, %v4990
      %v5015 = vcombine.high %v4991, %v4991
      %v5016 = vcombine.high %v4992, %v4992
      %v5017 = vcombine.high %v4993, %v4993
      %v5018 = vcombine.high %v4994, %v4994
      %v5019 = vcombine.high %v4995, %v4995
      %v5020 = vcombine.high %v4996, %v4996
      %v5021 = vcombine.high %v4997, %v4997
      %v5022 = vcombine.high %v4998, %v4998
      %5023 = vrot.lane.b32.xlu0 %v4988, 91
      %v5024 = vpop.permute.xlu0 %5023
      %5025 = vrot.lane.b32.xlu0 %v5012, 91
      %v5026 = vpop.permute.xlu0 %5025
      %5027 = vrot.lane.b32.xlu0 %v4989, 91
      %v5028 = vpop.permute.xlu0 %5027
      %5029 = vrot.lane.b32.xlu0 %v5013, 91
      %v5030 = vpop.permute.xlu0 %5029
      %5031 = vrot.lane.b32.xlu0 %v4990, 91
      %v5032 = vpop.permute.xlu0 %5031
      %5033 = vrot.lane.b32.xlu0 %v5014, 91
      %v5034 = vpop.permute.xlu0 %5033
      %5035 = vrot.lane.b32.xlu0 %v4991, 91
      %v5036 = vpop.permute.xlu0 %5035
      %5037 = vrot.lane.b32.xlu0 %v5015, 91
      %v5038 = vpop.permute.xlu0 %5037
      %5039 = vrot.lane.b32.xlu0 %v4992, 91
      %v5040 = vpop.permute.xlu0 %5039
      %5041 = vrot.lane.b32.xlu0 %v5016, 91
      %v5042 = vpop.permute.xlu0 %5041
      %5043 = vrot.lane.b32.xlu0 %v4993, 91
      %v5044 = vpop.permute.xlu0 %5043
      %5045 = vrot.lane.b32.xlu0 %v5017, 91
      %v5046 = vpop.permute.xlu0 %5045
      %5047 = vrot.lane.b32.xlu0 %v4994, 91
      %v5048 = vpop.permute.xlu0 %5047
      %5049 = vrot.lane.b32.xlu0 %v5018, 91
      %v5050 = vpop.permute.xlu0 %5049
      %5051 = vrot.lane.b32.xlu0 %v4995, 91
      %v5052 = vpop.permute.xlu0 %5051
      %5053 = vrot.lane.b32.xlu0 %v5019, 91
      %v5054 = vpop.permute.xlu0 %5053
      %5055 = vrot.lane.b32.xlu0 %v4996, 91
      %v5056 = vpop.permute.xlu0 %5055
      %5057 = vrot.lane.b32.xlu0 %v5020, 91
      %v5058 = vpop.permute.xlu0 %5057
      %5059 = vrot.lane.b32.xlu0 %v4997, 91
      %v5060 = vpop.permute.xlu0 %5059
      %5061 = vrot.lane.b32.xlu0 %v5021, 91
      %v5062 = vpop.permute.xlu0 %5061
      %5063 = vrot.lane.b32.xlu0 %v4998, 91
      %v5064 = vpop.permute.xlu0 %5063
      %5065 = vrot.lane.b32.xlu0 %v5022, 91
      %v5066 = vpop.permute.xlu0 %5065
      %5067 = vrot.lane.b32.xlu0 %v4999, 91
      %v5068 = vpop.permute.xlu0 %5067
      %v5069 = vsel %vm1619, %v5024, %v5026
      %v5070 = vsel %vm1619, %v5026, %v5028
      %v5071 = vsel %vm1619, %v5028, %v5030
      %v5072 = vsel %vm1619, %v5030, %v5032
      %v5073 = vsel %vm1619, %v5032, %v5034
      %v5074 = vsel %vm1619, %v5034, %v5036
      %v5075 = vsel %vm1619, %v5036, %v5038
      %v5076 = vsel %vm1619, %v5038, %v5040
      %v5077 = vsel %vm1619, %v5040, %v5042
      %v5078 = vsel %vm1619, %v5042, %v5044
      %v5079 = vsel %vm1619, %v5044, %v5046
      %v5080 = vsel %vm1619, %v5046, %v5048
      %v5081 = vsel %vm1619, %v5048, %v5050
      %v5082 = vsel %vm1619, %v5050, %v5052
      %v5083 = vsel %vm1619, %v5052, %v5054
      %v5084 = vsel %vm1619, %v5054, %v5056
      %v5085 = vsel %vm1619, %v5056, %v5058
      %v5086 = vsel %vm1619, %v5058, %v5060
      %v5087 = vsel %vm1619, %v5060, %v5062
      %v5088 = vsel %vm1619, %v5062, %v5064
      %v5089 = vsel %vm1619, %v5064, %v5066
      %v5090 = vsel %vm1619, %v5066, %v5068
      %5113 = vst [vmem:[#allocation4 + $0x210] sm:$0x7] %v5069
      %5114 = vst [vmem:[#allocation4 + $0x218] sm:$0x7] %v5070
      %5115 = vst [vmem:[#allocation4 + $0x220] sm:$0x7] %v5071
      %5116 = vst [vmem:[#allocation4 + $0x228] sm:$0x7] %v5072
      %5117 = vst [vmem:[#allocation4 + $0x230] sm:$0x7] %v5073
      %5118 = vst [vmem:[#allocation4 + $0x238] sm:$0x7] %v5074
      %5119 = vst [vmem:[#allocation4 + $0x240] sm:$0x7] %v5075
      %5120 = vst [vmem:[#allocation4 + $0x248] sm:$0x7] %v5076
      %5121 = vst [vmem:[#allocation4 + $0x250] sm:$0x7] %v5077
      %5122 = vst [vmem:[#allocation4 + $0x258] sm:$0x7] %v5078
      %5123 = vst [vmem:[#allocation4 + $0x260] sm:$0x7] %v5079
      %5124 = vst [vmem:[#allocation4 + $0x268] sm:$0x7] %v5080
      %5125 = vst [vmem:[#allocation4 + $0x270] sm:$0x7] %v5081
      %5126 = vst [vmem:[#allocation4 + $0x278] sm:$0x7] %v5082
      %5127 = vst [vmem:[#allocation4 + $0x280] sm:$0x7] %v5083
      %5128 = vst [vmem:[#allocation4 + $0x288] sm:$0x7] %v5084
      %5129 = vst [vmem:[#allocation4 + $0x290] sm:$0x7] %v5085
      %5130 = vst [vmem:[#allocation4 + $0x298] sm:$0x7] %v5086
      %5131 = vst [vmem:[#allocation4 + $0x2a0] sm:$0x7] %v5087
      %5132 = vst [vmem:[#allocation4 + $0x2a8] sm:$0x7] %v5088
      %5133 = vst [vmem:[#allocation4 + $0x2b0] sm:$0x7] %v5089
      %5134 = vst [vmem:[#allocation4 + $0x2b8] sm:$0x7] %v5090
      %v5135 = vld [vmem:[%s1] sm:$0xff]
      %v5136 = vld [vmem:[%s1 + $0x8] sm:$0xf]
      %v5137 = vld [vmem:[#allocation4] sm:$0xff]
      %v5138 = vld [vmem:[#allocation4 + $0x8] sm:$0xff]
      %v5139 = vld [vmem:[#allocation4 + $0x10] sm:$0xff]
      %v5140 = vld [vmem:[#allocation4 + $0x18] sm:$0xff]
      %v5141 = vld [vmem:[#allocation4 + $0x20] sm:$0xff]
      %v5142 = vld [vmem:[#allocation4 + $0x28] sm:$0xff]
      %v5143 = vld [vmem:[#allocation4 + $0x30] sm:$0xff]
      %v5144 = vld [vmem:[#allocation4 + $0x38] sm:$0xff]
      %v5145 = vld [vmem:[#allocation4 + $0x40] sm:$0xff]
      %v5146 = vld [vmem:[#allocation4 + $0x48] sm:$0xff]
      %v5147 = vld [vmem:[#allocation4 + $0x50] sm:$0xff]
      %v5148 = vld [vmem:[#allocation4 + $0x58] sm:$0xff]
      %v5149 = vld [vmem:[#allocation4 + $0x60] sm:$0xff]
      %v5150 = vld [vmem:[#allocation4 + $0x68] sm:$0xff]
      %v5151 = vld [vmem:[#allocation4 + $0x70] sm:$0xff]
      %v5152 = vld [vmem:[#allocation4 + $0x78] sm:$0xff]
      %v5153 = vld [vmem:[#allocation4 + $0x80] sm:$0xff]
      %v5154 = vld [vmem:[#allocation4 + $0x88] sm:$0xff]
      %v5155 = vld [vmem:[#allocation4 + $0x90] sm:$0xff]
      %v5156 = vld [vmem:[#allocation4 + $0x98] sm:$0xff]
      %v5157 = vld [vmem:[#allocation4 + $0xa0] sm:$0xff]
      %v5158 = vld [vmem:[#allocation4 + $0xa8] sm:$0xff]
      %v5159 = vld [vmem:[#allocation4 + $0xb0] sm:$0xff]
      %v5160 = vld [vmem:[#allocation4 + $0xb8] sm:$0xff]
      %v5161 = vld [vmem:[#allocation4 + $0xc0] sm:$0xff]
      %v5162 = vld [vmem:[#allocation4 + $0xc8] sm:$0xff]
      %v5163 = vld [vmem:[#allocation4 + $0xd0] sm:$0xff]
      %v5164 = vld [vmem:[#allocation4 + $0xd8] sm:$0xff]
      %v5165 = vld [vmem:[#allocation4 + $0xe0] sm:$0xff]
      %v5166 = vld [vmem:[#allocation4 + $0xe8] sm:$0xff]
      %v5167 = vld [vmem:[#allocation4 + $0xf0] sm:$0xff]
      %v5168 = vld [vmem:[#allocation4 + $0xf8] sm:$0xff]
      %v5169 = vld [vmem:[#allocation4 + $0x100] sm:$0xff]
      %v5170 = vld [vmem:[#allocation4 + $0x108] sm:$0xff]
      %v5171 = vld [vmem:[#allocation4 + $0x110] sm:$0xff]
      %v5172 = vld [vmem:[#allocation4 + $0x118] sm:$0xff]
      %v5173 = vld [vmem:[#allocation4 + $0x120] sm:$0xff]
      %v5174 = vld [vmem:[#allocation4 + $0x128] sm:$0xff]
      %v5175 = vld [vmem:[#allocation4 + $0x130] sm:$0xff]
      %v5176 = vld [vmem:[#allocation4 + $0x138] sm:$0xff]
      %v5177 = vld [vmem:[#allocation4 + $0x140] sm:$0xff]
      %v5178 = vld [vmem:[#allocation4 + $0x148] sm:$0xff]
      %v5179 = vld [vmem:[#allocation4 + $0x150] sm:$0xff]
      %v5180 = vld [vmem:[#allocation4 + $0x158] sm:$0xff]
      %v5181 = vld [vmem:[#allocation4 + $0x160] sm:$0xff]
      %v5182 = vld [vmem:[#allocation4 + $0x168] sm:$0xff]
      %v5183 = vld [vmem:[#allocation4 + $0x170] sm:$0xff]
      %v5184 = vld [vmem:[#allocation4 + $0x178] sm:$0xff]
      %v5185 = vld [vmem:[#allocation4 + $0x180] sm:$0xff]
      %v5186 = vld [vmem:[#allocation4 + $0x188] sm:$0xff]
      %v5187 = vld [vmem:[#allocation4 + $0x190] sm:$0xff]
      %v5188 = vld [vmem:[#allocation4 + $0x198] sm:$0xff]
      %v5189 = vld [vmem:[#allocation4 + $0x1a0] sm:$0xff]
      %v5190 = vld [vmem:[#allocation4 + $0x1a8] sm:$0xff]
      %v5191 = vld [vmem:[#allocation4 + $0x1b0] sm:$0xff]
      %v5192 = vld [vmem:[#allocation4 + $0x1b8] sm:$0xff]
      %v5193 = vld [vmem:[#allocation4 + $0x1c0] sm:$0xff]
      %v5194 = vld [vmem:[#allocation4 + $0x1c8] sm:$0xff]
      %v5195 = vld [vmem:[#allocation4 + $0x1d0] sm:$0xff]
      %v5196 = vld [vmem:[#allocation4 + $0x1d8] sm:$0xff]
      %v5197 = vld [vmem:[#allocation4 + $0x1e0] sm:$0xff]
      %v5198 = vld [vmem:[#allocation4 + $0x1e8] sm:$0xff]
      %v5199 = vld [vmem:[#allocation4 + $0x1f0] sm:$0xff]
      %v5200 = vld [vmem:[#allocation4 + $0x1f8] sm:$0xff]
      %v5201 = vld [vmem:[#allocation4 + $0x200] sm:$0xff]
      %v5202 = vld [vmem:[#allocation4 + $0x208] sm:$0xff]
      %v5203 = vld [vmem:[#allocation4 + $0x210] sm:$0x7]
      %v5204 = vld [vmem:[#allocation4 + $0x218] sm:$0x7]
      %v5205 = vld [vmem:[#allocation4 + $0x220] sm:$0x7]
      %v5206 = vld [vmem:[#allocation4 + $0x228] sm:$0x7]
      %v5207 = vld [vmem:[#allocation4 + $0x230] sm:$0x7]
      %v5208 = vld [vmem:[#allocation4 + $0x238] sm:$0x7]
      %v5209 = vld [vmem:[#allocation4 + $0x240] sm:$0x7]
      %v5210 = vld [vmem:[#allocation4 + $0x248] sm:$0x7]
      %v5211 = vld [vmem:[#allocation4 + $0x250] sm:$0x7]
      %v5212 = vld [vmem:[#allocation4 + $0x258] sm:$0x7]
      %v5213 = vld [vmem:[#allocation4 + $0x260] sm:$0x7]
      %v5214 = vld [vmem:[#allocation4 + $0x268] sm:$0x7]
      %v5215 = vld [vmem:[#allocation4 + $0x270] sm:$0x7]
      %v5216 = vld [vmem:[#allocation4 + $0x278] sm:$0x7]
      %v5217 = vld [vmem:[#allocation4 + $0x280] sm:$0x7]
      %v5218 = vld [vmem:[#allocation4 + $0x288] sm:$0x7]
      %v5219 = vld [vmem:[#allocation4 + $0x290] sm:$0x7]
      %v5220 = vld [vmem:[#allocation4 + $0x298] sm:$0x7]
      %v5221 = vld [vmem:[#allocation4 + $0x2a0] sm:$0x7]
      %v5222 = vld [vmem:[#allocation4 + $0x2a8] sm:$0x7]
      %v5223 = vld [vmem:[#allocation4 + $0x2b0] sm:$0x7]
      %v5224 = vld [vmem:[#allocation4 + $0x2b8] sm:$0x7]
      %v5225 = vld [vmem:[%s2] sm:$0xff]
      %v5226 = vld [vmem:[%s2 + $0x8] sm:$0xf]
      %5228 = vset.pattern.permute.xlu0 0
      %5229 = vperm.xlu0 %5228, %v5225
      %v5230 = vpop.permute.xlu0 %5229
      %5233 = vset.pattern.permute.xlu0 0
      %5234 = vperm.xlu0 %5233, %v5226
      %v5235 = vpop.permute.xlu0 %5234
      %v5238 = vsel %vm1788, %v5135, 0
      %v5241 = vsel %vm1788, %v5136, 0
      %v5244 = vsel %vm1795, %v5203, 0
      %v5247 = vsel %vm1795, %v5204, 0
      %v5250 = vsel %vm1795, %v5205, 0
      %v5253 = vsel %vm1795, %v5206, 0
      %v5256 = vsel %vm1795, %v5207, 0
      %v5259 = vsel %vm1795, %v5208, 0
      %v5262 = vsel %vm1795, %v5209, 0
      %v5265 = vsel %vm1795, %v5210, 0
      %v5268 = vsel %vm1795, %v5211, 0
      %v5271 = vsel %vm1795, %v5212, 0
      %v5274 = vsel %vm1795, %v5213, 0
      %v5277 = vsel %vm1795, %v5214, 0
      %v5280 = vsel %vm1795, %v5215, 0
      %v5283 = vsel %vm1795, %v5216, 0
      %v5286 = vsel %vm1795, %v5217, 0
      %v5289 = vsel %vm1795, %v5218, 0
      %v5292 = vsel %vm1795, %v5219, 0
      %v5295 = vsel %vm1795, %v5220, 0
      %v5298 = vsel %vm1795, %v5221, 0
      %v5301 = vsel %vm1795, %v5222, 0
      %v5304 = vsel %vm1795, %v5223, 0
      %v5307 = vsel %vm1795, %v5224, 0
      %5309 = vmatprep.subr.mxu0 %v5138
      %5310 = vmatpush1.msra.mxu0 %v5137
      %5311 = vmatprep.subr.mxu0 %v5160
      %5312 = vmatpush1.msra.mxu0 %v5159
      %5313 = vmatprep.subr.mxu0 %v5182
      %5314 = vmatpush1.msra.mxu0 %v5181
      %5315 = vmatprep.subr.mxu0 %v5247
      %5316 = vmatpush1.msra.mxu0 %v5244
      %5317 = vmatprep.subr.mxu0 0.0
      %5318 = vmatpush1.msra.mxu0 0.0
      %5319 = vmatprep.subr.mxu0 0.0
      %5320 = vmatpush1.msra.mxu0 0.0
      %5321 = vmatprep.subr.mxu0 0.0
      %5322 = vmatpush1.msra.mxu0 0.0
      %5323 = vmatprep.subr.mxu0 0.0
      %5324 = vmatpush1.msra.mxu0 0.0
      %5325 = vmatprep.subr.mxu0 0.0
      %5326 = vmatpush1.msra.mxu0 0.0
      %5327 = vmatprep.subr.mxu0 0.0
      %5328 = vmatpush1.msra.mxu0 0.0
      %5329 = vmatprep.subr.mxu0 0.0
      %5330 = vmatpush1.msra.mxu0 0.0
      %5331 = vmatprep.subr.mxu0 0.0
      %5332 = vmatpush1.msra.mxu0 0.0
      %5333 = vmatprep.subr.mxu0 0.0
      %5334 = vmatpush1.msra.mxu0 0.0
      %5335 = vmatprep.subr.mxu0 0.0
      %5336 = vmatpush1.msra.mxu0 0.0
      %5337 = vmatprep.subr.mxu0 0.0
      %5338 = vmatpush1.msra.mxu0 0.0
      %5339 = vmatprep.subr.mxu0 0.0
      %5340 = vmatpush1.msra.mxu0 0.0
      %5341 = vmatprep.subr.mxu0 0.0
      %5342 = vmatpush1.msra.mxu0 0.0
      %5343 = vmatprep.subr.mxu0 0.0
      %5344 = vmatpush1.msra.mxu0 0.0
      %5345 = vmatprep.subr.mxu0 0.0
      %5346 = vmatpush1.msra.mxu0 0.0
      %5347 = vmatprep.subr.mxu0 0.0
      %5348 = vmatpush1.msra.mxu0 0.0
      %5349 = vmatprep.subr.mxu0 0.0
      %5350 = vmatpush1.msra.mxu0 0.0
      %5351 = vmatprep.subr.mxu0 0.0
      %5352 = vmatpush1.msra.mxu0 0.0
      %5353 = vmatprep.subr.mxu0 0.0
      %5354 = vmatpush1.msra.mxu0 0.0
      %5355 = vmatprep.subr.mxu0 0.0
      %5356 = vmatpush1.msra.mxu0 0.0
      %5357 = vmatprep.subr.mxu0 0.0
      %5358 = vmatpush1.msra.mxu0 0.0
      %5359 = vmatprep.subr.mxu0 0.0
      %5360 = vmatpush1.msra.mxu0 0.0
      %5361 = vmatprep.subr.mxu0 0.0
      %5362 = vmatpush1.msra.mxu0 0.0
      %5363 = vmatprep.subr.mxu0 0.0
      %5364 = vmatpush1.msra.mxu0 0.0
      %5365 = vmatprep.subr.mxu0 0.0
      %5366 = vmatpush1.msra.mxu0 0.0
      %5367 = vmatprep.subr.mxu0 0.0
      %5368 = vmatpush1.msra.mxu0 0.0
      %5369 = vmatprep.subr.mxu0 0.0
      %5370 = vmatpush1.msra.mxu0 0.0
      %5371 = vmatprep.subr.mxu0 0.0
      %5372 = vmatpush1.msra.mxu0 0.0
      %5373 = vmatprep.mubr.f32.mxu0 0.0
      %5374 = vmatmul.mubr.f32.gmra.mrb[0].mxu0 %v5238
      %v5375 = vpop.f32.mrb[0].mxu0
      %v5376 = vadd.f32 %v5230, %v5375
      %v5377 = vpop.f32.mrb[0].mxu0
      %v5378 = vadd.f32 %v5230, %v5377
      %5379 = vmatprep.mubr.f32.mxu0 0.0
      %5380 = vmatmul.mubr.f32.gmra.mrb[0].mxu0 %v5241
      %v5381 = vpop.f32.mrb[0].mxu0
      %v5382 = vadd.f32 %v5235, %v5381
      %v5383 = vpop.f32.mrb[0].mxu0
      %v5384 = vadd.f32 %v5235, %v5383
      %5385 = vdwg.mxu0
      %5386 = vmatprep.subr.mxu0 %v5140
      %5387 = vmatpush1.msra.mxu0 %v5139
      %5388 = vmatprep.subr.mxu0 %v5162
      %5389 = vmatpush1.msra.mxu0 %v5161
      %5390 = vmatprep.subr.mxu0 %v5184
      %5391 = vmatpush1.msra.mxu0 %v5183
      %5392 = vmatprep.subr.mxu0 %v5253
      %5393 = vmatpush1.msra.mxu0 %v5250
      %5394 = vmatprep.subr.mxu0 0.0
      %5395 = vmatpush1.msra.mxu0 0.0
      %5396 = vmatprep.subr.mxu0 0.0
      %5397 = vmatpush1.msra.mxu0 0.0
      %5398 = vmatprep.subr.mxu0 0.0
      %5399 = vmatpush1.msra.mxu0 0.0
      %5400 = vmatprep.subr.mxu0 0.0
      %5401 = vmatpush1.msra.mxu0 0.0
      %5402 = vmatprep.subr.mxu0 0.0
      %5403 = vmatpush1.msra.mxu0 0.0
      %5404 = vmatprep.subr.mxu0 0.0
      %5405 = vmatpush1.msra.mxu0 0.0
      %5406 = vmatprep.subr.mxu0 0.0
      %5407 = vmatpush1.msra.mxu0 0.0
      %5408 = vmatprep.subr.mxu0 0.0
      %5409 = vmatpush1.msra.mxu0 0.0
      %5410 = vmatprep.subr.mxu0 0.0
      %5411 = vmatpush1.msra.mxu0 0.0
      %5412 = vmatprep.subr.mxu0 0.0
      %5413 = vmatpush1.msra.mxu0 0.0
      %5414 = vmatprep.subr.mxu0 0.0
      %5415 = vmatpush1.msra.mxu0 0.0
      %5416 = vmatprep.subr.mxu0 0.0
      %5417 = vmatpush1.msra.mxu0 0.0
      %5418 = vmatprep.subr.mxu0 0.0
      %5419 = vmatpush1.msra.mxu0 0.0
      %5420 = vmatprep.subr.mxu0 0.0
      %5421 = vmatpush1.msra.mxu0 0.0
      %5422 = vmatprep.subr.mxu0 0.0
      %5423 = vmatpush1.msra.mxu0 0.0
      %5424 = vmatprep.subr.mxu0 0.0
      %5425 = vmatpush1.msra.mxu0 0.0
      %5426 = vmatprep.subr.mxu0 0.0
      %5427 = vmatpush1.msra.mxu0 0.0
      %5428 = vmatprep.subr.mxu0 0.0
      %5429 = vmatpush1.msra.mxu0 0.0
      %5430 = vmatprep.subr.mxu0 0.0
      %5431 = vmatpush1.msra.mxu0 0.0
      %5432 = vmatprep.subr.mxu0 0.0
      %5433 = vmatpush1.msra.mxu0 0.0
      %5434 = vmatprep.subr.mxu0 0.0
      %5435 = vmatpush1.msra.mxu0 0.0
      %5436 = vmatprep.subr.mxu0 0.0
      %5437 = vmatpush1.msra.mxu0 0.0
      %5438 = vmatprep.subr.mxu0 0.0
      %5439 = vmatpush1.msra.mxu0 0.0
      %5440 = vmatprep.subr.mxu0 0.0
      %5441 = vmatpush1.msra.mxu0 0.0
      %5442 = vmatprep.subr.mxu0 0.0
      %5443 = vmatpush1.msra.mxu0 0.0
      %5444 = vmatprep.subr.mxu0 0.0
      %5445 = vmatpush1.msra.mxu0 0.0
      %5446 = vmatprep.subr.mxu0 0.0
      %5447 = vmatpush1.msra.mxu0 0.0
      %5448 = vmatprep.subr.mxu0 0.0
      %5449 = vmatpush1.msra.mxu0 0.0
      %5450 = vmatprep.mubr.f32.mxu0 0.0
      %5451 = vmatmul.mubr.f32.gmra.mrb[0].mxu0 %v5238
      %v5452 = vpop.f32.mrb[0].mxu0
      %v5453 = vadd.f32 %v5230, %v5452
      %v5454 = vpop.f32.mrb[0].mxu0
      %v5455 = vadd.f32 %v5230, %v5454
      %5456 = vmatprep.mubr.f32.mxu0 0.0
      %5457 = vmatmul.mubr.f32.gmra.mrb[0].mxu0 %v5241
      %v5458 = vpop.f32.mrb[0].mxu0
      %v5459 = vadd.f32 %v5235, %v5458
      %v5460 = vpop.f32.mrb[0].mxu0
      %v5461 = vadd.f32 %v5235, %v5460
      %5462 = vdwg.mxu0
      %5463 = vmatprep.subr.mxu0 %v5142
      %5464 = vmatpush1.msra.mxu0 %v5141
      %5465 = vmatprep.subr.mxu0 %v5164
      %5466 = vmatpush1.msra.mxu0 %v5163
      %5467 = vmatprep.subr.mxu0 %v5186
      %5468 = vmatpush1.msra.mxu0 %v5185
      %5469 = vmatprep.subr.mxu0 %v5259
      %5470 = vmatpush1.msra.mxu0 %v5256
      %5471 = vmatprep.subr.mxu0 0.0
      %5472 = vmatpush1.msra.mxu0 0.0
      %5473 = vmatprep.subr.mxu0 0.0
      %5474 = vmatpush1.msra.mxu0 0.0
      %5475 = vmatprep.subr.mxu0 0.0
      %5476 = vmatpush1.msra.mxu0 0.0
      %5477 = vmatprep.subr.mxu0 0.0
      %5478 = vmatpush1.msra.mxu0 0.0
      %5479 = vmatprep.subr.mxu0 0.0
      %5480 = vmatpush1.msra.mxu0 0.0
      %5481 = vmatprep.subr.mxu0 0.0
      %5482 = vmatpush1.msra.mxu0 0.0
      %5483 = vmatprep.subr.mxu0 0.0
      %5484 = vmatpush1.msra.mxu0 0.0
      %5485 = vmatprep.subr.mxu0 0.0
      %5486 = vmatpush1.msra.mxu0 0.0
      %5487 = vmatprep.subr.mxu0 0.0
      %5488 = vmatpush1.msra.mxu0 0.0
      %5489 = vmatprep.subr.mxu0 0.0
      %5490 = vmatpush1.msra.mxu0 0.0
      %5491 = vmatprep.subr.mxu0 0.0
      %5492 = vmatpush1.msra.mxu0 0.0
      %5493 = vmatprep.subr.mxu0 0.0
      %5494 = vmatpush1.msra.mxu0 0.0
      %5495 = vmatprep.subr.mxu0 0.0
      %5496 = vmatpush1.msra.mxu0 0.0
      %5497 = vmatprep.subr.mxu0 0.0
      %5498 = vmatpush1.msra.mxu0 0.0
      %5499 = vmatprep.subr.mxu0 0.0
      %5500 = vmatpush1.msra.mxu0 0.0
      %5501 = vmatprep.subr.mxu0 0.0
      %5502 = vmatpush1.msra.mxu0 0.0
      %5503 = vmatprep.subr.mxu0 0.0
      %5504 = vmatpush1.msra.mxu0 0.0
      %5505 = vmatprep.subr.mxu0 0.0
      %5506 = vmatpush1.msra.mxu0 0.0
      %5507 = vmatprep.subr.mxu0 0.0
      %5508 = vmatpush1.msra.mxu0 0.0
      %5509 = vmatprep.subr.mxu0 0.0
      %5510 = vmatpush1.msra.mxu0 0.0
      %5511 = vmatprep.subr.mxu0 0.0
      %5512 = vmatpush1.msra.mxu0 0.0
      %5513 = vmatprep.subr.mxu0 0.0
      %5514 = vmatpush1.msra.mxu0 0.0
      %5515 = vmatprep.subr.mxu0 0.0
      %5516 = vmatpush1.msra.mxu0 0.0
      %5517 = vmatprep.subr.mxu0 0.0
      %5518 = vmatpush1.msra.mxu0 0.0
      %5519 = vmatprep.subr.mxu0 0.0
      %5520 = vmatpush1.msra.mxu0 0.0
      %5521 = vmatprep.subr.mxu0 0.0
      %5522 = vmatpush1.msra.mxu0 0.0
      %5523 = vmatprep.subr.mxu0 0.0
      %5524 = vmatpush1.msra.mxu0 0.0
      %5525 = vmatprep.subr.mxu0 0.0
      %5526 = vmatpush1.msra.mxu0 0.0
      %5527 = vmatprep.mubr.f32.mxu0 0.0
      %5528 = vmatmul.mubr.f32.gmra.mrb[0].mxu0 %v5238
      %v5529 = vpop.f32.mrb[0].mxu0
      %v5530 = vadd.f32 %v5230, %v5529
      %v5531 = vpop.f32.mrb[0].mxu0
      %v5532 = vadd.f32 %v5230, %v5531
      %5533 = vmatprep.mubr.f32.mxu0 0.0
      %5534 = vmatmul.mubr.f32.gmra.mrb[0].mxu0 %v5241
      %v5535 = vpop.f32.mrb[0].mxu0
      %v5536 = vadd.f32 %v5235, %v5535
      %v5537 = vpop.f32.mrb[0].mxu0
      %v5538 = vadd.f32 %v5235, %v5537
      %5539 = vdwg.mxu0
      %5540 = vmatprep.subr.mxu0 %v5144
      %5541 = vmatpush1.msra.mxu0 %v5143
      %5542 = vmatprep.subr.mxu0 %v5166
      %5543 = vmatpush1.msra.mxu0 %v5165
      %5544 = vmatprep.subr.mxu0 %v5188
      %5545 = vmatpush1.msra.mxu0 %v5187
      %5546 = vmatprep.subr.mxu0 %v5265
      %5547 = vmatpush1.msra.mxu0 %v5262
      %5548 = vmatprep.subr.mxu0 0.0
      %5549 = vmatpush1.msra.mxu0 0.0
      %5550 = vmatprep.subr.mxu0 0.0
      %5551 = vmatpush1.msra.mxu0 0.0
      %5552 = vmatprep.subr.mxu0 0.0
      %5553 = vmatpush1.msra.mxu0 0.0
      %5554 = vmatprep.subr.mxu0 0.0
      %5555 = vmatpush1.msra.mxu0 0.0
      %5556 = vmatprep.subr.mxu0 0.0
      %5557 = vmatpush1.msra.mxu0 0.0
      %5558 = vmatprep.subr.mxu0 0.0
      %5559 = vmatpush1.msra.mxu0 0.0
      %5560 = vmatprep.subr.mxu0 0.0
      %5561 = vmatpush1.msra.mxu0 0.0
      %5562 = vmatprep.subr.mxu0 0.0
      %5563 = vmatpush1.msra.mxu0 0.0
      %5564 = vmatprep.subr.mxu0 0.0
      %5565 = vmatpush1.msra.mxu0 0.0
      %5566 = vmatprep.subr.mxu0 0.0
      %5567 = vmatpush1.msra.mxu0 0.0
      %5568 = vmatprep.subr.mxu0 0.0
      %5569 = vmatpush1.msra.mxu0 0.0
      %5570 = vmatprep.subr.mxu0 0.0
      %5571 = vmatpush1.msra.mxu0 0.0
      %5572 = vmatprep.subr.mxu0 0.0
      %5573 = vmatpush1.msra.mxu0 0.0
      %5574 = vmatprep.subr.mxu0 0.0
      %5575 = vmatpush1.msra.mxu0 0.0
      %5576 = vmatprep.subr.mxu0 0.0
      %5577 = vmatpush1.msra.mxu0 0.0
      %5578 = vmatprep.subr.mxu0 0.0
      %5579 = vmatpush1.msra.mxu0 0.0
      %5580 = vmatprep.subr.mxu0 0.0
      %5581 = vmatpush1.msra.mxu0 0.0
      %5582 = vmatprep.subr.mxu0 0.0
      %5583 = vmatpush1.msra.mxu0 0.0
      %5584 = vmatprep.subr.mxu0 0.0
      %5585 = vmatpush1.msra.mxu0 0.0
      %5586 = vmatprep.subr.mxu0 0.0
      %5587 = vmatpush1.msra.mxu0 0.0
      %5588 = vmatprep.subr.mxu0 0.0
      %5589 = vmatpush1.msra.mxu0 0.0
      %5590 = vmatprep.subr.mxu0 0.0
      %5591 = vmatpush1.msra.mxu0 0.0
      %5592 = vmatprep.subr.mxu0 0.0
      %5593 = vmatpush1.msra.mxu0 0.0
      %5594 = vmatprep.subr.mxu0 0.0
      %5595 = vmatpush1.msra.mxu0 0.0
      %5596 = vmatprep.subr.mxu0 0.0
      %5597 = vmatpush1.msra.mxu0 0.0
      %5598 = vmatprep.subr.mxu0 0.0
      %5599 = vmatpush1.msra.mxu0 0.0
      %5600 = vmatprep.subr.mxu0 0.0
      %5601 = vmatpush1.msra.mxu0 0.0
      %5602 = vmatprep.subr.mxu0 0.0
      %5603 = vmatpush1.msra.mxu0 0.0
      %5604 = vmatprep.mubr.f32.mxu0 0.0
      %5605 = vmatmul.mubr.f32.gmra.mrb[0].mxu0 %v5238
      %v5606 = vpop.f32.mrb[0].mxu0
      %v5607 = vadd.f32 %v5230, %v5606
      %v5608 = vpop.f32.mrb[0].mxu0
      %v5609 = vadd.f32 %v5230, %v5608
      %5610 = vmatprep.mubr.f32.mxu0 0.0
      %5611 = vmatmul.mubr.f32.gmra.mrb[0].mxu0 %v5241
      %v5612 = vpop.f32.mrb[0].mxu0
      %v5613 = vadd.f32 %v5235, %v5612
      %v5614 = vpop.f32.mrb[0].mxu0
      %v5615 = vadd.f32 %v5235, %v5614
      %5616 = vdwg.mxu0
      %5617 = vmatprep.subr.mxu0 %v5146
      %5618 = vmatpush1.msra.mxu0 %v5145
      %5619 = vmatprep.subr.mxu0 %v5168
      %5620 = vmatpush1.msra.mxu0 %v5167
      %5621 = vmatprep.subr.mxu0 %v5190
      %5622 = vmatpush1.msra.mxu0 %v5189
      %5623 = vmatprep.subr.mxu0 %v5271
      %5624 = vmatpush1.msra.mxu0 %v5268
      %5625 = vmatprep.subr.mxu0 0.0
      %5626 = vmatpush1.msra.mxu0 0.0
      %5627 = vmatprep.subr.mxu0 0.0
      %5628 = vmatpush1.msra.mxu0 0.0
      %5629 = vmatprep.subr.mxu0 0.0
      %5630 = vmatpush1.msra.mxu0 0.0
      %5631 = vmatprep.subr.mxu0 0.0
      %5632 = vmatpush1.msra.mxu0 0.0
      %5633 = vmatprep.subr.mxu0 0.0
      %5634 = vmatpush1.msra.mxu0 0.0
      %5635 = vmatprep.subr.mxu0 0.0
      %5636 = vmatpush1.msra.mxu0 0.0
      %5637 = vmatprep.subr.mxu0 0.0
      %5638 = vmatpush1.msra.mxu0 0.0
      %5639 = vmatprep.subr.mxu0 0.0
      %5640 = vmatpush1.msra.mxu0 0.0
      %5641 = vmatprep.subr.mxu0 0.0
      %5642 = vmatpush1.msra.mxu0 0.0
      %5643 = vmatprep.subr.mxu0 0.0
      %5644 = vmatpush1.msra.mxu0 0.0
      %5645 = vmatprep.subr.mxu0 0.0
      %5646 = vmatpush1.msra.mxu0 0.0
      %5647 = vmatprep.subr.mxu0 0.0
      %5648 = vmatpush1.msra.mxu0 0.0
      %5649 = vmatprep.subr.mxu0 0.0
      %5650 = vmatpush1.msra.mxu0 0.0
      %5651 = vmatprep.subr.mxu0 0.0
      %5652 = vmatpush1.msra.mxu0 0.0
      %5653 = vmatprep.subr.mxu0 0.0
      %5654 = vmatpush1.msra.mxu0 0.0
      %5655 = vmatprep.subr.mxu0 0.0
      %5656 = vmatpush1.msra.mxu0 0.0
      %5657 = vmatprep.subr.mxu0 0.0
      %5658 = vmatpush1.msra.mxu0 0.0
      %5659 = vmatprep.subr.mxu0 0.0
      %5660 = vmatpush1.msra.mxu0 0.0
      %5661 = vmatprep.subr.mxu0 0.0
      %5662 = vmatpush1.msra.mxu0 0.0
      %5663 = vmatprep.subr.mxu0 0.0
      %5664 = vmatpush1.msra.mxu0 0.0
      %5665 = vmatprep.subr.mxu0 0.0
      %5666 = vmatpush1.msra.mxu0 0.0
      %5667 = vmatprep.subr.mxu0 0.0
      %5668 = vmatpush1.msra.mxu0 0.0
      %5669 = vmatprep.subr.mxu0 0.0
      %5670 = vmatpush1.msra.mxu0 0.0
      %5671 = vmatprep.subr.mxu0 0.0
      %5672 = vmatpush1.msra.mxu0 0.0
      %5673 = vmatprep.subr.mxu0 0.0
      %5674 = vmatpush1.msra.mxu0 0.0
      %5675 = vmatprep.subr.mxu0 0.0
      %5676 = vmatpush1.msra.mxu0 0.0
      %5677 = vmatprep.subr.mxu0 0.0
      %5678 = vmatpush1.msra.mxu0 0.0
      %5679 = vmatprep.subr.mxu0 0.0
      %5680 = vmatpush1.msra.mxu0 0.0
      %5681 = vmatprep.mubr.f32.mxu0 0.0
      %5682 = vmatmul.mubr.f32.gmra.mrb[0].mxu0 %v5238
      %v5683 = vpop.f32.mrb[0].mxu0
      %v5684 = vadd.f32 %v5230, %v5683
      %v5685 = vpop.f32.mrb[0].mxu0
      %v5686 = vadd.f32 %v5230, %v5685
      %5687 = vmatprep.mubr.f32.mxu0 0.0
      %5688 = vmatmul.mubr.f32.gmra.mrb[0].mxu0 %v5241
      %v5689 = vpop.f32.mrb[0].mxu0
      %v5690 = vadd.f32 %v5235, %v5689
      %v5691 = vpop.f32.mrb[0].mxu0
      %v5692 = vadd.f32 %v5235, %v5691
      %5693 = vdwg.mxu0
      %5694 = vmatprep.subr.mxu0 %v5148
      %5695 = vmatpush1.msra.mxu0 %v5147
      %5696 = vmatprep.subr.mxu0 %v5170
      %5697 = vmatpush1.msra.mxu0 %v5169
      %5698 = vmatprep.subr.mxu0 %v5192
      %5699 = vmatpush1.msra.mxu0 %v5191
      %5700 = vmatprep.subr.mxu0 %v5277
      %5701 = vmatpush1.msra.mxu0 %v5274
      %5702 = vmatprep.subr.mxu0 0.0
      %5703 = vmatpush1.msra.mxu0 0.0
      %5704 = vmatprep.subr.mxu0 0.0
      %5705 = vmatpush1.msra.mxu0 0.0
      %5706 = vmatprep.subr.mxu0 0.0
      %5707 = vmatpush1.msra.mxu0 0.0
      %5708 = vmatprep.subr.mxu0 0.0
      %5709 = vmatpush1.msra.mxu0 0.0
      %5710 = vmatprep.subr.mxu0 0.0
      %5711 = vmatpush1.msra.mxu0 0.0
      %5712 = vmatprep.subr.mxu0 0.0
      %5713 = vmatpush1.msra.mxu0 0.0
      %5714 = vmatprep.subr.mxu0 0.0
      %5715 = vmatpush1.msra.mxu0 0.0
      %5716 = vmatprep.subr.mxu0 0.0
      %5717 = vmatpush1.msra.mxu0 0.0
      %5718 = vmatprep.subr.mxu0 0.0
      %5719 = vmatpush1.msra.mxu0 0.0
      %5720 = vmatprep.subr.mxu0 0.0
      %5721 = vmatpush1.msra.mxu0 0.0
      %5722 = vmatprep.subr.mxu0 0.0
      %5723 = vmatpush1.msra.mxu0 0.0
      %5724 = vmatprep.subr.mxu0 0.0
      %5725 = vmatpush1.msra.mxu0 0.0
      %5726 = vmatprep.subr.mxu0 0.0
      %5727 = vmatpush1.msra.mxu0 0.0
      %5728 = vmatprep.subr.mxu0 0.0
      %5729 = vmatpush1.msra.mxu0 0.0
      %5730 = vmatprep.subr.mxu0 0.0
      %5731 = vmatpush1.msra.mxu0 0.0
      %5732 = vmatprep.subr.mxu0 0.0
      %5733 = vmatpush1.msra.mxu0 0.0
      %5734 = vmatprep.subr.mxu0 0.0
      %5735 = vmatpush1.msra.mxu0 0.0
      %5736 = vmatprep.subr.mxu0 0.0
      %5737 = vmatpush1.msra.mxu0 0.0
      %5738 = vmatprep.subr.mxu0 0.0
      %5739 = vmatpush1.msra.mxu0 0.0
      %5740 = vmatprep.subr.mxu0 0.0
      %5741 = vmatpush1.msra.mxu0 0.0
      %5742 = vmatprep.subr.mxu0 0.0
      %5743 = vmatpush1.msra.mxu0 0.0
      %5744 = vmatprep.subr.mxu0 0.0
      %5745 = vmatpush1.msra.mxu0 0.0
      %5746 = vmatprep.subr.mxu0 0.0
      %5747 = vmatpush1.msra.mxu0 0.0
      %5748 = vmatprep.subr.mxu0 0.0
      %5749 = vmatpush1.msra.mxu0 0.0
      %5750 = vmatprep.subr.mxu0 0.0
      %5751 = vmatpush1.msra.mxu0 0.0
      %5752 = vmatprep.subr.mxu0 0.0
      %5753 = vmatpush1.msra.mxu0 0.0
      %5754 = vmatprep.subr.mxu0 0.0
      %5755 = vmatpush1.msra.mxu0 0.0
      %5756 = vmatprep.subr.mxu0 0.0
      %5757 = vmatpush1.msra.mxu0 0.0
      %5758 = vmatprep.mubr.f32.mxu0 0.0
      %5759 = vmatmul.mubr.f32.gmra.mrb[0].mxu0 %v5238
      %v5760 = vpop.f32.mrb[0].mxu0
      %v5761 = vadd.f32 %v5230, %v5760
      %v5762 = vpop.f32.mrb[0].mxu0
      %v5763 = vadd.f32 %v5230, %v5762
      %5764 = vmatprep.mubr.f32.mxu0 0.0
      %5765 = vmatmul.mubr.f32.gmra.mrb[0].mxu0 %v5241
      %v5766 = vpop.f32.mrb[0].mxu0
      %v5767 = vadd.f32 %v5235, %v5766
      %v5768 = vpop.f32.mrb[0].mxu0
      %v5769 = vadd.f32 %v5235, %v5768
      %5770 = vdwg.mxu0
      %5771 = vmatprep.subr.mxu0 %v5150
      %5772 = vmatpush1.msra.mxu0 %v5149
      %5773 = vmatprep.subr.mxu0 %v5172
      %5774 = vmatpush1.msra.mxu0 %v5171
      %5775 = vmatprep.subr.mxu0 %v5194
      %5776 = vmatpush1.msra.mxu0 %v5193
      %5777 = vmatprep.subr.mxu0 %v5283
      %5778 = vmatpush1.msra.mxu0 %v5280
      %5779 = vmatprep.subr.mxu0 0.0
      %5780 = vmatpush1.msra.mxu0 0.0
      %5781 = vmatprep.subr.mxu0 0.0
      %5782 = vmatpush1.msra.mxu0 0.0
      %5783 = vmatprep.subr.mxu0 0.0
      %5784 = vmatpush1.msra.mxu0 0.0
      %5785 = vmatprep.subr.mxu0 0.0
      %5786 = vmatpush1.msra.mxu0 0.0
      %5787 = vmatprep.subr.mxu0 0.0
      %5788 = vmatpush1.msra.mxu0 0.0
      %5789 = vmatprep.subr.mxu0 0.0
      %5790 = vmatpush1.msra.mxu0 0.0
      %5791 = vmatprep.subr.mxu0 0.0
      %5792 = vmatpush1.msra.mxu0 0.0
      %5793 = vmatprep.subr.mxu0 0.0
      %5794 = vmatpush1.msra.mxu0 0.0
      %5795 = vmatprep.subr.mxu0 0.0
      %5796 = vmatpush1.msra.mxu0 0.0
      %5797 = vmatprep.subr.mxu0 0.0
      %5798 = vmatpush1.msra.mxu0 0.0
      %5799 = vmatprep.subr.mxu0 0.0
      %5800 = vmatpush1.msra.mxu0 0.0
      %5801 = vmatprep.subr.mxu0 0.0
      %5802 = vmatpush1.msra.mxu0 0.0
      %5803 = vmatprep.subr.mxu0 0.0
      %5804 = vmatpush1.msra.mxu0 0.0
      %5805 = vmatprep.subr.mxu0 0.0
      %5806 = vmatpush1.msra.mxu0 0.0
      %5807 = vmatprep.subr.mxu0 0.0
      %5808 = vmatpush1.msra.mxu0 0.0
      %5809 = vmatprep.subr.mxu0 0.0
      %5810 = vmatpush1.msra.mxu0 0.0
      %5811 = vmatprep.subr.mxu0 0.0
      %5812 = vmatpush1.msra.mxu0 0.0
      %5813 = vmatprep.subr.mxu0 0.0
      %5814 = vmatpush1.msra.mxu0 0.0
      %5815 = vmatprep.subr.mxu0 0.0
      %5816 = vmatpush1.msra.mxu0 0.0
      %5817 = vmatprep.subr.mxu0 0.0
      %5818 = vmatpush1.msra.mxu0 0.0
      %5819 = vmatprep.subr.mxu0 0.0
      %5820 = vmatpush1.msra.mxu0 0.0
      %5821 = vmatprep.subr.mxu0 0.0
      %5822 = vmatpush1.msra.mxu0 0.0
      %5823 = vmatprep.subr.mxu0 0.0
      %5824 = vmatpush1.msra.mxu0 0.0
      %5825 = vmatprep.subr.mxu0 0.0
      %5826 = vmatpush1.msra.mxu0 0.0
      %5827 = vmatprep.subr.mxu0 0.0
      %5828 = vmatpush1.msra.mxu0 0.0
      %5829 = vmatprep.subr.mxu0 0.0
      %5830 = vmatpush1.msra.mxu0 0.0
      %5831 = vmatprep.subr.mxu0 0.0
      %5832 = vmatpush1.msra.mxu0 0.0
      %5833 = vmatprep.subr.mxu0 0.0
      %5834 = vmatpush1.msra.mxu0 0.0
      %5835 = vmatprep.mubr.f32.mxu0 0.0
      %5836 = vmatmul.mubr.f32.gmra.mrb[0].mxu0 %v5238
      %v5837 = vpop.f32.mrb[0].mxu0
      %v5838 = vadd.f32 %v5230, %v5837
      %v5839 = vpop.f32.mrb[0].mxu0
      %v5840 = vadd.f32 %v5230, %v5839
      %5841 = vmatprep.mubr.f32.mxu0 0.0
      %5842 = vmatmul.mubr.f32.gmra.mrb[0].mxu0 %v5241
      %v5843 = vpop.f32.mrb[0].mxu0
      %v5844 = vadd.f32 %v5235, %v5843
      %v5845 = vpop.f32.mrb[0].mxu0
      %v5846 = vadd.f32 %v5235, %v5845
      %5847 = vdwg.mxu0
      %5848 = vmatprep.subr.mxu0 %v5152
      %5849 = vmatpush1.msra.mxu0 %v5151
      %5850 = vmatprep.subr.mxu0 %v5174
      %5851 = vmatpush1.msra.mxu0 %v5173
      %5852 = vmatprep.subr.mxu0 %v5196
      %5853 = vmatpush1.msra.mxu0 %v5195
      %5854 = vmatprep.subr.mxu0 %v5289
      %5855 = vmatpush1.msra.mxu0 %v5286
      %5856 = vmatprep.subr.mxu0 0.0
      %5857 = vmatpush1.msra.mxu0 0.0
      %5858 = vmatprep.subr.mxu0 0.0
      %5859 = vmatpush1.msra.mxu0 0.0
      %5860 = vmatprep.subr.mxu0 0.0
      %5861 = vmatpush1.msra.mxu0 0.0
      %5862 = vmatprep.subr.mxu0 0.0
      %5863 = vmatpush1.msra.mxu0 0.0
      %5864 = vmatprep.subr.mxu0 0.0
      %5865 = vmatpush1.msra.mxu0 0.0
      %5866 = vmatprep.subr.mxu0 0.0
      %5867 = vmatpush1.msra.mxu0 0.0
      %5868 = vmatprep.subr.mxu0 0.0
      %5869 = vmatpush1.msra.mxu0 0.0
      %5870 = vmatprep.subr.mxu0 0.0
      %5871 = vmatpush1.msra.mxu0 0.0
      %5872 = vmatprep.subr.mxu0 0.0
      %5873 = vmatpush1.msra.mxu0 0.0
      %5874 = vmatprep.subr.mxu0 0.0
      %5875 = vmatpush1.msra.mxu0 0.0
      %5876 = vmatprep.subr.mxu0 0.0
      %5877 = vmatpush1.msra.mxu0 0.0
      %5878 = vmatprep.subr.mxu0 0.0
      %5879 = vmatpush1.msra.mxu0 0.0
      %5880 = vmatprep.subr.mxu0 0.0
      %5881 = vmatpush1.msra.mxu0 0.0
      %5882 = vmatprep.subr.mxu0 0.0
      %5883 = vmatpush1.msra.mxu0 0.0
      %5884 = vmatprep.subr.mxu0 0.0
      %5885 = vmatpush1.msra.mxu0 0.0
      %5886 = vmatprep.subr.mxu0 0.0
      %5887 = vmatpush1.msra.mxu0 0.0
      %5888 = vmatprep.subr.mxu0 0.0
      %5889 = vmatpush1.msra.mxu0 0.0
      %5890 = vmatprep.subr.mxu0 0.0
      %5891 = vmatpush1.msra.mxu0 0.0
      %5892 = vmatprep.subr.mxu0 0.0
      %5893 = vmatpush1.msra.mxu0 0.0
      %5894 = vmatprep.subr.mxu0 0.0
      %5895 = vmatpush1.msra.mxu0 0.0
      %5896 = vmatprep.subr.mxu0 0.0
      %5897 = vmatpush1.msra.mxu0 0.0
      %5898 = vmatprep.subr.mxu0 0.0
      %5899 = vmatpush1.msra.mxu0 0.0
      %5900 = vmatprep.subr.mxu0 0.0
      %5901 = vmatpush1.msra.mxu0 0.0
      %5902 = vmatprep.subr.mxu0 0.0
      %5903 = vmatpush1.msra.mxu0 0.0
      %5904 = vmatprep.subr.mxu0 0.0
      %5905 = vmatpush1.msra.mxu0 0.0
      %5906 = vmatprep.subr.mxu0 0.0
      %5907 = vmatpush1.msra.mxu0 0.0
      %5908 = vmatprep.subr.mxu0 0.0
      %5909 = vmatpush1.msra.mxu0 0.0
      %5910 = vmatprep.subr.mxu0 0.0
      %5911 = vmatpush1.msra.mxu0 0.0
      %5912 = vmatprep.mubr.f32.mxu0 0.0
      %5913 = vmatmul.mubr.f32.gmra.mrb[0].mxu0 %v5238
      %v5914 = vpop.f32.mrb[0].mxu0
      %v5915 = vadd.f32 %v5230, %v5914
      %v5916 = vpop.f32.mrb[0].mxu0
      %v5917 = vadd.f32 %v5230, %v5916
      %5918 = vmatprep.mubr.f32.mxu0 0.0
      %5919 = vmatmul.mubr.f32.gmra.mrb[0].mxu0 %v5241
      %v5920 = vpop.f32.mrb[0].mxu0
      %v5921 = vadd.f32 %v5235, %v5920
      %v5922 = vpop.f32.mrb[0].mxu0
      %v5923 = vadd.f32 %v5235, %v5922
      %5924 = vdwg.mxu0
      %5925 = vmatprep.subr.mxu0 %v5154
      %5926 = vmatpush1.msra.mxu0 %v5153
      %5927 = vmatprep.subr.mxu0 %v5176
      %5928 = vmatpush1.msra.mxu0 %v5175
      %5929 = vmatprep.subr.mxu0 %v5198
      %5930 = vmatpush1.msra.mxu0 %v5197
      %5931 = vmatprep.subr.mxu0 %v5295
      %5932 = vmatpush1.msra.mxu0 %v5292
      %5933 = vmatprep.subr.mxu0 0.0
      %5934 = vmatpush1.msra.mxu0 0.0
      %5935 = vmatprep.subr.mxu0 0.0
      %5936 = vmatpush1.msra.mxu0 0.0
      %5937 = vmatprep.subr.mxu0 0.0
      %5938 = vmatpush1.msra.mxu0 0.0
      %5939 = vmatprep.subr.mxu0 0.0
      %5940 = vmatpush1.msra.mxu0 0.0
      %5941 = vmatprep.subr.mxu0 0.0
      %5942 = vmatpush1.msra.mxu0 0.0
      %5943 = vmatprep.subr.mxu0 0.0
      %5944 = vmatpush1.msra.mxu0 0.0
      %5945 = vmatprep.subr.mxu0 0.0
      %5946 = vmatpush1.msra.mxu0 0.0
      %5947 = vmatprep.subr.mxu0 0.0
      %5948 = vmatpush1.msra.mxu0 0.0
      %5949 = vmatprep.subr.mxu0 0.0
      %5950 = vmatpush1.msra.mxu0 0.0
      %5951 = vmatprep.subr.mxu0 0.0
      %5952 = vmatpush1.msra.mxu0 0.0
      %5953 = vmatprep.subr.mxu0 0.0
      %5954 = vmatpush1.msra.mxu0 0.0
      %5955 = vmatprep.subr.mxu0 0.0
      %5956 = vmatpush1.msra.mxu0 0.0
      %5957 = vmatprep.subr.mxu0 0.0
      %5958 = vmatpush1.msra.mxu0 0.0
      %5959 = vmatprep.subr.mxu0 0.0
      %5960 = vmatpush1.msra.mxu0 0.0
      %5961 = vmatprep.subr.mxu0 0.0
      %5962 = vmatpush1.msra.mxu0 0.0
      %5963 = vmatprep.subr.mxu0 0.0
      %5964 = vmatpush1.msra.mxu0 0.0
      %5965 = vmatprep.subr.mxu0 0.0
      %5966 = vmatpush1.msra.mxu0 0.0
      %5967 = vmatprep.subr.mxu0 0.0
      %5968 = vmatpush1.msra.mxu0 0.0
      %5969 = vmatprep.subr.mxu0 0.0
      %5970 = vmatpush1.msra.mxu0 0.0
      %5971 = vmatprep.subr.mxu0 0.0
      %5972 = vmatpush1.msra.mxu0 0.0
      %5973 = vmatprep.subr.mxu0 0.0
      %5974 = vmatpush1.msra.mxu0 0.0
      %5975 = vmatprep.subr.mxu0 0.0
      %5976 = vmatpush1.msra.mxu0 0.0
      %5977 = vmatprep.subr.mxu0 0.0
      %5978 = vmatpush1.msra.mxu0 0.0
      %5979 = vmatprep.subr.mxu0 0.0
      %5980 = vmatpush1.msra.mxu0 0.0
      %5981 = vmatprep.subr.mxu0 0.0
      %5982 = vmatpush1.msra.mxu0 0.0
      %5983 = vmatprep.subr.mxu0 0.0
      %5984 = vmatpush1.msra.mxu0 0.0
      %5985 = vmatprep.subr.mxu0 0.0
      %5986 = vmatpush1.msra.mxu0 0.0
      %5987 = vmatprep.subr.mxu0 0.0
      %5988 = vmatpush1.msra.mxu0 0.0
      %5989 = vmatprep.mubr.f32.mxu0 0.0
      %5990 = vmatmul.mubr.f32.gmra.mrb[0].mxu0 %v5238
      %v5991 = vpop.f32.mrb[0].mxu0
      %v5992 = vadd.f32 %v5230, %v5991
      %v5993 = vpop.f32.mrb[0].mxu0
      %v5994 = vadd.f32 %v5230, %v5993
      %5995 = vmatprep.mubr.f32.mxu0 0.0
      %5996 = vmatmul.mubr.f32.gmra.mrb[0].mxu0 %v5241
      %v5997 = vpop.f32.mrb[0].mxu0
      %v5998 = vadd.f32 %v5235, %v5997
      %v5999 = vpop.f32.mrb[0].mxu0
      %v6000 = vadd.f32 %v5235, %v5999
      %6001 = vdwg.mxu0
      %6002 = vmatprep.subr.mxu0 %v5156
      %6003 = vmatpush1.msra.mxu0 %v5155
      %6004 = vmatprep.subr.mxu0 %v5178
      %6005 = vmatpush1.msra.mxu0 %v5177
      %6006 = vmatprep.subr.mxu0 %v5200
      %6007 = vmatpush1.msra.mxu0 %v5199
      %6008 = vmatprep.subr.mxu0 %v5301
      %6009 = vmatpush1.msra.mxu0 %v5298
      %6010 = vmatprep.subr.mxu0 0.0
      %6011 = vmatpush1.msra.mxu0 0.0
      %6012 = vmatprep.subr.mxu0 0.0
      %6013 = vmatpush1.msra.mxu0 0.0
      %6014 = vmatprep.subr.mxu0 0.0
      %6015 = vmatpush1.msra.mxu0 0.0
      %6016 = vmatprep.subr.mxu0 0.0
      %6017 = vmatpush1.msra.mxu0 0.0
      %6018 = vmatprep.subr.mxu0 0.0
      %6019 = vmatpush1.msra.mxu0 0.0
      %6020 = vmatprep.subr.mxu0 0.0
      %6021 = vmatpush1.msra.mxu0 0.0
      %6022 = vmatprep.subr.mxu0 0.0
      %6023 = vmatpush1.msra.mxu0 0.0
      %6024 = vmatprep.subr.mxu0 0.0
      %6025 = vmatpush1.msra.mxu0 0.0
      %6026 = vmatprep.subr.mxu0 0.0
      %6027 = vmatpush1.msra.mxu0 0.0
      %6028 = vmatprep.subr.mxu0 0.0
      %6029 = vmatpush1.msra.mxu0 0.0
      %6030 = vmatprep.subr.mxu0 0.0
      %6031 = vmatpush1.msra.mxu0 0.0
      %6032 = vmatprep.subr.mxu0 0.0
      %6033 = vmatpush1.msra.mxu0 0.0
      %6034 = vmatprep.subr.mxu0 0.0
      %6035 = vmatpush1.msra.mxu0 0.0
      %6036 = vmatprep.subr.mxu0 0.0
      %6037 = vmatpush1.msra.mxu0 0.0
      %6038 = vmatprep.subr.mxu0 0.0
      %6039 = vmatpush1.msra.mxu0 0.0
      %6040 = vmatprep.subr.mxu0 0.0
      %6041 = vmatpush1.msra.mxu0 0.0
      %6042 = vmatprep.subr.mxu0 0.0
      %6043 = vmatpush1.msra.mxu0 0.0
      %6044 = vmatprep.subr.mxu0 0.0
      %6045 = vmatpush1.msra.mxu0 0.0
      %6046 = vmatprep.subr.mxu0 0.0
      %6047 = vmatpush1.msra.mxu0 0.0
      %6048 = vmatprep.subr.mxu0 0.0
      %6049 = vmatpush1.msra.mxu0 0.0
      %6050 = vmatprep.subr.mxu0 0.0
      %6051 = vmatpush1.msra.mxu0 0.0
      %6052 = vmatprep.subr.mxu0 0.0
      %6053 = vmatpush1.msra.mxu0 0.0
      %6054 = vmatprep.subr.mxu0 0.0
      %6055 = vmatpush1.msra.mxu0 0.0
      %6056 = vmatprep.subr.mxu0 0.0
      %6057 = vmatpush1.msra.mxu0 0.0
      %6058 = vmatprep.subr.mxu0 0.0
      %6059 = vmatpush1.msra.mxu0 0.0
      %6060 = vmatprep.subr.mxu0 0.0
      %6061 = vmatpush1.msra.mxu0 0.0
      %6062 = vmatprep.subr.mxu0 0.0
      %6063 = vmatpush1.msra.mxu0 0.0
      %6064 = vmatprep.subr.mxu0 0.0
      %6065 = vmatpush1.msra.mxu0 0.0
      %6066 = vmatprep.mubr.f32.mxu0 0.0
      %6067 = vmatmul.mubr.f32.gmra.mrb[0].mxu0 %v5238
      %v6068 = vpop.f32.mrb[0].mxu0
      %v6069 = vadd.f32 %v5230, %v6068
      %v6070 = vpop.f32.mrb[0].mxu0
      %v6071 = vadd.f32 %v5230, %v6070
      %6072 = vmatprep.mubr.f32.mxu0 0.0
      %6073 = vmatmul.mubr.f32.gmra.mrb[0].mxu0 %v5241
      %v6074 = vpop.f32.mrb[0].mxu0
      %v6075 = vadd.f32 %v5235, %v6074
      %v6076 = vpop.f32.mrb[0].mxu0
      %v6077 = vadd.f32 %v5235, %v6076
      %6078 = vdwg.mxu0
      %6079 = vmatprep.subr.mxu0 %v5158
      %6080 = vmatpush1.msra.mxu0 %v5157
      %6081 = vmatprep.subr.mxu0 %v5180
      %6082 = vmatpush1.msra.mxu0 %v5179
      %6083 = vmatprep.subr.mxu0 %v5202
      %6084 = vmatpush1.msra.mxu0 %v5201
      %6085 = vmatprep.subr.mxu0 %v5307
      %6086 = vmatpush1.msra.mxu0 %v5304
      %6087 = vmatprep.subr.mxu0 0.0
      %6088 = vmatpush1.msra.mxu0 0.0
      %6089 = vmatprep.subr.mxu0 0.0
      %6090 = vmatpush1.msra.mxu0 0.0
      %6091 = vmatprep.subr.mxu0 0.0
      %6092 = vmatpush1.msra.mxu0 0.0
      %6093 = vmatprep.subr.mxu0 0.0
      %6094 = vmatpush1.msra.mxu0 0.0
      %6095 = vmatprep.subr.mxu0 0.0
      %6096 = vmatpush1.msra.mxu0 0.0
      %6097 = vmatprep.subr.mxu0 0.0
      %6098 = vmatpush1.msra.mxu0 0.0
      %6099 = vmatprep.subr.mxu0 0.0
      %6100 = vmatpush1.msra.mxu0 0.0
      %6101 = vmatprep.subr.mxu0 0.0
      %6102 = vmatpush1.msra.mxu0 0.0
      %6103 = vmatprep.subr.mxu0 0.0
      %6104 = vmatpush1.msra.mxu0 0.0
      %6105 = vmatprep.subr.mxu0 0.0
      %6106 = vmatpush1.msra.mxu0 0.0
      %6107 = vmatprep.subr.mxu0 0.0
      %6108 = vmatpush1.msra.mxu0 0.0
      %6109 = vmatprep.subr.mxu0 0.0
      %6110 = vmatpush1.msra.mxu0 0.0
      %6111 = vmatprep.subr.mxu0 0.0
      %6112 = vmatpush1.msra.mxu0 0.0
      %6113 = vmatprep.subr.mxu0 0.0
      %6114 = vmatpush1.msra.mxu0 0.0
      %6115 = vmatprep.subr.mxu0 0.0
      %6116 = vmatpush1.msra.mxu0 0.0
      %6117 = vmatprep.subr.mxu0 0.0
      %6118 = vmatpush1.msra.mxu0 0.0
      %6119 = vmatprep.subr.mxu0 0.0
      %6120 = vmatpush1.msra.mxu0 0.0
      %6121 = vmatprep.subr.mxu0 0.0
      %6122 = vmatpush1.msra.mxu0 0.0
      %6123 = vmatprep.subr.mxu0 0.0
      %6124 = vmatpush1.msra.mxu0 0.0
      %6125 = vmatprep.subr.mxu0 0.0
      %6126 = vmatpush1.msra.mxu0 0.0
      %6127 = vmatprep.subr.mxu0 0.0
      %6128 = vmatpush1.msra.mxu0 0.0
      %6129 = vmatprep.subr.mxu0 0.0
      %6130 = vmatpush1.msra.mxu0 0.0
      %6131 = vmatprep.subr.mxu0 0.0
      %6132 = vmatpush1.msra.mxu0 0.0
      %6133 = vmatprep.subr.mxu0 0.0
      %6134 = vmatpush1.msra.mxu0 0.0
      %6135 = vmatprep.subr.mxu0 0.0
      %6136 = vmatpush1.msra.mxu0 0.0
      %6137 = vmatprep.subr.mxu0 0.0
      %6138 = vmatpush1.msra.mxu0 0.0
      %6139 = vmatprep.subr.mxu0 0.0
      %6140 = vmatpush1.msra.mxu0 0.0
      %6141 = vmatprep.subr.mxu0 0.0
      %6142 = vmatpush1.msra.mxu0 0.0
      %6143 = vmatprep.mubr.f32.mxu0 0.0
      %6144 = vmatmul.mubr.f32.gmra.mrb[0].mxu0 %v5238
      %v6145 = vpop.f32.mrb[0].mxu0
      %v6146 = vadd.f32 %v5230, %v6145
      %v6147 = vpop.f32.mrb[0].mxu0
      %v6148 = vadd.f32 %v5230, %v6147
      %6149 = vmatprep.mubr.f32.mxu0 0.0
      %6150 = vmatmul.mubr.f32.gmra.mrb[0].mxu0 %v5241
      %v6151 = vpop.f32.mrb[0].mxu0
      %v6152 = vadd.f32 %v5235, %v6151
      %v6153 = vpop.f32.mrb[0].mxu0
      %v6154 = vadd.f32 %v5235, %v6153
      %6155 = vdwg.mxu0
      %6156 = vst [vmem:[#allocation5] sm:$0xff] %v5376
      %6157 = vst [vmem:[#allocation5 + $0x8] sm:$0xff] %v5378
      %6158 = vst [vmem:[#allocation5 + $0x10] sm:$0xff] %v5453
      %6159 = vst [vmem:[#allocation5 + $0x18] sm:$0xff] %v5455
      %6160 = vst [vmem:[#allocation5 + $0x20] sm:$0xff] %v5530
      %6161 = vst [vmem:[#allocation5 + $0x28] sm:$0xff] %v5532
      %6162 = vst [vmem:[#allocation5 + $0x30] sm:$0xff] %v5607
      %6163 = vst [vmem:[#allocation5 + $0x38] sm:$0xff] %v5609
      %6164 = vst [vmem:[#allocation5 + $0x40] sm:$0xff] %v5684
      %6165 = vst [vmem:[#allocation5 + $0x48] sm:$0xff] %v5686
      %6166 = vst [vmem:[#allocation5 + $0x50] sm:$0xff] %v5761
      %6167 = vst [vmem:[#allocation5 + $0x58] sm:$0xff] %v5763
      %6168 = vst [vmem:[#allocation5 + $0x60] sm:$0xff] %v5838
      %6169 = vst [vmem:[#allocation5 + $0x68] sm:$0xff] %v5840
      %6170 = vst [vmem:[#allocation5 + $0x70] sm:$0xff] %v5915
      %6171 = vst [vmem:[#allocation5 + $0x78] sm:$0xff] %v5917
      %6172 = vst [vmem:[#allocation5 + $0x80] sm:$0xff] %v5992
      %6173 = vst [vmem:[#allocation5 + $0x88] sm:$0xff] %v5994
      %6174 = vst [vmem:[#allocation5 + $0x90] sm:$0xff] %v6069
      %6175 = vst [vmem:[#allocation5 + $0x98] sm:$0xff] %v6071
      %6176 = vst [vmem:[#allocation5 + $0xa0] sm:$0xff] %v6146
      %6177 = vst [vmem:[#allocation5 + $0xa8] sm:$0xff] %v6148
      %6178 = vst [vmem:[#allocation5 + $0xb0] sm:$0xf] %v5382
      %6179 = vst [vmem:[#allocation5 + $0xb8] sm:$0xf] %v5384
      %6180 = vst [vmem:[#allocation5 + $0xc0] sm:$0xf] %v5459
      %6181 = vst [vmem:[#allocation5 + $0xc8] sm:$0xf] %v5461
      %6182 = vst [vmem:[#allocation5 + $0xd0] sm:$0xf] %v5536
      %6183 = vst [vmem:[#allocation5 + $0xd8] sm:$0xf] %v5538
      %6184 = vst [vmem:[#allocation5 + $0xe0] sm:$0xf] %v5613
      %6185 = vst [vmem:[#allocation5 + $0xe8] sm:$0xf] %v5615
      %6186 = vst [vmem:[#allocation5 + $0xf0] sm:$0xf] %v5690
      %6187 = vst [vmem:[#allocation5 + $0xf8] sm:$0xf] %v5692
      %6188 = vst [vmem:[#allocation5 + $0x100] sm:$0xf] %v5767
      %6189 = vst [vmem:[#allocation5 + $0x108] sm:$0xf] %v5769
      %6190 = vst [vmem:[#allocation5 + $0x110] sm:$0xf] %v5844
      %6191 = vst [vmem:[#allocation5 + $0x118] sm:$0xf] %v5846
      %6192 = vst [vmem:[#allocation5 + $0x120] sm:$0xf] %v5921
      %6193 = vst [vmem:[#allocation5 + $0x128] sm:$0xf] %v5923
      %6194 = vst [vmem:[#allocation5 + $0x130] sm:$0xf] %v5998
      %6195 = vst [vmem:[#allocation5 + $0x138] sm:$0xf] %v6000
      %6196 = vst [vmem:[#allocation5 + $0x140] sm:$0xf] %v6075
      %6197 = vst [vmem:[#allocation5 + $0x148] sm:$0xf] %v6077
      %6198 = vst [vmem:[#allocation5 + $0x150] sm:$0xf] %v6152
      %6199 = vst [vmem:[#allocation5 + $0x158] sm:$0xf] %v6154
      %v6200 = vld [vmem:[%s3] sm:$0x7]
      %v6201 = vld [vmem:[#allocation5] sm:$0xff]
      %v6202 = vld [vmem:[#allocation5 + $0x8] sm:$0xff]
      %v6203 = vld [vmem:[#allocation5 + $0x10] sm:$0xff]
      %v6204 = vld [vmem:[#allocation5 + $0x18] sm:$0xff]
      %v6205 = vld [vmem:[#allocation5 + $0x20] sm:$0xff]
      %v6206 = vld [vmem:[#allocation5 + $0x28] sm:$0xff]
      %v6207 = vld [vmem:[#allocation5 + $0x30] sm:$0xff]
      %v6208 = vld [vmem:[#allocation5 + $0x38] sm:$0xff]
      %v6209 = vld [vmem:[#allocation5 + $0x40] sm:$0xff]
      %v6210 = vld [vmem:[#allocation5 + $0x48] sm:$0xff]
      %v6211 = vld [vmem:[#allocation5 + $0x50] sm:$0xff]
      %v6212 = vld [vmem:[#allocation5 + $0x58] sm:$0xff]
      %v6213 = vld [vmem:[#allocation5 + $0x60] sm:$0xff]
      %v6214 = vld [vmem:[#allocation5 + $0x68] sm:$0xff]
      %v6215 = vld [vmem:[#allocation5 + $0x70] sm:$0xff]
      %v6216 = vld [vmem:[#allocation5 + $0x78] sm:$0xff]
      %v6217 = vld [vmem:[#allocation5 + $0x80] sm:$0xff]
      %v6218 = vld [vmem:[#allocation5 + $0x88] sm:$0xff]
      %v6219 = vld [vmem:[#allocation5 + $0x90] sm:$0xff]
      %v6220 = vld [vmem:[#allocation5 + $0x98] sm:$0xff]
      %v6221 = vld [vmem:[#allocation5 + $0xa0] sm:$0xff]
      %v6222 = vld [vmem:[#allocation5 + $0xa8] sm:$0xff]
      %v6223 = vld [vmem:[#allocation5 + $0xb0] sm:$0xf]
      %v6224 = vld [vmem:[#allocation5 + $0xb8] sm:$0xf]
      %v6225 = vld [vmem:[#allocation5 + $0xc0] sm:$0xf]
      %v6226 = vld [vmem:[#allocation5 + $0xc8] sm:$0xf]
      %v6227 = vld [vmem:[#allocation5 + $0xd0] sm:$0xf]
      %v6228 = vld [vmem:[#allocation5 + $0xd8] sm:$0xf]
      %v6229 = vld [vmem:[#allocation5 + $0xe0] sm:$0xf]
      %v6230 = vld [vmem:[#allocation5 + $0xe8] sm:$0xf]
      %v6231 = vld [vmem:[#allocation5 + $0xf0] sm:$0xf]
      %v6232 = vld [vmem:[#allocation5 + $0xf8] sm:$0xf]
      %v6233 = vld [vmem:[#allocation5 + $0x100] sm:$0xf]
      %v6234 = vld [vmem:[#allocation5 + $0x108] sm:$0xf]
      %v6235 = vld [vmem:[#allocation5 + $0x110] sm:$0xf]
      %v6236 = vld [vmem:[#allocation5 + $0x118] sm:$0xf]
      %v6237 = vld [vmem:[#allocation5 + $0x120] sm:$0xf]
      %v6238 = vld [vmem:[#allocation5 + $0x128] sm:$0xf]
      %v6239 = vld [vmem:[#allocation5 + $0x130] sm:$0xf]
      %v6240 = vld [vmem:[#allocation5 + $0x138] sm:$0xf]
      %v6241 = vld [vmem:[#allocation5 + $0x140] sm:$0xf]
      %v6242 = vld [vmem:[#allocation5 + $0x148] sm:$0xf]
      %v6243 = vld [vmem:[#allocation5 + $0x150] sm:$0xf]
      %v6244 = vld [vmem:[#allocation5 + $0x158] sm:$0xf]
      %v6245 = vld [vmem:[%s4] sm:$0x7]
      %6247 = vset.pattern.permute.xlu0 0
      %6248 = vperm.xlu0 %6247, %v6245
      %v6249 = vpop.permute.xlu0 %6248
      %v6252 = vsel %vm2804, %v6200, 0
      %v6255 = vsel %vm2808, %v6223, 0
      %v6258 = vsel %vm2808, %v6224, 0
      %v6261 = vsel %vm2808, %v6225, 0
      %v6264 = vsel %vm2808, %v6226, 0
      %v6267 = vsel %vm2808, %v6227, 0
      %v6270 = vsel %vm2808, %v6228, 0
      %v6273 = vsel %vm2808, %v6229, 0
      %v6276 = vsel %vm2808, %v6230, 0
      %v6279 = vsel %vm2808, %v6231, 0
      %v6282 = vsel %vm2808, %v6232, 0
      %v6285 = vsel %vm2808, %v6233, 0
      %v6288 = vsel %vm2808, %v6234, 0
      %v6291 = vsel %vm2808, %v6235, 0
      %v6294 = vsel %vm2808, %v6236, 0
      %v6297 = vsel %vm2808, %v6237, 0
      %v6300 = vsel %vm2808, %v6238, 0
      %v6303 = vsel %vm2808, %v6239, 0
      %v6306 = vsel %vm2808, %v6240, 0
      %v6309 = vsel %vm2808, %v6241, 0
      %v6312 = vsel %vm2808, %v6242, 0
      %v6315 = vsel %vm2808, %v6243, 0
      %v6318 = vsel %vm2808, %v6244, 0
      %6320 = vmatprep.subr.mxu0 %v6202
      %6321 = vmatpush1.msra.mxu0 %v6201
      %6322 = vmatprep.subr.mxu0 %v6258
      %6323 = vmatpush1.msra.mxu0 %v6255
      %6324 = vmatprep.subr.mxu0 0.0
      %6325 = vmatpush1.msra.mxu0 0.0
      %6326 = vmatprep.subr.mxu0 0.0
      %6327 = vmatpush1.msra.mxu0 0.0
      %6328 = vmatprep.subr.mxu0 0.0
      %6329 = vmatpush1.msra.mxu0 0.0
      %6330 = vmatprep.subr.mxu0 0.0
      %6331 = vmatpush1.msra.mxu0 0.0
      %6332 = vmatprep.subr.mxu0 0.0
      %6333 = vmatpush1.msra.mxu0 0.0
      %6334 = vmatprep.subr.mxu0 0.0
      %6335 = vmatpush1.msra.mxu0 0.0
      %6336 = vmatprep.subr.mxu0 0.0
      %6337 = vmatpush1.msra.mxu0 0.0
      %6338 = vmatprep.subr.mxu0 0.0
      %6339 = vmatpush1.msra.mxu0 0.0
      %6340 = vmatprep.subr.mxu0 0.0
      %6341 = vmatpush1.msra.mxu0 0.0
      %6342 = vmatprep.subr.mxu0 0.0
      %6343 = vmatpush1.msra.mxu0 0.0
      %6344 = vmatprep.subr.mxu0 0.0
      %6345 = vmatpush1.msra.mxu0 0.0
      %6346 = vmatprep.subr.mxu0 0.0
      %6347 = vmatpush1.msra.mxu0 0.0
      %6348 = vmatprep.subr.mxu0 0.0
      %6349 = vmatpush1.msra.mxu0 0.0
      %6350 = vmatprep.subr.mxu0 0.0
      %6351 = vmatpush1.msra.mxu0 0.0
      %6352 = vmatprep.subr.mxu0 0.0
      %6353 = vmatpush1.msra.mxu0 0.0
      %6354 = vmatprep.subr.mxu0 0.0
      %6355 = vmatpush1.msra.mxu0 0.0
      %6356 = vmatprep.subr.mxu0 0.0
      %6357 = vmatpush1.msra.mxu0 0.0
      %6358 = vmatprep.subr.mxu0 0.0
      %6359 = vmatpush1.msra.mxu0 0.0
      %6360 = vmatprep.subr.mxu0 0.0
      %6361 = vmatpush1.msra.mxu0 0.0
      %6362 = vmatprep.subr.mxu0 0.0
      %6363 = vmatpush1.msra.mxu0 0.0
      %6364 = vmatprep.subr.mxu0 0.0
      %6365 = vmatpush1.msra.mxu0 0.0
      %6366 = vmatprep.subr.mxu0 0.0
      %6367 = vmatpush1.msra.mxu0 0.0
      %6368 = vmatprep.subr.mxu0 0.0
      %6369 = vmatpush1.msra.mxu0 0.0
      %6370 = vmatprep.subr.mxu0 0.0
      %6371 = vmatpush1.msra.mxu0 0.0
      %6372 = vmatprep.subr.mxu0 0.0
      %6373 = vmatpush1.msra.mxu0 0.0
      %6374 = vmatprep.subr.mxu0 0.0
      %6375 = vmatpush1.msra.mxu0 0.0
      %6376 = vmatprep.subr.mxu0 0.0
      %6377 = vmatpush1.msra.mxu0 0.0
      %6378 = vmatprep.subr.mxu0 0.0
      %6379 = vmatpush1.msra.mxu0 0.0
      %6380 = vmatprep.subr.mxu0 0.0
      %6381 = vmatpush1.msra.mxu0 0.0
      %6382 = vmatprep.subr.mxu0 0.0
      %6383 = vmatpush1.msra.mxu0 0.0
      %6384 = vmatprep.mubr.f32.mxu0 0.0
      %6385 = vmatmul.mubr.f32.gmra.mrb[0].mxu0 %v6252
      %v6386 = vpop.f32.mrb[0].mxu0
      %v6387 = vadd.f32 %v6249, %v6386
      %v6388 = vpop.f32.mrb[0].mxu0
      %v6389 = vadd.f32 %v6249, %v6388
      %6390 = vdwg.mxu0
      %6391 = vmatprep.subr.mxu0 %v6204
      %6392 = vmatpush1.msra.mxu0 %v6203
      %6393 = vmatprep.subr.mxu0 %v6264
      %6394 = vmatpush1.msra.mxu0 %v6261
      %6395 = vmatprep.subr.mxu0 0.0
      %6396 = vmatpush1.msra.mxu0 0.0
      %6397 = vmatprep.subr.mxu0 0.0
      %6398 = vmatpush1.msra.mxu0 0.0
      %6399 = vmatprep.subr.mxu0 0.0
      %6400 = vmatpush1.msra.mxu0 0.0
      %6401 = vmatprep.subr.mxu0 0.0
      %6402 = vmatpush1.msra.mxu0 0.0
      %6403 = vmatprep.subr.mxu0 0.0
      %6404 = vmatpush1.msra.mxu0 0.0
      %6405 = vmatprep.subr.mxu0 0.0
      %6406 = vmatpush1.msra.mxu0 0.0
      %6407 = vmatprep.subr.mxu0 0.0
      %6408 = vmatpush1.msra.mxu0 0.0
      %6409 = vmatprep.subr.mxu0 0.0
      %6410 = vmatpush1.msra.mxu0 0.0
      %6411 = vmatprep.subr.mxu0 0.0
      %6412 = vmatpush1.msra.mxu0 0.0
      %6413 = vmatprep.subr.mxu0 0.0
      %6414 = vmatpush1.msra.mxu0 0.0
      %6415 = vmatprep.subr.mxu0 0.0
      %6416 = vmatpush1.msra.mxu0 0.0
      %6417 = vmatprep.subr.mxu0 0.0
      %6418 = vmatpush1.msra.mxu0 0.0
      %6419 = vmatprep.subr.mxu0 0.0
      %6420 = vmatpush1.msra.mxu0 0.0
      %6421 = vmatprep.subr.mxu0 0.0
      %6422 = vmatpush1.msra.mxu0 0.0
      %6423 = vmatprep.subr.mxu0 0.0
      %6424 = vmatpush1.msra.mxu0 0.0
      %6425 = vmatprep.subr.mxu0 0.0
      %6426 = vmatpush1.msra.mxu0 0.0
      %6427 = vmatprep.subr.mxu0 0.0
      %6428 = vmatpush1.msra.mxu0 0.0
      %6429 = vmatprep.subr.mxu0 0.0
      %6430 = vmatpush1.msra.mxu0 0.0
      %6431 = vmatprep.subr.mxu0 0.0
      %6432 = vmatpush1.msra.mxu0 0.0
      %6433 = vmatprep.subr.mxu0 0.0
      %6434 = vmatpush1.msra.mxu0 0.0
      %6435 = vmatprep.subr.mxu0 0.0
      %6436 = vmatpush1.msra.mxu0 0.0
      %6437 = vmatprep.subr.mxu0 0.0
      %6438 = vmatpush1.msra.mxu0 0.0
      %6439 = vmatprep.subr.mxu0 0.0
      %6440 = vmatpush1.msra.mxu0 0.0
      %6441 = vmatprep.subr.mxu0 0.0
      %6442 = vmatpush1.msra.mxu0 0.0
      %6443 = vmatprep.subr.mxu0 0.0
      %6444 = vmatpush1.msra.mxu0 0.0
      %6445 = vmatprep.subr.mxu0 0.0
      %6446 = vmatpush1.msra.mxu0 0.0
      %6447 = vmatprep.subr.mxu0 0.0
      %6448 = vmatpush1.msra.mxu0 0.0
      %6449 = vmatprep.subr.mxu0 0.0
      %6450 = vmatpush1.msra.mxu0 0.0
      %6451 = vmatprep.subr.mxu0 0.0
      %6452 = vmatpush1.msra.mxu0 0.0
      %6453 = vmatprep.subr.mxu0 0.0
      %6454 = vmatpush1.msra.mxu0 0.0
      %6455 = vmatprep.mubr.f32.mxu0 0.0
      %6456 = vmatmul.mubr.f32.gmra.mrb[0].mxu0 %v6252
      %v6457 = vpop.f32.mrb[0].mxu0
      %v6458 = vadd.f32 %v6249, %v6457
      %v6459 = vpop.f32.mrb[0].mxu0
      %v6460 = vadd.f32 %v6249, %v6459
      %6461 = vdwg.mxu0
      %6462 = vmatprep.subr.mxu0 %v6206
      %6463 = vmatpush1.msra.mxu0 %v6205
      %6464 = vmatprep.subr.mxu0 %v6270
      %6465 = vmatpush1.msra.mxu0 %v6267
      %6466 = vmatprep.subr.mxu0 0.0
      %6467 = vmatpush1.msra.mxu0 0.0
      %6468 = vmatprep.subr.mxu0 0.0
      %6469 = vmatpush1.msra.mxu0 0.0
      %6470 = vmatprep.subr.mxu0 0.0
      %6471 = vmatpush1.msra.mxu0 0.0
      %6472 = vmatprep.subr.mxu0 0.0
      %6473 = vmatpush1.msra.mxu0 0.0
      %6474 = vmatprep.subr.mxu0 0.0
      %6475 = vmatpush1.msra.mxu0 0.0
      %6476 = vmatprep.subr.mxu0 0.0
      %6477 = vmatpush1.msra.mxu0 0.0
      %6478 = vmatprep.subr.mxu0 0.0
      %6479 = vmatpush1.msra.mxu0 0.0
      %6480 = vmatprep.subr.mxu0 0.0
      %6481 = vmatpush1.msra.mxu0 0.0
      %6482 = vmatprep.subr.mxu0 0.0
      %6483 = vmatpush1.msra.mxu0 0.0
      %6484 = vmatprep.subr.mxu0 0.0
      %6485 = vmatpush1.msra.mxu0 0.0
      %6486 = vmatprep.subr.mxu0 0.0
      %6487 = vmatpush1.msra.mxu0 0.0
      %6488 = vmatprep.subr.mxu0 0.0
      %6489 = vmatpush1.msra.mxu0 0.0
      %6490 = vmatprep.subr.mxu0 0.0
      %6491 = vmatpush1.msra.mxu0 0.0
      %6492 = vmatprep.subr.mxu0 0.0
      %6493 = vmatpush1.msra.mxu0 0.0
      %6494 = vmatprep.subr.mxu0 0.0
      %6495 = vmatpush1.msra.mxu0 0.0
      %6496 = vmatprep.subr.mxu0 0.0
      %6497 = vmatpush1.msra.mxu0 0.0
      %6498 = vmatprep.subr.mxu0 0.0
      %6499 = vmatpush1.msra.mxu0 0.0
      %6500 = vmatprep.subr.mxu0 0.0
      %6501 = vmatpush1.msra.mxu0 0.0
      %6502 = vmatprep.subr.mxu0 0.0
      %6503 = vmatpush1.msra.mxu0 0.0
      %6504 = vmatprep.subr.mxu0 0.0
      %6505 = vmatpush1.msra.mxu0 0.0
      %6506 = vmatprep.subr.mxu0 0.0
      %6507 = vmatpush1.msra.mxu0 0.0
      %6508 = vmatprep.subr.mxu0 0.0
      %6509 = vmatpush1.msra.mxu0 0.0
      %6510 = vmatprep.subr.mxu0 0.0
      %6511 = vmatpush1.msra.mxu0 0.0
      %6512 = vmatprep.subr.mxu0 0.0
      %6513 = vmatpush1.msra.mxu0 0.0
      %6514 = vmatprep.subr.mxu0 0.0
      %6515 = vmatpush1.msra.mxu0 0.0
      %6516 = vmatprep.subr.mxu0 0.0
      %6517 = vmatpush1.msra.mxu0 0.0
      %6518 = vmatprep.subr.mxu0 0.0
      %6519 = vmatpush1.msra.mxu0 0.0
      %6520 = vmatprep.subr.mxu0 0.0
      %6521 = vmatpush1.msra.mxu0 0.0
      %6522 = vmatprep.subr.mxu0 0.0
      %6523 = vmatpush1.msra.mxu0 0.0
      %6524 = vmatprep.subr.mxu0 0.0
      %6525 = vmatpush1.msra.mxu0 0.0
      %6526 = vmatprep.mubr.f32.mxu0 0.0
      %6527 = vmatmul.mubr.f32.gmra.mrb[0].mxu0 %v6252
      %v6528 = vpop.f32.mrb[0].mxu0
      %v6529 = vadd.f32 %v6249, %v6528
      %v6530 = vpop.f32.mrb[0].mxu0
      %v6531 = vadd.f32 %v6249, %v6530
      %6532 = vdwg.mxu0
      %6533 = vmatprep.subr.mxu0 %v6208
      %6534 = vmatpush1.msra.mxu0 %v6207
      %6535 = vmatprep.subr.mxu0 %v6276
      %6536 = vmatpush1.msra.mxu0 %v6273
      %6537 = vmatprep.subr.mxu0 0.0
      %6538 = vmatpush1.msra.mxu0 0.0
      %6539 = vmatprep.subr.mxu0 0.0
      %6540 = vmatpush1.msra.mxu0 0.0
      %6541 = vmatprep.subr.mxu0 0.0
      %6542 = vmatpush1.msra.mxu0 0.0
      %6543 = vmatprep.subr.mxu0 0.0
      %6544 = vmatpush1.msra.mxu0 0.0
      %6545 = vmatprep.subr.mxu0 0.0
      %6546 = vmatpush1.msra.mxu0 0.0
      %6547 = vmatprep.subr.mxu0 0.0
      %6548 = vmatpush1.msra.mxu0 0.0
      %6549 = vmatprep.subr.mxu0 0.0
      %6550 = vmatpush1.msra.mxu0 0.0
      %6551 = vmatprep.subr.mxu0 0.0
      %6552 = vmatpush1.msra.mxu0 0.0
      %6553 = vmatprep.subr.mxu0 0.0
      %6554 = vmatpush1.msra.mxu0 0.0
      %6555 = vmatprep.subr.mxu0 0.0
      %6556 = vmatpush1.msra.mxu0 0.0
      %6557 = vmatprep.subr.mxu0 0.0
      %6558 = vmatpush1.msra.mxu0 0.0
      %6559 = vmatprep.subr.mxu0 0.0
      %6560 = vmatpush1.msra.mxu0 0.0
      %6561 = vmatprep.subr.mxu0 0.0
      %6562 = vmatpush1.msra.mxu0 0.0
      %6563 = vmatprep.subr.mxu0 0.0
      %6564 = vmatpush1.msra.mxu0 0.0
      %6565 = vmatprep.subr.mxu0 0.0
      %6566 = vmatpush1.msra.mxu0 0.0
      %6567 = vmatprep.subr.mxu0 0.0
      %6568 = vmatpush1.msra.mxu0 0.0
      %6569 = vmatprep.subr.mxu0 0.0
      %6570 = vmatpush1.msra.mxu0 0.0
      %6571 = vmatprep.subr.mxu0 0.0
      %6572 = vmatpush1.msra.mxu0 0.0
      %6573 = vmatprep.subr.mxu0 0.0
      %6574 = vmatpush1.msra.mxu0 0.0
      %6575 = vmatprep.subr.mxu0 0.0
      %6576 = vmatpush1.msra.mxu0 0.0
      %6577 = vmatprep.subr.mxu0 0.0
      %6578 = vmatpush1.msra.mxu0 0.0
      %6579 = vmatprep.subr.mxu0 0.0
      %6580 = vmatpush1.msra.mxu0 0.0
      %6581 = vmatprep.subr.mxu0 0.0
      %6582 = vmatpush1.msra.mxu0 0.0
      %6583 = vmatprep.subr.mxu0 0.0
      %6584 = vmatpush1.msra.mxu0 0.0
      %6585 = vmatprep.subr.mxu0 0.0
      %6586 = vmatpush1.msra.mxu0 0.0
      %6587 = vmatprep.subr.mxu0 0.0
      %6588 = vmatpush1.msra.mxu0 0.0
      %6589 = vmatprep.subr.mxu0 0.0
      %6590 = vmatpush1.msra.mxu0 0.0
      %6591 = vmatprep.subr.mxu0 0.0
      %6592 = vmatpush1.msra.mxu0 0.0
      %6593 = vmatprep.subr.mxu0 0.0
      %6594 = vmatpush1.msra.mxu0 0.0
      %6595 = vmatprep.subr.mxu0 0.0
      %6596 = vmatpush1.msra.mxu0 0.0
      %6597 = vmatprep.mubr.f32.mxu0 0.0
      %6598 = vmatmul.mubr.f32.gmra.mrb[0].mxu0 %v6252
      %v6599 = vpop.f32.mrb[0].mxu0
      %v6600 = vadd.f32 %v6249, %v6599
      %v6601 = vpop.f32.mrb[0].mxu0
      %v6602 = vadd.f32 %v6249, %v6601
      %6603 = vdwg.mxu0
      %6604 = vmatprep.subr.mxu0 %v6210
      %6605 = vmatpush1.msra.mxu0 %v6209
      %6606 = vmatprep.subr.mxu0 %v6282
      %6607 = vmatpush1.msra.mxu0 %v6279
      %6608 = vmatprep.subr.mxu0 0.0
      %6609 = vmatpush1.msra.mxu0 0.0
      %6610 = vmatprep.subr.mxu0 0.0
      %6611 = vmatpush1.msra.mxu0 0.0
      %6612 = vmatprep.subr.mxu0 0.0
      %6613 = vmatpush1.msra.mxu0 0.0
      %6614 = vmatprep.subr.mxu0 0.0
      %6615 = vmatpush1.msra.mxu0 0.0
      %6616 = vmatprep.subr.mxu0 0.0
      %6617 = vmatpush1.msra.mxu0 0.0
      %6618 = vmatprep.subr.mxu0 0.0
      %6619 = vmatpush1.msra.mxu0 0.0
      %6620 = vmatprep.subr.mxu0 0.0
      %6621 = vmatpush1.msra.mxu0 0.0
      %6622 = vmatprep.subr.mxu0 0.0
      %6623 = vmatpush1.msra.mxu0 0.0
      %6624 = vmatprep.subr.mxu0 0.0
      %6625 = vmatpush1.msra.mxu0 0.0
      %6626 = vmatprep.subr.mxu0 0.0
      %6627 = vmatpush1.msra.mxu0 0.0
      %6628 = vmatprep.subr.mxu0 0.0
      %6629 = vmatpush1.msra.mxu0 0.0
      %6630 = vmatprep.subr.mxu0 0.0
      %6631 = vmatpush1.msra.mxu0 0.0
      %6632 = vmatprep.subr.mxu0 0.0
      %6633 = vmatpush1.msra.mxu0 0.0
      %6634 = vmatprep.subr.mxu0 0.0
      %6635 = vmatpush1.msra.mxu0 0.0
      %6636 = vmatprep.subr.mxu0 0.0
      %6637 = vmatpush1.msra.mxu0 0.0
      %6638 = vmatprep.subr.mxu0 0.0
      %6639 = vmatpush1.msra.mxu0 0.0
      %6640 = vmatprep.subr.mxu0 0.0
      %6641 = vmatpush1.msra.mxu0 0.0
      %6642 = vmatprep.subr.mxu0 0.0
      %6643 = vmatpush1.msra.mxu0 0.0
      %6644 = vmatprep.subr.mxu0 0.0
      %6645 = vmatpush1.msra.mxu0 0.0
      %6646 = vmatprep.subr.mxu0 0.0
      %6647 = vmatpush1.msra.mxu0 0.0
      %6648 = vmatprep.subr.mxu0 0.0
      %6649 = vmatpush1.msra.mxu0 0.0
      %6650 = vmatprep.subr.mxu0 0.0
      %6651 = vmatpush1.msra.mxu0 0.0
      %6652 = vmatprep.subr.mxu0 0.0
      %6653 = vmatpush1.msra.mxu0 0.0
      %6654 = vmatprep.subr.mxu0 0.0
      %6655 = vmatpush1.msra.mxu0 0.0
      %6656 = vmatprep.subr.mxu0 0.0
      %6657 = vmatpush1.msra.mxu0 0.0
      %6658 = vmatprep.subr.mxu0 0.0
      %6659 = vmatpush1.msra.mxu0 0.0
      %6660 = vmatprep.subr.mxu0 0.0
      %6661 = vmatpush1.msra.mxu0 0.0
      %6662 = vmatprep.subr.mxu0 0.0
      %6663 = vmatpush1.msra.mxu0 0.0
      %6664 = vmatprep.subr.mxu0 0.0
      %6665 = vmatpush1.msra.mxu0 0.0
      %6666 = vmatprep.subr.mxu0 0.0
      %6667 = vmatpush1.msra.mxu0 0.0
      %6668 = vmatprep.mubr.f32.mxu0 0.0
      %6669 = vmatmul.mubr.f32.gmra.mrb[0].mxu0 %v6252
      %v6670 = vpop.f32.mrb[0].mxu0
      %v6671 = vadd.f32 %v6249, %v6670
      %v6672 = vpop.f32.mrb[0].mxu0
      %v6673 = vadd.f32 %v6249, %v6672
      %6674 = vdwg.mxu0
      %6675 = vmatprep.subr.mxu0 %v6212
      %6676 = vmatpush1.msra.mxu0 %v6211
      %6677 = vmatprep.subr.mxu0 %v6288
      %6678 = vmatpush1.msra.mxu0 %v6285
      %6679 = vmatprep.subr.mxu0 0.0
      %6680 = vmatpush1.msra.mxu0 0.0
      %6681 = vmatprep.subr.mxu0 0.0
      %6682 = vmatpush1.msra.mxu0 0.0
      %6683 = vmatprep.subr.mxu0 0.0
      %6684 = vmatpush1.msra.mxu0 0.0
      %6685 = vmatprep.subr.mxu0 0.0
      %6686 = vmatpush1.msra.mxu0 0.0
      %6687 = vmatprep.subr.mxu0 0.0
      %6688 = vmatpush1.msra.mxu0 0.0
      %6689 = vmatprep.subr.mxu0 0.0
      %6690 = vmatpush1.msra.mxu0 0.0
      %6691 = vmatprep.subr.mxu0 0.0
      %6692 = vmatpush1.msra.mxu0 0.0
      %6693 = vmatprep.subr.mxu0 0.0
      %6694 = vmatpush1.msra.mxu0 0.0
      %6695 = vmatprep.subr.mxu0 0.0
      %6696 = vmatpush1.msra.mxu0 0.0
      %6697 = vmatprep.subr.mxu0 0.0
      %6698 = vmatpush1.msra.mxu0 0.0
      %6699 = vmatprep.subr.mxu0 0.0
      %6700 = vmatpush1.msra.mxu0 0.0
      %6701 = vmatprep.subr.mxu0 0.0
      %6702 = vmatpush1.msra.mxu0 0.0
      %6703 = vmatprep.subr.mxu0 0.0
      %6704 = vmatpush1.msra.mxu0 0.0
      %6705 = vmatprep.subr.mxu0 0.0
      %6706 = vmatpush1.msra.mxu0 0.0
      %6707 = vmatprep.subr.mxu0 0.0
      %6708 = vmatpush1.msra.mxu0 0.0
      %6709 = vmatprep.subr.mxu0 0.0
      %6710 = vmatpush1.msra.mxu0 0.0
      %6711 = vmatprep.subr.mxu0 0.0
      %6712 = vmatpush1.msra.mxu0 0.0
      %6713 = vmatprep.subr.mxu0 0.0
      %6714 = vmatpush1.msra.mxu0 0.0
      %6715 = vmatprep.subr.mxu0 0.0
      %6716 = vmatpush1.msra.mxu0 0.0
      %6717 = vmatprep.subr.mxu0 0.0
      %6718 = vmatpush1.msra.mxu0 0.0
      %6719 = vmatprep.subr.mxu0 0.0
      %6720 = vmatpush1.msra.mxu0 0.0
      %6721 = vmatprep.subr.mxu0 0.0
      %6722 = vmatpush1.msra.mxu0 0.0
      %6723 = vmatprep.subr.mxu0 0.0
      %6724 = vmatpush1.msra.mxu0 0.0
      %6725 = vmatprep.subr.mxu0 0.0
      %6726 = vmatpush1.msra.mxu0 0.0
      %6727 = vmatprep.subr.mxu0 0.0
      %6728 = vmatpush1.msra.mxu0 0.0
      %6729 = vmatprep.subr.mxu0 0.0
      %6730 = vmatpush1.msra.mxu0 0.0
      %6731 = vmatprep.subr.mxu0 0.0
      %6732 = vmatpush1.msra.mxu0 0.0
      %6733 = vmatprep.subr.mxu0 0.0
      %6734 = vmatpush1.msra.mxu0 0.0
      %6735 = vmatprep.subr.mxu0 0.0
      %6736 = vmatpush1.msra.mxu0 0.0
      %6737 = vmatprep.subr.mxu0 0.0
      %6738 = vmatpush1.msra.mxu0 0.0
      %6739 = vmatprep.mubr.f32.mxu0 0.0
      %6740 = vmatmul.mubr.f32.gmra.mrb[0].mxu0 %v6252
      %v6741 = vpop.f32.mrb[0].mxu0
      %v6742 = vadd.f32 %v6249, %v6741
      %v6743 = vpop.f32.mrb[0].mxu0
      %v6744 = vadd.f32 %v6249, %v6743
      %6745 = vdwg.mxu0
      %6746 = vmatprep.subr.mxu0 %v6214
      %6747 = vmatpush1.msra.mxu0 %v6213
      %6748 = vmatprep.subr.mxu0 %v6294
      %6749 = vmatpush1.msra.mxu0 %v6291
      %6750 = vmatprep.subr.mxu0 0.0
      %6751 = vmatpush1.msra.mxu0 0.0
      %6752 = vmatprep.subr.mxu0 0.0
      %6753 = vmatpush1.msra.mxu0 0.0
      %6754 = vmatprep.subr.mxu0 0.0
      %6755 = vmatpush1.msra.mxu0 0.0
      %6756 = vmatprep.subr.mxu0 0.0
      %6757 = vmatpush1.msra.mxu0 0.0
      %6758 = vmatprep.subr.mxu0 0.0
      %6759 = vmatpush1.msra.mxu0 0.0
      %6760 = vmatprep.subr.mxu0 0.0
      %6761 = vmatpush1.msra.mxu0 0.0
      %6762 = vmatprep.subr.mxu0 0.0
      %6763 = vmatpush1.msra.mxu0 0.0
      %6764 = vmatprep.subr.mxu0 0.0
      %6765 = vmatpush1.msra.mxu0 0.0
      %6766 = vmatprep.subr.mxu0 0.0
      %6767 = vmatpush1.msra.mxu0 0.0
      %6768 = vmatprep.subr.mxu0 0.0
      %6769 = vmatpush1.msra.mxu0 0.0
      %6770 = vmatprep.subr.mxu0 0.0
      %6771 = vmatpush1.msra.mxu0 0.0
      %6772 = vmatprep.subr.mxu0 0.0
      %6773 = vmatpush1.msra.mxu0 0.0
      %6774 = vmatprep.subr.mxu0 0.0
      %6775 = vmatpush1.msra.mxu0 0.0
      %6776 = vmatprep.subr.mxu0 0.0
      %6777 = vmatpush1.msra.mxu0 0.0
      %6778 = vmatprep.subr.mxu0 0.0
      %6779 = vmatpush1.msra.mxu0 0.0
      %6780 = vmatprep.subr.mxu0 0.0
      %6781 = vmatpush1.msra.mxu0 0.0
      %6782 = vmatprep.subr.mxu0 0.0
      %6783 = vmatpush1.msra.mxu0 0.0
      %6784 = vmatprep.subr.mxu0 0.0
      %6785 = vmatpush1.msra.mxu0 0.0
      %6786 = vmatprep.subr.mxu0 0.0
      %6787 = vmatpush1.msra.mxu0 0.0
      %6788 = vmatprep.subr.mxu0 0.0
      %6789 = vmatpush1.msra.mxu0 0.0
      %6790 = vmatprep.subr.mxu0 0.0
      %6791 = vmatpush1.msra.mxu0 0.0
      %6792 = vmatprep.subr.mxu0 0.0
      %6793 = vmatpush1.msra.mxu0 0.0
      %6794 = vmatprep.subr.mxu0 0.0
      %6795 = vmatpush1.msra.mxu0 0.0
      %6796 = vmatprep.subr.mxu0 0.0
      %6797 = vmatpush1.msra.mxu0 0.0
      %6798 = vmatprep.subr.mxu0 0.0
      %6799 = vmatpush1.msra.mxu0 0.0
      %6800 = vmatprep.subr.mxu0 0.0
      %6801 = vmatpush1.msra.mxu0 0.0
      %6802 = vmatprep.subr.mxu0 0.0
      %6803 = vmatpush1.msra.mxu0 0.0
      %6804 = vmatprep.subr.mxu0 0.0
      %6805 = vmatpush1.msra.mxu0 0.0
      %6806 = vmatprep.subr.mxu0 0.0
      %6807 = vmatpush1.msra.mxu0 0.0
      %6808 = vmatprep.subr.mxu0 0.0
      %6809 = vmatpush1.msra.mxu0 0.0
      %6810 = vmatprep.mubr.f32.mxu0 0.0
      %6811 = vmatmul.mubr.f32.gmra.mrb[0].mxu0 %v6252
      %v6812 = vpop.f32.mrb[0].mxu0
      %v6813 = vadd.f32 %v6249, %v6812
      %v6814 = vpop.f32.mrb[0].mxu0
      %v6815 = vadd.f32 %v6249, %v6814
      %6816 = vdwg.mxu0
      %6817 = vmatprep.subr.mxu0 %v6216
      %6818 = vmatpush1.msra.mxu0 %v6215
      %6819 = vmatprep.subr.mxu0 %v6300
      %6820 = vmatpush1.msra.mxu0 %v6297
      %6821 = vmatprep.subr.mxu0 0.0
      %6822 = vmatpush1.msra.mxu0 0.0
      %6823 = vmatprep.subr.mxu0 0.0
      %6824 = vmatpush1.msra.mxu0 0.0
      %6825 = vmatprep.subr.mxu0 0.0
      %6826 = vmatpush1.msra.mxu0 0.0
      %6827 = vmatprep.subr.mxu0 0.0
      %6828 = vmatpush1.msra.mxu0 0.0
      %6829 = vmatprep.subr.mxu0 0.0
      %6830 = vmatpush1.msra.mxu0 0.0
      %6831 = vmatprep.subr.mxu0 0.0
      %6832 = vmatpush1.msra.mxu0 0.0
      %6833 = vmatprep.subr.mxu0 0.0
      %6834 = vmatpush1.msra.mxu0 0.0
      %6835 = vmatprep.subr.mxu0 0.0
      %6836 = vmatpush1.msra.mxu0 0.0
      %6837 = vmatprep.subr.mxu0 0.0
      %6838 = vmatpush1.msra.mxu0 0.0
      %6839 = vmatprep.subr.mxu0 0.0
      %6840 = vmatpush1.msra.mxu0 0.0
      %6841 = vmatprep.subr.mxu0 0.0
      %6842 = vmatpush1.msra.mxu0 0.0
      %6843 = vmatprep.subr.mxu0 0.0
      %6844 = vmatpush1.msra.mxu0 0.0
      %6845 = vmatprep.subr.mxu0 0.0
      %6846 = vmatpush1.msra.mxu0 0.0
      %6847 = vmatprep.subr.mxu0 0.0
      %6848 = vmatpush1.msra.mxu0 0.0
      %6849 = vmatprep.subr.mxu0 0.0
      %6850 = vmatpush1.msra.mxu0 0.0
      %6851 = vmatprep.subr.mxu0 0.0
      %6852 = vmatpush1.msra.mxu0 0.0
      %6853 = vmatprep.subr.mxu0 0.0
      %6854 = vmatpush1.msra.mxu0 0.0
      %6855 = vmatprep.subr.mxu0 0.0
      %6856 = vmatpush1.msra.mxu0 0.0
      %6857 = vmatprep.subr.mxu0 0.0
      %6858 = vmatpush1.msra.mxu0 0.0
      %6859 = vmatprep.subr.mxu0 0.0
      %6860 = vmatpush1.msra.mxu0 0.0
      %6861 = vmatprep.subr.mxu0 0.0
      %6862 = vmatpush1.msra.mxu0 0.0
      %6863 = vmatprep.subr.mxu0 0.0
      %6864 = vmatpush1.msra.mxu0 0.0
      %6865 = vmatprep.subr.mxu0 0.0
      %6866 = vmatpush1.msra.mxu0 0.0
      %6867 = vmatprep.subr.mxu0 0.0
      %6868 = vmatpush1.msra.mxu0 0.0
      %6869 = vmatprep.subr.mxu0 0.0
      %6870 = vmatpush1.msra.mxu0 0.0
      %6871 = vmatprep.subr.mxu0 0.0
      %6872 = vmatpush1.msra.mxu0 0.0
      %6873 = vmatprep.subr.mxu0 0.0
      %6874 = vmatpush1.msra.mxu0 0.0
      %6875 = vmatprep.subr.mxu0 0.0
      %6876 = vmatpush1.msra.mxu0 0.0
      %6877 = vmatprep.subr.mxu0 0.0
      %6878 = vmatpush1.msra.mxu0 0.0
      %6879 = vmatprep.subr.mxu0 0.0
      %6880 = vmatpush1.msra.mxu0 0.0
      %6881 = vmatprep.mubr.f32.mxu0 0.0
      %6882 = vmatmul.mubr.f32.gmra.mrb[0].mxu0 %v6252
      %v6883 = vpop.f32.mrb[0].mxu0
      %v6884 = vadd.f32 %v6249, %v6883
      %v6885 = vpop.f32.mrb[0].mxu0
      %v6886 = vadd.f32 %v6249, %v6885
      %6887 = vdwg.mxu0
      %6888 = vmatprep.subr.mxu0 %v6218
      %6889 = vmatpush1.msra.mxu0 %v6217
      %6890 = vmatprep.subr.mxu0 %v6306
      %6891 = vmatpush1.msra.mxu0 %v6303
      %6892 = vmatprep.subr.mxu0 0.0
      %6893 = vmatpush1.msra.mxu0 0.0
      %6894 = vmatprep.subr.mxu0 0.0
      %6895 = vmatpush1.msra.mxu0 0.0
      %6896 = vmatprep.subr.mxu0 0.0
      %6897 = vmatpush1.msra.mxu0 0.0
      %6898 = vmatprep.subr.mxu0 0.0
      %6899 = vmatpush1.msra.mxu0 0.0
      %6900 = vmatprep.subr.mxu0 0.0
      %6901 = vmatpush1.msra.mxu0 0.0
      %6902 = vmatprep.subr.mxu0 0.0
      %6903 = vmatpush1.msra.mxu0 0.0
      %6904 = vmatprep.subr.mxu0 0.0
      %6905 = vmatpush1.msra.mxu0 0.0
      %6906 = vmatprep.subr.mxu0 0.0
      %6907 = vmatpush1.msra.mxu0 0.0
      %6908 = vmatprep.subr.mxu0 0.0
      %6909 = vmatpush1.msra.mxu0 0.0
      %6910 = vmatprep.subr.mxu0 0.0
      %6911 = vmatpush1.msra.mxu0 0.0
      %6912 = vmatprep.subr.mxu0 0.0
      %6913 = vmatpush1.msra.mxu0 0.0
      %6914 = vmatprep.subr.mxu0 0.0
      %6915 = vmatpush1.msra.mxu0 0.0
      %6916 = vmatprep.subr.mxu0 0.0
      %6917 = vmatpush1.msra.mxu0 0.0
      %6918 = vmatprep.subr.mxu0 0.0
      %6919 = vmatpush1.msra.mxu0 0.0
      %6920 = vmatprep.subr.mxu0 0.0
      %6921 = vmatpush1.msra.mxu0 0.0
      %6922 = vmatprep.subr.mxu0 0.0
      %6923 = vmatpush1.msra.mxu0 0.0
      %6924 = vmatprep.subr.mxu0 0.0
      %6925 = vmatpush1.msra.mxu0 0.0
      %6926 = vmatprep.subr.mxu0 0.0
      %6927 = vmatpush1.msra.mxu0 0.0
      %6928 = vmatprep.subr.mxu0 0.0
      %6929 = vmatpush1.msra.mxu0 0.0
      %6930 = vmatprep.subr.mxu0 0.0
      %6931 = vmatpush1.msra.mxu0 0.0
      %6932 = vmatprep.subr.mxu0 0.0
      %6933 = vmatpush1.msra.mxu0 0.0
      %6934 = vmatprep.subr.mxu0 0.0
      %6935 = vmatpush1.msra.mxu0 0.0
      %6936 = vmatprep.subr.mxu0 0.0
      %6937 = vmatpush1.msra.mxu0 0.0
      %6938 = vmatprep.subr.mxu0 0.0
      %6939 = vmatpush1.msra.mxu0 0.0
      %6940 = vmatprep.subr.mxu0 0.0
      %6941 = vmatpush1.msra.mxu0 0.0
      %6942 = vmatprep.subr.mxu0 0.0
      %6943 = vmatpush1.msra.mxu0 0.0
      %6944 = vmatprep.subr.mxu0 0.0
      %6945 = vmatpush1.msra.mxu0 0.0
      %6946 = vmatprep.subr.mxu0 0.0
      %6947 = vmatpush1.msra.mxu0 0.0
      %6948 = vmatprep.subr.mxu0 0.0
      %6949 = vmatpush1.msra.mxu0 0.0
      %6950 = vmatprep.subr.mxu0 0.0
      %6951 = vmatpush1.msra.mxu0 0.0
      %6952 = vmatprep.mubr.f32.mxu0 0.0
      %6953 = vmatmul.mubr.f32.gmra.mrb[0].mxu0 %v6252
      %v6954 = vpop.f32.mrb[0].mxu0
      %v6955 = vadd.f32 %v6249, %v6954
      %v6956 = vpop.f32.mrb[0].mxu0
      %v6957 = vadd.f32 %v6249, %v6956
      %6958 = vdwg.mxu0
      %6959 = vmatprep.subr.mxu0 %v6220
      %6960 = vmatpush1.msra.mxu0 %v6219
      %6961 = vmatprep.subr.mxu0 %v6312
      %6962 = vmatpush1.msra.mxu0 %v6309
      %6963 = vmatprep.subr.mxu0 0.0
      %6964 = vmatpush1.msra.mxu0 0.0
      %6965 = vmatprep.subr.mxu0 0.0
      %6966 = vmatpush1.msra.mxu0 0.0
      %6967 = vmatprep.subr.mxu0 0.0
      %6968 = vmatpush1.msra.mxu0 0.0
      %6969 = vmatprep.subr.mxu0 0.0
      %6970 = vmatpush1.msra.mxu0 0.0
      %6971 = vmatprep.subr.mxu0 0.0
      %6972 = vmatpush1.msra.mxu0 0.0
      %6973 = vmatprep.subr.mxu0 0.0
      %6974 = vmatpush1.msra.mxu0 0.0
      %6975 = vmatprep.subr.mxu0 0.0
      %6976 = vmatpush1.msra.mxu0 0.0
      %6977 = vmatprep.subr.mxu0 0.0
      %6978 = vmatpush1.msra.mxu0 0.0
      %6979 = vmatprep.subr.mxu0 0.0
      %6980 = vmatpush1.msra.mxu0 0.0
      %6981 = vmatprep.subr.mxu0 0.0
      %6982 = vmatpush1.msra.mxu0 0.0
      %6983 = vmatprep.subr.mxu0 0.0
      %6984 = vmatpush1.msra.mxu0 0.0
      %6985 = vmatprep.subr.mxu0 0.0
      %6986 = vmatpush1.msra.mxu0 0.0
      %6987 = vmatprep.subr.mxu0 0.0
      %6988 = vmatpush1.msra.mxu0 0.0
      %6989 = vmatprep.subr.mxu0 0.0
      %6990 = vmatpush1.msra.mxu0 0.0
      %6991 = vmatprep.subr.mxu0 0.0
      %6992 = vmatpush1.msra.mxu0 0.0
      %6993 = vmatprep.subr.mxu0 0.0
      %6994 = vmatpush1.msra.mxu0 0.0
      %6995 = vmatprep.subr.mxu0 0.0
      %6996 = vmatpush1.msra.mxu0 0.0
      %6997 = vmatprep.subr.mxu0 0.0
      %6998 = vmatpush1.msra.mxu0 0.0
      %6999 = vmatprep.subr.mxu0 0.0
      %7000 = vmatpush1.msra.mxu0 0.0
      %7001 = vmatprep.subr.mxu0 0.0
      %7002 = vmatpush1.msra.mxu0 0.0
      %7003 = vmatprep.subr.mxu0 0.0
      %7004 = vmatpush1.msra.mxu0 0.0
      %7005 = vmatprep.subr.mxu0 0.0
      %7006 = vmatpush1.msra.mxu0 0.0
      %7007 = vmatprep.subr.mxu0 0.0
      %7008 = vmatpush1.msra.mxu0 0.0
      %7009 = vmatprep.subr.mxu0 0.0
      %7010 = vmatpush1.msra.mxu0 0.0
      %7011 = vmatprep.subr.mxu0 0.0
      %7012 = vmatpush1.msra.mxu0 0.0
      %7013 = vmatprep.subr.mxu0 0.0
      %7014 = vmatpush1.msra.mxu0 0.0
      %7015 = vmatprep.subr.mxu0 0.0
      %7016 = vmatpush1.msra.mxu0 0.0
      %7017 = vmatprep.subr.mxu0 0.0
      %7018 = vmatpush1.msra.mxu0 0.0
      %7019 = vmatprep.subr.mxu0 0.0
      %7020 = vmatpush1.msra.mxu0 0.0
      %7021 = vmatprep.subr.mxu0 0.0
      %7022 = vmatpush1.msra.mxu0 0.0
      %7023 = vmatprep.mubr.f32.mxu0 0.0
      %7024 = vmatmul.mubr.f32.gmra.mrb[0].mxu0 %v6252
      %v7025 = vpop.f32.mrb[0].mxu0
      %v7026 = vadd.f32 %v6249, %v7025
      %v7027 = vpop.f32.mrb[0].mxu0
      %v7028 = vadd.f32 %v6249, %v7027
      %7029 = vdwg.mxu0
      %7030 = vmatprep.subr.mxu0 %v6222
      %7031 = vmatpush1.msra.mxu0 %v6221
      %7032 = vmatprep.subr.mxu0 %v6318
      %7033 = vmatpush1.msra.mxu0 %v6315
      %7034 = vmatprep.subr.mxu0 0.0
      %7035 = vmatpush1.msra.mxu0 0.0
      %7036 = vmatprep.subr.mxu0 0.0
      %7037 = vmatpush1.msra.mxu0 0.0
      %7038 = vmatprep.subr.mxu0 0.0
      %7039 = vmatpush1.msra.mxu0 0.0
      %7040 = vmatprep.subr.mxu0 0.0
      %7041 = vmatpush1.msra.mxu0 0.0
      %7042 = vmatprep.subr.mxu0 0.0
      %7043 = vmatpush1.msra.mxu0 0.0
      %7044 = vmatprep.subr.mxu0 0.0
      %7045 = vmatpush1.msra.mxu0 0.0
      %7046 = vmatprep.subr.mxu0 0.0
      %7047 = vmatpush1.msra.mxu0 0.0
      %7048 = vmatprep.subr.mxu0 0.0
      %7049 = vmatpush1.msra.mxu0 0.0
      %7050 = vmatprep.subr.mxu0 0.0
      %7051 = vmatpush1.msra.mxu0 0.0
      %7052 = vmatprep.subr.mxu0 0.0
      %7053 = vmatpush1.msra.mxu0 0.0
      %7054 = vmatprep.subr.mxu0 0.0
      %7055 = vmatpush1.msra.mxu0 0.0
      %7056 = vmatprep.subr.mxu0 0.0
      %7057 = vmatpush1.msra.mxu0 0.0
      %7058 = vmatprep.subr.mxu0 0.0
      %7059 = vmatpush1.msra.mxu0 0.0
      %7060 = vmatprep.subr.mxu0 0.0
      %7061 = vmatpush1.msra.mxu0 0.0
      %7062 = vmatprep.subr.mxu0 0.0
      %7063 = vmatpush1.msra.mxu0 0.0
      %7064 = vmatprep.subr.mxu0 0.0
      %7065 = vmatpush1.msra.mxu0 0.0
      %7066 = vmatprep.subr.mxu0 0.0
      %7067 = vmatpush1.msra.mxu0 0.0
      %7068 = vmatprep.subr.mxu0 0.0
      %7069 = vmatpush1.msra.mxu0 0.0
      %7070 = vmatprep.subr.mxu0 0.0
      %7071 = vmatpush1.msra.mxu0 0.0
      %7072 = vmatprep.subr.mxu0 0.0
      %7073 = vmatpush1.msra.mxu0 0.0
      %7074 = vmatprep.subr.mxu0 0.0
      %7075 = vmatpush1.msra.mxu0 0.0
      %7076 = vmatprep.subr.mxu0 0.0
      %7077 = vmatpush1.msra.mxu0 0.0
      %7078 = vmatprep.subr.mxu0 0.0
      %7079 = vmatpush1.msra.mxu0 0.0
      %7080 = vmatprep.subr.mxu0 0.0
      %7081 = vmatpush1.msra.mxu0 0.0
      %7082 = vmatprep.subr.mxu0 0.0
      %7083 = vmatpush1.msra.mxu0 0.0
      %7084 = vmatprep.subr.mxu0 0.0
      %7085 = vmatpush1.msra.mxu0 0.0
      %7086 = vmatprep.subr.mxu0 0.0
      %7087 = vmatpush1.msra.mxu0 0.0
      %7088 = vmatprep.subr.mxu0 0.0
      %7089 = vmatpush1.msra.mxu0 0.0
      %7090 = vmatprep.subr.mxu0 0.0
      %7091 = vmatpush1.msra.mxu0 0.0
      %7092 = vmatprep.subr.mxu0 0.0
      %7093 = vmatpush1.msra.mxu0 0.0
      %7094 = vmatprep.mubr.f32.mxu0 0.0
      %7095 = vmatmul.mubr.f32.gmra.mrb[0].mxu0 %v6252
      %v7096 = vpop.f32.mrb[0].mxu0
      %v7097 = vadd.f32 %v6249, %v7096
      %v7098 = vpop.f32.mrb[0].mxu0
      %v7099 = vadd.f32 %v6249, %v7098
      %7100 = vdwg.mxu0
      %v7101 = vld [vmem:[%s220] sm:$0x77]
      %v7102 = vld [vmem:[%s220 + $0x8] sm:$0x77]
      %v7103 = vld [vmem:[%s220 + $0x10] sm:$0x77]
      %v7104 = vld [vmem:[%s220 + $0x18] sm:$0x77]
      %v7105 = vld [vmem:[%s220 + $0x20] sm:$0x77]
      %v7106 = vld [vmem:[%s220 + $0x28] sm:$0x77]
      %v7107 = vld [vmem:[%s220 + $0x30] sm:$0x77]
      %v7108 = vld [vmem:[%s220 + $0x38] sm:$0x77]
      %v7109 = vld [vmem:[%s220 + $0x40] sm:$0x77]
      %v7110 = vld [vmem:[%s220 + $0x48] sm:$0x77]
      %v7111 = vld [vmem:[%s220 + $0x50] sm:$0x77]
      %v7123 = vcombine.high %v7101, %v7101
      %v7124 = vcombine.high %v7102, %v7102
      %v7125 = vcombine.high %v7103, %v7103
      %v7126 = vcombine.high %v7104, %v7104
      %v7127 = vcombine.high %v7105, %v7105
      %v7128 = vcombine.high %v7106, %v7106
      %v7129 = vcombine.high %v7107, %v7107
      %v7130 = vcombine.high %v7108, %v7108
      %v7131 = vcombine.high %v7109, %v7109
      %v7132 = vcombine.high %v7110, %v7110
      %v7133 = vcombine.high %v7111, %v7111
      %v7145 = vmul.f32 %v6387, %v7101
      %v7146 = vmul.f32 %v6389, %v7123
      %v7147 = vmul.f32 %v6458, %v7102
      %v7148 = vmul.f32 %v6460, %v7124
      %v7149 = vmul.f32 %v6529, %v7103
      %v7150 = vmul.f32 %v6531, %v7125
      %v7151 = vmul.f32 %v6600, %v7104
      %v7152 = vmul.f32 %v6602, %v7126
      %v7153 = vmul.f32 %v6671, %v7105
      %v7154 = vmul.f32 %v6673, %v7127
      %v7155 = vmul.f32 %v6742, %v7106
      %v7156 = vmul.f32 %v6744, %v7128
      %v7157 = vmul.f32 %v6813, %v7107
      %v7158 = vmul.f32 %v6815, %v7129
      %v7159 = vmul.f32 %v6884, %v7108
      %v7160 = vmul.f32 %v6886, %v7130
      %v7161 = vmul.f32 %v6955, %v7109
      %v7162 = vmul.f32 %v6957, %v7131
      %v7163 = vmul.f32 %v7026, %v7110
      %v7164 = vmul.f32 %v7028, %v7132
      %v7165 = vmul.f32 %v7097, %v7111
      %v7166 = vmul.f32 %v7099, %v7133
      %v7167 = vmax.f32 %v7145, 0.0
      %v7168 = vmax.f32 %v7146, 0.0
      %v7169 = vmax.f32 %v7147, 0.0
      %v7170 = vmax.f32 %v7148, 0.0
      %v7171 = vmax.f32 %v7149, 0.0
      %v7172 = vmax.f32 %v7150, 0.0
      %v7173 = vmax.f32 %v7151, 0.0
      %v7174 = vmax.f32 %v7152, 0.0
      %v7175 = vmax.f32 %v7153, 0.0
      %v7176 = vmax.f32 %v7154, 0.0
      %v7177 = vmax.f32 %v7155, 0.0
      %v7178 = vmax.f32 %v7156, 0.0
      %v7179 = vmax.f32 %v7157, 0.0
      %v7180 = vmax.f32 %v7158, 0.0
      %v7181 = vmax.f32 %v7159, 0.0
      %v7182 = vmax.f32 %v7160, 0.0
      %v7183 = vmax.f32 %v7161, 0.0
      %v7184 = vmax.f32 %v7162, 0.0
      %v7185 = vmax.f32 %v7163, 0.0
      %v7186 = vmax.f32 %v7164, 0.0
      %v7187 = vmax.f32 %v7165, 0.0
      %v7188 = vmax.f32 %v7166, 0.0
      %v7211 = vcombine.low %v7167, %v7168
      %v7212 = vcombine.low %v7169, %v7170
      %v7213 = vcombine.low %v7171, %v7172
      %v7214 = vcombine.low %v7173, %v7174
      %v7215 = vcombine.low %v7175, %v7176
      %v7216 = vcombine.low %v7177, %v7178
      %v7217 = vcombine.low %v7179, %v7180
      %v7218 = vcombine.low %v7181, %v7182
      %v7219 = vcombine.low %v7183, %v7184
      %v7220 = vcombine.low %v7185, %v7186
      %v7221 = vcombine.low %v7187, %v7188
      %7233 = vst [vmem:[%s226] sm:$0x77] %v7211
      %7234 = vst [vmem:[%s226 + $0x8] sm:$0x77] %v7212
      %7235 = vst [vmem:[%s226 + $0x10] sm:$0x77] %v7213
      %7236 = vst [vmem:[%s226 + $0x18] sm:$0x77] %v7214
      %7237 = vst [vmem:[%s226 + $0x20] sm:$0x77] %v7215
      %7238 = vst [vmem:[%s226 + $0x28] sm:$0x77] %v7216
      %7239 = vst [vmem:[%s226 + $0x30] sm:$0x77] %v7217
      %7240 = vst [vmem:[%s226 + $0x38] sm:$0x77] %v7218
      %7241 = vst [vmem:[%s226 + $0x40] sm:$0x77] %v7219
      %7242 = vst [vmem:[%s226 + $0x48] sm:$0x77] %v7220
      %7243 = vst [vmem:[%s226 + $0x50] sm:$0x77] %v7221
      %s7244 = smul.u32 22, %s16
      %p7245 = scmp.lt.s32.totalorder %s7244, 43
      %s7246 = scalar_select %p7245, %s7244, 43
      %s7247 = smul.addr %s7246, 4
      %s7248 = scalar_lea.vmem %s5, %s7247
      // Predicated region
      $region41: #{model_forward.1} parent=39 // pred_check
        %p7249 = pneg %p144
      $region42: #{model_forward.1} parent=39 // pred_check_branch
        %7251 = sbr.rel (%p7249) target = $region44
      $region43: #{model_forward.1} parent=39 // pred_region
        %s7252 = smul.u32 22, %s16
      $region44: #{model_forward.1} parent=39 // pred_fallthru
        _
    $region40: #{model_forward.1} parent=5 // pred_fallthru
      _
    %p7253 = scmp.le.s32.totalorder 2, %s11
    // Predicated region
    $region45: #{model_forward.1} parent=5 // pred_check
      %p7254 = pneg %p7253
    $region46: #{model_forward.1} parent=5 // pred_check_branch
      %7256 = sbr.rel (%p7254) target = $region48
    $region47: #{model_forward.1} parent=5 // pred_region
      %s7257 = ssub.s32 %s11, 2
      // Predicated region
      $region49: #{model_forward.1} parent=47 // pred_check
        %p7258 = pneg %p150
      $region50: #{model_forward.1} parent=47 // pred_check_branch
        %7260 = sbr.rel (%p7258) target = $region52
      $region51: #{model_forward.1} parent=47 // pred_region
        %s7261 = smul.u32 22, %s17
        %p7262 = scmp.lt.s32.totalorder %s7261, 43
        %s7263 = scalar_select %p7262, %s7261, 43
        %s7264 = smul.addr %s7263, 4
        %s7265 = scalar_lea.vmem %s5, %s7264
      $region52: #{model_forward.1} parent=47 // pred_fallthru
        _
    $region48: #{model_forward.1} parent=5 // pred_fallthru
      _
  $region6: #{model_forward.1} parent=0 // loop_footer
    %s15 = sadd.s32 1, %s11
  $region7: #{model_forward.1} parent=0 // loop_footer_branch
    %10 = sbr.rel target = $region3
  $region8: #{model_forward.1} parent=0 // loop_exit
    _

</llo_original>
